<compile_context>
chip_gen: v5e
topology: v5e:2x2
jax: 0.10.0
libtpu: 0.0.40
codegen_flags: <defaults>
</compile_context>

<pallas_src>
import functools

import jax
import jax.numpy as jnp
from jax.experimental import pallas as pl
from jax.experimental.pallas import tpu as pltpu

_EPS = 1e-5


def _detect_vmem_limit():
    """Scoped-VMEM budget: generous on 128-MiB parts, conservative on v7x."""
    try:
        cap = pltpu.get_tpu_info().vmem_capacity_bytes
    except Exception:
        cap = 64 * 1024 * 1024
    return int(min(max(cap - 16 * 1024 * 1024, 32 * 1024 * 1024),
                   100 * 1024 * 1024))


_VMEM_LIMIT = _detect_vmem_limit()


# ----------------------------------------------------------------------------
# small helpers
# ----------------------------------------------------------------------------
def _round_up(x, m):
    return (x + m - 1) // m * m


def _m_tiling(m, cap=1024):
    """Pick an M tile (multiple of 8, <= cap) and the padded M."""
    tile = cap if m >= cap else _round_up(m, 8)
    return tile, _round_up(m, tile)


def _pad_rows(a, m_pad):
    m = a.shape[0]
    if m == m_pad:
        return a
    return jnp.pad(a, ((0, m_pad - m),) + ((0, 0),) * (a.ndim - 1))


# ----------------------------------------------------------------------------
# Pass-1 kernels: conv GEMM (+ per-tile BN statistics)
# ----------------------------------------------------------------------------
def _gemm_bn_stats_kernel(col_ref, w_ref, y_ref, stats_ref):
    """im2col GEMM tile; bias skipped (cancelled by BN mean subtraction).

    Stats are per-tile partials (rows 0/1 of an (8, C) block) so the grid can
    be fully parallel; the wrapper sums the tiny partials.
    """
    y = jnp.dot(col_ref[...], w_ref[...], preferred_element_type=jnp.float32)
    y_ref[...] = y.astype(y_ref.dtype)
    # Zero-padded M rows contribute exactly 0 to both sums.
    stats_ref[0:1, :] = jnp.sum(y, axis=0, keepdims=True)
    stats_ref[1:2, :] = jnp.sum(y * y, axis=0, keepdims=True)


def _gemm_bias_act_kernel(act, col_ref, w_ref, b_ref, o_ref):
    """im2col GEMM tile + bias + activation (no BN)."""
    y = jnp.dot(col_ref[...], w_ref[...], preferred_element_type=jnp.float32)
    y = y + b_ref[...]
    if act == "relu":
        y = jnp.maximum(y, 0.0)
    elif act == "tanh":
        y = jnp.tanh(y)
    o_ref[...] = y.astype(o_ref.dtype)


def _make_conv_s1_bn_kernel(tm, wq, wo):
    """Stride-1 3x3 conv on a row-flattened padded image (BN stage).

    The BlockSpec-pipelined halo slab x_ref has shape (slab, Cin); every tap is
    a unit-stride row shift of it (kh*wq is sublane-aligned since wq % 8 == 0).
    """

    def kernel(x_ref, w_ref, y_ref, stats_ref):
        cout = y_ref.shape[-1]
        acc = jnp.zeros((tm, cout), jnp.float32)
        for t in range(9):                       # 9 taps = 9 accumulated dots
            sh = (t // 3) * wq + (t % 3)
            acc = acc + jnp.dot(x_ref[sh:sh + tm, :], w_ref[t],
                                preferred_element_type=jnp.float32)
        y_ref[...] = acc.astype(y_ref.dtype)

        # Mask the (wq - wo) junk columns of each flattened row so they do not
        # contaminate the batch statistics; stats are per-tile partials.
        colpos = jax.lax.broadcasted_iota(jnp.int32, (tm, 1), 0) % wq
        accm = acc * (colpos < wo).astype(jnp.float32)
        stats_ref[0:1, :] = jnp.sum(accm, axis=0, keepdims=True)
        stats_ref[1:2, :] = jnp.sum(accm * accm, axis=0, keepdims=True)

    return kernel


def _make_conv_s1_bias_kernel(tm, wq, act):
    """Stride-1 3x3 conv + bias + activation (no BN)."""

    def kernel(x_ref, w_ref, b_ref, y_ref):
        cout = y_ref.shape[-1]
        acc = jnp.zeros((tm, cout), jnp.float32)
        for t in range(9):
            sh = (t // 3) * wq + (t % 3)
            acc = acc + jnp.dot(x_ref[sh:sh + tm, :], w_ref[t],
                                preferred_element_type=jnp.float32)
        acc = acc + b_ref[...]
        if act == "relu":
            acc = jnp.maximum(acc, 0.0)
        elif act == "tanh":
            acc = jnp.tanh(acc)
        y_ref[...] = acc.astype(y_ref.dtype)

    return kernel


# ----------------------------------------------------------------------------
# Pass-2 kernel: BN apply + ReLU + optional residual (element-wise, parallel)
# ----------------------------------------------------------------------------
def _bn_apply_kernel(inv_count, eps, has_res, *refs):
    if has_res:
        y_ref, stats_ref, res_ref, o_ref = refs
    else:
        y_ref, stats_ref, o_ref = refs
    y = y_ref[...].astype(jnp.float32)
    mean = stats_ref[0:1, :] * inv_count
    var = stats_ref[1:2, :] * inv_count - mean * mean
    var = jnp.maximum(var, 0.0)                  # guard E[x^2]-E[x]^2 cancel
    y = (y - mean) * jax.lax.rsqrt(var + eps)
    y = jnp.maximum(y, 0.0)                      # every BN stage uses ReLU
    if has_res:
        y = y + res_ref[...].astype(jnp.float32) # residual added after ReLU
    o_ref[...] = y.astype(o_ref.dtype)


def _reduce_stats(stats_tiles, cout):
    """Sum per-tile [sum; sumsq] partials -> global (8, cout) stats (rows 0/1)."""
    part = stats_tiles.reshape(-1, 8, cout)[:, :2, :].sum(axis=0)
    return jnp.pad(part, ((0, 6), (0, 0)))


def _bn_act_res(y_mc, stats, *, count, residual=None, out_dtype=jnp.bfloat16):
    """Apply batch-norm (global stats), ReLU and optional residual over (M, C)."""
    m, c = y_mc.shape
    tile_m, m_pad = _m_tiling(m)
    inputs = [_pad_rows(y_mc, m_pad), stats]
    in_specs = [pl.BlockSpec((tile_m, c), lambda i: (i, 0)),
                pl.BlockSpec((8, c), lambda i: (0, 0))]
    if residual is not None:
        inputs.append(_pad_rows(residual, m_pad))
        in_specs.append(pl.BlockSpec((tile_m, c), lambda i: (i, 0)))

    out = pl.pallas_call(
        functools.partial(_bn_apply_kernel, 1.0 / count, _EPS,
                          residual is not None),
        grid=(m_pad // tile_m,),
        in_specs=in_specs,
        out_specs=pl.BlockSpec((tile_m, c), lambda i: (i, 0)),
        out_shape=jax.ShapeDtypeStruct((m_pad, c), out_dtype),
        compiler_params=pltpu.CompilerParams(
            dimension_semantics=("parallel",),
            vmem_limit_bytes=_VMEM_LIMIT),
    )(*inputs)
    return out[:m]


# ----------------------------------------------------------------------------
# Stride-2 convs (conv1..conv3): wrapper im2col -> tiled bf16 GEMM
# ----------------------------------------------------------------------------
def _im2col_s2(x_nhwc, ho, wo):
    n, _, _, cin = x_nhwc.shape
    xp = jnp.pad(x_nhwc, ((0, 0), (1, 1), (1, 1), (0, 0)))
    cols = []
    for kh in range(3):
        for kw in range(3):
            patch = jax.lax.slice(
                xp, (0, kh, kw, 0),
                (n, kh + 2 * (ho - 1) + 1, kw + 2 * (wo - 1) + 1, cin),
                (1, 2, 2, 1))
            cols.append(patch)
    return jnp.stack(cols, axis=3).reshape(n * ho * wo, 9 * cin)


def conv_s2(x_nhwc, w, b, *, use_bn, act, out_dtype=jnp.bfloat16):
    """3x3 conv, stride=2, pad=1 (+ optional two-pass BN, activation)."""
    n, h, wdt, cin = x_nhwc.shape
    cout = w.shape[0]
    ho, wo = (h - 1) // 2 + 1, (wdt - 1) // 2 + 1
    m = n * ho * wo
    k = 9 * cin
    tile_m, m_pad = _m_tiling(m)
    nb = m_pad // tile_m

    col = _pad_rows(_im2col_s2(x_nhwc, ho, wo), m_pad).astype(jnp.bfloat16)
    w_mat = jnp.transpose(w, (2, 3, 1, 0)).reshape(k, cout).astype(jnp.bfloat16)

    grid = (nb,)
    col_spec = pl.BlockSpec((tile_m, k), lambda i: (i, 0))
    w_spec = pl.BlockSpec((k, cout), lambda i: (0, 0))
    y_spec = pl.BlockSpec((tile_m, cout), lambda i: (i, 0))

    if use_bn:
        y, stats_t = pl.pallas_call(
            _gemm_bn_stats_kernel,
            grid=grid,
            in_specs=[col_spec, w_spec],
            out_specs=(y_spec, pl.BlockSpec((8, cout), lambda i: (i, 0))),
            out_shape=(jax.ShapeDtypeStruct((m_pad, cout), jnp.bfloat16),
                       jax.ShapeDtypeStruct((nb * 8, cout), jnp.float32)),
            compiler_params=pltpu.CompilerParams(
                dimension_semantics=("parallel",),
                vmem_limit_bytes=_VMEM_LIMIT),
        )(col, w_mat)
        stats = _reduce_stats(stats_t, cout)
        out = _bn_act_res(y[:m], stats, count=m)
        return out.reshape(n, ho, wo, cout)

    b_row = b.reshape(1, cout).astype(jnp.float32)
    y = pl.pallas_call(
        functools.partial(_gemm_bias_act_kernel, act),
        grid=grid,
        in_specs=[col_spec, w_spec, pl.BlockSpec((1, cout), lambda i: (0, 0))],
        out_specs=y_spec,
        out_shape=jax.ShapeDtypeStruct((m_pad, cout), out_dtype),
        compiler_params=pltpu.CompilerParams(
            dimension_semantics=("parallel",),
            vmem_limit_bytes=_VMEM_LIMIT),
    )(col, w_mat, b_row)
    return y[:m].reshape(n, ho, wo, cout)


# ----------------------------------------------------------------------------
# Stride-1 convs (conv4..conv8): im2col-free flat-shift conv
# ----------------------------------------------------------------------------
def conv_s1(x_nhwc, w, b, *, use_bn, act, residual=None, upsample=1,
            pad_cout_to=None, out_dtype=jnp.float32, row_tile_cap=2048):
    """3x3 conv, stride=1, pad=1 (+ optional 2x nearest pre-upsample,
    two-pass BN, activation, residual)."""
    if upsample == 2:
        # Nearest-2x upsample; XLA fuses it with the pad/cast/slab producer
        # below so only the padded flat bf16 buffer is materialized in HBM.
        x_nhwc = jnp.repeat(jnp.repeat(x_nhwc, 2, axis=1), 2, axis=2)

    n, h, wdt, cin = x_nhwc.shape
    cout = w.shape[0]
    if pad_cout_to is not None and pad_cout_to > cout:
        # Lane-dense output stores (e.g. conv8: 3 -> 128 channels).
        w = jnp.pad(w, ((0, pad_cout_to - cout), (0, 0), (0, 0), (0, 0)))
        b = jnp.pad(b, (0, pad_cout_to - cout))
        cout_p = pad_cout_to
    else:
        cout_p = cout

    wo = wdt
    wq = _round_up(wdt + 3, 8)                 # sublane-aligned flat row width

    # Output rows handled per grid step (second-minor tile dim must be a
    # multiple of 8 or the full extent).
    if h % 8 != 0:
        tr = h
    else:
        tr = max(8, min(h, (row_tile_cap // wq) // 8 * 8))
        while h % tr:
            tr -= 8
    tm = tr * wq                               # flat output positions per tile
    slab = _round_up(tm + 2 * wq + 2, 8)       # flat input halo per tile
    hq = h + max(3, -(-(slab - tm) // wq))     # padded rows (halo stays in-bounds)
    n_tiles = h // tr

    xpad = jnp.pad(x_nhwc, ((0, 0), (1, hq - h - 1), (1, wq - wdt - 1), (0, 0)))
    xflat = xpad.astype(jnp.bfloat16).reshape(n, hq * wq, cin)
    # One (overlapping) halo slab per row tile; BlockSpec auto-pipelining
    # double-buffers these HBM->VMEM, hiding the transfer behind the MXU dots.
    x_slabs = jnp.stack(
        [xflat[:, r * tm:r * tm + slab, :] for r in range(n_tiles)], axis=1)
    w_t = jnp.transpose(w, (2, 3, 1, 0)).reshape(9, cin, cout_p).astype(jnp.bfloat16)

    grid = (n, n_tiles)
    x_spec = pl.BlockSpec((None, None, slab, cin), lambda i, r: (i, r, 0, 0))
    w_spec = pl.BlockSpec((9, cin, cout_p), lambda i, r: (0, 0, 0))
    y_spec = pl.BlockSpec((None, tm, cout_p), lambda i, r: (i, r, 0))

    if use_bn:
        stats_spec = pl.BlockSpec((8, cout_p), lambda i, r: (i * n_tiles + r, 0))
        y, stats_t = pl.pallas_call(
            _make_conv_s1_bn_kernel(tm, wq, wo),
            grid=grid,
            in_specs=[x_spec, w_spec],
            out_specs=(y_spec, stats_spec),
            out_shape=(jax.ShapeDtypeStruct((n, n_tiles * tm, cout_p), jnp.bfloat16),
                       jax.ShapeDtypeStruct((n * n_tiles * 8, cout_p), jnp.float32)),
            compiler_params=pltpu.CompilerParams(
                dimension_semantics=("parallel", "parallel"),
                vmem_limit_bytes=_VMEM_LIMIT),
        )(x_slabs, w_t)
        stats = _reduce_stats(stats_t, cout_p)
        # Drop the per-row junk columns and flatten to (M, Cout).
        y = y.reshape(n, h, wq, cout_p)[:, :, :wo, :].reshape(n * h * wo, cout_p)
        m = n * h * wo
        res_flat = None if residual is None else residual.reshape(m, cout_p)
        out = _bn_act_res(y, stats, count=m, residual=res_flat)
        return out.reshape(n, h, wo, cout_p)

    b_row = b.reshape(1, cout_p).astype(jnp.float32)
    y = pl.pallas_call(
        _make_conv_s1_bias_kernel(tm, wq, act),
        grid=grid,
        in_specs=[x_spec, w_spec, pl.BlockSpec((1, cout_p), lambda i, r: (0, 0))],
        out_specs=y_spec,
        out_shape=jax.ShapeDtypeStruct((n, n_tiles * tm, cout_p), out_dtype),
        compiler_params=pltpu.CompilerParams(
            dimension_semantics=("parallel", "parallel"),
            vmem_limit_bytes=_VMEM_LIMIT),
    )(x_slabs, w_t, b_row)
    return y.reshape(n, h, wq, cout_p)[:, :, :wo, :cout]


# ----------------------------------------------------------------------------
# model glue
# ----------------------------------------------------------------------------
def init_params(key):
    specs = {
        "conv1": (32, 1), "conv2": (64, 32), "conv3": (128, 64),
        "conv4": (128, 128), "conv5": (128, 128), "conv6": (64, 128),
        "conv7": (32, 64), "conv8": (3, 32),
    }
    params = {}
    for i, (name, (co, ci)) in enumerate(specs.items()):
        kw_, kb_ = jax.random.split(jax.random.fold_in(key, i))
        bound = 1.0 / ((ci * 9) ** 0.5)         # PyTorch default conv init range
        w = jax.random.uniform(kw_, (co, ci, 3, 3), jnp.float32, -bound, bound)
        b = jax.random.uniform(kb_, (co,), jnp.float32, -bound, bound)
        params[name] = (w, b)
    # BatchNorm gamma=1/beta=0 are identity at init; training-mode forward uses
    # batch statistics, so running stats are omitted.
    return params


def unet_forward(x_nchw, params):
    x = jnp.transpose(x_nchw, (0, 2, 3, 1)).astype(jnp.float32)   # NCHW -> NHWC

    x1 = conv_s2(x, *params["conv1"], use_bn=False, act="relu")          # 8x8x32
    x2 = conv_s2(x1, *params["conv2"], use_bn=True, act="relu")          # 4x4x64
    x3 = conv_s2(x2, *params["conv3"], use_bn=True, act="relu")          # 2x2x128
    x4 = conv_s1(x3, *params["conv4"], use_bn=True, act="relu")          # 2x2x128
    x5 = conv_s1(x4, *params["conv5"], use_bn=True, act="relu",
                 residual=x3)                                            # 2x2x128
    x6 = conv_s1(x5, *params["conv6"], use_bn=True, act="relu",
                 residual=x2, upsample=2)                                # 4x4x64
    x7 = conv_s1(x6, *params["conv7"], use_bn=True, act="relu",
                 residual=x1, upsample=2)                                # 8x8x32
    x8 = conv_s1(x7, *params["conv8"], use_bn=False, act="tanh",
                 upsample=2, pad_cout_to=128, out_dtype=jnp.float32)     # 16x16x3
    return jnp.transpose(x8, (0, 3, 1, 2)).astype(jnp.float32)    # NHWC -> NCHW


if __name__ == "__main__":
    key = jax.random.PRNGKey(0)
    k_x, k_p = jax.random.split(key)

    # nn.Conv2d(1, 32, ...) expects 1 input channel: input is (2, 1, 16, 16).
    x = jax.random.normal(k_x, (2, 1, 16, 16), dtype=jnp.float32)
    params = init_params(k_p)

    out = jax.jit(unet_forward)(x, params)
    out = jax.block_until_ready(out)

    assert out.shape == (2, 3, 16, 16), out.shape
    assert bool(jnp.all(jnp.isfinite(out)))
    print("KERNEL_OK")
</pallas_src>

<mosaic_0001>
module attributes {stable_mosaic.version = 11 : i64} {
  func.func @_gemm_bias_act_kernel(%arg0: i32, %arg1: memref<128x9xbf16, #tpu.memory_space<vmem>>, %arg2: memref<9x32xbf16, #tpu.memory_space<vmem>>, %arg3: memref<1x32xf32, #tpu.memory_space<vmem>>, %arg4: memref<128x32xbf16, #tpu.memory_space<vmem>>) attributes {dimension_semantics = [#tpu.dimension_semantics<parallel>], iteration_bounds = array<i64: 1>, scalar_prefetch = 0 : i64, scratch_operands = 0 : i64, tpu.core_type = #tpu.core_type<tc>, window_params = [{transform_indices = @transform_0, window_bounds = array<i64: 128, 9>}, {pipeline_mode = #tpu.pipeline_mode<synchronous>, transform_indices = @transform_1, window_bounds = array<i64: 9, 32>}, {pipeline_mode = #tpu.pipeline_mode<synchronous>, transform_indices = @transform_2, window_bounds = array<i64: 1, 32>}, {transform_indices = @transform_3, window_bounds = array<i64: 128, 32>}]} {
    %c0 = arith.constant 0 : index
    %c0_0 = arith.constant 0 : index
    %0 = vector.load %arg1[%c0, %c0_0] : memref<128x9xbf16, #tpu.memory_space<vmem>>, vector<128x9xbf16>
    %c0_1 = arith.constant 0 : index
    %c0_2 = arith.constant 0 : index
    %1 = vector.load %arg2[%c0_1, %c0_2] : memref<9x32xbf16, #tpu.memory_space<vmem>>, vector<9x32xbf16>
    %cst = arith.constant dense<0.000000e+00> : vector<128x32xf32>
    %2 = tpu.matmul %0, %1, %cst {dimension_numbers = #tpu.dot_dimension_numbers<[1], [0], [0], [1], [0, 0, 1, 1], [], []>} : vector<128x9xbf16>, vector<9x32xbf16>, vector<128x32xf32> -> vector<128x32xf32>
    %c0_3 = arith.constant 0 : index
    %c0_4 = arith.constant 0 : index
    %3 = vector.load %arg3[%c0_3, %c0_4] : memref<1x32xf32, #tpu.memory_space<vmem>>, vector<1x32xf32>
    %4 = vector.broadcast %3 : vector<1x32xf32> to vector<128x32xf32>
    %5 = arith.addf %2, %4 : vector<128x32xf32>
    %cst_5 = arith.constant 0.000000e+00 : f32
    %6 = vector.broadcast %cst_5 : f32 to vector<128x32xf32>
    %7 = arith.maximumf %5, %6 : vector<128x32xf32>
    %8 = arith.truncf %7 : vector<128x32xf32> to vector<128x32xbf16>
    %c0_6 = arith.constant 0 : index
    %c0_7 = arith.constant 0 : index
    %9 = vector.load %arg4[%c0_6, %c0_7] : memref<128x32xbf16, #tpu.memory_space<vmem>>, vector<128x32xbf16>
    tpu.vector_store %arg4[%c0_6, %c0_7], %8 {strides = array<i32>} : memref<128x32xbf16, #tpu.memory_space<vmem>>, vector<128x32xbf16>,
    return
  }
  func.func @transform_0(%arg0: i32) -> (i32, i32) {
    %c0_i32 = arith.constant 0 : i32
    %c0_i32_0 = arith.constant 0 : i32
    return %arg0, %c0_i32 : i32, i32
  }
  func.func @transform_1(%arg0: i32) -> (i32, i32) {
    %c0_i32 = arith.constant 0 : i32
    %c0_i32_0 = arith.constant 0 : i32
    %c0_i32_1 = arith.constant 0 : i32
    return %c0_i32, %c0_i32_0 : i32, i32
  }
  func.func @transform_2(%arg0: i32) -> (i32, i32) {
    %c0_i32 = arith.constant 0 : i32
    %c0_i32_0 = arith.constant 0 : i32
    %c0_i32_1 = arith.constant 0 : i32
    return %c0_i32, %c0_i32_0 : i32, i32
  }
  func.func @transform_3(%arg0: i32) -> (i32, i32) {
    %c0_i32 = arith.constant 0 : i32
    %c0_i32_0 = arith.constant 0 : i32
    return %arg0, %c0_i32 : i32, i32
  }
}

module attributes {stable_mosaic.version = 11 : i64} {
  func.func @_gemm_bn_stats_kernel(%arg0: i32, %arg1: memref<32x288xbf16, #tpu.memory_space<vmem>>, %arg2: memref<288x64xbf16, #tpu.memory_space<vmem>>, %arg3: memref<32x64xbf16, #tpu.memory_space<vmem>>, %arg4: memref<8x64xf32, #tpu.memory_space<vmem>>) attributes {dimension_semantics = [#tpu.dimension_semantics<parallel>], iteration_bounds = array<i64: 1>, scalar_prefetch = 0 : i64, scratch_operands = 0 : i64, tpu.core_type = #tpu.core_type<tc>, window_params = [{transform_indices = @transform_0, window_bounds = array<i64: 32, 288>}, {pipeline_mode = #tpu.pipeline_mode<synchronous>, transform_indices = @transform_1, window_bounds = array<i64: 288, 64>}, {transform_indices = @transform_2, window_bounds = array<i64: 32, 64>}, {transform_indices = @transform_3, window_bounds = array<i64: 8, 64>}]} {
    %c0 = arith.constant 0 : index
    %c0_0 = arith.constant 0 : index
    %0 = vector.load %arg1[%c0, %c0_0] : memref<32x288xbf16, #tpu.memory_space<vmem>>, vector<32x288xbf16>
    %c0_1 = arith.constant 0 : index
    %c0_2 = arith.constant 0 : index
    %1 = vector.load %arg2[%c0_1, %c0_2] : memref<288x64xbf16, #tpu.memory_space<vmem>>, vector<288x64xbf16>
    %cst = arith.constant dense<0.000000e+00> : vector<32x64xf32>
    %2 = tpu.matmul %0, %1, %cst {dimension_numbers = #tpu.dot_dimension_numbers<[1], [0], [0], [1], [0, 0, 1, 1], [], []>} : vector<32x288xbf16>, vector<288x64xbf16>, vector<32x64xf32> -> vector<32x64xf32>
    %3 = arith.truncf %2 : vector<32x64xf32> to vector<32x64xbf16>
    %c0_3 = arith.constant 0 : index
    %c0_4 = arith.constant 0 : index
    %4 = vector.load %arg3[%c0_3, %c0_4] : memref<32x64xbf16, #tpu.memory_space<vmem>>, vector<32x64xbf16>
    tpu.vector_store %arg3[%c0_3, %c0_4], %3 {strides = array<i32>} : memref<32x64xbf16, #tpu.memory_space<vmem>>, vector<32x64xbf16>,
    %cst_5 = arith.constant dense<0.000000e+00> : vector<64xf32>
    %5 = vector.multi_reduction <add>, %2, %cst_5 [0] : vector<32x64xf32> to vector<64xf32>
    %6 = vector.shape_cast %5 : vector<64xf32> to vector<1x64xf32>
    %c0_6 = arith.constant 0 : index
    %c0_7 = arith.constant 0 : index
    %7 = vector.load %arg4[%c0_6, %c0_7] : memref<8x64xf32, #tpu.memory_space<vmem>>, vector<1x64xf32>
    tpu.vector_store %arg4[%c0_6, %c0_7], %6 {strides = array<i32>} : memref<8x64xf32, #tpu.memory_space<vmem>>, vector<1x64xf32>,
    %8 = arith.mulf %2, %2 : vector<32x64xf32>
    %cst_8 = arith.constant dense<0.000000e+00> : vector<64xf32>
    %9 = vector.multi_reduction <add>, %8, %cst_8 [0] : vector<32x64xf32> to vector<64xf32>
    %10 = vector.shape_cast %9 : vector<64xf32> to vector<1x64xf32>
    %c1 = arith.constant 1 : index
    %c0_9 = arith.constant 0 : index
    %11 = vector.load %arg4[%c1, %c0_9] : memref<8x64xf32, #tpu.memory_space<vmem>>, vector<1x64xf32>
    tpu.vector_store %arg4[%c1, %c0_9], %10 {strides = array<i32>} : memref<8x64xf32, #tpu.memory_space<vmem>>, vector<1x64xf32>,
    return
  }
  func.func @transform_0(%arg0: i32) -> (i32, i32) {
    %c0_i32 = arith.constant 0 : i32
    %c0_i32_0 = arith.constant 0 : i32
    return %arg0, %c0_i32 : i32, i32
  }
  func.func @transform_1(%arg0: i32) -> (i32, i32) {
    %c0_i32 = arith.constant 0 : i32
    %c0_i32_0 = arith.constant 0 : i32
    %c0_i32_1 = arith.constant 0 : i32
    return %c0_i32, %c0_i32_0 : i32, i32
  }
  func.func @transform_2(%arg0: i32) -> (i32, i32) {
    %c0_i32 = arith.constant 0 : i32
    %c0_i32_0 = arith.constant 0 : i32
    return %arg0, %c0_i32 : i32, i32
  }
  func.func @transform_3(%arg0: i32) -> (i32, i32) {
    %c0_i32 = arith.constant 0 : i32
    %c0_i32_0 = arith.constant 0 : i32
    return %arg0, %c0_i32 : i32, i32
  }
}

module attributes {stable_mosaic.version = 11 : i64} {
  func.func @_bn_apply_kernel(%arg0: i32, %arg1: memref<32x64xbf16, #tpu.memory_space<vmem>>, %arg2: memref<8x64xf32, #tpu.memory_space<vmem>>, %arg3: memref<32x64xbf16, #tpu.memory_space<vmem>>) attributes {dimension_semantics = [#tpu.dimension_semantics<parallel>], iteration_bounds = array<i64: 1>, scalar_prefetch = 0 : i64, scratch_operands = 0 : i64, tpu.core_type = #tpu.core_type<tc>, window_params = [{transform_indices = @transform_0, window_bounds = array<i64: 32, 64>}, {pipeline_mode = #tpu.pipeline_mode<synchronous>, transform_indices = @transform_1, window_bounds = array<i64: 8, 64>}, {transform_indices = @transform_2, window_bounds = array<i64: 32, 64>}]} {
    %c0 = arith.constant 0 : index
    %c0_0 = arith.constant 0 : index
    %0 = vector.load %arg1[%c0, %c0_0] : memref<32x64xbf16, #tpu.memory_space<vmem>>, vector<32x64xbf16>
    %1 = arith.extf %0 : vector<32x64xbf16> to vector<32x64xf32>
    %c0_1 = arith.constant 0 : index
    %c0_2 = arith.constant 0 : index
    %2 = vector.load %arg2[%c0_1, %c0_2] : memref<8x64xf32, #tpu.memory_space<vmem>>, vector<1x64xf32>
    %cst = arith.constant 3.125000e-02 : f32
    %3 = vector.broadcast %cst : f32 to vector<1x64xf32>
    %4 = arith.mulf %2, %3 : vector<1x64xf32>
    %c1 = arith.constant 1 : index
    %c0_3 = arith.constant 0 : index
    %5 = vector.load %arg2[%c1, %c0_3] : memref<8x64xf32, #tpu.memory_space<vmem>>, vector<1x64xf32>
    %cst_4 = arith.constant 3.125000e-02 : f32
    %6 = vector.broadcast %cst_4 : f32 to vector<1x64xf32>
    %7 = arith.mulf %5, %6 : vector<1x64xf32>
    %8 = arith.mulf %4, %4 : vector<1x64xf32>
    %9 = arith.subf %7, %8 : vector<1x64xf32>
    %cst_5 = arith.constant 0.000000e+00 : f32
    %10 = vector.broadcast %cst_5 : f32 to vector<1x64xf32>
    %11 = arith.maximumf %9, %10 : vector<1x64xf32>
    %12 = vector.broadcast %4 : vector<1x64xf32> to vector<32x64xf32>
    %13 = arith.subf %1, %12 : vector<32x64xf32>
    %cst_6 = arith.constant 9.99999974E-6 : f32
    %14 = vector.broadcast %cst_6 : f32 to vector<1x64xf32>
    %15 = arith.addf %11, %14 : vector<1x64xf32>
    %16 = math.rsqrt %15 : vector<1x64xf32>
    %17 = vector.broadcast %16 : vector<1x64xf32> to vector<32x64xf32>
    %18 = arith.mulf %13, %17 : vector<32x64xf32>
    %cst_7 = arith.constant 0.000000e+00 : f32
    %19 = vector.broadcast %cst_7 : f32 to vector<32x64xf32>
    %20 = arith.maximumf %18, %19 : vector<32x64xf32>
    %21 = arith.truncf %20 : vector<32x64xf32> to vector<32x64xbf16>
    %c0_8 = arith.constant 0 : index
    %c0_9 = arith.constant 0 : index
    %22 = vector.load %arg3[%c0_8, %c0_9] : memref<32x64xbf16, #tpu.memory_space<vmem>>, vector<32x64xbf16>
    tpu.vector_store %arg3[%c0_8, %c0_9], %21 {strides = array<i32>} : memref<32x64xbf16, #tpu.memory_space<vmem>>, vector<32x64xbf16>,
    return
  }
  func.func @transform_0(%arg0: i32) -> (i32, i32) {
    %c0_i32 = arith.constant 0 : i32
    %c0_i32_0 = arith.constant 0 : i32
    return %arg0, %c0_i32 : i32, i32
  }
  func.func @transform_1(%arg0: i32) -> (i32, i32) {
    %c0_i32 = arith.constant 0 : i32
    %c0_i32_0 = arith.constant 0 : i32
    %c0_i32_1 = arith.constant 0 : i32
    return %c0_i32, %c0_i32_0 : i32, i32
  }
  func.func @transform_2(%arg0: i32) -> (i32, i32) {
    %c0_i32 = arith.constant 0 : i32
    %c0_i32_0 = arith.constant 0 : i32
    return %arg0, %c0_i32 : i32, i32
  }
}

module attributes {stable_mosaic.version = 11 : i64} {
  func.func @_gemm_bn_stats_kernel(%arg0: i32, %arg1: memref<8x576xbf16, #tpu.memory_space<vmem>>, %arg2: memref<576x128xbf16, #tpu.memory_space<vmem>>, %arg3: memref<8x128xbf16, #tpu.memory_space<vmem>>, %arg4: memref<8x128xf32, #tpu.memory_space<vmem>>) attributes {dimension_semantics = [#tpu.dimension_semantics<parallel>], iteration_bounds = array<i64: 1>, scalar_prefetch = 0 : i64, scratch_operands = 0 : i64, tpu.core_type = #tpu.core_type<tc>, window_params = [{transform_indices = @transform_0, window_bounds = array<i64: 8, 576>}, {pipeline_mode = #tpu.pipeline_mode<synchronous>, transform_indices = @transform_1, window_bounds = array<i64: 576, 128>}, {transform_indices = @transform_2, window_bounds = array<i64: 8, 128>}, {transform_indices = @transform_3, window_bounds = array<i64: 8, 128>}]} {
    %c0 = arith.constant 0 : index
    %c0_0 = arith.constant 0 : index
    %0 = vector.load %arg1[%c0, %c0_0] : memref<8x576xbf16, #tpu.memory_space<vmem>>, vector<8x576xbf16>
    %c0_1 = arith.constant 0 : index
    %c0_2 = arith.constant 0 : index
    %1 = vector.load %arg2[%c0_1, %c0_2] : memref<576x128xbf16, #tpu.memory_space<vmem>>, vector<576x128xbf16>
    %cst = arith.constant dense<0.000000e+00> : vector<8x128xf32>
    %2 = tpu.matmul %0, %1, %cst {dimension_numbers = #tpu.dot_dimension_numbers<[1], [0], [0], [1], [0, 0, 1, 1], [], []>} : vector<8x576xbf16>, vector<576x128xbf16>, vector<8x128xf32> -> vector<8x128xf32>
    %3 = arith.truncf %2 : vector<8x128xf32> to vector<8x128xbf16>
    %c0_3 = arith.constant 0 : index
    %c0_4 = arith.constant 0 : index
    %4 = vector.load %arg3[%c0_3, %c0_4] : memref<8x128xbf16, #tpu.memory_space<vmem>>, vector<8x128xbf16>
    tpu.vector_store %arg3[%c0_3, %c0_4], %3 {strides = array<i32>} : memref<8x128xbf16, #tpu.memory_space<vmem>>, vector<8x128xbf16>,
    %cst_5 = arith.constant dense<0.000000e+00> : vector<128xf32>
    %5 = vector.multi_reduction <add>, %2, %cst_5 [0] : vector<8x128xf32> to vector<128xf32>
    %6 = vector.shape_cast %5 : vector<128xf32> to vector<1x128xf32>
    %c0_6 = arith.constant 0 : index
    %c0_7 = arith.constant 0 : index
    %7 = vector.load %arg4[%c0_6, %c0_7] : memref<8x128xf32, #tpu.memory_space<vmem>>, vector<1x128xf32>
    tpu.vector_store %arg4[%c0_6, %c0_7], %6 {strides = array<i32>} : memref<8x128xf32, #tpu.memory_space<vmem>>, vector<1x128xf32>,
    %8 = arith.mulf %2, %2 : vector<8x128xf32>
    %cst_8 = arith.constant dense<0.000000e+00> : vector<128xf32>
    %9 = vector.multi_reduction <add>, %8, %cst_8 [0] : vector<8x128xf32> to vector<128xf32>
    %10 = vector.shape_cast %9 : vector<128xf32> to vector<1x128xf32>
    %c1 = arith.constant 1 : index
    %c0_9 = arith.constant 0 : index
    %11 = vector.load %arg4[%c1, %c0_9] : memref<8x128xf32, #tpu.memory_space<vmem>>, vector<1x128xf32>
    tpu.vector_store %arg4[%c1, %c0_9], %10 {strides = array<i32>} : memref<8x128xf32, #tpu.memory_space<vmem>>, vector<1x128xf32>,
    return
  }
  func.func @transform_0(%arg0: i32) -> (i32, i32) {
    %c0_i32 = arith.constant 0 : i32
    %c0_i32_0 = arith.constant 0 : i32
    return %arg0, %c0_i32 : i32, i32
  }
  func.func @transform_1(%arg0: i32) -> (i32, i32) {
    %c0_i32 = arith.constant 0 : i32
    %c0_i32_0 = arith.constant 0 : i32
    %c0_i32_1 = arith.constant 0 : i32
    return %c0_i32, %c0_i32_0 : i32, i32
  }
  func.func @transform_2(%arg0: i32) -> (i32, i32) {
    %c0_i32 = arith.constant 0 : i32
    %c0_i32_0 = arith.constant 0 : i32
    return %arg0, %c0_i32 : i32, i32
  }
  func.func @transform_3(%arg0: i32) -> (i32, i32) {
    %c0_i32 = arith.constant 0 : i32
    %c0_i32_0 = arith.constant 0 : i32
    return %arg0, %c0_i32 : i32, i32
  }
}

module attributes {stable_mosaic.version = 11 : i64} {
  func.func @_bn_apply_kernel(%arg0: i32, %arg1: memref<8x128xbf16, #tpu.memory_space<vmem>>, %arg2: memref<8x128xf32, #tpu.memory_space<vmem>>, %arg3: memref<8x128xbf16, #tpu.memory_space<vmem>>) attributes {dimension_semantics = [#tpu.dimension_semantics<parallel>], iteration_bounds = array<i64: 1>, scalar_prefetch = 0 : i64, scratch_operands = 0 : i64, tpu.core_type = #tpu.core_type<tc>, window_params = [{transform_indices = @transform_0, window_bounds = array<i64: 8, 128>}, {pipeline_mode = #tpu.pipeline_mode<synchronous>, transform_indices = @transform_1, window_bounds = array<i64: 8, 128>}, {transform_indices = @transform_2, window_bounds = array<i64: 8, 128>}]} {
    %c0 = arith.constant 0 : index
    %c0_0 = arith.constant 0 : index
    %0 = vector.load %arg1[%c0, %c0_0] : memref<8x128xbf16, #tpu.memory_space<vmem>>, vector<8x128xbf16>
    %1 = arith.extf %0 : vector<8x128xbf16> to vector<8x128xf32>
    %c0_1 = arith.constant 0 : index
    %c0_2 = arith.constant 0 : index
    %2 = vector.load %arg2[%c0_1, %c0_2] : memref<8x128xf32, #tpu.memory_space<vmem>>, vector<1x128xf32>
    %cst = arith.constant 1.250000e-01 : f32
    %3 = vector.broadcast %cst : f32 to vector<1x128xf32>
    %4 = arith.mulf %2, %3 : vector<1x128xf32>
    %c1 = arith.constant 1 : index
    %c0_3 = arith.constant 0 : index
    %5 = vector.load %arg2[%c1, %c0_3] : memref<8x128xf32, #tpu.memory_space<vmem>>, vector<1x128xf32>
    %cst_4 = arith.constant 1.250000e-01 : f32
    %6 = vector.broadcast %cst_4 : f32 to vector<1x128xf32>
    %7 = arith.mulf %5, %6 : vector<1x128xf32>
    %8 = arith.mulf %4, %4 : vector<1x128xf32>
    %9 = arith.subf %7, %8 : vector<1x128xf32>
    %cst_5 = arith.constant 0.000000e+00 : f32
    %10 = vector.broadcast %cst_5 : f32 to vector<1x128xf32>
    %11 = arith.maximumf %9, %10 : vector<1x128xf32>
    %12 = vector.broadcast %4 : vector<1x128xf32> to vector<8x128xf32>
    %13 = arith.subf %1, %12 : vector<8x128xf32>
    %cst_6 = arith.constant 9.99999974E-6 : f32
    %14 = vector.broadcast %cst_6 : f32 to vector<1x128xf32>
    %15 = arith.addf %11, %14 : vector<1x128xf32>
    %16 = math.rsqrt %15 : vector<1x128xf32>
    %17 = vector.broadcast %16 : vector<1x128xf32> to vector<8x128xf32>
    %18 = arith.mulf %13, %17 : vector<8x128xf32>
    %cst_7 = arith.constant 0.000000e+00 : f32
    %19 = vector.broadcast %cst_7 : f32 to vector<8x128xf32>
    %20 = arith.maximumf %18, %19 : vector<8x128xf32>
    %21 = arith.truncf %20 : vector<8x128xf32> to vector<8x128xbf16>
    %c0_8 = arith.constant 0 : index
    %c0_9 = arith.constant 0 : index
    %22 = vector.load %arg3[%c0_8, %c0_9] : memref<8x128xbf16, #tpu.memory_space<vmem>>, vector<8x128xbf16>
    tpu.vector_store %arg3[%c0_8, %c0_9], %21 {strides = array<i32>} : memref<8x128xbf16, #tpu.memory_space<vmem>>, vector<8x128xbf16>,
    return
  }
  func.func @transform_0(%arg0: i32) -> (i32, i32) {
    %c0_i32 = arith.constant 0 : i32
    %c0_i32_0 = arith.constant 0 : i32
    return %arg0, %c0_i32 : i32, i32
  }
  func.func @transform_1(%arg0: i32) -> (i32, i32) {
    %c0_i32 = arith.constant 0 : i32
    %c0_i32_0 = arith.constant 0 : i32
    %c0_i32_1 = arith.constant 0 : i32
    return %c0_i32, %c0_i32_0 : i32, i32
  }
  func.func @transform_2(%arg0: i32) -> (i32, i32) {
    %c0_i32 = arith.constant 0 : i32
    %c0_i32_0 = arith.constant 0 : i32
    return %arg0, %c0_i32 : i32, i32
  }
}

module attributes {stable_mosaic.version = 11 : i64} {
  func.func @kernel(%arg0: i32, %arg1: i32, %arg2: memref<1x1x40x128xbf16, #tpu.memory_space<vmem>>, %arg3: memref<9x128x128xbf16, #tpu.memory_space<vmem>>, %arg4: memref<1x16x128xbf16, #tpu.memory_space<vmem>>, %arg5: memref<8x128xf32, #tpu.memory_space<vmem>>) attributes {dimension_semantics = [#tpu.dimension_semantics<parallel>, #tpu.dimension_semantics<parallel>], iteration_bounds = array<i64: 2, 1>, scalar_prefetch = 0 : i64, scratch_operands = 0 : i64, tpu.core_type = #tpu.core_type<tc>, window_params = [{transform_indices = @transform_0, window_bounds = array<i64: 1, 1, 40, 128>}, {pipeline_mode = #tpu.pipeline_mode<synchronous>, transform_indices = @transform_1, window_bounds = array<i64: 9, 128, 128>}, {transform_indices = @transform_2, window_bounds = array<i64: 1, 16, 128>}, {transform_indices = @transform_3, window_bounds = array<i64: 8, 128>}]} {
    %cst = arith.constant 0.000000e+00 : f32
    %0 = vector.broadcast %cst : f32 to vector<16x128xf32>
    %c0 = arith.constant 0 : index
    %c0_0 = arith.constant 0 : index
    %c0_1 = arith.constant 0 : index
    %c0_2 = arith.constant 0 : index
    %1 = vector.load %arg2[%c0, %c0_0, %c0_1, %c0_2] : memref<1x1x40x128xbf16, #tpu.memory_space<vmem>>, vector<1x1x16x128xbf16>
    %2 = vector.shape_cast %1 : vector<1x1x16x128xbf16> to vector<16x128xbf16>
    %c0_3 = arith.constant 0 : index
    %c0_4 = arith.constant 0 : index
    %c0_5 = arith.constant 0 : index
    %3 = vector.load %arg3[%c0_3, %c0_4, %c0_5] : memref<9x128x128xbf16, #tpu.memory_space<vmem>>, vector<1x128x128xbf16>
    %4 = vector.shape_cast %3 : vector<1x128x128xbf16> to vector<128x128xbf16>
    %cst_6 = arith.constant dense<0.000000e+00> : vector<16x128xf32>
    %5 = tpu.matmul %2, %4, %cst_6 {dimension_numbers = #tpu.dot_dimension_numbers<[1], [0], [0], [1], [0, 0, 1, 1], [], []>} : vector<16x128xbf16>, vector<128x128xbf16>, vector<16x128xf32> -> vector<16x128xf32>
    %6 = arith.addf %0, %5 : vector<16x128xf32>
    %c0_7 = arith.constant 0 : index
    %c0_8 = arith.constant 0 : index
    %c1 = arith.constant 1 : index
    %c0_9 = arith.constant 0 : index
    %7 = vector.load %arg2[%c0_7, %c0_8, %c1, %c0_9] : memref<1x1x40x128xbf16, #tpu.memory_space<vmem>>, vector<1x1x16x128xbf16>
    %8 = vector.shape_cast %7 : vector<1x1x16x128xbf16> to vector<16x128xbf16>
    %c1_10 = arith.constant 1 : index
    %c0_11 = arith.constant 0 : index
    %c0_12 = arith.constant 0 : index
    %9 = vector.load %arg3[%c1_10, %c0_11, %c0_12] : memref<9x128x128xbf16, #tpu.memory_space<vmem>>, vector<1x128x128xbf16>
    %10 = vector.shape_cast %9 : vector<1x128x128xbf16> to vector<128x128xbf16>
    %cst_13 = arith.constant dense<0.000000e+00> : vector<16x128xf32>
    %11 = tpu.matmul %8, %10, %cst_13 {dimension_numbers = #tpu.dot_dimension_numbers<[1], [0], [0], [1], [0, 0, 1, 1], [], []>} : vector<16x128xbf16>, vector<128x128xbf16>, vector<16x128xf32> -> vector<16x128xf32>
    %12 = arith.addf %6, %11 : vector<16x128xf32>
    %c0_14 = arith.constant 0 : index
    %c0_15 = arith.constant 0 : index
    %c2 = arith.constant 2 : index
    %c0_16 = arith.constant 0 : index
    %13 = vector.load %arg2[%c0_14, %c0_15, %c2, %c0_16] : memref<1x1x40x128xbf16, #tpu.memory_space<vmem>>, vector<1x1x16x128xbf16>
    %14 = vector.shape_cast %13 : vector<1x1x16x128xbf16> to vector<16x128xbf16>
    %c2_17 = arith.constant 2 : index
    %c0_18 = arith.constant 0 : index
    %c0_19 = arith.constant 0 : index
    %15 = vector.load %arg3[%c2_17, %c0_18, %c0_19] : memref<9x128x128xbf16, #tpu.memory_space<vmem>>, vector<1x128x128xbf16>
    %16 = vector.shape_cast %15 : vector<1x128x128xbf16> to vector<128x128xbf16>
    %cst_20 = arith.constant dense<0.000000e+00> : vector<16x128xf32>
    %17 = tpu.matmul %14, %16, %cst_20 {dimension_numbers = #tpu.dot_dimension_numbers<[1], [0], [0], [1], [0, 0, 1, 1], [], []>} : vector<16x128xbf16>, vector<128x128xbf16>, vector<16x128xf32> -> vector<16x128xf32>
    %18 = arith.addf %12, %17 : vector<16x128xf32>
    %c0_21 = arith.constant 0 : index
    %c0_22 = arith.constant 0 : index
    %c8 = arith.constant 8 : index
    %c0_23 = arith.constant 0 : index
    %19 = vector.load %arg2[%c0_21, %c0_22, %c8, %c0_23] : memref<1x1x40x128xbf16, #tpu.memory_space<vmem>>, vector<1x1x16x128xbf16>
    %20 = vector.shape_cast %19 : vector<1x1x16x128xbf16> to vector<16x128xbf16>
    %c3 = arith.constant 3 : index
    %c0_24 = arith.constant 0 : index
    %c0_25 = arith.constant 0 : index
    %21 = vector.load %arg3[%c3, %c0_24, %c0_25] : memref<9x128x128xbf16, #tpu.memory_space<vmem>>, vector<1x128x128xbf16>
    %22 = vector.shape_cast %21 : vector<1x128x128xbf16> to vector<128x128xbf16>
    %cst_26 = arith.constant dense<0.000000e+00> : vector<16x128xf32>
    %23 = tpu.matmul %20, %22, %cst_26 {dimension_numbers = #tpu.dot_dimension_numbers<[1], [0], [0], [1], [0, 0, 1, 1], [], []>} : vector<16x128xbf16>, vector<128x128xbf16>, vector<16x128xf32> -> vector<16x128xf32>
    %24 = arith.addf %18, %23 : vector<16x128xf32>
    %c0_27 = arith.constant 0 : index
    %c0_28 = arith.constant 0 : index
    %c9 = arith.constant 9 : index
    %c0_29 = arith.constant 0 : index
    %25 = vector.load %arg2[%c0_27, %c0_28, %c9, %c0_29] : memref<1x1x40x128xbf16, #tpu.memory_space<vmem>>, vector<1x1x16x128xbf16>
    %26 = vector.shape_cast %25 : vector<1x1x16x128xbf16> to vector<16x128xbf16>
    %c4 = arith.constant 4 : index
    %c0_30 = arith.constant 0 : index
    %c0_31 = arith.constant 0 : index
    %27 = vector.load %arg3[%c4, %c0_30, %c0_31] : memref<9x128x128xbf16, #tpu.memory_space<vmem>>, vector<1x128x128xbf16>
    %28 = vector.shape_cast %27 : vector<1x128x128xbf16> to vector<128x128xbf16>
    %cst_32 = arith.constant dense<0.000000e+00> : vector<16x128xf32>
    %29 = tpu.matmul %26, %28, %cst_32 {dimension_numbers = #tpu.dot_dimension_numbers<[1], [0], [0], [1], [0, 0, 1, 1], [], []>} : vector<16x128xbf16>, vector<128x128xbf16>, vector<16x128xf32> -> vector<16x128xf32>
    %30 = arith.addf %24, %29 : vector<16x128xf32>
    %c0_33 = arith.constant 0 : index
    %c0_34 = arith.constant 0 : index
    %c10 = arith.constant 10 : index
    %c0_35 = arith.constant 0 : index
    %31 = vector.load %arg2[%c0_33, %c0_34, %c10, %c0_35] : memref<1x1x40x128xbf16, #tpu.memory_space<vmem>>, vector<1x1x16x128xbf16>
    %32 = vector.shape_cast %31 : vector<1x1x16x128xbf16> to vector<16x128xbf16>
    %c5 = arith.constant 5 : index
    %c0_36 = arith.constant 0 : index
    %c0_37 = arith.constant 0 : index
    %33 = vector.load %arg3[%c5, %c0_36, %c0_37] : memref<9x128x128xbf16, #tpu.memory_space<vmem>>, vector<1x128x128xbf16>
    %34 = vector.shape_cast %33 : vector<1x128x128xbf16> to vector<128x128xbf16>
    %cst_38 = arith.constant dense<0.000000e+00> : vector<16x128xf32>
    %35 = tpu.matmul %32, %34, %cst_38 {dimension_numbers = #tpu.dot_dimension_numbers<[1], [0], [0], [1], [0, 0, 1, 1], [], []>} : vector<16x128xbf16>, vector<128x128xbf16>, vector<16x128xf32> -> vector<16x128xf32>
    %36 = arith.addf %30, %35 : vector<16x128xf32>
    %c0_39 = arith.constant 0 : index
    %c0_40 = arith.constant 0 : index
    %c16 = arith.constant 16 : index
    %c0_41 = arith.constant 0 : index
    %37 = vector.load %arg2[%c0_39, %c0_40, %c16, %c0_41] : memref<1x1x40x128xbf16, #tpu.memory_space<vmem>>, vector<1x1x16x128xbf16>
    %38 = vector.shape_cast %37 : vector<1x1x16x128xbf16> to vector<16x128xbf16>
    %c6 = arith.constant 6 : index
    %c0_42 = arith.constant 0 : index
    %c0_43 = arith.constant 0 : index
    %39 = vector.load %arg3[%c6, %c0_42, %c0_43] : memref<9x128x128xbf16, #tpu.memory_space<vmem>>, vector<1x128x128xbf16>
    %40 = vector.shape_cast %39 : vector<1x128x128xbf16> to vector<128x128xbf16>
    %cst_44 = arith.constant dense<0.000000e+00> : vector<16x128xf32>
    %41 = tpu.matmul %38, %40, %cst_44 {dimension_numbers = #tpu.dot_dimension_numbers<[1], [0], [0], [1], [0, 0, 1, 1], [], []>} : vector<16x128xbf16>, vector<128x128xbf16>, vector<16x128xf32> -> vector<16x128xf32>
    %42 = arith.addf %36, %41 : vector<16x128xf32>
    %c0_45 = arith.constant 0 : index
    %c0_46 = arith.constant 0 : index
    %c17 = arith.constant 17 : index
    %c0_47 = arith.constant 0 : index
    %43 = vector.load %arg2[%c0_45, %c0_46, %c17, %c0_47] : memref<1x1x40x128xbf16, #tpu.memory_space<vmem>>, vector<1x1x16x128xbf16>
    %44 = vector.shape_cast %43 : vector<1x1x16x128xbf16> to vector<16x128xbf16>
    %c7 = arith.constant 7 : index
    %c0_48 = arith.constant 0 : index
    %c0_49 = arith.constant 0 : index
    %45 = vector.load %arg3[%c7, %c0_48, %c0_49] : memref<9x128x128xbf16, #tpu.memory_space<vmem>>, vector<1x128x128xbf16>
    %46 = vector.shape_cast %45 : vector<1x128x128xbf16> to vector<128x128xbf16>
    %cst_50 = arith.constant dense<0.000000e+00> : vector<16x128xf32>
    %47 = tpu.matmul %44, %46, %cst_50 {dimension_numbers = #tpu.dot_dimension_numbers<[1], [0], [0], [1], [0, 0, 1, 1], [], []>} : vector<16x128xbf16>, vector<128x128xbf16>, vector<16x128xf32> -> vector<16x128xf32>
    %48 = arith.addf %42, %47 : vector<16x128xf32>
    %c0_51 = arith.constant 0 : index
    %c0_52 = arith.constant 0 : index
    %c18 = arith.constant 18 : index
    %c0_53 = arith.constant 0 : index
    %49 = vector.load %arg2[%c0_51, %c0_52, %c18, %c0_53] : memref<1x1x40x128xbf16, #tpu.memory_space<vmem>>, vector<1x1x16x128xbf16>
    %50 = vector.shape_cast %49 : vector<1x1x16x128xbf16> to vector<16x128xbf16>
    %c8_54 = arith.constant 8 : index
    %c0_55 = arith.constant 0 : index
    %c0_56 = arith.constant 0 : index
    %51 = vector.load %arg3[%c8_54, %c0_55, %c0_56] : memref<9x128x128xbf16, #tpu.memory_space<vmem>>, vector<1x128x128xbf16>
    %52 = vector.shape_cast %51 : vector<1x128x128xbf16> to vector<128x128xbf16>
    %cst_57 = arith.constant dense<0.000000e+00> : vector<16x128xf32>
    %53 = tpu.matmul %50, %52, %cst_57 {dimension_numbers = #tpu.dot_dimension_numbers<[1], [0], [0], [1], [0, 0, 1, 1], [], []>} : vector<16x128xbf16>, vector<128x128xbf16>, vector<16x128xf32> -> vector<16x128xf32>
    %54 = arith.addf %48, %53 : vector<16x128xf32>
    %55 = arith.truncf %54 : vector<16x128xf32> to vector<16x128xbf16>
    %c0_58 = arith.constant 0 : index
    %c0_59 = arith.constant 0 : index
    %c0_60 = arith.constant 0 : index
    %56 = vector.load %arg4[%c0_58, %c0_59, %c0_60] : memref<1x16x128xbf16, #tpu.memory_space<vmem>>, vector<1x16x128xbf16>
    %57 = vector.shape_cast %56 : vector<1x16x128xbf16> to vector<16x128xbf16>
    %58 = vector.shape_cast %55 : vector<16x128xbf16> to vector<1x16x128xbf16>
    tpu.vector_store %arg4[%c0_58, %c0_59, %c0_60], %58 {strides = array<i32>} : memref<1x16x128xbf16, #tpu.memory_space<vmem>>, vector<1x16x128xbf16>,
    %59 = tpu.iota {dimensions = array<i32: 0>} : vector<16x1xi32>
    %c8_i32 = arith.constant 8 : i32
    %c0_i32 = arith.constant 0 : i32
    %60 = arith.cmpi eq, %c8_i32, %c0_i32 : i32
    %c1_i32 = arith.constant 1 : i32
    %61 = arith.select %60, %c1_i32, %c8_i32 : i32
    %62 = vector.broadcast %61 : i32 to vector<16x1xi32>
    %63 = arith.remsi %59, %62 : vector<16x1xi32>
    %c0_i32_61 = arith.constant 0 : i32
    %64 = vector.broadcast %c0_i32_61 : i32 to vector<16x1xi32>
    %65 = arith.cmpi ne, %63, %64 : vector<16x1xi32>
    %c0_i32_62 = arith.constant 0 : i32
    %66 = vector.broadcast %c0_i32_62 : i32 to vector<16x1xi32>
    %67 = arith.cmpi slt, %63, %66 : vector<16x1xi32>
    %c0_i32_63 = arith.constant 0 : i32
    %68 = arith.cmpi slt, %61, %c0_i32_63 : i32
    %69 = vector.broadcast %68 : i1 to vector<16x1xi1>
    %70 = vector.broadcast %69 : vector<16x1xi1> to vector<16x1xi1>
    %71 = arith.xori %67, %70 : vector<16x1xi1>
    %72 = arith.andi %71, %65 : vector<16x1xi1>
    %73 = vector.broadcast %61 : i32 to vector<16x1xi32>
    %74 = arith.addi %63, %73 : vector<16x1xi32>
    %75 = arith.select %72, %74, %63 : vector<16x1xi1>, vector<16x1xi32>
    %c2_i32 = arith.constant 2 : i32
    %76 = vector.broadcast %c2_i32 : i32 to vector<16x1xi32>
    %77 = arith.cmpi slt, %75, %76 : vector<16x1xi32>
    %78 = arith.extui %77 : vector<16x1xi1> to vector<16x1xi32>
    %79 = arith.sitofp %78 : vector<16x1xi32> to vector<16x1xf32>
    %80 = vector.broadcast %79 : vector<16x1xf32> to vector<16x128xf32>
    %81 = arith.mulf %54, %80 : vector<16x128xf32>
    %cst_64 = arith.constant dense<0.000000e+00> : vector<128xf32>
    %82 = vector.multi_reduction <add>, %81, %cst_64 [0] : vector<16x128xf32> to vector<128xf32>
    %83 = vector.shape_cast %82 : vector<128xf32> to vector<1x128xf32>
    %c0_65 = arith.constant 0 : index
    %c0_66 = arith.constant 0 : index
    %84 = vector.load %arg5[%c0_65, %c0_66] : memref<8x128xf32, #tpu.memory_space<vmem>>, vector<1x128xf32>
    tpu.vector_store %arg5[%c0_65, %c0_66], %83 {strides = array<i32>} : memref<8x128xf32, #tpu.memory_space<vmem>>, vector<1x128xf32>,
    %85 = arith.mulf %81, %81 : vector<16x128xf32>
    %cst_67 = arith.constant dense<0.000000e+00> : vector<128xf32>
    %86 = vector.multi_reduction <add>, %85, %cst_67 [0] : vector<16x128xf32> to vector<128xf32>
    %87 = vector.shape_cast %86 : vector<128xf32> to vector<1x128xf32>
    %c1_68 = arith.constant 1 : index
    %c0_69 = arith.constant 0 : index
    %88 = vector.load %arg5[%c1_68, %c0_69] : memref<8x128xf32, #tpu.memory_space<vmem>>, vector<1x128xf32>
    tpu.vector_store %arg5[%c1_68, %c0_69], %87 {strides = array<i32>} : memref<8x128xf32, #tpu.memory_space<vmem>>, vector<1x128xf32>,
    return
  }
  func.func @transform_0(%arg0: i32, %arg1: i32) -> (i32, i32, i32, i32) {
    %c0_i32 = arith.constant 0 : i32
    %c0_i32_0 = arith.constant 0 : i32
    %c0_i32_1 = arith.constant 0 : i32
    return %arg0, %arg1, %c0_i32, %c0_i32_0 : i32, i32, i32, i32
  }
  func.func @transform_1(%arg0: i32, %arg1: i32) -> (i32, i32, i32) {
    %c0_i32 = arith.constant 0 : i32
    %c0_i32_0 = arith.constant 0 : i32
    %c0_i32_1 = arith.constant 0 : i32
    %c0_i32_2 = arith.constant 0 : i32
    return %c0_i32, %c0_i32_0, %c0_i32_1 : i32, i32, i32
  }
  func.func @transform_2(%arg0: i32, %arg1: i32) -> (i32, i32, i32) {
    %c0_i32 = arith.constant 0 : i32
    %c0_i32_0 = arith.constant 0 : i32
    return %arg0, %arg1, %c0_i32 : i32, i32, i32
  }
  func.func @transform_3(%arg0: i32, %arg1: i32) -> (i32, i32) {
    %c1_i32 = arith.constant 1 : i32
    %0 = arith.muli %arg0, %c1_i32 : i32
    %1 = arith.addi %0, %arg1 : i32
    %c0_i32 = arith.constant 0 : i32
    %c0_i32_0 = arith.constant 0 : i32
    return %1, %c0_i32 : i32, i32
  }
}

module attributes {stable_mosaic.version = 11 : i64} {
  func.func @_bn_apply_kernel(%arg0: i32, %arg1: memref<8x128xbf16, #tpu.memory_space<vmem>>, %arg2: memref<8x128xf32, #tpu.memory_space<vmem>>, %arg3: memref<8x128xbf16, #tpu.memory_space<vmem>>, %arg4: memref<8x128xbf16, #tpu.memory_space<vmem>>) attributes {dimension_semantics = [#tpu.dimension_semantics<parallel>], iteration_bounds = array<i64: 1>, scalar_prefetch = 0 : i64, scratch_operands = 0 : i64, tpu.core_type = #tpu.core_type<tc>, window_params = [{transform_indices = @transform_0, window_bounds = array<i64: 8, 128>}, {pipeline_mode = #tpu.pipeline_mode<synchronous>, transform_indices = @transform_1, window_bounds = array<i64: 8, 128>}, {transform_indices = @transform_2, window_bounds = array<i64: 8, 128>}, {transform_indices = @transform_3, window_bounds = array<i64: 8, 128>}]} {
    %c0 = arith.constant 0 : index
    %c0_0 = arith.constant 0 : index
    %0 = vector.load %arg1[%c0, %c0_0] : memref<8x128xbf16, #tpu.memory_space<vmem>>, vector<8x128xbf16>
    %1 = arith.extf %0 : vector<8x128xbf16> to vector<8x128xf32>
    %c0_1 = arith.constant 0 : index
    %c0_2 = arith.constant 0 : index
    %2 = vector.load %arg2[%c0_1, %c0_2] : memref<8x128xf32, #tpu.memory_space<vmem>>, vector<1x128xf32>
    %cst = arith.constant 1.250000e-01 : f32
    %3 = vector.broadcast %cst : f32 to vector<1x128xf32>
    %4 = arith.mulf %2, %3 : vector<1x128xf32>
    %c1 = arith.constant 1 : index
    %c0_3 = arith.constant 0 : index
    %5 = vector.load %arg2[%c1, %c0_3] : memref<8x128xf32, #tpu.memory_space<vmem>>, vector<1x128xf32>
    %cst_4 = arith.constant 1.250000e-01 : f32
    %6 = vector.broadcast %cst_4 : f32 to vector<1x128xf32>
    %7 = arith.mulf %5, %6 : vector<1x128xf32>
    %8 = arith.mulf %4, %4 : vector<1x128xf32>
    %9 = arith.subf %7, %8 : vector<1x128xf32>
    %cst_5 = arith.constant 0.000000e+00 : f32
    %10 = vector.broadcast %cst_5 : f32 to vector<1x128xf32>
    %11 = arith.maximumf %9, %10 : vector<1x128xf32>
    %12 = vector.broadcast %4 : vector<1x128xf32> to vector<8x128xf32>
    %13 = arith.subf %1, %12 : vector<8x128xf32>
    %cst_6 = arith.constant 9.99999974E-6 : f32
    %14 = vector.broadcast %cst_6 : f32 to vector<1x128xf32>
    %15 = arith.addf %11, %14 : vector<1x128xf32>
    %16 = math.rsqrt %15 : vector<1x128xf32>
    %17 = vector.broadcast %16 : vector<1x128xf32> to vector<8x128xf32>
    %18 = arith.mulf %13, %17 : vector<8x128xf32>
    %cst_7 = arith.constant 0.000000e+00 : f32
    %19 = vector.broadcast %cst_7 : f32 to vector<8x128xf32>
    %20 = arith.maximumf %18, %19 : vector<8x128xf32>
    %c0_8 = arith.constant 0 : index
    %c0_9 = arith.constant 0 : index
    %21 = vector.load %arg3[%c0_8, %c0_9] : memref<8x128xbf16, #tpu.memory_space<vmem>>, vector<8x128xbf16>
    %22 = arith.extf %21 : vector<8x128xbf16> to vector<8x128xf32>
    %23 = arith.addf %20, %22 : vector<8x128xf32>
    %24 = arith.truncf %23 : vector<8x128xf32> to vector<8x128xbf16>
    %c0_10 = arith.constant 0 : index
    %c0_11 = arith.constant 0 : index
    %25 = vector.load %arg4[%c0_10, %c0_11] : memref<8x128xbf16, #tpu.memory_space<vmem>>, vector<8x128xbf16>
    tpu.vector_store %arg4[%c0_10, %c0_11], %24 {strides = array<i32>} : memref<8x128xbf16, #tpu.memory_space<vmem>>, vector<8x128xbf16>,
    return
  }
  func.func @transform_0(%arg0: i32) -> (i32, i32) {
    %c0_i32 = arith.constant 0 : i32
    %c0_i32_0 = arith.constant 0 : i32
    return %arg0, %c0_i32 : i32, i32
  }
  func.func @transform_1(%arg0: i32) -> (i32, i32) {
    %c0_i32 = arith.constant 0 : i32
    %c0_i32_0 = arith.constant 0 : i32
    %c0_i32_1 = arith.constant 0 : i32
    return %c0_i32, %c0_i32_0 : i32, i32
  }
  func.func @transform_2(%arg0: i32) -> (i32, i32) {
    %c0_i32 = arith.constant 0 : i32
    %c0_i32_0 = arith.constant 0 : i32
    return %arg0, %c0_i32 : i32, i32
  }
  func.func @transform_3(%arg0: i32) -> (i32, i32) {
    %c0_i32 = arith.constant 0 : i32
    %c0_i32_0 = arith.constant 0 : i32
    return %arg0, %c0_i32 : i32, i32
  }
}

module attributes {stable_mosaic.version = 11 : i64} {
  func.func @kernel(%arg0: i32, %arg1: i32, %arg2: memref<1x1x56x128xbf16, #tpu.memory_space<vmem>>, %arg3: memref<9x128x64xbf16, #tpu.memory_space<vmem>>, %arg4: memref<1x32x64xbf16, #tpu.memory_space<vmem>>, %arg5: memref<8x64xf32, #tpu.memory_space<vmem>>) attributes {dimension_semantics = [#tpu.dimension_semantics<parallel>, #tpu.dimension_semantics<parallel>], iteration_bounds = array<i64: 2, 1>, scalar_prefetch = 0 : i64, scratch_operands = 0 : i64, tpu.core_type = #tpu.core_type<tc>, window_params = [{transform_indices = @transform_0, window_bounds = array<i64: 1, 1, 56, 128>}, {pipeline_mode = #tpu.pipeline_mode<synchronous>, transform_indices = @transform_1, window_bounds = array<i64: 9, 128, 64>}, {transform_indices = @transform_2, window_bounds = array<i64: 1, 32, 64>}, {transform_indices = @transform_3, window_bounds = array<i64: 8, 64>}]} {
    %cst = arith.constant 0.000000e+00 : f32
    %0 = vector.broadcast %cst : f32 to vector<32x64xf32>
    %c0 = arith.constant 0 : index
    %c0_0 = arith.constant 0 : index
    %c0_1 = arith.constant 0 : index
    %c0_2 = arith.constant 0 : index
    %1 = vector.load %arg2[%c0, %c0_0, %c0_1, %c0_2] : memref<1x1x56x128xbf16, #tpu.memory_space<vmem>>, vector<1x1x32x128xbf16>
    %2 = vector.shape_cast %1 : vector<1x1x32x128xbf16> to vector<32x128xbf16>
    %c0_3 = arith.constant 0 : index
    %c0_4 = arith.constant 0 : index
    %c0_5 = arith.constant 0 : index
    %3 = vector.load %arg3[%c0_3, %c0_4, %c0_5] : memref<9x128x64xbf16, #tpu.memory_space<vmem>>, vector<1x128x64xbf16>
    %4 = vector.shape_cast %3 : vector<1x128x64xbf16> to vector<128x64xbf16>
    %cst_6 = arith.constant dense<0.000000e+00> : vector<32x64xf32>
    %5 = tpu.matmul %2, %4, %cst_6 {dimension_numbers = #tpu.dot_dimension_numbers<[1], [0], [0], [1], [0, 0, 1, 1], [], []>} : vector<32x128xbf16>, vector<128x64xbf16>, vector<32x64xf32> -> vector<32x64xf32>
    %6 = arith.addf %0, %5 : vector<32x64xf32>
    %c0_7 = arith.constant 0 : index
    %c0_8 = arith.constant 0 : index
    %c1 = arith.constant 1 : index
    %c0_9 = arith.constant 0 : index
    %7 = vector.load %arg2[%c0_7, %c0_8, %c1, %c0_9] : memref<1x1x56x128xbf16, #tpu.memory_space<vmem>>, vector<1x1x32x128xbf16>
    %8 = vector.shape_cast %7 : vector<1x1x32x128xbf16> to vector<32x128xbf16>
    %c1_10 = arith.constant 1 : index
    %c0_11 = arith.constant 0 : index
    %c0_12 = arith.constant 0 : index
    %9 = vector.load %arg3[%c1_10, %c0_11, %c0_12] : memref<9x128x64xbf16, #tpu.memory_space<vmem>>, vector<1x128x64xbf16>
    %10 = vector.shape_cast %9 : vector<1x128x64xbf16> to vector<128x64xbf16>
    %cst_13 = arith.constant dense<0.000000e+00> : vector<32x64xf32>
    %11 = tpu.matmul %8, %10, %cst_13 {dimension_numbers = #tpu.dot_dimension_numbers<[1], [0], [0], [1], [0, 0, 1, 1], [], []>} : vector<32x128xbf16>, vector<128x64xbf16>, vector<32x64xf32> -> vector<32x64xf32>
    %12 = arith.addf %6, %11 : vector<32x64xf32>
    %c0_14 = arith.constant 0 : index
    %c0_15 = arith.constant 0 : index
    %c2 = arith.constant 2 : index
    %c0_16 = arith.constant 0 : index
    %13 = vector.load %arg2[%c0_14, %c0_15, %c2, %c0_16] : memref<1x1x56x128xbf16, #tpu.memory_space<vmem>>, vector<1x1x32x128xbf16>
    %14 = vector.shape_cast %13 : vector<1x1x32x128xbf16> to vector<32x128xbf16>
    %c2_17 = arith.constant 2 : index
    %c0_18 = arith.constant 0 : index
    %c0_19 = arith.constant 0 : index
    %15 = vector.load %arg3[%c2_17, %c0_18, %c0_19] : memref<9x128x64xbf16, #tpu.memory_space<vmem>>, vector<1x128x64xbf16>
    %16 = vector.shape_cast %15 : vector<1x128x64xbf16> to vector<128x64xbf16>
    %cst_20 = arith.constant dense<0.000000e+00> : vector<32x64xf32>
    %17 = tpu.matmul %14, %16, %cst_20 {dimension_numbers = #tpu.dot_dimension_numbers<[1], [0], [0], [1], [0, 0, 1, 1], [], []>} : vector<32x128xbf16>, vector<128x64xbf16>, vector<32x64xf32> -> vector<32x64xf32>
    %18 = arith.addf %12, %17 : vector<32x64xf32>
    %c0_21 = arith.constant 0 : index
    %c0_22 = arith.constant 0 : index
    %c8 = arith.constant 8 : index
    %c0_23 = arith.constant 0 : index
    %19 = vector.load %arg2[%c0_21, %c0_22, %c8, %c0_23] : memref<1x1x56x128xbf16, #tpu.memory_space<vmem>>, vector<1x1x32x128xbf16>
    %20 = vector.shape_cast %19 : vector<1x1x32x128xbf16> to vector<32x128xbf16>
    %c3 = arith.constant 3 : index
    %c0_24 = arith.constant 0 : index
    %c0_25 = arith.constant 0 : index
    %21 = vector.load %arg3[%c3, %c0_24, %c0_25] : memref<9x128x64xbf16, #tpu.memory_space<vmem>>, vector<1x128x64xbf16>
    %22 = vector.shape_cast %21 : vector<1x128x64xbf16> to vector<128x64xbf16>
    %cst_26 = arith.constant dense<0.000000e+00> : vector<32x64xf32>
    %23 = tpu.matmul %20, %22, %cst_26 {dimension_numbers = #tpu.dot_dimension_numbers<[1], [0], [0], [1], [0, 0, 1, 1], [], []>} : vector<32x128xbf16>, vector<128x64xbf16>, vector<32x64xf32> -> vector<32x64xf32>
    %24 = arith.addf %18, %23 : vector<32x64xf32>
    %c0_27 = arith.constant 0 : index
    %c0_28 = arith.constant 0 : index
    %c9 = arith.constant 9 : index
    %c0_29 = arith.constant 0 : index
    %25 = vector.load %arg2[%c0_27, %c0_28, %c9, %c0_29] : memref<1x1x56x128xbf16, #tpu.memory_space<vmem>>, vector<1x1x32x128xbf16>
    %26 = vector.shape_cast %25 : vector<1x1x32x128xbf16> to vector<32x128xbf16>
    %c4 = arith.constant 4 : index
    %c0_30 = arith.constant 0 : index
    %c0_31 = arith.constant 0 : index
    %27 = vector.load %arg3[%c4, %c0_30, %c0_31] : memref<9x128x64xbf16, #tpu.memory_space<vmem>>, vector<1x128x64xbf16>
    %28 = vector.shape_cast %27 : vector<1x128x64xbf16> to vector<128x64xbf16>
    %cst_32 = arith.constant dense<0.000000e+00> : vector<32x64xf32>
    %29 = tpu.matmul %26, %28, %cst_32 {dimension_numbers = #tpu.dot_dimension_numbers<[1], [0], [0], [1], [0, 0, 1, 1], [], []>} : vector<32x128xbf16>, vector<128x64xbf16>, vector<32x64xf32> -> vector<32x64xf32>
    %30 = arith.addf %24, %29 : vector<32x64xf32>
    %c0_33 = arith.constant 0 : index
    %c0_34 = arith.constant 0 : index
    %c10 = arith.constant 10 : index
    %c0_35 = arith.constant 0 : index
    %31 = vector.load %arg2[%c0_33, %c0_34, %c10, %c0_35] : memref<1x1x56x128xbf16, #tpu.memory_space<vmem>>, vector<1x1x32x128xbf16>
    %32 = vector.shape_cast %31 : vector<1x1x32x128xbf16> to vector<32x128xbf16>
    %c5 = arith.constant 5 : index
    %c0_36 = arith.constant 0 : index
    %c0_37 = arith.constant 0 : index
    %33 = vector.load %arg3[%c5, %c0_36, %c0_37] : memref<9x128x64xbf16, #tpu.memory_space<vmem>>, vector<1x128x64xbf16>
    %34 = vector.shape_cast %33 : vector<1x128x64xbf16> to vector<128x64xbf16>
    %cst_38 = arith.constant dense<0.000000e+00> : vector<32x64xf32>
    %35 = tpu.matmul %32, %34, %cst_38 {dimension_numbers = #tpu.dot_dimension_numbers<[1], [0], [0], [1], [0, 0, 1, 1], [], []>} : vector<32x128xbf16>, vector<128x64xbf16>, vector<32x64xf32> -> vector<32x64xf32>
    %36 = arith.addf %30, %35 : vector<32x64xf32>
    %c0_39 = arith.constant 0 : index
    %c0_40 = arith.constant 0 : index
    %c16 = arith.constant 16 : index
    %c0_41 = arith.constant 0 : index
    %37 = vector.load %arg2[%c0_39, %c0_40, %c16, %c0_41] : memref<1x1x56x128xbf16, #tpu.memory_space<vmem>>, vector<1x1x32x128xbf16>
    %38 = vector.shape_cast %37 : vector<1x1x32x128xbf16> to vector<32x128xbf16>
    %c6 = arith.constant 6 : index
    %c0_42 = arith.constant 0 : index
    %c0_43 = arith.constant 0 : index
    %39 = vector.load %arg3[%c6, %c0_42, %c0_43] : memref<9x128x64xbf16, #tpu.memory_space<vmem>>, vector<1x128x64xbf16>
    %40 = vector.shape_cast %39 : vector<1x128x64xbf16> to vector<128x64xbf16>
    %cst_44 = arith.constant dense<0.000000e+00> : vector<32x64xf32>
    %41 = tpu.matmul %38, %40, %cst_44 {dimension_numbers = #tpu.dot_dimension_numbers<[1], [0], [0], [1], [0, 0, 1, 1], [], []>} : vector<32x128xbf16>, vector<128x64xbf16>, vector<32x64xf32> -> vector<32x64xf32>
    %42 = arith.addf %36, %41 : vector<32x64xf32>
    %c0_45 = arith.constant 0 : index
    %c0_46 = arith.constant 0 : index
    %c17 = arith.constant 17 : index
    %c0_47 = arith.constant 0 : index
    %43 = vector.load %arg2[%c0_45, %c0_46, %c17, %c0_47] : memref<1x1x56x128xbf16, #tpu.memory_space<vmem>>, vector<1x1x32x128xbf16>
    %44 = vector.shape_cast %43 : vector<1x1x32x128xbf16> to vector<32x128xbf16>
    %c7 = arith.constant 7 : index
    %c0_48 = arith.constant 0 : index
    %c0_49 = arith.constant 0 : index
    %45 = vector.load %arg3[%c7, %c0_48, %c0_49] : memref<9x128x64xbf16, #tpu.memory_space<vmem>>, vector<1x128x64xbf16>
    %46 = vector.shape_cast %45 : vector<1x128x64xbf16> to vector<128x64xbf16>
    %cst_50 = arith.constant dense<0.000000e+00> : vector<32x64xf32>
    %47 = tpu.matmul %44, %46, %cst_50 {dimension_numbers = #tpu.dot_dimension_numbers<[1], [0], [0], [1], [0, 0, 1, 1], [], []>} : vector<32x128xbf16>, vector<128x64xbf16>, vector<32x64xf32> -> vector<32x64xf32>
    %48 = arith.addf %42, %47 : vector<32x64xf32>
    %c0_51 = arith.constant 0 : index
    %c0_52 = arith.constant 0 : index
    %c18 = arith.constant 18 : index
    %c0_53 = arith.constant 0 : index
    %49 = vector.load %arg2[%c0_51, %c0_52, %c18, %c0_53] : memref<1x1x56x128xbf16, #tpu.memory_space<vmem>>, vector<1x1x32x128xbf16>
    %50 = vector.shape_cast %49 : vector<1x1x32x128xbf16> to vector<32x128xbf16>
    %c8_54 = arith.constant 8 : index
    %c0_55 = arith.constant 0 : index
    %c0_56 = arith.constant 0 : index
    %51 = vector.load %arg3[%c8_54, %c0_55, %c0_56] : memref<9x128x64xbf16, #tpu.memory_space<vmem>>, vector<1x128x64xbf16>
    %52 = vector.shape_cast %51 : vector<1x128x64xbf16> to vector<128x64xbf16>
    %cst_57 = arith.constant dense<0.000000e+00> : vector<32x64xf32>
    %53 = tpu.matmul %50, %52, %cst_57 {dimension_numbers = #tpu.dot_dimension_numbers<[1], [0], [0], [1], [0, 0, 1, 1], [], []>} : vector<32x128xbf16>, vector<128x64xbf16>, vector<32x64xf32> -> vector<32x64xf32>
    %54 = arith.addf %48, %53 : vector<32x64xf32>
    %55 = arith.truncf %54 : vector<32x64xf32> to vector<32x64xbf16>
    %c0_58 = arith.constant 0 : index
    %c0_59 = arith.constant 0 : index
    %c0_60 = arith.constant 0 : index
    %56 = vector.load %arg4[%c0_58, %c0_59, %c0_60] : memref<1x32x64xbf16, #tpu.memory_space<vmem>>, vector<1x32x64xbf16>
    %57 = vector.shape_cast %56 : vector<1x32x64xbf16> to vector<32x64xbf16>
    %58 = vector.shape_cast %55 : vector<32x64xbf16> to vector<1x32x64xbf16>
    tpu.vector_store %arg4[%c0_58, %c0_59, %c0_60], %58 {strides = array<i32>} : memref<1x32x64xbf16, #tpu.memory_space<vmem>>, vector<1x32x64xbf16>,
    %59 = tpu.iota {dimensions = array<i32: 0>} : vector<32x1xi32>
    %c8_i32 = arith.constant 8 : i32
    %c0_i32 = arith.constant 0 : i32
    %60 = arith.cmpi eq, %c8_i32, %c0_i32 : i32
    %c1_i32 = arith.constant 1 : i32
    %61 = arith.select %60, %c1_i32, %c8_i32 : i32
    %62 = vector.broadcast %61 : i32 to vector<32x1xi32>
    %63 = arith.remsi %59, %62 : vector<32x1xi32>
    %c0_i32_61 = arith.constant 0 : i32
    %64 = vector.broadcast %c0_i32_61 : i32 to vector<32x1xi32>
    %65 = arith.cmpi ne, %63, %64 : vector<32x1xi32>
    %c0_i32_62 = arith.constant 0 : i32
    %66 = vector.broadcast %c0_i32_62 : i32 to vector<32x1xi32>
    %67 = arith.cmpi slt, %63, %66 : vector<32x1xi32>
    %c0_i32_63 = arith.constant 0 : i32
    %68 = arith.cmpi slt, %61, %c0_i32_63 : i32
    %69 = vector.broadcast %68 : i1 to vector<32x1xi1>
    %70 = vector.broadcast %69 : vector<32x1xi1> to vector<32x1xi1>
    %71 = arith.xori %67, %70 : vector<32x1xi1>
    %72 = arith.andi %71, %65 : vector<32x1xi1>
    %73 = vector.broadcast %61 : i32 to vector<32x1xi32>
    %74 = arith.addi %63, %73 : vector<32x1xi32>
    %75 = arith.select %72, %74, %63 : vector<32x1xi1>, vector<32x1xi32>
    %c4_i32 = arith.constant 4 : i32
    %76 = vector.broadcast %c4_i32 : i32 to vector<32x1xi32>
    %77 = arith.cmpi slt, %75, %76 : vector<32x1xi32>
    %78 = arith.extui %77 : vector<32x1xi1> to vector<32x1xi32>
    %79 = arith.sitofp %78 : vector<32x1xi32> to vector<32x1xf32>
    %80 = vector.broadcast %79 : vector<32x1xf32> to vector<32x64xf32>
    %81 = arith.mulf %54, %80 : vector<32x64xf32>
    %cst_64 = arith.constant dense<0.000000e+00> : vector<64xf32>
    %82 = vector.multi_reduction <add>, %81, %cst_64 [0] : vector<32x64xf32> to vector<64xf32>
    %83 = vector.shape_cast %82 : vector<64xf32> to vector<1x64xf32>
    %c0_65 = arith.constant 0 : index
    %c0_66 = arith.constant 0 : index
    %84 = vector.load %arg5[%c0_65, %c0_66] : memref<8x64xf32, #tpu.memory_space<vmem>>, vector<1x64xf32>
    tpu.vector_store %arg5[%c0_65, %c0_66], %83 {strides = array<i32>} : memref<8x64xf32, #tpu.memory_space<vmem>>, vector<1x64xf32>,
    %85 = arith.mulf %81, %81 : vector<32x64xf32>
    %cst_67 = arith.constant dense<0.000000e+00> : vector<64xf32>
    %86 = vector.multi_reduction <add>, %85, %cst_67 [0] : vector<32x64xf32> to vector<64xf32>
    %87 = vector.shape_cast %86 : vector<64xf32> to vector<1x64xf32>
    %c1_68 = arith.constant 1 : index
    %c0_69 = arith.constant 0 : index
    %88 = vector.load %arg5[%c1_68, %c0_69] : memref<8x64xf32, #tpu.memory_space<vmem>>, vector<1x64xf32>
    tpu.vector_store %arg5[%c1_68, %c0_69], %87 {strides = array<i32>} : memref<8x64xf32, #tpu.memory_space<vmem>>, vector<1x64xf32>,
    return
  }
  func.func @transform_0(%arg0: i32, %arg1: i32) -> (i32, i32, i32, i32) {
    %c0_i32 = arith.constant 0 : i32
    %c0_i32_0 = arith.constant 0 : i32
    %c0_i32_1 = arith.constant 0 : i32
    return %arg0, %arg1, %c0_i32, %c0_i32_0 : i32, i32, i32, i32
  }
  func.func @transform_1(%arg0: i32, %arg1: i32) -> (i32, i32, i32) {
    %c0_i32 = arith.constant 0 : i32
    %c0_i32_0 = arith.constant 0 : i32
    %c0_i32_1 = arith.constant 0 : i32
    %c0_i32_2 = arith.constant 0 : i32
    return %c0_i32, %c0_i32_0, %c0_i32_1 : i32, i32, i32
  }
  func.func @transform_2(%arg0: i32, %arg1: i32) -> (i32, i32, i32) {
    %c0_i32 = arith.constant 0 : i32
    %c0_i32_0 = arith.constant 0 : i32
    return %arg0, %arg1, %c0_i32 : i32, i32, i32
  }
  func.func @transform_3(%arg0: i32, %arg1: i32) -> (i32, i32) {
    %c1_i32 = arith.constant 1 : i32
    %0 = arith.muli %arg0, %c1_i32 : i32
    %1 = arith.addi %0, %arg1 : i32
    %c0_i32 = arith.constant 0 : i32
    %c0_i32_0 = arith.constant 0 : i32
    return %1, %c0_i32 : i32, i32
  }
}

module attributes {stable_mosaic.version = 11 : i64} {
  func.func @_bn_apply_kernel(%arg0: i32, %arg1: memref<32x64xbf16, #tpu.memory_space<vmem>>, %arg2: memref<8x64xf32, #tpu.memory_space<vmem>>, %arg3: memref<32x64xbf16, #tpu.memory_space<vmem>>, %arg4: memref<32x64xbf16, #tpu.memory_space<vmem>>) attributes {dimension_semantics = [#tpu.dimension_semantics<parallel>], iteration_bounds = array<i64: 1>, scalar_prefetch = 0 : i64, scratch_operands = 0 : i64, tpu.core_type = #tpu.core_type<tc>, window_params = [{transform_indices = @transform_0, window_bounds = array<i64: 32, 64>}, {pipeline_mode = #tpu.pipeline_mode<synchronous>, transform_indices = @transform_1, window_bounds = array<i64: 8, 64>}, {transform_indices = @transform_2, window_bounds = array<i64: 32, 64>}, {transform_indices = @transform_3, window_bounds = array<i64: 32, 64>}]} {
    %c0 = arith.constant 0 : index
    %c0_0 = arith.constant 0 : index
    %0 = vector.load %arg1[%c0, %c0_0] : memref<32x64xbf16, #tpu.memory_space<vmem>>, vector<32x64xbf16>
    %1 = arith.extf %0 : vector<32x64xbf16> to vector<32x64xf32>
    %c0_1 = arith.constant 0 : index
    %c0_2 = arith.constant 0 : index
    %2 = vector.load %arg2[%c0_1, %c0_2] : memref<8x64xf32, #tpu.memory_space<vmem>>, vector<1x64xf32>
    %cst = arith.constant 3.125000e-02 : f32
    %3 = vector.broadcast %cst : f32 to vector<1x64xf32>
    %4 = arith.mulf %2, %3 : vector<1x64xf32>
    %c1 = arith.constant 1 : index
    %c0_3 = arith.constant 0 : index
    %5 = vector.load %arg2[%c1, %c0_3] : memref<8x64xf32, #tpu.memory_space<vmem>>, vector<1x64xf32>
    %cst_4 = arith.constant 3.125000e-02 : f32
    %6 = vector.broadcast %cst_4 : f32 to vector<1x64xf32>
    %7 = arith.mulf %5, %6 : vector<1x64xf32>
    %8 = arith.mulf %4, %4 : vector<1x64xf32>
    %9 = arith.subf %7, %8 : vector<1x64xf32>
    %cst_5 = arith.constant 0.000000e+00 : f32
    %10 = vector.broadcast %cst_5 : f32 to vector<1x64xf32>
    %11 = arith.maximumf %9, %10 : vector<1x64xf32>
    %12 = vector.broadcast %4 : vector<1x64xf32> to vector<32x64xf32>
    %13 = arith.subf %1, %12 : vector<32x64xf32>
    %cst_6 = arith.constant 9.99999974E-6 : f32
    %14 = vector.broadcast %cst_6 : f32 to vector<1x64xf32>
    %15 = arith.addf %11, %14 : vector<1x64xf32>
    %16 = math.rsqrt %15 : vector<1x64xf32>
    %17 = vector.broadcast %16 : vector<1x64xf32> to vector<32x64xf32>
    %18 = arith.mulf %13, %17 : vector<32x64xf32>
    %cst_7 = arith.constant 0.000000e+00 : f32
    %19 = vector.broadcast %cst_7 : f32 to vector<32x64xf32>
    %20 = arith.maximumf %18, %19 : vector<32x64xf32>
    %c0_8 = arith.constant 0 : index
    %c0_9 = arith.constant 0 : index
    %21 = vector.load %arg3[%c0_8, %c0_9] : memref<32x64xbf16, #tpu.memory_space<vmem>>, vector<32x64xbf16>
    %22 = arith.extf %21 : vector<32x64xbf16> to vector<32x64xf32>
    %23 = arith.addf %20, %22 : vector<32x64xf32>
    %24 = arith.truncf %23 : vector<32x64xf32> to vector<32x64xbf16>
    %c0_10 = arith.constant 0 : index
    %c0_11 = arith.constant 0 : index
    %25 = vector.load %arg4[%c0_10, %c0_11] : memref<32x64xbf16, #tpu.memory_space<vmem>>, vector<32x64xbf16>
    tpu.vector_store %arg4[%c0_10, %c0_11], %24 {strides = array<i32>} : memref<32x64xbf16, #tpu.memory_space<vmem>>, vector<32x64xbf16>,
    return
  }
  func.func @transform_0(%arg0: i32) -> (i32, i32) {
    %c0_i32 = arith.constant 0 : i32
    %c0_i32_0 = arith.constant 0 : i32
    return %arg0, %c0_i32 : i32, i32
  }
  func.func @transform_1(%arg0: i32) -> (i32, i32) {
    %c0_i32 = arith.constant 0 : i32
    %c0_i32_0 = arith.constant 0 : i32
    %c0_i32_1 = arith.constant 0 : i32
    return %c0_i32, %c0_i32_0 : i32, i32
  }
  func.func @transform_2(%arg0: i32) -> (i32, i32) {
    %c0_i32 = arith.constant 0 : i32
    %c0_i32_0 = arith.constant 0 : i32
    return %arg0, %c0_i32 : i32, i32
  }
  func.func @transform_3(%arg0: i32) -> (i32, i32) {
    %c0_i32 = arith.constant 0 : i32
    %c0_i32_0 = arith.constant 0 : i32
    return %arg0, %c0_i32 : i32, i32
  }
}

module attributes {stable_mosaic.version = 11 : i64} {
  func.func @kernel(%arg0: i32, %arg1: i32, %arg2: memref<1x1x168x64xbf16, #tpu.memory_space<vmem>>, %arg3: memref<9x64x32xbf16, #tpu.memory_space<vmem>>, %arg4: memref<1x128x32xbf16, #tpu.memory_space<vmem>>, %arg5: memref<8x32xf32, #tpu.memory_space<vmem>>) attributes {dimension_semantics = [#tpu.dimension_semantics<parallel>, #tpu.dimension_semantics<parallel>], iteration_bounds = array<i64: 2, 1>, scalar_prefetch = 0 : i64, scratch_operands = 0 : i64, tpu.core_type = #tpu.core_type<tc>, window_params = [{transform_indices = @transform_0, window_bounds = array<i64: 1, 1, 168, 64>}, {pipeline_mode = #tpu.pipeline_mode<synchronous>, transform_indices = @transform_1, window_bounds = array<i64: 9, 64, 32>}, {transform_indices = @transform_2, window_bounds = array<i64: 1, 128, 32>}, {transform_indices = @transform_3, window_bounds = array<i64: 8, 32>}]} {
    %cst = arith.constant 0.000000e+00 : f32
    %0 = vector.broadcast %cst : f32 to vector<128x32xf32>
    %c0 = arith.constant 0 : index
    %c0_0 = arith.constant 0 : index
    %c0_1 = arith.constant 0 : index
    %c0_2 = arith.constant 0 : index
    %1 = vector.load %arg2[%c0, %c0_0, %c0_1, %c0_2] : memref<1x1x168x64xbf16, #tpu.memory_space<vmem>>, vector<1x1x128x64xbf16>
    %2 = vector.shape_cast %1 : vector<1x1x128x64xbf16> to vector<128x64xbf16>
    %c0_3 = arith.constant 0 : index
    %c0_4 = arith.constant 0 : index
    %c0_5 = arith.constant 0 : index
    %3 = vector.load %arg3[%c0_3, %c0_4, %c0_5] : memref<9x64x32xbf16, #tpu.memory_space<vmem>>, vector<1x64x32xbf16>
    %4 = vector.shape_cast %3 : vector<1x64x32xbf16> to vector<64x32xbf16>
    %cst_6 = arith.constant dense<0.000000e+00> : vector<128x32xf32>
    %5 = tpu.matmul %2, %4, %cst_6 {dimension_numbers = #tpu.dot_dimension_numbers<[1], [0], [0], [1], [0, 0, 1, 1], [], []>} : vector<128x64xbf16>, vector<64x32xbf16>, vector<128x32xf32> -> vector<128x32xf32>
    %6 = arith.addf %0, %5 : vector<128x32xf32>
    %c0_7 = arith.constant 0 : index
    %c0_8 = arith.constant 0 : index
    %c1 = arith.constant 1 : index
    %c0_9 = arith.constant 0 : index
    %7 = vector.load %arg2[%c0_7, %c0_8, %c1, %c0_9] : memref<1x1x168x64xbf16, #tpu.memory_space<vmem>>, vector<1x1x128x64xbf16>
    %8 = vector.shape_cast %7 : vector<1x1x128x64xbf16> to vector<128x64xbf16>
    %c1_10 = arith.constant 1 : index
    %c0_11 = arith.constant 0 : index
    %c0_12 = arith.constant 0 : index
    %9 = vector.load %arg3[%c1_10, %c0_11, %c0_12] : memref<9x64x32xbf16, #tpu.memory_space<vmem>>, vector<1x64x32xbf16>
    %10 = vector.shape_cast %9 : vector<1x64x32xbf16> to vector<64x32xbf16>
    %cst_13 = arith.constant dense<0.000000e+00> : vector<128x32xf32>
    %11 = tpu.matmul %8, %10, %cst_13 {dimension_numbers = #tpu.dot_dimension_numbers<[1], [0], [0], [1], [0, 0, 1, 1], [], []>} : vector<128x64xbf16>, vector<64x32xbf16>, vector<128x32xf32> -> vector<128x32xf32>
    %12 = arith.addf %6, %11 : vector<128x32xf32>
    %c0_14 = arith.constant 0 : index
    %c0_15 = arith.constant 0 : index
    %c2 = arith.constant 2 : index
    %c0_16 = arith.constant 0 : index
    %13 = vector.load %arg2[%c0_14, %c0_15, %c2, %c0_16] : memref<1x1x168x64xbf16, #tpu.memory_space<vmem>>, vector<1x1x128x64xbf16>
    %14 = vector.shape_cast %13 : vector<1x1x128x64xbf16> to vector<128x64xbf16>
    %c2_17 = arith.constant 2 : index
    %c0_18 = arith.constant 0 : index
    %c0_19 = arith.constant 0 : index
    %15 = vector.load %arg3[%c2_17, %c0_18, %c0_19] : memref<9x64x32xbf16, #tpu.memory_space<vmem>>, vector<1x64x32xbf16>
    %16 = vector.shape_cast %15 : vector<1x64x32xbf16> to vector<64x32xbf16>
    %cst_20 = arith.constant dense<0.000000e+00> : vector<128x32xf32>
    %17 = tpu.matmul %14, %16, %cst_20 {dimension_numbers = #tpu.dot_dimension_numbers<[1], [0], [0], [1], [0, 0, 1, 1], [], []>} : vector<128x64xbf16>, vector<64x32xbf16>, vector<128x32xf32> -> vector<128x32xf32>
    %18 = arith.addf %12, %17 : vector<128x32xf32>
    %c0_21 = arith.constant 0 : index
    %c0_22 = arith.constant 0 : index
    %c16 = arith.constant 16 : index
    %c0_23 = arith.constant 0 : index
    %19 = vector.load %arg2[%c0_21, %c0_22, %c16, %c0_23] : memref<1x1x168x64xbf16, #tpu.memory_space<vmem>>, vector<1x1x128x64xbf16>
    %20 = vector.shape_cast %19 : vector<1x1x128x64xbf16> to vector<128x64xbf16>
    %c3 = arith.constant 3 : index
    %c0_24 = arith.constant 0 : index
    %c0_25 = arith.constant 0 : index
    %21 = vector.load %arg3[%c3, %c0_24, %c0_25] : memref<9x64x32xbf16, #tpu.memory_space<vmem>>, vector<1x64x32xbf16>
    %22 = vector.shape_cast %21 : vector<1x64x32xbf16> to vector<64x32xbf16>
    %cst_26 = arith.constant dense<0.000000e+00> : vector<128x32xf32>
    %23 = tpu.matmul %20, %22, %cst_26 {dimension_numbers = #tpu.dot_dimension_numbers<[1], [0], [0], [1], [0, 0, 1, 1], [], []>} : vector<128x64xbf16>, vector<64x32xbf16>, vector<128x32xf32> -> vector<128x32xf32>
    %24 = arith.addf %18, %23 : vector<128x32xf32>
    %c0_27 = arith.constant 0 : index
    %c0_28 = arith.constant 0 : index
    %c17 = arith.constant 17 : index
    %c0_29 = arith.constant 0 : index
    %25 = vector.load %arg2[%c0_27, %c0_28, %c17, %c0_29] : memref<1x1x168x64xbf16, #tpu.memory_space<vmem>>, vector<1x1x128x64xbf16>
    %26 = vector.shape_cast %25 : vector<1x1x128x64xbf16> to vector<128x64xbf16>
    %c4 = arith.constant 4 : index
    %c0_30 = arith.constant 0 : index
    %c0_31 = arith.constant 0 : index
    %27 = vector.load %arg3[%c4, %c0_30, %c0_31] : memref<9x64x32xbf16, #tpu.memory_space<vmem>>, vector<1x64x32xbf16>
    %28 = vector.shape_cast %27 : vector<1x64x32xbf16> to vector<64x32xbf16>
    %cst_32 = arith.constant dense<0.000000e+00> : vector<128x32xf32>
    %29 = tpu.matmul %26, %28, %cst_32 {dimension_numbers = #tpu.dot_dimension_numbers<[1], [0], [0], [1], [0, 0, 1, 1], [], []>} : vector<128x64xbf16>, vector<64x32xbf16>, vector<128x32xf32> -> vector<128x32xf32>
    %30 = arith.addf %24, %29 : vector<128x32xf32>
    %c0_33 = arith.constant 0 : index
    %c0_34 = arith.constant 0 : index
    %c18 = arith.constant 18 : index
    %c0_35 = arith.constant 0 : index
    %31 = vector.load %arg2[%c0_33, %c0_34, %c18, %c0_35] : memref<1x1x168x64xbf16, #tpu.memory_space<vmem>>, vector<1x1x128x64xbf16>
    %32 = vector.shape_cast %31 : vector<1x1x128x64xbf16> to vector<128x64xbf16>
    %c5 = arith.constant 5 : index
    %c0_36 = arith.constant 0 : index
    %c0_37 = arith.constant 0 : index
    %33 = vector.load %arg3[%c5, %c0_36, %c0_37] : memref<9x64x32xbf16, #tpu.memory_space<vmem>>, vector<1x64x32xbf16>
    %34 = vector.shape_cast %33 : vector<1x64x32xbf16> to vector<64x32xbf16>
    %cst_38 = arith.constant dense<0.000000e+00> : vector<128x32xf32>
    %35 = tpu.matmul %32, %34, %cst_38 {dimension_numbers = #tpu.dot_dimension_numbers<[1], [0], [0], [1], [0, 0, 1, 1], [], []>} : vector<128x64xbf16>, vector<64x32xbf16>, vector<128x32xf32> -> vector<128x32xf32>
    %36 = arith.addf %30, %35 : vector<128x32xf32>
    %c0_39 = arith.constant 0 : index
    %c0_40 = arith.constant 0 : index
    %c32 = arith.constant 32 : index
    %c0_41 = arith.constant 0 : index
    %37 = vector.load %arg2[%c0_39, %c0_40, %c32, %c0_41] : memref<1x1x168x64xbf16, #tpu.memory_space<vmem>>, vector<1x1x128x64xbf16>
    %38 = vector.shape_cast %37 : vector<1x1x128x64xbf16> to vector<128x64xbf16>
    %c6 = arith.constant 6 : index
    %c0_42 = arith.constant 0 : index
    %c0_43 = arith.constant 0 : index
    %39 = vector.load %arg3[%c6, %c0_42, %c0_43] : memref<9x64x32xbf16, #tpu.memory_space<vmem>>, vector<1x64x32xbf16>
    %40 = vector.shape_cast %39 : vector<1x64x32xbf16> to vector<64x32xbf16>
    %cst_44 = arith.constant dense<0.000000e+00> : vector<128x32xf32>
    %41 = tpu.matmul %38, %40, %cst_44 {dimension_numbers = #tpu.dot_dimension_numbers<[1], [0], [0], [1], [0, 0, 1, 1], [], []>} : vector<128x64xbf16>, vector<64x32xbf16>, vector<128x32xf32> -> vector<128x32xf32>
    %42 = arith.addf %36, %41 : vector<128x32xf32>
    %c0_45 = arith.constant 0 : index
    %c0_46 = arith.constant 0 : index
    %c33 = arith.constant 33 : index
    %c0_47 = arith.constant 0 : index
    %43 = vector.load %arg2[%c0_45, %c0_46, %c33, %c0_47] : memref<1x1x168x64xbf16, #tpu.memory_space<vmem>>, vector<1x1x128x64xbf16>
    %44 = vector.shape_cast %43 : vector<1x1x128x64xbf16> to vector<128x64xbf16>
    %c7 = arith.constant 7 : index
    %c0_48 = arith.constant 0 : index
    %c0_49 = arith.constant 0 : index
    %45 = vector.load %arg3[%c7, %c0_48, %c0_49] : memref<9x64x32xbf16, #tpu.memory_space<vmem>>, vector<1x64x32xbf16>
    %46 = vector.shape_cast %45 : vector<1x64x32xbf16> to vector<64x32xbf16>
    %cst_50 = arith.constant dense<0.000000e+00> : vector<128x32xf32>
    %47 = tpu.matmul %44, %46, %cst_50 {dimension_numbers = #tpu.dot_dimension_numbers<[1], [0], [0], [1], [0, 0, 1, 1], [], []>} : vector<128x64xbf16>, vector<64x32xbf16>, vector<128x32xf32> -> vector<128x32xf32>
    %48 = arith.addf %42, %47 : vector<128x32xf32>
    %c0_51 = arith.constant 0 : index
    %c0_52 = arith.constant 0 : index
    %c34 = arith.constant 34 : index
    %c0_53 = arith.constant 0 : index
    %49 = vector.load %arg2[%c0_51, %c0_52, %c34, %c0_53] : memref<1x1x168x64xbf16, #tpu.memory_space<vmem>>, vector<1x1x128x64xbf16>
    %50 = vector.shape_cast %49 : vector<1x1x128x64xbf16> to vector<128x64xbf16>
    %c8 = arith.constant 8 : index
    %c0_54 = arith.constant 0 : index
    %c0_55 = arith.constant 0 : index
    %51 = vector.load %arg3[%c8, %c0_54, %c0_55] : memref<9x64x32xbf16, #tpu.memory_space<vmem>>, vector<1x64x32xbf16>
    %52 = vector.shape_cast %51 : vector<1x64x32xbf16> to vector<64x32xbf16>
    %cst_56 = arith.constant dense<0.000000e+00> : vector<128x32xf32>
    %53 = tpu.matmul %50, %52, %cst_56 {dimension_numbers = #tpu.dot_dimension_numbers<[1], [0], [0], [1], [0, 0, 1, 1], [], []>} : vector<128x64xbf16>, vector<64x32xbf16>, vector<128x32xf32> -> vector<128x32xf32>
    %54 = arith.addf %48, %53 : vector<128x32xf32>
    %55 = arith.truncf %54 : vector<128x32xf32> to vector<128x32xbf16>
    %c0_57 = arith.constant 0 : index
    %c0_58 = arith.constant 0 : index
    %c0_59 = arith.constant 0 : index
    %56 = vector.load %arg4[%c0_57, %c0_58, %c0_59] : memref<1x128x32xbf16, #tpu.memory_space<vmem>>, vector<1x128x32xbf16>
    %57 = vector.shape_cast %56 : vector<1x128x32xbf16> to vector<128x32xbf16>
    %58 = vector.shape_cast %55 : vector<128x32xbf16> to vector<1x128x32xbf16>
    tpu.vector_store %arg4[%c0_57, %c0_58, %c0_59], %58 {strides = array<i32>} : memref<1x128x32xbf16, #tpu.memory_space<vmem>>, vector<1x128x32xbf16>,
    %59 = tpu.iota {dimensions = array<i32: 0>} : vector<128x1xi32>
    %c16_i32 = arith.constant 16 : i32
    %c0_i32 = arith.constant 0 : i32
    %60 = arith.cmpi eq, %c16_i32, %c0_i32 : i32
    %c1_i32 = arith.constant 1 : i32
    %61 = arith.select %60, %c1_i32, %c16_i32 : i32
    %62 = vector.broadcast %61 : i32 to vector<128x1xi32>
    %63 = arith.remsi %59, %62 : vector<128x1xi32>
    %c0_i32_60 = arith.constant 0 : i32
    %64 = vector.broadcast %c0_i32_60 : i32 to vector<128x1xi32>
    %65 = arith.cmpi ne, %63, %64 : vector<128x1xi32>
    %c0_i32_61 = arith.constant 0 : i32
    %66 = vector.broadcast %c0_i32_61 : i32 to vector<128x1xi32>
    %67 = arith.cmpi slt, %63, %66 : vector<128x1xi32>
    %c0_i32_62 = arith.constant 0 : i32
    %68 = arith.cmpi slt, %61, %c0_i32_62 : i32
    %69 = vector.broadcast %68 : i1 to vector<128x1xi1>
    %70 = vector.broadcast %69 : vector<128x1xi1> to vector<128x1xi1>
    %71 = arith.xori %67, %70 : vector<128x1xi1>
    %72 = arith.andi %71, %65 : vector<128x1xi1>
    %73 = vector.broadcast %61 : i32 to vector<128x1xi32>
    %74 = arith.addi %63, %73 : vector<128x1xi32>
    %75 = arith.select %72, %74, %63 : vector<128x1xi1>, vector<128x1xi32>
    %c8_i32 = arith.constant 8 : i32
    %76 = vector.broadcast %c8_i32 : i32 to vector<128x1xi32>
    %77 = arith.cmpi slt, %75, %76 : vector<128x1xi32>
    %78 = arith.extui %77 : vector<128x1xi1> to vector<128x1xi32>
    %79 = arith.sitofp %78 : vector<128x1xi32> to vector<128x1xf32>
    %80 = vector.broadcast %79 : vector<128x1xf32> to vector<128x32xf32>
    %81 = arith.mulf %54, %80 : vector<128x32xf32>
    %cst_63 = arith.constant dense<0.000000e+00> : vector<32xf32>
    %82 = vector.multi_reduction <add>, %81, %cst_63 [0] : vector<128x32xf32> to vector<32xf32>
    %83 = vector.shape_cast %82 : vector<32xf32> to vector<1x32xf32>
    %c0_64 = arith.constant 0 : index
    %c0_65 = arith.constant 0 : index
    %84 = vector.load %arg5[%c0_64, %c0_65] : memref<8x32xf32, #tpu.memory_space<vmem>>, vector<1x32xf32>
    tpu.vector_store %arg5[%c0_64, %c0_65], %83 {strides = array<i32>} : memref<8x32xf32, #tpu.memory_space<vmem>>, vector<1x32xf32>,
    %85 = arith.mulf %81, %81 : vector<128x32xf32>
    %cst_66 = arith.constant dense<0.000000e+00> : vector<32xf32>
    %86 = vector.multi_reduction <add>, %85, %cst_66 [0] : vector<128x32xf32> to vector<32xf32>
    %87 = vector.shape_cast %86 : vector<32xf32> to vector<1x32xf32>
    %c1_67 = arith.constant 1 : index
    %c0_68 = arith.constant 0 : index
    %88 = vector.load %arg5[%c1_67, %c0_68] : memref<8x32xf32, #tpu.memory_space<vmem>>, vector<1x32xf32>
    tpu.vector_store %arg5[%c1_67, %c0_68], %87 {strides = array<i32>} : memref<8x32xf32, #tpu.memory_space<vmem>>, vector<1x32xf32>,
    return
  }
  func.func @transform_0(%arg0: i32, %arg1: i32) -> (i32, i32, i32, i32) {
    %c0_i32 = arith.constant 0 : i32
    %c0_i32_0 = arith.constant 0 : i32
    %c0_i32_1 = arith.constant 0 : i32
    return %arg0, %arg1, %c0_i32, %c0_i32_0 : i32, i32, i32, i32
  }
  func.func @transform_1(%arg0: i32, %arg1: i32) -> (i32, i32, i32) {
    %c0_i32 = arith.constant 0 : i32
    %c0_i32_0 = arith.constant 0 : i32
    %c0_i32_1 = arith.constant 0 : i32
    %c0_i32_2 = arith.constant 0 : i32
    return %c0_i32, %c0_i32_0, %c0_i32_1 : i32, i32, i32
  }
  func.func @transform_2(%arg0: i32, %arg1: i32) -> (i32, i32, i32) {
    %c0_i32 = arith.constant 0 : i32
    %c0_i32_0 = arith.constant 0 : i32
    return %arg0, %arg1, %c0_i32 : i32, i32, i32
  }
  func.func @transform_3(%arg0: i32, %arg1: i32) -> (i32, i32) {
    %c1_i32 = arith.constant 1 : i32
    %0 = arith.muli %arg0, %c1_i32 : i32
    %1 = arith.addi %0, %arg1 : i32
    %c0_i32 = arith.constant 0 : i32
    %c0_i32_0 = arith.constant 0 : i32
    return %1, %c0_i32 : i32, i32
  }
}

module attributes {stable_mosaic.version = 11 : i64} {
  func.func @_bn_apply_kernel(%arg0: i32, %arg1: memref<128x32xbf16, #tpu.memory_space<vmem>>, %arg2: memref<8x32xf32, #tpu.memory_space<vmem>>, %arg3: memref<128x32xbf16, #tpu.memory_space<vmem>>, %arg4: memref<128x32xbf16, #tpu.memory_space<vmem>>) attributes {dimension_semantics = [#tpu.dimension_semantics<parallel>], iteration_bounds = array<i64: 1>, scalar_prefetch = 0 : i64, scratch_operands = 0 : i64, tpu.core_type = #tpu.core_type<tc>, window_params = [{transform_indices = @transform_0, window_bounds = array<i64: 128, 32>}, {pipeline_mode = #tpu.pipeline_mode<synchronous>, transform_indices = @transform_1, window_bounds = array<i64: 8, 32>}, {transform_indices = @transform_2, window_bounds = array<i64: 128, 32>}, {transform_indices = @transform_3, window_bounds = array<i64: 128, 32>}]} {
    %c0 = arith.constant 0 : index
    %c0_0 = arith.constant 0 : index
    %0 = vector.load %arg1[%c0, %c0_0] : memref<128x32xbf16, #tpu.memory_space<vmem>>, vector<128x32xbf16>
    %1 = arith.extf %0 : vector<128x32xbf16> to vector<128x32xf32>
    %c0_1 = arith.constant 0 : index
    %c0_2 = arith.constant 0 : index
    %2 = vector.load %arg2[%c0_1, %c0_2] : memref<8x32xf32, #tpu.memory_space<vmem>>, vector<1x32xf32>
    %cst = arith.constant 7.812500e-03 : f32
    %3 = vector.broadcast %cst : f32 to vector<1x32xf32>
    %4 = arith.mulf %2, %3 : vector<1x32xf32>
    %c1 = arith.constant 1 : index
    %c0_3 = arith.constant 0 : index
    %5 = vector.load %arg2[%c1, %c0_3] : memref<8x32xf32, #tpu.memory_space<vmem>>, vector<1x32xf32>
    %cst_4 = arith.constant 7.812500e-03 : f32
    %6 = vector.broadcast %cst_4 : f32 to vector<1x32xf32>
    %7 = arith.mulf %5, %6 : vector<1x32xf32>
    %8 = arith.mulf %4, %4 : vector<1x32xf32>
    %9 = arith.subf %7, %8 : vector<1x32xf32>
    %cst_5 = arith.constant 0.000000e+00 : f32
    %10 = vector.broadcast %cst_5 : f32 to vector<1x32xf32>
    %11 = arith.maximumf %9, %10 : vector<1x32xf32>
    %12 = vector.broadcast %4 : vector<1x32xf32> to vector<128x32xf32>
    %13 = arith.subf %1, %12 : vector<128x32xf32>
    %cst_6 = arith.constant 9.99999974E-6 : f32
    %14 = vector.broadcast %cst_6 : f32 to vector<1x32xf32>
    %15 = arith.addf %11, %14 : vector<1x32xf32>
    %16 = math.rsqrt %15 : vector<1x32xf32>
    %17 = vector.broadcast %16 : vector<1x32xf32> to vector<128x32xf32>
    %18 = arith.mulf %13, %17 : vector<128x32xf32>
    %cst_7 = arith.constant 0.000000e+00 : f32
    %19 = vector.broadcast %cst_7 : f32 to vector<128x32xf32>
    %20 = arith.maximumf %18, %19 : vector<128x32xf32>
    %c0_8 = arith.constant 0 : index
    %c0_9 = arith.constant 0 : index
    %21 = vector.load %arg3[%c0_8, %c0_9] : memref<128x32xbf16, #tpu.memory_space<vmem>>, vector<128x32xbf16>
    %22 = arith.extf %21 : vector<128x32xbf16> to vector<128x32xf32>
    %23 = arith.addf %20, %22 : vector<128x32xf32>
    %24 = arith.truncf %23 : vector<128x32xf32> to vector<128x32xbf16>
    %c0_10 = arith.constant 0 : index
    %c0_11 = arith.constant 0 : index
    %25 = vector.load %arg4[%c0_10, %c0_11] : memref<128x32xbf16, #tpu.memory_space<vmem>>, vector<128x32xbf16>
    tpu.vector_store %arg4[%c0_10, %c0_11], %24 {strides = array<i32>} : memref<128x32xbf16, #tpu.memory_space<vmem>>, vector<128x32xbf16>,
    return
  }
  func.func @transform_0(%arg0: i32) -> (i32, i32) {
    %c0_i32 = arith.constant 0 : i32
    %c0_i32_0 = arith.constant 0 : i32
    return %arg0, %c0_i32 : i32, i32
  }
  func.func @transform_1(%arg0: i32) -> (i32, i32) {
    %c0_i32 = arith.constant 0 : i32
    %c0_i32_0 = arith.constant 0 : i32
    %c0_i32_1 = arith.constant 0 : i32
    return %c0_i32, %c0_i32_0 : i32, i32
  }
  func.func @transform_2(%arg0: i32) -> (i32, i32) {
    %c0_i32 = arith.constant 0 : i32
    %c0_i32_0 = arith.constant 0 : i32
    return %arg0, %c0_i32 : i32, i32
  }
  func.func @transform_3(%arg0: i32) -> (i32, i32) {
    %c0_i32 = arith.constant 0 : i32
    %c0_i32_0 = arith.constant 0 : i32
    return %arg0, %c0_i32 : i32, i32
  }
}

module attributes {stable_mosaic.version = 11 : i64} {
  func.func @kernel(%arg0: i32, %arg1: i32, %arg2: memref<1x1x440x32xbf16, #tpu.memory_space<vmem>>, %arg3: memref<9x32x128xbf16, #tpu.memory_space<vmem>>, %arg4: memref<1x128xf32, #tpu.memory_space<vmem>>, %arg5: memref<1x384x128xf32, #tpu.memory_space<vmem>>) attributes {dimension_semantics = [#tpu.dimension_semantics<parallel>, #tpu.dimension_semantics<parallel>], iteration_bounds = array<i64: 2, 1>, scalar_prefetch = 0 : i64, scratch_operands = 0 : i64, tpu.core_type = #tpu.core_type<tc>, window_params = [{transform_indices = @transform_0, window_bounds = array<i64: 1, 1, 440, 32>}, {pipeline_mode = #tpu.pipeline_mode<synchronous>, transform_indices = @transform_1, window_bounds = array<i64: 9, 32, 128>}, {pipeline_mode = #tpu.pipeline_mode<synchronous>, transform_indices = @transform_2, window_bounds = array<i64: 1, 128>}, {transform_indices = @transform_3, window_bounds = array<i64: 1, 384, 128>}]} {
    %cst = arith.constant 0.000000e+00 : f32
    %0 = vector.broadcast %cst : f32 to vector<384x128xf32>
    %c0 = arith.constant 0 : index
    %c0_0 = arith.constant 0 : index
    %c0_1 = arith.constant 0 : index
    %c0_2 = arith.constant 0 : index
    %1 = vector.load %arg2[%c0, %c0_0, %c0_1, %c0_2] : memref<1x1x440x32xbf16, #tpu.memory_space<vmem>>, vector<1x1x384x32xbf16>
    %2 = vector.shape_cast %1 : vector<1x1x384x32xbf16> to vector<384x32xbf16>
    %c0_3 = arith.constant 0 : index
    %c0_4 = arith.constant 0 : index
    %c0_5 = arith.constant 0 : index
    %3 = vector.load %arg3[%c0_3, %c0_4, %c0_5] : memref<9x32x128xbf16, #tpu.memory_space<vmem>>, vector<1x32x128xbf16>
    %4 = vector.shape_cast %3 : vector<1x32x128xbf16> to vector<32x128xbf16>
    %cst_6 = arith.constant dense<0.000000e+00> : vector<384x128xf32>
    %5 = tpu.matmul %2, %4, %cst_6 {dimension_numbers = #tpu.dot_dimension_numbers<[1], [0], [0], [1], [0, 0, 1, 1], [], []>} : vector<384x32xbf16>, vector<32x128xbf16>, vector<384x128xf32> -> vector<384x128xf32>
    %6 = arith.addf %0, %5 : vector<384x128xf32>
    %c0_7 = arith.constant 0 : index
    %c0_8 = arith.constant 0 : index
    %c1 = arith.constant 1 : index
    %c0_9 = arith.constant 0 : index
    %7 = vector.load %arg2[%c0_7, %c0_8, %c1, %c0_9] : memref<1x1x440x32xbf16, #tpu.memory_space<vmem>>, vector<1x1x384x32xbf16>
    %8 = vector.shape_cast %7 : vector<1x1x384x32xbf16> to vector<384x32xbf16>
    %c1_10 = arith.constant 1 : index
    %c0_11 = arith.constant 0 : index
    %c0_12 = arith.constant 0 : index
    %9 = vector.load %arg3[%c1_10, %c0_11, %c0_12] : memref<9x32x128xbf16, #tpu.memory_space<vmem>>, vector<1x32x128xbf16>
    %10 = vector.shape_cast %9 : vector<1x32x128xbf16> to vector<32x128xbf16>
    %cst_13 = arith.constant dense<0.000000e+00> : vector<384x128xf32>
    %11 = tpu.matmul %8, %10, %cst_13 {dimension_numbers = #tpu.dot_dimension_numbers<[1], [0], [0], [1], [0, 0, 1, 1], [], []>} : vector<384x32xbf16>, vector<32x128xbf16>, vector<384x128xf32> -> vector<384x128xf32>
    %12 = arith.addf %6, %11 : vector<384x128xf32>
    %c0_14 = arith.constant 0 : index
    %c0_15 = arith.constant 0 : index
    %c2 = arith.constant 2 : index
    %c0_16 = arith.constant 0 : index
    %13 = vector.load %arg2[%c0_14, %c0_15, %c2, %c0_16] : memref<1x1x440x32xbf16, #tpu.memory_space<vmem>>, vector<1x1x384x32xbf16>
    %14 = vector.shape_cast %13 : vector<1x1x384x32xbf16> to vector<384x32xbf16>
    %c2_17 = arith.constant 2 : index
    %c0_18 = arith.constant 0 : index
    %c0_19 = arith.constant 0 : index
    %15 = vector.load %arg3[%c2_17, %c0_18, %c0_19] : memref<9x32x128xbf16, #tpu.memory_space<vmem>>, vector<1x32x128xbf16>
    %16 = vector.shape_cast %15 : vector<1x32x128xbf16> to vector<32x128xbf16>
    %cst_20 = arith.constant dense<0.000000e+00> : vector<384x128xf32>
    %17 = tpu.matmul %14, %16, %cst_20 {dimension_numbers = #tpu.dot_dimension_numbers<[1], [0], [0], [1], [0, 0, 1, 1], [], []>} : vector<384x32xbf16>, vector<32x128xbf16>, vector<384x128xf32> -> vector<384x128xf32>
    %18 = arith.addf %12, %17 : vector<384x128xf32>
    %c0_21 = arith.constant 0 : index
    %c0_22 = arith.constant 0 : index
    %c24 = arith.constant 24 : index
    %c0_23 = arith.constant 0 : index
    %19 = vector.load %arg2[%c0_21, %c0_22, %c24, %c0_23] : memref<1x1x440x32xbf16, #tpu.memory_space<vmem>>, vector<1x1x384x32xbf16>
    %20 = vector.shape_cast %19 : vector<1x1x384x32xbf16> to vector<384x32xbf16>
    %c3 = arith.constant 3 : index
    %c0_24 = arith.constant 0 : index
    %c0_25 = arith.constant 0 : index
    %21 = vector.load %arg3[%c3, %c0_24, %c0_25] : memref<9x32x128xbf16, #tpu.memory_space<vmem>>, vector<1x32x128xbf16>
    %22 = vector.shape_cast %21 : vector<1x32x128xbf16> to vector<32x128xbf16>
    %cst_26 = arith.constant dense<0.000000e+00> : vector<384x128xf32>
    %23 = tpu.matmul %20, %22, %cst_26 {dimension_numbers = #tpu.dot_dimension_numbers<[1], [0], [0], [1], [0, 0, 1, 1], [], []>} : vector<384x32xbf16>, vector<32x128xbf16>, vector<384x128xf32> -> vector<384x128xf32>
    %24 = arith.addf %18, %23 : vector<384x128xf32>
    %c0_27 = arith.constant 0 : index
    %c0_28 = arith.constant 0 : index
    %c25 = arith.constant 25 : index
    %c0_29 = arith.constant 0 : index
    %25 = vector.load %arg2[%c0_27, %c0_28, %c25, %c0_29] : memref<1x1x440x32xbf16, #tpu.memory_space<vmem>>, vector<1x1x384x32xbf16>
    %26 = vector.shape_cast %25 : vector<1x1x384x32xbf16> to vector<384x32xbf16>
    %c4 = arith.constant 4 : index
    %c0_30 = arith.constant 0 : index
    %c0_31 = arith.constant 0 : index
    %27 = vector.load %arg3[%c4, %c0_30, %c0_31] : memref<9x32x128xbf16, #tpu.memory_space<vmem>>, vector<1x32x128xbf16>
    %28 = vector.shape_cast %27 : vector<1x32x128xbf16> to vector<32x128xbf16>
    %cst_32 = arith.constant dense<0.000000e+00> : vector<384x128xf32>
    %29 = tpu.matmul %26, %28, %cst_32 {dimension_numbers = #tpu.dot_dimension_numbers<[1], [0], [0], [1], [0, 0, 1, 1], [], []>} : vector<384x32xbf16>, vector<32x128xbf16>, vector<384x128xf32> -> vector<384x128xf32>
    %30 = arith.addf %24, %29 : vector<384x128xf32>
    %c0_33 = arith.constant 0 : index
    %c0_34 = arith.constant 0 : index
    %c26 = arith.constant 26 : index
    %c0_35 = arith.constant 0 : index
    %31 = vector.load %arg2[%c0_33, %c0_34, %c26, %c0_35] : memref<1x1x440x32xbf16, #tpu.memory_space<vmem>>, vector<1x1x384x32xbf16>
    %32 = vector.shape_cast %31 : vector<1x1x384x32xbf16> to vector<384x32xbf16>
    %c5 = arith.constant 5 : index
    %c0_36 = arith.constant 0 : index
    %c0_37 = arith.constant 0 : index
    %33 = vector.load %arg3[%c5, %c0_36, %c0_37] : memref<9x32x128xbf16, #tpu.memory_space<vmem>>, vector<1x32x128xbf16>
    %34 = vector.shape_cast %33 : vector<1x32x128xbf16> to vector<32x128xbf16>
    %cst_38 = arith.constant dense<0.000000e+00> : vector<384x128xf32>
    %35 = tpu.matmul %32, %34, %cst_38 {dimension_numbers = #tpu.dot_dimension_numbers<[1], [0], [0], [1], [0, 0, 1, 1], [], []>} : vector<384x32xbf16>, vector<32x128xbf16>, vector<384x128xf32> -> vector<384x128xf32>
    %36 = arith.addf %30, %35 : vector<384x128xf32>
    %c0_39 = arith.constant 0 : index
    %c0_40 = arith.constant 0 : index
    %c48 = arith.constant 48 : index
    %c0_41 = arith.constant 0 : index
    %37 = vector.load %arg2[%c0_39, %c0_40, %c48, %c0_41] : memref<1x1x440x32xbf16, #tpu.memory_space<vmem>>, vector<1x1x384x32xbf16>
    %38 = vector.shape_cast %37 : vector<1x1x384x32xbf16> to vector<384x32xbf16>
    %c6 = arith.constant 6 : index
    %c0_42 = arith.constant 0 : index
    %c0_43 = arith.constant 0 : index
    %39 = vector.load %arg3[%c6, %c0_42, %c0_43] : memref<9x32x128xbf16, #tpu.memory_space<vmem>>, vector<1x32x128xbf16>
    %40 = vector.shape_cast %39 : vector<1x32x128xbf16> to vector<32x128xbf16>
    %cst_44 = arith.constant dense<0.000000e+00> : vector<384x128xf32>
    %41 = tpu.matmul %38, %40, %cst_44 {dimension_numbers = #tpu.dot_dimension_numbers<[1], [0], [0], [1], [0, 0, 1, 1], [], []>} : vector<384x32xbf16>, vector<32x128xbf16>, vector<384x128xf32> -> vector<384x128xf32>
    %42 = arith.addf %36, %41 : vector<384x128xf32>
    %c0_45 = arith.constant 0 : index
    %c0_46 = arith.constant 0 : index
    %c49 = arith.constant 49 : index
    %c0_47 = arith.constant 0 : index
    %43 = vector.load %arg2[%c0_45, %c0_46, %c49, %c0_47] : memref<1x1x440x32xbf16, #tpu.memory_space<vmem>>, vector<1x1x384x32xbf16>
    %44 = vector.shape_cast %43 : vector<1x1x384x32xbf16> to vector<384x32xbf16>
    %c7 = arith.constant 7 : index
    %c0_48 = arith.constant 0 : index
    %c0_49 = arith.constant 0 : index
    %45 = vector.load %arg3[%c7, %c0_48, %c0_49] : memref<9x32x128xbf16, #tpu.memory_space<vmem>>, vector<1x32x128xbf16>
    %46 = vector.shape_cast %45 : vector<1x32x128xbf16> to vector<32x128xbf16>
    %cst_50 = arith.constant dense<0.000000e+00> : vector<384x128xf32>
    %47 = tpu.matmul %44, %46, %cst_50 {dimension_numbers = #tpu.dot_dimension_numbers<[1], [0], [0], [1], [0, 0, 1, 1], [], []>} : vector<384x32xbf16>, vector<32x128xbf16>, vector<384x128xf32> -> vector<384x128xf32>
    %48 = arith.addf %42, %47 : vector<384x128xf32>
    %c0_51 = arith.constant 0 : index
    %c0_52 = arith.constant 0 : index
    %c50 = arith.constant 50 : index
    %c0_53 = arith.constant 0 : index
    %49 = vector.load %arg2[%c0_51, %c0_52, %c50, %c0_53] : memref<1x1x440x32xbf16, #tpu.memory_space<vmem>>, vector<1x1x384x32xbf16>
    %50 = vector.shape_cast %49 : vector<1x1x384x32xbf16> to vector<384x32xbf16>
    %c8 = arith.constant 8 : index
    %c0_54 = arith.constant 0 : index
    %c0_55 = arith.constant 0 : index
    %51 = vector.load %arg3[%c8, %c0_54, %c0_55] : memref<9x32x128xbf16, #tpu.memory_space<vmem>>, vector<1x32x128xbf16>
    %52 = vector.shape_cast %51 : vector<1x32x128xbf16> to vector<32x128xbf16>
    %cst_56 = arith.constant dense<0.000000e+00> : vector<384x128xf32>
    %53 = tpu.matmul %50, %52, %cst_56 {dimension_numbers = #tpu.dot_dimension_numbers<[1], [0], [0], [1], [0, 0, 1, 1], [], []>} : vector<384x32xbf16>, vector<32x128xbf16>, vector<384x128xf32> -> vector<384x128xf32>
    %54 = arith.addf %48, %53 : vector<384x128xf32>
    %c0_57 = arith.constant 0 : index
    %c0_58 = arith.constant 0 : index
    %55 = vector.load %arg4[%c0_57, %c0_58] : memref<1x128xf32, #tpu.memory_space<vmem>>, vector<1x128xf32>
    %56 = vector.broadcast %55 : vector<1x128xf32> to vector<384x128xf32>
    %57 = arith.addf %54, %56 : vector<384x128xf32>
    %58 = math.tanh %57 : vector<384x128xf32>
    %c0_59 = arith.constant 0 : index
    %c0_60 = arith.constant 0 : index
    %c0_61 = arith.constant 0 : index
    %59 = vector.load %arg5[%c0_59, %c0_60, %c0_61] : memref<1x384x128xf32, #tpu.memory_space<vmem>>, vector<1x384x128xf32>
    %60 = vector.shape_cast %59 : vector<1x384x128xf32> to vector<384x128xf32>
    %61 = vector.shape_cast %58 : vector<384x128xf32> to vector<1x384x128xf32>
    tpu.vector_store %arg5[%c0_59, %c0_60, %c0_61], %61 {strides = array<i32>} : memref<1x384x128xf32, #tpu.memory_space<vmem>>, vector<1x384x128xf32>,
    return
  }
  func.func @transform_0(%arg0: i32, %arg1: i32) -> (i32, i32, i32, i32) {
    %c0_i32 = arith.constant 0 : i32
    %c0_i32_0 = arith.constant 0 : i32
    %c0_i32_1 = arith.constant 0 : i32
    return %arg0, %arg1, %c0_i32, %c0_i32_0 : i32, i32, i32, i32
  }
  func.func @transform_1(%arg0: i32, %arg1: i32) -> (i32, i32, i32) {
    %c0_i32 = arith.constant 0 : i32
    %c0_i32_0 = arith.constant 0 : i32
    %c0_i32_1 = arith.constant 0 : i32
    %c0_i32_2 = arith.constant 0 : i32
    return %c0_i32, %c0_i32_0, %c0_i32_1 : i32, i32, i32
  }
  func.func @transform_2(%arg0: i32, %arg1: i32) -> (i32, i32) {
    %c0_i32 = arith.constant 0 : i32
    %c0_i32_0 = arith.constant 0 : i32
    %c0_i32_1 = arith.constant 0 : i32
    return %c0_i32, %c0_i32_0 : i32, i32
  }
  func.func @transform_3(%arg0: i32, %arg1: i32) -> (i32, i32, i32) {
    %c0_i32 = arith.constant 0 : i32
    %c0_i32_0 = arith.constant 0 : i32
    return %arg0, %arg1, %c0_i32 : i32, i32, i32
  }
}

</mosaic_0001>

<llo_original>
// kernel: unet_forward.14
$region0: #{unet_forward.14}
  #allocation0 [shape = 'u32[]', space=smem, size = 0x4, offset = 0x4, fixed_abs, tag = 'smem constant byte address 0x4 - core index']
  #allocation1 [shape = 'u32[72,128]{1,0:T(1,128)}', space=vmem, size = 0x9000, scoped, tag = 'internal scratch']
  %s0 = inlined_call_operand.vmem [shape: bf16[128,9], index: 0, kind: input, shape index: {}]
  %s1 = inlined_call_operand.vmem [shape: bf16[9,32], index: 1, kind: input, shape index: {}]
  %s2 = inlined_call_operand.vmem [shape: f32[1,32], index: 2, kind: input, shape index: {}]
  %s3 = inlined_call_operand.vmem [shape: bf16[128,32], index: 3, kind: output, shape index: {}]
  %s4 = sld [smem:[#allocation0]]
  $region22: #{unet_forward.14} parent=0
    _
  %s6 = ssub.s32 1, %s4
  %s7 = scalar_select 0, %s6, %s4
  // Predicated region
  $region2: #{unet_forward.14} parent=0 // pred_check
    _
  $region3: #{unet_forward.14} parent=0 // pred_check_branch
    %9 = sbr.rel (0) target = $region5
  $region4: #{unet_forward.14} parent=0 // pred_region
    _
  $region5: #{unet_forward.14} parent=0 // pred_fallthru
    _
  // Predicated region
  $region6: #{unet_forward.14} parent=0 // pred_check
    _
  $region7: #{unet_forward.14} parent=0 // pred_check_branch
    %11 = sbr.rel (0) target = $region9
  $region8: #{unet_forward.14} parent=0 // pred_region
    _
  $region9: #{unet_forward.14} parent=0 // pred_fallthru
    _
  // Predicated region
  $region10: #{unet_forward.14} parent=0 // pred_check
    _
  $region11: #{unet_forward.14} parent=0 // pred_check_branch
    %13 = sbr.rel (0) target = $region13
  $region12: #{unet_forward.14} parent=0 // pred_region
    _
  $region13: #{unet_forward.14} parent=0 // pred_fallthru
    _
  %v15 = vld [vmem:[%s0] sm:$0xf]
  %v16 = vld [vmem:[%s0 + $0x4] sm:$0xf]
  %v17 = vld [vmem:[%s0 + $0x8] sm:$0xf]
  %v18 = vld [vmem:[%s0 + $0xc] sm:$0xf]
  %v19 = vld [vmem:[%s0 + $0x10] sm:$0xf]
  %v20 = vld [vmem:[%s0 + $0x14] sm:$0xf]
  %v21 = vld [vmem:[%s0 + $0x18] sm:$0xf]
  %v22 = vld [vmem:[%s0 + $0x1c] sm:$0xf]
  %v23 = vld [vmem:[%s0 + $0x20] sm:$0xf]
  %v24 = vld [vmem:[%s0 + $0x24] sm:$0xf]
  %v25 = vld [vmem:[%s0 + $0x28] sm:$0xf]
  %v26 = vld [vmem:[%s0 + $0x2c] sm:$0xf]
  %v27 = vld [vmem:[%s0 + $0x30] sm:$0xf]
  %v28 = vld [vmem:[%s0 + $0x34] sm:$0xf]
  %v29 = vld [vmem:[%s0 + $0x38] sm:$0xf]
  %v30 = vld [vmem:[%s0 + $0x3c] sm:$0xf]
  %v31 = vld [vmem:[%s1] sm:$0xf]
  %v32 = vld [vmem:[%s1 + $0x4] sm:$0x1]
  %v33 = vld [vmem:[%s2] sm:$0x1]
  %v35 = vperm.slane %v33, 0
  %v53 = vunpack.c.l.b16 %v15
  %v54 = vunpack.c.l.b16 %v16
  %v55 = vunpack.c.l.b16 %v17
  %v56 = vunpack.c.l.b16 %v18
  %v57 = vunpack.c.l.b16 %v19
  %v58 = vunpack.c.l.b16 %v20
  %v59 = vunpack.c.l.b16 %v21
  %v60 = vunpack.c.l.b16 %v22
  %v61 = vunpack.c.l.b16 %v23
  %v62 = vunpack.c.l.b16 %v24
  %v63 = vunpack.c.l.b16 %v25
  %v64 = vunpack.c.l.b16 %v26
  %v65 = vunpack.c.l.b16 %v27
  %v66 = vunpack.c.l.b16 %v28
  %v67 = vunpack.c.l.b16 %v29
  %v68 = vunpack.c.l.b16 %v30
  %v69 = vpack.c.b16 %v54, %v53
  %v70 = vpack.c.b16 %v56, %v55
  %v71 = vpack.c.b16 %v58, %v57
  %v72 = vpack.c.b16 %v60, %v59
  %v73 = vpack.c.b16 %v62, %v61
  %v74 = vpack.c.b16 %v64, %v63
  %v75 = vpack.c.b16 %v66, %v65
  %v76 = vpack.c.b16 %v68, %v67
  %v79 = vunpack.c.l.b16 %v31
  %v80 = vunpack.c.l.b16 %v32
  %v81 = vpack.c.b16 %v80, %v79
  %vm82 = vcmask 72704
  %v84 = vsel %vm82, %v69, 0
  %v87 = vsel %vm82, %v70, 0
  %v90 = vsel %vm82, %v71, 0
  %v93 = vsel %vm82, %v72, 0
  %v96 = vsel %vm82, %v73, 0
  %v99 = vsel %vm82, %v74, 0
  %v102 = vsel %vm82, %v75, 0
  %v105 = vsel %vm82, %v76, 0
  %vm107 = vcmask 1043456
  %vm108 = vcmask 1044480
  %v109 = vsel %vm107, 4294967295, 65535
  %v110 = vsel %vm108, %v109, 0
  %v112 = vand.u32 %v81, %v110
  %114 = vmatpush.bf16.msra.mxu0 0
  %115 = vmatpush.bf16.msra.mxu0 0
  %116 = vmatpush.bf16.msra.mxu0 0
  %117 = vmatpush.bf16.msra.mxu0 0
  %118 = vmatpush.bf16.msra.mxu0 0
  %119 = vmatpush.bf16.msra.mxu0 0
  %120 = vmatpush.bf16.msra.mxu0 0
  %121 = vmatpush.bf16.msra.mxu0 %v112
  %122 = vmatmul.bf16.gmra.mxu0 %v84
  %v123 = vpop.f32.mrf.mxu0
  %v124 = vadd.f32 %v35, %v123
  %v125 = vpop.f32.mrf.mxu0
  %v126 = vadd.f32 %v35, %v125
  %127 = vmatmul.bf16.gmra.mxu0 %v87
  %v128 = vpop.f32.mrf.mxu0
  %v129 = vadd.f32 %v35, %v128
  %v130 = vpop.f32.mrf.mxu0
  %v131 = vadd.f32 %v35, %v130
  %132 = vmatmul.bf16.gmra.mxu0 %v90
  %v133 = vpop.f32.mrf.mxu0
  %v134 = vadd.f32 %v35, %v133
  %v135 = vpop.f32.mrf.mxu0
  %v136 = vadd.f32 %v35, %v135
  %137 = vmatmul.bf16.gmra.mxu0 %v93
  %v138 = vpop.f32.mrf.mxu0
  %v139 = vadd.f32 %v35, %v138
  %v140 = vpop.f32.mrf.mxu0
  %v141 = vadd.f32 %v35, %v140
  %142 = vmatmul.bf16.gmra.mxu0 %v96
  %v143 = vpop.f32.mrf.mxu0
  %v144 = vadd.f32 %v35, %v143
  %v145 = vpop.f32.mrf.mxu0
  %v146 = vadd.f32 %v35, %v145
  %147 = vmatmul.bf16.gmra.mxu0 %v99
  %v148 = vpop.f32.mrf.mxu0
  %v149 = vadd.f32 %v35, %v148
  %v150 = vpop.f32.mrf.mxu0
  %v151 = vadd.f32 %v35, %v150
  %152 = vmatmul.bf16.gmra.mxu0 %v102
  %v153 = vpop.f32.mrf.mxu0
  %v154 = vadd.f32 %v35, %v153
  %v155 = vpop.f32.mrf.mxu0
  %v156 = vadd.f32 %v35, %v155
  %157 = vmatmul.bf16.gmra.mxu0 %v105
  %v158 = vpop.f32.mrf.mxu0
  %v159 = vadd.f32 %v35, %v158
  %v160 = vpop.f32.mrf.mxu0
  %v161 = vadd.f32 %v35, %v160
  %162 = vdwg.mxu0
  %v163 = vmax.f32 %v124, 0.0
  %v164 = vmax.f32 %v126, 0.0
  %v165 = vmax.f32 %v129, 0.0
  %v166 = vmax.f32 %v131, 0.0
  %v167 = vmax.f32 %v134, 0.0
  %v168 = vmax.f32 %v136, 0.0
  %v169 = vmax.f32 %v139, 0.0
  %v170 = vmax.f32 %v141, 0.0
  %v171 = vmax.f32 %v144, 0.0
  %v172 = vmax.f32 %v146, 0.0
  %v173 = vmax.f32 %v149, 0.0
  %v174 = vmax.f32 %v151, 0.0
  %v175 = vmax.f32 %v154, 0.0
  %v176 = vmax.f32 %v156, 0.0
  %v177 = vmax.f32 %v159, 0.0
  %v178 = vmax.f32 %v161, 0.0
  %v179 = vpack.c.bf16 %v163, %v163
  %v180 = vpack.c.bf16 %v164, %v164
  %v181 = vpack.c.bf16 %v165, %v165
  %v182 = vpack.c.bf16 %v166, %v166
  %v183 = vpack.c.bf16 %v167, %v167
  %v184 = vpack.c.bf16 %v168, %v168
  %v185 = vpack.c.bf16 %v169, %v169
  %v186 = vpack.c.bf16 %v170, %v170
  %v187 = vpack.c.bf16 %v171, %v171
  %v188 = vpack.c.bf16 %v172, %v172
  %v189 = vpack.c.bf16 %v173, %v173
  %v190 = vpack.c.bf16 %v174, %v174
  %v191 = vpack.c.bf16 %v175, %v175
  %v192 = vpack.c.bf16 %v176, %v176
  %v193 = vpack.c.bf16 %v177, %v177
  %v194 = vpack.c.bf16 %v178, %v178
  %vm195 = vcmask 257024
  %196 = vst.msk [vmem:[%s3] sm:$0xf] %vm195, %v179
  %197 = vst.msk [vmem:[%s3 + $0x4] sm:$0xf] %vm195, %v180
  %198 = vst.msk [vmem:[%s3 + $0x8] sm:$0xf] %vm195, %v181
  %199 = vst.msk [vmem:[%s3 + $0xc] sm:$0xf] %vm195, %v182
  %200 = vst.msk [vmem:[%s3 + $0x10] sm:$0xf] %vm195, %v183
  %201 = vst.msk [vmem:[%s3 + $0x14] sm:$0xf] %vm195, %v184
  %202 = vst.msk [vmem:[%s3 + $0x18] sm:$0xf] %vm195, %v185
  %203 = vst.msk [vmem:[%s3 + $0x1c] sm:$0xf] %vm195, %v186
  %204 = vst.msk [vmem:[%s3 + $0x20] sm:$0xf] %vm195, %v187
  %205 = vst.msk [vmem:[%s3 + $0x24] sm:$0xf] %vm195, %v188
  %206 = vst.msk [vmem:[%s3 + $0x28] sm:$0xf] %vm195, %v189
  %207 = vst.msk [vmem:[%s3 + $0x2c] sm:$0xf] %vm195, %v190
  %208 = vst.msk [vmem:[%s3 + $0x30] sm:$0xf] %vm195, %v191
  %209 = vst.msk [vmem:[%s3 + $0x34] sm:$0xf] %vm195, %v192
  %210 = vst.msk [vmem:[%s3 + $0x38] sm:$0xf] %vm195, %v193
  %211 = vst.msk [vmem:[%s3 + $0x3c] sm:$0xf] %vm195, %v194
  // Predicated region
  $region14: #{unet_forward.14} parent=0 // pred_check
    _
  $region15: #{unet_forward.14} parent=0 // pred_check_branch
    %213 = sbr.rel (0) target = $region17
  $region16: #{unet_forward.14} parent=0 // pred_region
    _
  $region17: #{unet_forward.14} parent=0 // pred_fallthru
    _
  // Predicated region
  $region18: #{unet_forward.14} parent=0 // pred_check
    _
  $region19: #{unet_forward.14} parent=0 // pred_check_branch
    %215 = sbr.rel (0) target = $region21
  $region20: #{unet_forward.14} parent=0 // pred_region
    _
  $region21: #{unet_forward.14} parent=0 // pred_fallthru
    _

// kernel: unet_forward.16
$region0: #{unet_forward.16}
  #allocation0 [shape = 'u32[]', space=smem, size = 0x4, offset = 0x4, fixed_abs, tag = 'smem constant byte address 0x4 - core index']
  #allocation1 [shape = 'u32[72,128]{1,0:T(1,128)}', space=vmem, size = 0x9000, scoped, tag = 'internal scratch']
  %s0 = inlined_call_operand.vmem [shape: bf16[32,64], index: 0, kind: input, shape index: {}]
  %s1 = inlined_call_operand.vmem [shape: f32[8,64], index: 1, kind: input, shape index: {}]
  %s2 = inlined_call_operand.vmem [shape: bf16[32,64], index: 2, kind: output, shape index: {}]
  %s3 = sld [smem:[#allocation0]]
  $region18: #{unet_forward.16} parent=0
    _
  %s5 = ssub.s32 1, %s3
  %s6 = scalar_select 0, %s5, %s3
  // Predicated region
  $region2: #{unet_forward.16} parent=0 // pred_check
    _
  $region3: #{unet_forward.16} parent=0 // pred_check_branch
    %8 = sbr.rel (0) target = $region5
  $region4: #{unet_forward.16} parent=0 // pred_region
    _
  $region5: #{unet_forward.16} parent=0 // pred_fallthru
    _
  // Predicated region
  $region6: #{unet_forward.16} parent=0 // pred_check
    _
  $region7: #{unet_forward.16} parent=0 // pred_check_branch
    %10 = sbr.rel (0) target = $region9
  $region8: #{unet_forward.16} parent=0 // pred_region
    _
  $region9: #{unet_forward.16} parent=0 // pred_fallthru
    _
  %v11 = vld [vmem:[%s0] sm:$0xf]
  %v12 = vld [vmem:[%s0 + $0x4] sm:$0xf]
  %v13 = vld [vmem:[%s0 + $0x8] sm:$0xf]
  %v14 = vld [vmem:[%s0 + $0xc] sm:$0xf]
  %v15 = vunpack.c.l.bf16 %v11
  %v16 = vunpack.c.l.bf16 %v12
  %v17 = vunpack.c.l.bf16 %v13
  %v18 = vunpack.c.l.bf16 %v14
  %v19 = vld [vmem:[%s1] sm:$0x1]
  %v20 = vmul.f32 %v19, 0.03125
  %v21 = vld [vmem:[%s1 + $0x1] sm:$0x1]
  %v22 = vmul.f32 %v21, 0.03125
  %v23 = vmul.f32 %v20, %v20
  %v24 = vsub.f32 %v22, %v23
  %v25 = vmax.f32 %v24, 0.0
  %v26 = vperm.slane %v20, 0
  %v27 = vsub.f32 %v15, %v26
  %v28 = vsub.f32 %v16, %v26
  %v29 = vsub.f32 %v17, %v26
  %v30 = vsub.f32 %v18, %v26
  %v31 = vadd.f32 %v25, 1e-05
  %v32 = vrsqrt.pop %v31
  %v33 = vmul.f32 %v32, %v31
  %v34 = vmul.f32 %v33, %v32
  %v35 = vmul.f32 0.5, %v34
  %v36 = vsub.f32 1.5, %v35
  %v37 = vmul.f32 %v32, %v36
  %vm38 = vweird.f32 %v31
  %vm39 = vweird.f32 %v32
  %vm40 = vmor %vm38, %vm39
  %v41 = vsel %vm40, %v32, %v37
  %v42 = vperm.slane %v41, 0
  %v43 = vmul.f32 %v27, %v42
  %v44 = vmul.f32 %v28, %v42
  %v45 = vmul.f32 %v29, %v42
  %v46 = vmul.f32 %v30, %v42
  %v47 = vmax.f32 %v43, 0.0
  %v48 = vmax.f32 %v44, 0.0
  %v49 = vmax.f32 %v45, 0.0
  %v50 = vmax.f32 %v46, 0.0
  %v51 = vpack.c.bf16 %v47, %v47
  %v52 = vpack.c.bf16 %v48, %v48
  %v53 = vpack.c.bf16 %v49, %v49
  %v54 = vpack.c.bf16 %v50, %v50
  %vm55 = vcmask 519168
  %56 = vst.msk [vmem:[%s2] sm:$0xf] %vm55, %v51
  %57 = vst.msk [vmem:[%s2 + $0x4] sm:$0xf] %vm55, %v52
  %58 = vst.msk [vmem:[%s2 + $0x8] sm:$0xf] %vm55, %v53
  %59 = vst.msk [vmem:[%s2 + $0xc] sm:$0xf] %vm55, %v54
  // Predicated region
  $region10: #{unet_forward.16} parent=0 // pred_check
    _
  $region11: #{unet_forward.16} parent=0 // pred_check_branch
    %61 = sbr.rel (0) target = $region13
  $region12: #{unet_forward.16} parent=0 // pred_region
    _
  $region13: #{unet_forward.16} parent=0 // pred_fallthru
    _
  // Predicated region
  $region14: #{unet_forward.16} parent=0 // pred_check
    _
  $region15: #{unet_forward.16} parent=0 // pred_check_branch
    %63 = sbr.rel (0) target = $region17
  $region16: #{unet_forward.16} parent=0 // pred_region
    _
  $region17: #{unet_forward.16} parent=0 // pred_fallthru
    _

// kernel: unet_forward.15
$region0: #{unet_forward.15}
  #allocation0 [shape = 'u32[]', space=smem, size = 0x4, offset = 0x4, fixed_abs, tag = 'smem constant byte address 0x4 - core index']
  #allocation1 [shape = 'u32[72,128]{1,0:T(1,128)}', space=vmem, size = 0x9000, scoped, tag = 'internal scratch']
  %s0 = inlined_call_operand.vmem [shape: bf16[32,288], index: 0, kind: input, shape index: {}]
  %s1 = inlined_call_operand.vmem [shape: bf16[288,64], index: 1, kind: input, shape index: {}]
  %s2 = inlined_call_operand.vmem [shape: bf16[32,64], index: 2, kind: output, shape index: {0}]
  %s3 = inlined_call_operand.vmem [shape: f32[8,64], index: 3, kind: output, shape index: {1}]
  %4 = xla_tuple %s2, %s3
  %s5 = sld [smem:[#allocation0]]
  $region26: #{unet_forward.15} parent=0
    _
  %s7 = ssub.s32 1, %s5
  %s8 = scalar_select 0, %s7, %s5
  // Predicated region
  $region2: #{unet_forward.15} parent=0 // pred_check
    _
  $region3: #{unet_forward.15} parent=0 // pred_check_branch
    %10 = sbr.rel (0) target = $region5
  $region4: #{unet_forward.15} parent=0 // pred_region
    _
  $region5: #{unet_forward.15} parent=0 // pred_fallthru
    _
  // Predicated region
  $region6: #{unet_forward.15} parent=0 // pred_check
    _
  $region7: #{unet_forward.15} parent=0 // pred_check_branch
    %12 = sbr.rel (0) target = $region9
  $region8: #{unet_forward.15} parent=0 // pred_region
    _
  $region9: #{unet_forward.15} parent=0 // pred_fallthru
    _
  %v14 = vld [vmem:[%s0] sm:$0xff]
  %v15 = vld [vmem:[%s0 + $0x8] sm:$0xf]
  %v16 = vld [vmem:[%s0 + $0xc] sm:$0xff]
  %v17 = vld [vmem:[%s0 + $0x14] sm:$0xf]
  %v18 = vld [vmem:[%s0 + $0x18] sm:$0xff]
  %v19 = vld [vmem:[%s0 + $0x20] sm:$0xf]
  %v20 = vld [vmem:[%s0 + $0x24] sm:$0xff]
  %v21 = vld [vmem:[%s0 + $0x2c] sm:$0xf]
  %v22 = vld [vmem:[%s1] sm:$0xf]
  %v23 = vld [vmem:[%s1 + $0x4] sm:$0xf]
  %v24 = vld [vmem:[%s1 + $0x8] sm:$0xf]
  %v25 = vld [vmem:[%s1 + $0xc] sm:$0xf]
  %v26 = vld [vmem:[%s1 + $0x10] sm:$0xf]
  %v27 = vld [vmem:[%s1 + $0x14] sm:$0xf]
  %v28 = vld [vmem:[%s1 + $0x18] sm:$0xf]
  %v29 = vld [vmem:[%s1 + $0x1c] sm:$0xf]
  %v30 = vld [vmem:[%s1 + $0x20] sm:$0xf]
  %v31 = vld [vmem:[%s1 + $0x24] sm:$0xf]
  %v32 = vld [vmem:[%s1 + $0x28] sm:$0xf]
  %v33 = vld [vmem:[%s1 + $0x2c] sm:$0xf]
  %v34 = vld [vmem:[%s1 + $0x30] sm:$0xf]
  %v35 = vld [vmem:[%s1 + $0x34] sm:$0xf]
  %v36 = vld [vmem:[%s1 + $0x38] sm:$0xf]
  %v37 = vld [vmem:[%s1 + $0x3c] sm:$0xf]
  %v38 = vld [vmem:[%s1 + $0x40] sm:$0xf]
  %v39 = vld [vmem:[%s1 + $0x44] sm:$0xf]
  %v40 = vld [vmem:[%s1 + $0x48] sm:$0xf]
  %v41 = vld [vmem:[%s1 + $0x4c] sm:$0xf]
  %v42 = vld [vmem:[%s1 + $0x50] sm:$0xf]
  %v43 = vld [vmem:[%s1 + $0x54] sm:$0xf]
  %v44 = vld [vmem:[%s1 + $0x58] sm:$0xf]
  %v45 = vld [vmem:[%s1 + $0x5c] sm:$0xf]
  %v46 = vld [vmem:[%s1 + $0x60] sm:$0xf]
  %v47 = vld [vmem:[%s1 + $0x64] sm:$0xf]
  %v48 = vld [vmem:[%s1 + $0x68] sm:$0xf]
  %v49 = vld [vmem:[%s1 + $0x6c] sm:$0xf]
  %v50 = vld [vmem:[%s1 + $0x70] sm:$0xf]
  %v51 = vld [vmem:[%s1 + $0x74] sm:$0xf]
  %v52 = vld [vmem:[%s1 + $0x78] sm:$0xf]
  %v53 = vld [vmem:[%s1 + $0x7c] sm:$0xf]
  %v54 = vld [vmem:[%s1 + $0x80] sm:$0xf]
  %v55 = vld [vmem:[%s1 + $0x84] sm:$0xf]
  %v56 = vld [vmem:[%s1 + $0x88] sm:$0xf]
  %v57 = vld [vmem:[%s1 + $0x8c] sm:$0xf]
  %v66 = vunpack.c.l.b16 %v14
  %v67 = vunpack.c.h.b16 %v14
  %v68 = vunpack.c.l.b16 %v15
  %v69 = vunpack.c.l.b16 %v16
  %v70 = vunpack.c.h.b16 %v16
  %v71 = vunpack.c.l.b16 %v17
  %v72 = vunpack.c.l.b16 %v18
  %v73 = vunpack.c.h.b16 %v18
  %v74 = vunpack.c.l.b16 %v19
  %v75 = vunpack.c.l.b16 %v20
  %v76 = vunpack.c.h.b16 %v20
  %v77 = vunpack.c.l.b16 %v21
  %v78 = vpack.c.b16 %v69, %v66
  %v79 = vpack.c.b16 %v70, %v67
  %v80 = vpack.c.b16 %v71, %v68
  %v81 = vpack.c.b16 %v75, %v72
  %v82 = vpack.c.b16 %v76, %v73
  %v83 = vpack.c.b16 %v77, %v74
  %v124 = vunpack.c.l.b16 %v22
  %v125 = vunpack.c.l.b16 %v23
  %v126 = vunpack.c.l.b16 %v24
  %v127 = vunpack.c.l.b16 %v25
  %v128 = vunpack.c.l.b16 %v26
  %v129 = vunpack.c.l.b16 %v27
  %v130 = vunpack.c.l.b16 %v28
  %v131 = vunpack.c.l.b16 %v29
  %v132 = vunpack.c.l.b16 %v30
  %v133 = vunpack.c.l.b16 %v31
  %v134 = vunpack.c.l.b16 %v32
  %v135 = vunpack.c.l.b16 %v33
  %v136 = vunpack.c.l.b16 %v34
  %v137 = vunpack.c.l.b16 %v35
  %v138 = vunpack.c.l.b16 %v36
  %v139 = vunpack.c.l.b16 %v37
  %v140 = vunpack.c.l.b16 %v38
  %v141 = vunpack.c.l.b16 %v39
  %v142 = vunpack.c.l.b16 %v40
  %v143 = vunpack.c.l.b16 %v41
  %v144 = vunpack.c.l.b16 %v42
  %v145 = vunpack.c.l.b16 %v43
  %v146 = vunpack.c.l.b16 %v44
  %v147 = vunpack.c.l.b16 %v45
  %v148 = vunpack.c.l.b16 %v46
  %v149 = vunpack.c.l.b16 %v47
  %v150 = vunpack.c.l.b16 %v48
  %v151 = vunpack.c.l.b16 %v49
  %v152 = vunpack.c.l.b16 %v50
  %v153 = vunpack.c.l.b16 %v51
  %v154 = vunpack.c.l.b16 %v52
  %v155 = vunpack.c.l.b16 %v53
  %v156 = vunpack.c.l.b16 %v54
  %v157 = vunpack.c.l.b16 %v55
  %v158 = vunpack.c.l.b16 %v56
  %v159 = vunpack.c.l.b16 %v57
  %v160 = vpack.c.b16 %v125, %v124
  %v161 = vpack.c.b16 %v127, %v126
  %v162 = vpack.c.b16 %v129, %v128
  %v163 = vpack.c.b16 %v131, %v130
  %v164 = vpack.c.b16 %v133, %v132
  %v165 = vpack.c.b16 %v135, %v134
  %v166 = vpack.c.b16 %v137, %v136
  %v167 = vpack.c.b16 %v139, %v138
  %v168 = vpack.c.b16 %v141, %v140
  %v169 = vpack.c.b16 %v143, %v142
  %v170 = vpack.c.b16 %v145, %v144
  %v171 = vpack.c.b16 %v147, %v146
  %v172 = vpack.c.b16 %v149, %v148
  %v173 = vpack.c.b16 %v151, %v150
  %v174 = vpack.c.b16 %v153, %v152
  %v175 = vpack.c.b16 %v155, %v154
  %v176 = vpack.c.b16 %v157, %v156
  %v177 = vpack.c.b16 %v159, %v158
  %vm196 = vcmask 261120
  %v198 = vsel %vm196, %v80, 0
  %v201 = vsel %vm196, %v83, 0
  %203 = vmatpush.bf16.msra.mxu0 %v167
  %204 = vmatpush.bf16.msra.mxu0 %v166
  %205 = vmatpush.bf16.msra.mxu0 %v165
  %206 = vmatpush.bf16.msra.mxu0 %v164
  %207 = vmatpush.bf16.msra.mxu0 %v163
  %208 = vmatpush.bf16.msra.mxu0 %v162
  %209 = vmatpush.bf16.msra.mxu0 %v161
  %210 = vmatpush.bf16.msra.mxu0 %v160
  %211 = vmatmul.bf16.gmra.mxu0 %v78
  %v212 = vpop.f32.mrf.mxu0
  %v213 = vadd.f32 0.0, %v212
  %v214 = vpop.f32.mrf.mxu0
  %v215 = vadd.f32 0.0, %v214
  %216 = vmatmul.bf16.gmra.mxu0 %v81
  %v217 = vpop.f32.mrf.mxu0
  %v218 = vadd.f32 0.0, %v217
  %v219 = vpop.f32.mrf.mxu0
  %v220 = vadd.f32 0.0, %v219
  %221 = vdwg.mxu0
  %222 = vmatpush.bf16.msra.mxu0 %v175
  %223 = vmatpush.bf16.msra.mxu0 %v174
  %224 = vmatpush.bf16.msra.mxu0 %v173
  %225 = vmatpush.bf16.msra.mxu0 %v172
  %226 = vmatpush.bf16.msra.mxu0 %v171
  %227 = vmatpush.bf16.msra.mxu0 %v170
  %228 = vmatpush.bf16.msra.mxu0 %v169
  %229 = vmatpush.bf16.msra.mxu0 %v168
  %230 = vmatmul.bf16.gmra.mxu0 %v79
  %v231 = vpop.f32.mrf.mxu0
  %v232 = vadd.f32 %v213, %v231
  %v233 = vpop.f32.mrf.mxu0
  %v234 = vadd.f32 %v215, %v233
  %235 = vmatmul.bf16.gmra.mxu0 %v82
  %v236 = vpop.f32.mrf.mxu0
  %v237 = vadd.f32 %v218, %v236
  %v238 = vpop.f32.mrf.mxu0
  %v239 = vadd.f32 %v220, %v238
  %240 = vdwg.mxu0
  %241 = vmatpush.bf16.msra.mxu0 0
  %242 = vmatpush.bf16.msra.mxu0 0
  %243 = vmatpush.bf16.msra.mxu0 0
  %244 = vmatpush.bf16.msra.mxu0 0
  %245 = vmatpush.bf16.msra.mxu0 0
  %246 = vmatpush.bf16.msra.mxu0 0
  %247 = vmatpush.bf16.msra.mxu0 %v177
  %248 = vmatpush.bf16.msra.mxu0 %v176
  %249 = vmatmul.bf16.gmra.mxu0 %v198
  %v250 = vpop.f32.mrf.mxu0
  %v251 = vadd.f32 %v232, %v250
  %v252 = vpop.f32.mrf.mxu0
  %v253 = vadd.f32 %v234, %v252
  %254 = vmatmul.bf16.gmra.mxu0 %v201
  %v255 = vpop.f32.mrf.mxu0
  %v256 = vadd.f32 %v237, %v255
  %v257 = vpop.f32.mrf.mxu0
  %v258 = vadd.f32 %v239, %v257
  %259 = vdwg.mxu0
  %v260 = vpack.c.bf16 %v251, %v251
  %v261 = vpack.c.bf16 %v253, %v253
  %v262 = vpack.c.bf16 %v256, %v256
  %v263 = vpack.c.bf16 %v258, %v258
  %vm264 = vcmask 519168
  %265 = vst.msk [vmem:[%s2] sm:$0xf] %vm264, %v260
  %266 = vst.msk [vmem:[%s2 + $0x4] sm:$0xf] %vm264, %v261
  %267 = vst.msk [vmem:[%s2 + $0x8] sm:$0xf] %vm264, %v262
  %268 = vst.msk [vmem:[%s2 + $0xc] sm:$0xf] %vm264, %v263
  %vm269 = vcmask 523264
  %v270 = vsel %vm269, %v251, 0.0
  %v271 = vsel %vm269, %v253, 0.0
  %v272 = vadd.f32 %v270, %v271
  %v273 = vsel %vm269, %v256, 0.0
  %v274 = vadd.f32 %v272, %v273
  %v275 = vsel %vm269, %v258, 0.0
  %v276 = vadd.f32 %v274, %v275
  %v277 = vrot.slane %v276, 4
  %v278 = vadd.f32 %v276, %v277
  %v279 = vrot.slane %v278, 2
  %v280 = vadd.f32 %v278, %v279
  %v281 = vrot.slane %v280, 1
  %v282 = vadd.f32 %v280, %v281
  %vm283 = vcmask 516096
  %284 = vst.msk [vmem:[%s3] sm:$0x1] %vm283, %v282
  %v285 = vmul.f32 %v251, %v251
  %v286 = vmul.f32 %v253, %v253
  %v287 = vmul.f32 %v256, %v256
  %v288 = vmul.f32 %v258, %v258
  %v289 = vsel %vm269, %v285, 0.0
  %v290 = vsel %vm269, %v286, 0.0
  %v291 = vadd.f32 %v289, %v290
  %v292 = vsel %vm269, %v287, 0.0
  %v293 = vadd.f32 %v291, %v292
  %v294 = vsel %vm269, %v288, 0.0
  %v295 = vadd.f32 %v293, %v294
  %v296 = vrot.slane %v295, 4
  %v297 = vadd.f32 %v295, %v296
  %v298 = vrot.slane %v297, 2
  %v299 = vadd.f32 %v297, %v298
  %v300 = vrot.slane %v299, 1
  %v301 = vadd.f32 %v299, %v300
  %302 = vst.msk [vmem:[%s3 + $0x1] sm:$0x1] %vm283, %v301
  // Predicated region
  $region10: #{unet_forward.15} parent=0 // pred_check
    _
  $region11: #{unet_forward.15} parent=0 // pred_check_branch
    %304 = sbr.rel (0) target = $region13
  $region12: #{unet_forward.15} parent=0 // pred_region
    _
  $region13: #{unet_forward.15} parent=0 // pred_fallthru
    _
  // Predicated region
  $region14: #{unet_forward.15} parent=0 // pred_check
    _
  $region15: #{unet_forward.15} parent=0 // pred_check_branch
    %306 = sbr.rel (0) target = $region17
  $region16: #{unet_forward.15} parent=0 // pred_region
    _
  $region17: #{unet_forward.15} parent=0 // pred_fallthru
    _
  // Predicated region
  $region18: #{unet_forward.15} parent=0 // pred_check
    _
  $region19: #{unet_forward.15} parent=0 // pred_check_branch
    %308 = sbr.rel (0) target = $region21
  $region20: #{unet_forward.15} parent=0 // pred_region
    _
  $region21: #{unet_forward.15} parent=0 // pred_fallthru
    _
  // Predicated region
  $region22: #{unet_forward.15} parent=0 // pred_check
    _
  $region23: #{unet_forward.15} parent=0 // pred_check_branch
    %310 = sbr.rel (0) target = $region25
  $region24: #{unet_forward.15} parent=0 // pred_region
    _
  $region25: #{unet_forward.15} parent=0 // pred_fallthru
    _

// kernel: unet_forward.18
$region0: #{unet_forward.18}
  #allocation0 [shape = 'u32[]', space=smem, size = 0x4, offset = 0x4, fixed_abs, tag = 'smem constant byte address 0x4 - core index']
  #allocation1 [shape = 'u32[72,128]{1,0:T(1,128)}', space=vmem, size = 0x9000, scoped, tag = 'internal scratch']
  %s0 = inlined_call_operand.vmem [shape: bf16[8,128], index: 0, kind: input, shape index: {}]
  %s1 = inlined_call_operand.vmem [shape: f32[8,128], index: 1, kind: input, shape index: {}]
  %s2 = inlined_call_operand.vmem [shape: bf16[8,128], index: 2, kind: output, shape index: {}]
  %s3 = sld [smem:[#allocation0]]
  $region18: #{unet_forward.18} parent=0
    _
  %s5 = ssub.s32 1, %s3
  %s6 = scalar_select 0, %s5, %s3
  // Predicated region
  $region2: #{unet_forward.18} parent=0 // pred_check
    _
  $region3: #{unet_forward.18} parent=0 // pred_check_branch
    %8 = sbr.rel (0) target = $region5
  $region4: #{unet_forward.18} parent=0 // pred_region
    _
  $region5: #{unet_forward.18} parent=0 // pred_fallthru
    _
  // Predicated region
  $region6: #{unet_forward.18} parent=0 // pred_check
    _
  $region7: #{unet_forward.18} parent=0 // pred_check_branch
    %10 = sbr.rel (0) target = $region9
  $region8: #{unet_forward.18} parent=0 // pred_region
    _
  $region9: #{unet_forward.18} parent=0 // pred_fallthru
    _
  %v11 = vld [vmem:[%s0] sm:$0xf]
  %v12 = vunpack.c.l.bf16 %v11
  %v13 = vld [vmem:[%s1] sm:$0x1]
  %v14 = vmul.f32 %v13, 0.125
  %v15 = vld [vmem:[%s1 + $0x1] sm:$0x1]
  %v16 = vmul.f32 %v15, 0.125
  %v17 = vmul.f32 %v14, %v14
  %v18 = vsub.f32 %v16, %v17
  %v19 = vmax.f32 %v18, 0.0
  %v20 = vperm.slane %v14, 0
  %v21 = vsub.f32 %v12, %v20
  %v22 = vadd.f32 %v19, 1e-05
  %v23 = vrsqrt.pop %v22
  %v24 = vmul.f32 %v23, %v22
  %v25 = vmul.f32 %v24, %v23
  %v26 = vmul.f32 0.5, %v25
  %v27 = vsub.f32 1.5, %v26
  %v28 = vmul.f32 %v23, %v27
  %vm29 = vweird.f32 %v22
  %vm30 = vweird.f32 %v23
  %vm31 = vmor %vm29, %vm30
  %v32 = vsel %vm31, %v23, %v28
  %v33 = vperm.slane %v32, 0
  %v34 = vmul.f32 %v21, %v33
  %v35 = vmax.f32 %v34, 0.0
  %v36 = vpack.c.bf16 %v35, %v35
  %37 = vst [vmem:[%s2] sm:$0xf] %v36
  // Predicated region
  $region10: #{unet_forward.18} parent=0 // pred_check
    _
  $region11: #{unet_forward.18} parent=0 // pred_check_branch
    %39 = sbr.rel (0) target = $region13
  $region12: #{unet_forward.18} parent=0 // pred_region
    _
  $region13: #{unet_forward.18} parent=0 // pred_fallthru
    _
  // Predicated region
  $region14: #{unet_forward.18} parent=0 // pred_check
    _
  $region15: #{unet_forward.18} parent=0 // pred_check_branch
    %41 = sbr.rel (0) target = $region17
  $region16: #{unet_forward.18} parent=0 // pred_region
    _
  $region17: #{unet_forward.18} parent=0 // pred_fallthru
    _

// kernel: unet_forward.17
$region0: #{unet_forward.17}
  #allocation0 [shape = 'u32[]', space=smem, size = 0x4, offset = 0x4, fixed_abs, tag = 'smem constant byte address 0x4 - core index']
  #allocation1 [shape = 'u32[72,128]{1,0:T(1,128)}', space=vmem, size = 0x9000, scoped, tag = 'internal scratch']
  %s0 = inlined_call_operand.vmem [shape: bf16[8,576], index: 0, kind: input, shape index: {}]
  %s1 = inlined_call_operand.vmem [shape: bf16[576,128], index: 1, kind: input, shape index: {}]
  %s2 = inlined_call_operand.vmem [shape: bf16[8,128], index: 2, kind: output, shape index: {0}]
  %s3 = inlined_call_operand.vmem [shape: f32[8,128], index: 3, kind: output, shape index: {1}]
  %4 = xla_tuple %s2, %s3
  %s5 = sld [smem:[#allocation0]]
  $region26: #{unet_forward.17} parent=0
    _
  %s7 = ssub.s32 1, %s5
  %s8 = scalar_select 0, %s7, %s5
  // Predicated region
  $region2: #{unet_forward.17} parent=0 // pred_check
    _
  $region3: #{unet_forward.17} parent=0 // pred_check_branch
    %10 = sbr.rel (0) target = $region5
  $region4: #{unet_forward.17} parent=0 // pred_region
    _
  $region5: #{unet_forward.17} parent=0 // pred_fallthru
    _
  // Predicated region
  $region6: #{unet_forward.17} parent=0 // pred_check
    _
  $region7: #{unet_forward.17} parent=0 // pred_check_branch
    %12 = sbr.rel (0) target = $region9
  $region8: #{unet_forward.17} parent=0 // pred_region
    _
  $region9: #{unet_forward.17} parent=0 // pred_fallthru
    _
  %v14 = vld [vmem:[%s0] sm:$0xff]
  %v15 = vld [vmem:[%s0 + $0x8] sm:$0xff]
  %v16 = vld [vmem:[%s0 + $0x10] sm:$0xf]
  %v17 = vld [vmem:[%s1] sm:$0xf]
  %v18 = vld [vmem:[%s1 + $0x4] sm:$0xf]
  %v19 = vld [vmem:[%s1 + $0x8] sm:$0xf]
  %v20 = vld [vmem:[%s1 + $0xc] sm:$0xf]
  %v21 = vld [vmem:[%s1 + $0x10] sm:$0xf]
  %v22 = vld [vmem:[%s1 + $0x14] sm:$0xf]
  %v23 = vld [vmem:[%s1 + $0x18] sm:$0xf]
  %v24 = vld [vmem:[%s1 + $0x1c] sm:$0xf]
  %v25 = vld [vmem:[%s1 + $0x20] sm:$0xf]
  %v26 = vld [vmem:[%s1 + $0x24] sm:$0xf]
  %v27 = vld [vmem:[%s1 + $0x28] sm:$0xf]
  %v28 = vld [vmem:[%s1 + $0x2c] sm:$0xf]
  %v29 = vld [vmem:[%s1 + $0x30] sm:$0xf]
  %v30 = vld [vmem:[%s1 + $0x34] sm:$0xf]
  %v31 = vld [vmem:[%s1 + $0x38] sm:$0xf]
  %v32 = vld [vmem:[%s1 + $0x3c] sm:$0xf]
  %v33 = vld [vmem:[%s1 + $0x40] sm:$0xf]
  %v34 = vld [vmem:[%s1 + $0x44] sm:$0xf]
  %v35 = vld [vmem:[%s1 + $0x48] sm:$0xf]
  %v36 = vld [vmem:[%s1 + $0x4c] sm:$0xf]
  %v37 = vld [vmem:[%s1 + $0x50] sm:$0xf]
  %v38 = vld [vmem:[%s1 + $0x54] sm:$0xf]
  %v39 = vld [vmem:[%s1 + $0x58] sm:$0xf]
  %v40 = vld [vmem:[%s1 + $0x5c] sm:$0xf]
  %v41 = vld [vmem:[%s1 + $0x60] sm:$0xf]
  %v42 = vld [vmem:[%s1 + $0x64] sm:$0xf]
  %v43 = vld [vmem:[%s1 + $0x68] sm:$0xf]
  %v44 = vld [vmem:[%s1 + $0x6c] sm:$0xf]
  %v45 = vld [vmem:[%s1 + $0x70] sm:$0xf]
  %v46 = vld [vmem:[%s1 + $0x74] sm:$0xf]
  %v47 = vld [vmem:[%s1 + $0x78] sm:$0xf]
  %v48 = vld [vmem:[%s1 + $0x7c] sm:$0xf]
  %v49 = vld [vmem:[%s1 + $0x80] sm:$0xf]
  %v50 = vld [vmem:[%s1 + $0x84] sm:$0xf]
  %v51 = vld [vmem:[%s1 + $0x88] sm:$0xf]
  %v52 = vld [vmem:[%s1 + $0x8c] sm:$0xf]
  %v53 = vld [vmem:[%s1 + $0x90] sm:$0xf]
  %v54 = vld [vmem:[%s1 + $0x94] sm:$0xf]
  %v55 = vld [vmem:[%s1 + $0x98] sm:$0xf]
  %v56 = vld [vmem:[%s1 + $0x9c] sm:$0xf]
  %v57 = vld [vmem:[%s1 + $0xa0] sm:$0xf]
  %v58 = vld [vmem:[%s1 + $0xa4] sm:$0xf]
  %v59 = vld [vmem:[%s1 + $0xa8] sm:$0xf]
  %v60 = vld [vmem:[%s1 + $0xac] sm:$0xf]
  %v61 = vld [vmem:[%s1 + $0xb0] sm:$0xf]
  %v62 = vld [vmem:[%s1 + $0xb4] sm:$0xf]
  %v63 = vld [vmem:[%s1 + $0xb8] sm:$0xf]
  %v64 = vld [vmem:[%s1 + $0xbc] sm:$0xf]
  %v65 = vld [vmem:[%s1 + $0xc0] sm:$0xf]
  %v66 = vld [vmem:[%s1 + $0xc4] sm:$0xf]
  %v67 = vld [vmem:[%s1 + $0xc8] sm:$0xf]
  %v68 = vld [vmem:[%s1 + $0xcc] sm:$0xf]
  %v69 = vld [vmem:[%s1 + $0xd0] sm:$0xf]
  %v70 = vld [vmem:[%s1 + $0xd4] sm:$0xf]
  %v71 = vld [vmem:[%s1 + $0xd8] sm:$0xf]
  %v72 = vld [vmem:[%s1 + $0xdc] sm:$0xf]
  %v73 = vld [vmem:[%s1 + $0xe0] sm:$0xf]
  %v74 = vld [vmem:[%s1 + $0xe4] sm:$0xf]
  %v75 = vld [vmem:[%s1 + $0xe8] sm:$0xf]
  %v76 = vld [vmem:[%s1 + $0xec] sm:$0xf]
  %v77 = vld [vmem:[%s1 + $0xf0] sm:$0xf]
  %v78 = vld [vmem:[%s1 + $0xf4] sm:$0xf]
  %v79 = vld [vmem:[%s1 + $0xf8] sm:$0xf]
  %v80 = vld [vmem:[%s1 + $0xfc] sm:$0xf]
  %v81 = vld [vmem:[%s1 + $0x100] sm:$0xf]
  %v82 = vld [vmem:[%s1 + $0x104] sm:$0xf]
  %v83 = vld [vmem:[%s1 + $0x108] sm:$0xf]
  %v84 = vld [vmem:[%s1 + $0x10c] sm:$0xf]
  %v85 = vld [vmem:[%s1 + $0x110] sm:$0xf]
  %v86 = vld [vmem:[%s1 + $0x114] sm:$0xf]
  %v87 = vld [vmem:[%s1 + $0x118] sm:$0xf]
  %v88 = vld [vmem:[%s1 + $0x11c] sm:$0xf]
  %v92 = vunpack.c.l.b16 %v14
  %v93 = vunpack.c.h.b16 %v14
  %v94 = vunpack.c.l.b16 %v15
  %v95 = vunpack.c.h.b16 %v15
  %v96 = vunpack.c.l.b16 %v16
  %v97 = vpack.c.b16 %v92, %v92
  %v98 = vpack.c.b16 %v93, %v93
  %v99 = vpack.c.b16 %v94, %v94
  %v100 = vpack.c.b16 %v95, %v95
  %v101 = vpack.c.b16 %v96, %v96
  %v178 = vunpack.c.l.b16 %v17
  %v179 = vunpack.c.l.b16 %v18
  %v180 = vunpack.c.l.b16 %v19
  %v181 = vunpack.c.l.b16 %v20
  %v182 = vunpack.c.l.b16 %v21
  %v183 = vunpack.c.l.b16 %v22
  %v184 = vunpack.c.l.b16 %v23
  %v185 = vunpack.c.l.b16 %v24
  %v186 = vunpack.c.l.b16 %v25
  %v187 = vunpack.c.l.b16 %v26
  %v188 = vunpack.c.l.b16 %v27
  %v189 = vunpack.c.l.b16 %v28
  %v190 = vunpack.c.l.b16 %v29
  %v191 = vunpack.c.l.b16 %v30
  %v192 = vunpack.c.l.b16 %v31
  %v193 = vunpack.c.l.b16 %v32
  %v194 = vunpack.c.l.b16 %v33
  %v195 = vunpack.c.l.b16 %v34
  %v196 = vunpack.c.l.b16 %v35
  %v197 = vunpack.c.l.b16 %v36
  %v198 = vunpack.c.l.b16 %v37
  %v199 = vunpack.c.l.b16 %v38
  %v200 = vunpack.c.l.b16 %v39
  %v201 = vunpack.c.l.b16 %v40
  %v202 = vunpack.c.l.b16 %v41
  %v203 = vunpack.c.l.b16 %v42
  %v204 = vunpack.c.l.b16 %v43
  %v205 = vunpack.c.l.b16 %v44
  %v206 = vunpack.c.l.b16 %v45
  %v207 = vunpack.c.l.b16 %v46
  %v208 = vunpack.c.l.b16 %v47
  %v209 = vunpack.c.l.b16 %v48
  %v210 = vunpack.c.l.b16 %v49
  %v211 = vunpack.c.l.b16 %v50
  %v212 = vunpack.c.l.b16 %v51
  %v213 = vunpack.c.l.b16 %v52
  %v214 = vunpack.c.l.b16 %v53
  %v215 = vunpack.c.l.b16 %v54
  %v216 = vunpack.c.l.b16 %v55
  %v217 = vunpack.c.l.b16 %v56
  %v218 = vunpack.c.l.b16 %v57
  %v219 = vunpack.c.l.b16 %v58
  %v220 = vunpack.c.l.b16 %v59
  %v221 = vunpack.c.l.b16 %v60
  %v222 = vunpack.c.l.b16 %v61
  %v223 = vunpack.c.l.b16 %v62
  %v224 = vunpack.c.l.b16 %v63
  %v225 = vunpack.c.l.b16 %v64
  %v226 = vunpack.c.l.b16 %v65
  %v227 = vunpack.c.l.b16 %v66
  %v228 = vunpack.c.l.b16 %v67
  %v229 = vunpack.c.l.b16 %v68
  %v230 = vunpack.c.l.b16 %v69
  %v231 = vunpack.c.l.b16 %v70
  %v232 = vunpack.c.l.b16 %v71
  %v233 = vunpack.c.l.b16 %v72
  %v234 = vunpack.c.l.b16 %v73
  %v235 = vunpack.c.l.b16 %v74
  %v236 = vunpack.c.l.b16 %v75
  %v237 = vunpack.c.l.b16 %v76
  %v238 = vunpack.c.l.b16 %v77
  %v239 = vunpack.c.l.b16 %v78
  %v240 = vunpack.c.l.b16 %v79
  %v241 = vunpack.c.l.b16 %v80
  %v242 = vunpack.c.l.b16 %v81
  %v243 = vunpack.c.l.b16 %v82
  %v244 = vunpack.c.l.b16 %v83
  %v245 = vunpack.c.l.b16 %v84
  %v246 = vunpack.c.l.b16 %v85
  %v247 = vunpack.c.l.b16 %v86
  %v248 = vunpack.c.l.b16 %v87
  %v249 = vunpack.c.l.b16 %v88
  %v250 = vpack.c.b16 %v179, %v178
  %v251 = vpack.c.b16 %v181, %v180
  %v252 = vpack.c.b16 %v183, %v182
  %v253 = vpack.c.b16 %v185, %v184
  %v254 = vpack.c.b16 %v187, %v186
  %v255 = vpack.c.b16 %v189, %v188
  %v256 = vpack.c.b16 %v191, %v190
  %v257 = vpack.c.b16 %v193, %v192
  %v258 = vpack.c.b16 %v195, %v194
  %v259 = vpack.c.b16 %v197, %v196
  %v260 = vpack.c.b16 %v199, %v198
  %v261 = vpack.c.b16 %v201, %v200
  %v262 = vpack.c.b16 %v203, %v202
  %v263 = vpack.c.b16 %v205, %v204
  %v264 = vpack.c.b16 %v207, %v206
  %v265 = vpack.c.b16 %v209, %v208
  %v266 = vpack.c.b16 %v211, %v210
  %v267 = vpack.c.b16 %v213, %v212
  %v268 = vpack.c.b16 %v215, %v214
  %v269 = vpack.c.b16 %v217, %v216
  %v270 = vpack.c.b16 %v219, %v218
  %v271 = vpack.c.b16 %v221, %v220
  %v272 = vpack.c.b16 %v223, %v222
  %v273 = vpack.c.b16 %v225, %v224
  %v274 = vpack.c.b16 %v227, %v226
  %v275 = vpack.c.b16 %v229, %v228
  %v276 = vpack.c.b16 %v231, %v230
  %v277 = vpack.c.b16 %v233, %v232
  %v278 = vpack.c.b16 %v235, %v234
  %v279 = vpack.c.b16 %v237, %v236
  %v280 = vpack.c.b16 %v239, %v238
  %v281 = vpack.c.b16 %v241, %v240
  %v282 = vpack.c.b16 %v243, %v242
  %v283 = vpack.c.b16 %v245, %v244
  %v284 = vpack.c.b16 %v247, %v246
  %v285 = vpack.c.b16 %v249, %v248
  %vm322 = vcmask 523264
  %v324 = vsel %vm322, %v101, 0
  %326 = vmatpush.bf16.msra.mxu0 %v257
  %327 = vmatpush.bf16.msra.mxu0 %v256
  %328 = vmatpush.bf16.msra.mxu0 %v255
  %329 = vmatpush.bf16.msra.mxu0 %v254
  %330 = vmatpush.bf16.msra.mxu0 %v253
  %331 = vmatpush.bf16.msra.mxu0 %v252
  %332 = vmatpush.bf16.msra.mxu0 %v251
  %333 = vmatpush.bf16.msra.mxu0 %v250
  %334 = vmatmul.bf16.gmra.mxu0 %v97
  %v335 = vpop.f32.mrf.mxu0
  %v336 = vadd.f32 0.0, %v335
  %v337 = vpop.f32.mrf.mxu0
  %338 = vdwg.mxu0
  %339 = vmatpush.bf16.msra.mxu0 %v265
  %340 = vmatpush.bf16.msra.mxu0 %v264
  %341 = vmatpush.bf16.msra.mxu0 %v263
  %342 = vmatpush.bf16.msra.mxu0 %v262
  %343 = vmatpush.bf16.msra.mxu0 %v261
  %344 = vmatpush.bf16.msra.mxu0 %v260
  %345 = vmatpush.bf16.msra.mxu0 %v259
  %346 = vmatpush.bf16.msra.mxu0 %v258
  %347 = vmatmul.bf16.gmra.mxu0 %v98
  %v348 = vpop.f32.mrf.mxu0
  %v349 = vadd.f32 %v336, %v348
  %v350 = vpop.f32.mrf.mxu0
  %351 = vdwg.mxu0
  %352 = vmatpush.bf16.msra.mxu0 %v273
  %353 = vmatpush.bf16.msra.mxu0 %v272
  %354 = vmatpush.bf16.msra.mxu0 %v271
  %355 = vmatpush.bf16.msra.mxu0 %v270
  %356 = vmatpush.bf16.msra.mxu0 %v269
  %357 = vmatpush.bf16.msra.mxu0 %v268
  %358 = vmatpush.bf16.msra.mxu0 %v267
  %359 = vmatpush.bf16.msra.mxu0 %v266
  %360 = vmatmul.bf16.gmra.mxu0 %v99
  %v361 = vpop.f32.mrf.mxu0
  %v362 = vadd.f32 %v349, %v361
  %v363 = vpop.f32.mrf.mxu0
  %364 = vdwg.mxu0
  %365 = vmatpush.bf16.msra.mxu0 %v281
  %366 = vmatpush.bf16.msra.mxu0 %v280
  %367 = vmatpush.bf16.msra.mxu0 %v279
  %368 = vmatpush.bf16.msra.mxu0 %v278
  %369 = vmatpush.bf16.msra.mxu0 %v277
  %370 = vmatpush.bf16.msra.mxu0 %v276
  %371 = vmatpush.bf16.msra.mxu0 %v275
  %372 = vmatpush.bf16.msra.mxu0 %v274
  %373 = vmatmul.bf16.gmra.mxu0 %v100
  %v374 = vpop.f32.mrf.mxu0
  %v375 = vadd.f32 %v362, %v374
  %v376 = vpop.f32.mrf.mxu0
  %377 = vdwg.mxu0
  %378 = vmatpush.bf16.msra.mxu0 0
  %379 = vmatpush.bf16.msra.mxu0 0
  %380 = vmatpush.bf16.msra.mxu0 0
  %381 = vmatpush.bf16.msra.mxu0 0
  %382 = vmatpush.bf16.msra.mxu0 %v285
  %383 = vmatpush.bf16.msra.mxu0 %v284
  %384 = vmatpush.bf16.msra.mxu0 %v283
  %385 = vmatpush.bf16.msra.mxu0 %v282
  %386 = vmatmul.bf16.gmra.mxu0 %v324
  %v387 = vpop.f32.mrf.mxu0
  %v388 = vadd.f32 %v375, %v387
  %v389 = vpop.f32.mrf.mxu0
  %390 = vdwg.mxu0
  %v391 = vpack.c.bf16 %v388, %v388
  %392 = vst [vmem:[%s2] sm:$0xf] %v391
  %v393 = vrot.slane %v388, 4
  %v394 = vadd.f32 %v388, %v393
  %v395 = vrot.slane %v394, 2
  %v396 = vadd.f32 %v394, %v395
  %v397 = vrot.slane %v396, 1
  %v398 = vadd.f32 %v396, %v397
  %399 = vst [vmem:[%s3] sm:$0x1] %v398
  %v400 = vmul.f32 %v388, %v388
  %v401 = vrot.slane %v400, 4
  %v402 = vadd.f32 %v400, %v401
  %v403 = vrot.slane %v402, 2
  %v404 = vadd.f32 %v402, %v403
  %v405 = vrot.slane %v404, 1
  %v406 = vadd.f32 %v404, %v405
  %407 = vst [vmem:[%s3 + $0x1] sm:$0x1] %v406
  // Predicated region
  $region10: #{unet_forward.17} parent=0 // pred_check
    _
  $region11: #{unet_forward.17} parent=0 // pred_check_branch
    %409 = sbr.rel (0) target = $region13
  $region12: #{unet_forward.17} parent=0 // pred_region
    _
  $region13: #{unet_forward.17} parent=0 // pred_fallthru
    _
  // Predicated region
  $region14: #{unet_forward.17} parent=0 // pred_check
    _
  $region15: #{unet_forward.17} parent=0 // pred_check_branch
    %411 = sbr.rel (0) target = $region17
  $region16: #{unet_forward.17} parent=0 // pred_region
    _
  $region17: #{unet_forward.17} parent=0 // pred_fallthru
    _
  // Predicated region
  $region18: #{unet_forward.17} parent=0 // pred_check
    _
  $region19: #{unet_forward.17} parent=0 // pred_check_branch
    %413 = sbr.rel (0) target = $region21
  $region20: #{unet_forward.17} parent=0 // pred_region
    _
  $region21: #{unet_forward.17} parent=0 // pred_fallthru
    _
  // Predicated region
  $region22: #{unet_forward.17} parent=0 // pred_check
    _
  $region23: #{unet_forward.17} parent=0 // pred_check_branch
    %415 = sbr.rel (0) target = $region25
  $region24: #{unet_forward.17} parent=0 // pred_region
    _
  $region25: #{unet_forward.17} parent=0 // pred_fallthru
    _

// kernel: unet_forward.22
$region0: #{unet_forward.22}
  #allocation0 [shape = 'u32[]', space=smem, size = 0x4, offset = 0x4, fixed_abs, tag = 'smem constant byte address 0x4 - core index']
  #allocation1 [shape = 'u32[72,128]{1,0:T(1,128)}', space=vmem, size = 0x9000, scoped, tag = 'internal scratch']
  %s0 = inlined_call_operand.vmem [shape: bf16[8,128], index: 0, kind: input, shape index: {}]
  %s1 = inlined_call_operand.vmem [shape: f32[8,128], index: 1, kind: input, shape index: {}]
  %s2 = inlined_call_operand.vmem [shape: bf16[8,128], index: 2, kind: input, shape index: {}]
  %s3 = inlined_call_operand.vmem [shape: bf16[8,128], index: 3, kind: output, shape index: {}]
  %s4 = sld [smem:[#allocation0]]
  $region22: #{unet_forward.22} parent=0
    _
  %s6 = ssub.s32 1, %s4
  %s7 = scalar_select 0, %s6, %s4
  // Predicated region
  $region2: #{unet_forward.22} parent=0 // pred_check
    _
  $region3: #{unet_forward.22} parent=0 // pred_check_branch
    %9 = sbr.rel (0) target = $region5
  $region4: #{unet_forward.22} parent=0 // pred_region
    _
  $region5: #{unet_forward.22} parent=0 // pred_fallthru
    _
  // Predicated region
  $region6: #{unet_forward.22} parent=0 // pred_check
    _
  $region7: #{unet_forward.22} parent=0 // pred_check_branch
    %11 = sbr.rel (0) target = $region9
  $region8: #{unet_forward.22} parent=0 // pred_region
    _
  $region9: #{unet_forward.22} parent=0 // pred_fallthru
    _
  // Predicated region
  $region10: #{unet_forward.22} parent=0 // pred_check
    _
  $region11: #{unet_forward.22} parent=0 // pred_check_branch
    %13 = sbr.rel (0) target = $region13
  $region12: #{unet_forward.22} parent=0 // pred_region
    _
  $region13: #{unet_forward.22} parent=0 // pred_fallthru
    _
  %v14 = vld [vmem:[%s0] sm:$0xf]
  %v15 = vunpack.c.l.bf16 %v14
  %v16 = vld [vmem:[%s1] sm:$0x1]
  %v17 = vmul.f32 %v16, 0.125
  %v18 = vld [vmem:[%s1 + $0x1] sm:$0x1]
  %v19 = vmul.f32 %v18, 0.125
  %v20 = vmul.f32 %v17, %v17
  %v21 = vsub.f32 %v19, %v20
  %v22 = vmax.f32 %v21, 0.0
  %v23 = vperm.slane %v17, 0
  %v24 = vsub.f32 %v15, %v23
  %v25 = vadd.f32 %v22, 1e-05
  %v26 = vrsqrt.pop %v25
  %v27 = vmul.f32 %v26, %v25
  %v28 = vmul.f32 %v27, %v26
  %v29 = vmul.f32 0.5, %v28
  %v30 = vsub.f32 1.5, %v29
  %v31 = vmul.f32 %v26, %v30
  %vm32 = vweird.f32 %v25
  %vm33 = vweird.f32 %v26
  %vm34 = vmor %vm32, %vm33
  %v35 = vsel %vm34, %v26, %v31
  %v36 = vperm.slane %v35, 0
  %v37 = vmul.f32 %v24, %v36
  %v38 = vmax.f32 %v37, 0.0
  %v39 = vld [vmem:[%s2] sm:$0xf]
  %v40 = vunpack.c.l.bf16 %v39
  %v41 = vadd.f32 %v38, %v40
  %v42 = vpack.c.bf16 %v41, %v41
  %43 = vst [vmem:[%s3] sm:$0xf] %v42
  // Predicated region
  $region14: #{unet_forward.22} parent=0 // pred_check
    _
  $region15: #{unet_forward.22} parent=0 // pred_check_branch
    %45 = sbr.rel (0) target = $region17
  $region16: #{unet_forward.22} parent=0 // pred_region
    _
  $region17: #{unet_forward.22} parent=0 // pred_fallthru
    _
  // Predicated region
  $region18: #{unet_forward.22} parent=0 // pred_check
    _
  $region19: #{unet_forward.22} parent=0 // pred_check_branch
    %47 = sbr.rel (0) target = $region21
  $region20: #{unet_forward.22} parent=0 // pred_region
    _
  $region21: #{unet_forward.22} parent=0 // pred_fallthru
    _

// kernel: unet_forward.19
$region0: #{unet_forward.19}
  #allocation0 [shape = 'u32[]', space=smem, size = 0x4, offset = 0x4, fixed_abs, tag = 'smem constant byte address 0x4 - core index']
  #allocation1 [shape = 'u32[72,128]{1,0:T(1,128)}', space=vmem, size = 0x9000, scoped, tag = 'internal scratch']
  %s0 = inlined_call_operand.vmem [shape: bf16[2,1,40,128], index: 0, kind: input, shape index: {}]
  %s1 = inlined_call_operand.vmem [shape: bf16[9,128,128], index: 1, kind: input, shape index: {}]
  %s2 = inlined_call_operand.vmem [shape: bf16[2,16,128], index: 2, kind: output, shape index: {0}]
  %s3 = inlined_call_operand.vmem [shape: f32[16,128], index: 3, kind: output, shape index: {1}]
  %4 = xla_tuple %s2, %s3
  %s5 = sld [smem:[#allocation0]]
  $region49: #{unet_forward.19} parent=0
    _
  %s7 = ssub.s32 1, %s5
  %s8 = scalar_select 0, %s7, %s5
  loop: start=0, step=1, limit=4
  $region2: #{unet_forward.19} parent=0 // loop_pre_header
    _
  $region3: #{unet_forward.19} parent=0 // loop_header
    %s10 = sphi 0, %s14
    %p11 = scmp.ge.s32.totalorder %s10, 4
    %s17 = sphi 0, %s29
    %s18 = sphi 0, %s25
    %s19 = sphi 0, %s17
    %s20 = sphi 0, %s18
    %s21 = sphi 0, %s19
    %s22 = sphi 0, %s20
    %s34 = sphi 0, %s36
    %s37 = sphi 0, %s34
    %s38 = sphi 0, %s37
    %s54 = sphi 0, %s38
    %s58 = sphi 0, %s58
    %s60 = sphi 0, %s58
    %s61 = sphi 0, %s60
    %s75 = sphi 0, %s61
    %s83 = sphi 0, %s85
    %s86 = sphi 0, %s83
    %s87 = sphi 0, %s86
    %s103 = sphi 0, %s87
    %s111 = sphi 0, %s113
    %s114 = sphi 0, %s111
    %s115 = sphi 0, %s114
    %s131 = sphi 0, %s115
  $region4: #{unet_forward.19} parent=0 // loop_header_branch
    %13 = sbr.rel (%p11) target = $region8
  $region5: #{unet_forward.19} parent=0 // loop_body
    %s15 = ssub.s32 %s10, 1
    %s16 = ssub.s32 %s10, 2
    %s23 = sadd.s32 1, %s18
    %p24 = scmp.ge.s32.totalorder %s23, 1
    %s25 = scalar_select %p24, 0, %s23
    %s26 = sadd.s32 1, %s17
    %s27 = scalar_select %p24, %s26, %s17
    %p28 = scmp.ge.s32.totalorder %s27, 2
    %s29 = scalar_select %p28, 0, %s27
    %s30 = ssub.s32 %s17, %s29
    %s31 = ssub.s32 %s18, %s25
    %s32 = sor.u32 %s30, %s31
    %p33 = scmp.eq.s32.totalorder %s32, 0
    %s35 = sadd.s32 %s34, 1
    %s36 = scalar_select %p33, %s34, %s35
    %p39 = pneg %p33
    %p40 = scmp.eq.s32.totalorder %s10, 1
    %p41 = por %p39, %p40
    %p42 = scmp.ne.s32.totalorder %s34, %s37
    %p43 = scmp.eq.s32.totalorder %s10, 0
    %p44 = por %p42, %p43
    %p45 = scmp.ne.s32.totalorder %s34, %s37
    %p46 = scmp.eq.s32.totalorder %s15, 1
    %p47 = por %p45, %p46
    %p48 = scmp.ne.s32.totalorder %s37, %s38
    %p49 = scmp.eq.s32.totalorder %s15, 0
    %p50 = por %p48, %p49
    %p51 = scmp.ne.s32.totalorder %s37, %s38
    %p52 = scmp.eq.s32.totalorder %s16, 1
    %p53 = por %p51, %p52
    %p55 = scmp.ne.s32.totalorder %s38, %s54
    %p56 = scmp.eq.s32.totalorder %s16, 0
    %p57 = por %p55, %p56
    %s59 = sadd.s32 %s58, 1
    %p62 = scmp.eq.s32.totalorder %s10, 1
    %p63 = scmp.ne.s32.totalorder %s58, %s60
    %p64 = scmp.eq.s32.totalorder %s10, 0
    %p65 = por %p63, %p64
    %p66 = scmp.ne.s32.totalorder %s58, %s60
    %p67 = scmp.eq.s32.totalorder %s15, 1
    %p68 = por %p66, %p67
    %p69 = scmp.ne.s32.totalorder %s60, %s61
    %p70 = scmp.eq.s32.totalorder %s15, 0
    %p71 = por %p69, %p70
    %p72 = scmp.ne.s32.totalorder %s60, %s61
    %p73 = scmp.eq.s32.totalorder %s16, 1
    %p74 = por %p72, %p73
    %p76 = scmp.ne.s32.totalorder %s61, %s75
    %p77 = scmp.eq.s32.totalorder %s16, 0
    %p78 = por %p76, %p77
    %s79 = ssub.s32 %s17, %s29
    %s80 = ssub.s32 %s18, %s25
    %s81 = sor.u32 %s79, %s80
    %p82 = scmp.eq.s32.totalorder %s81, 0
    %s84 = sadd.s32 %s83, 1
    %s85 = scalar_select %p82, %s83, %s84
    %p88 = pneg %p82
    %p89 = scmp.eq.s32.totalorder %s10, 1
    %p90 = por %p88, %p89
    %p91 = scmp.ne.s32.totalorder %s83, %s86
    %p92 = scmp.eq.s32.totalorder %s10, 0
    %p93 = por %p91, %p92
    %p94 = scmp.ne.s32.totalorder %s83, %s86
    %p95 = scmp.eq.s32.totalorder %s15, 1
    %p96 = por %p94, %p95
    %p97 = scmp.ne.s32.totalorder %s86, %s87
    %p98 = scmp.eq.s32.totalorder %s15, 0
    %p99 = por %p97, %p98
    %p100 = scmp.ne.s32.totalorder %s86, %s87
    %p101 = scmp.eq.s32.totalorder %s16, 1
    %p102 = por %p100, %p101
    %p104 = scmp.ne.s32.totalorder %s87, %s103
    %p105 = scmp.eq.s32.totalorder %s16, 0
    %p106 = por %p104, %p105
    %s107 = sadd.s32 %s17, %s18
    %s108 = sadd.s32 %s29, %s25
    %s109 = ssub.s32 %s107, %s108
    %p110 = scmp.eq.s32.totalorder %s109, 0
    %s112 = sadd.s32 %s111, 1
    %s113 = scalar_select %p110, %s111, %s112
    %p116 = pneg %p110
    %p117 = scmp.eq.s32.totalorder %s10, 1
    %p118 = por %p116, %p117
    %p119 = scmp.ne.s32.totalorder %s111, %s114
    %p120 = scmp.eq.s32.totalorder %s10, 0
    %p121 = por %p119, %p120
    %p122 = scmp.ne.s32.totalorder %s111, %s114
    %p123 = scmp.eq.s32.totalorder %s15, 1
    %p124 = por %p122, %p123
    %p125 = scmp.ne.s32.totalorder %s114, %s115
    %p126 = scmp.eq.s32.totalorder %s15, 0
    %p127 = por %p125, %p126
    %p128 = scmp.ne.s32.totalorder %s114, %s115
    %p129 = scmp.eq.s32.totalorder %s16, 1
    %p130 = por %p128, %p129
    %p132 = scmp.ne.s32.totalorder %s115, %s131
    %p133 = scmp.eq.s32.totalorder %s16, 0
    %p134 = por %p132, %p133
    %p135 = scmp.le.s32.totalorder 1, %s10
    %p136 = scmp.lt.s32.totalorder %s10, 3
    %p137 = pnand %p135, %p136
    %p138 = pneg %p137
    // Predicated region
    $region9: #{unet_forward.19} parent=5 // pred_check
      _
    $region10: #{unet_forward.19} parent=5 // pred_check_branch
      %140 = sbr.rel (%p137) target = $region12
    $region11: #{unet_forward.19} parent=5 // pred_region
      %s141 = ssub.s32 %s10, 1
      // Predicated region
      $region13: #{unet_forward.19} parent=11 // pred_check
        %p142 = pneg %p71
      $region14: #{unet_forward.19} parent=11 // pred_check_branch
        %144 = sbr.rel (%p142) target = $region16
      $region15: #{unet_forward.19} parent=11 // pred_region
        _
      $region16: #{unet_forward.19} parent=11 // pred_fallthru
        _
    $region12: #{unet_forward.19} parent=5 // pred_fallthru
      _
    %p145 = scmp.lt.s32.totalorder %s10, 2
    // Predicated region
    $region17: #{unet_forward.19} parent=5 // pred_check
      %p146 = pneg %p145
    $region18: #{unet_forward.19} parent=5 // pred_check_branch
      %148 = sbr.rel (%p146) target = $region20
    $region19: #{unet_forward.19} parent=5 // pred_region
      // Predicated region
      $region21: #{unet_forward.19} parent=19 // pred_check
        %p149 = pneg %p44
      $region22: #{unet_forward.19} parent=19 // pred_check_branch
        %151 = sbr.rel (%p149) target = $region24
      $region23: #{unet_forward.19} parent=19 // pred_region
        %p152 = scmp.lt.s32.totalorder %s17, 1
        %s153 = scalar_select %p152, %s17, 1
        %p154 = scmp.lt.s32.totalorder %s18, 0
        %s155 = scalar_select %p154, %s18, 0
        %s156 = smul.addr %s155, 5
        %s157 = smul.addr %s153, 5
        %s158 = sadd.s32 %s156, %s157
        %s159 = smul.addr %s158, 4
        %s160 = scalar_lea.vmem %s0, %s159
      $region24: #{unet_forward.19} parent=19 // pred_fallthru
        _
    $region20: #{unet_forward.19} parent=5 // pred_fallthru
      _
    %p161 = scmp.le.s32.totalorder 1, %s10
    %p162 = scmp.lt.s32.totalorder %s10, 3
    %p163 = pnand %p161, %p162
    %p164 = pneg %p163
    // Predicated region
    $region25: #{unet_forward.19} parent=5 // pred_check
      _
    $region26: #{unet_forward.19} parent=5 // pred_check_branch
      %166 = sbr.rel (%p163) target = $region28
    $region27: #{unet_forward.19} parent=5 // pred_region
      %s167 = ssub.s32 %s10, 1
      %p168 = scmp.lt.s32.totalorder %s19, 1
      %s169 = scalar_select %p168, %s19, 1
      %p170 = scmp.lt.s32.totalorder %s20, 0
      %s171 = scalar_select %p170, %s20, 0
      %s172 = smul.addr %s171, 5
      %s173 = smul.addr %s169, 5
      %s174 = sadd.s32 %s172, %s173
      %s175 = smul.addr %s174, 4
      %s176 = scalar_lea.vmem %s0, %s175
      %p177 = pneg %p50
      %p178 = pneg %p47
      %p179 = pneg %p71
      %p180 = pneg %p68
      %p181 = pneg %p99
      %p182 = pneg %p96
      %s183 = smul.u32 2, %s20
      %p184 = scmp.lt.s32.totalorder %s19, 1
      %s185 = scalar_select %p184, %s19, 1
      %p186 = scmp.lt.s32.totalorder %s183, 1
      %s187 = scalar_select %p186, %s183, 1
      %s188 = smul.addr %s185, 2
      %s189 = sadd.s32 %s187, %s188
      %s190 = smul.addr %s189, 4
      %s191 = scalar_lea.vmem %s2, %s190
      %p192 = pneg %p127
      %p193 = pneg %p124
      %s194 = sadd.s32 %s19, %s20
      %p195 = scmp.lt.s32.totalorder %s194, 1
      %s196 = scalar_select %p195, %s194, 1
      %s197 = smul.addr %s196, 8
      %s198 = scalar_lea.vmem %s3, %s197
      %p199 = scmp.lt.s32.totalorder %s19, 1
      %s200 = scalar_select %p199, %s19, 1
      %p201 = scmp.lt.s32.totalorder %s20, 0
      %s202 = scalar_select %p201, %s20, 0
      %s203 = smul.addr %s202, 5
      %s204 = smul.addr %s200, 5
      %s205 = sadd.s32 %s203, %s204
      %s206 = smul.addr %s205, 4
      %s207 = scalar_lea.vmem %s0, %s206
      %s208 = smul.u32 2, %s20
      %p209 = scmp.lt.s32.totalorder %s19, 1
      %s210 = scalar_select %p209, %s19, 1
      %p211 = scmp.lt.s32.totalorder %s208, 1
      %s212 = scalar_select %p211, %s208, 1
      %s213 = smul.addr %s210, 2
      %s214 = sadd.s32 %s212, %s213
      %s215 = smul.addr %s214, 4
      %s216 = scalar_lea.vmem %s2, %s215
      %s217 = smul.u32 2, %s20
      %s218 = sadd.s32 %s19, %s20
      %p219 = scmp.lt.s32.totalorder %s218, 1
      %s220 = scalar_select %p219, %s218, 1
      %s221 = smul.addr %s220, 8
      %s222 = scalar_lea.vmem %s3, %s221
      %s223 = sadd.s32 %s19, %s20
      %v224 = vld [vmem:[%s207] sm:$0xf]
      %v225 = vld [vmem:[%s207 + $0x4] sm:$0xf]
      %v226 = vld [vmem:[%s1] sm:$0xf]
      %v227 = vld [vmem:[%s1 + $0x4] sm:$0xf]
      %v228 = vld [vmem:[%s1 + $0x8] sm:$0xf]
      %v229 = vld [vmem:[%s1 + $0xc] sm:$0xf]
      %v230 = vld [vmem:[%s1 + $0x10] sm:$0xf]
      %v231 = vld [vmem:[%s1 + $0x14] sm:$0xf]
      %v232 = vld [vmem:[%s1 + $0x18] sm:$0xf]
      %v233 = vld [vmem:[%s1 + $0x1c] sm:$0xf]
      %v234 = vld [vmem:[%s1 + $0x20] sm:$0xf]
      %v235 = vld [vmem:[%s1 + $0x24] sm:$0xf]
      %v236 = vld [vmem:[%s1 + $0x28] sm:$0xf]
      %v237 = vld [vmem:[%s1 + $0x2c] sm:$0xf]
      %v238 = vld [vmem:[%s1 + $0x30] sm:$0xf]
      %v239 = vld [vmem:[%s1 + $0x34] sm:$0xf]
      %v240 = vld [vmem:[%s1 + $0x38] sm:$0xf]
      %v241 = vld [vmem:[%s1 + $0x3c] sm:$0xf]
      %v242 = vld [vmem:[%s207 + $0x8] sm:$0x1]
      %s243 = scalar_lea.vmem %s1, 64
      %v244 = vld [vmem:[%s243] sm:$0xf]
      %v245 = vld [vmem:[%s243 + $0x4] sm:$0xf]
      %v246 = vld [vmem:[%s243 + $0x8] sm:$0xf]
      %v247 = vld [vmem:[%s243 + $0xc] sm:$0xf]
      %v248 = vld [vmem:[%s243 + $0x10] sm:$0xf]
      %v249 = vld [vmem:[%s243 + $0x14] sm:$0xf]
      %v250 = vld [vmem:[%s243 + $0x18] sm:$0xf]
      %v251 = vld [vmem:[%s243 + $0x1c] sm:$0xf]
      %v252 = vld [vmem:[%s243 + $0x20] sm:$0xf]
      %v253 = vld [vmem:[%s243 + $0x24] sm:$0xf]
      %v254 = vld [vmem:[%s243 + $0x28] sm:$0xf]
      %v255 = vld [vmem:[%s243 + $0x2c] sm:$0xf]
      %v256 = vld [vmem:[%s243 + $0x30] sm:$0xf]
      %v257 = vld [vmem:[%s243 + $0x34] sm:$0xf]
      %v258 = vld [vmem:[%s243 + $0x38] sm:$0xf]
      %v259 = vld [vmem:[%s243 + $0x3c] sm:$0xf]
      %v263 = vunpack.c.l.b16 %v224
      %v264 = vunpack.c.l.b16 %v225
      %v265 = vunpack.c.l.b16 %v242
      %v266 = vpack.c.b16 %v264, %v263
      %v267 = vpack.c.b16 %v265, %v265
      %vm268 = vsmask.f32 7424
      %v270 = vshrl.u32 %v266, 16
      %v272 = vshll.u32 %v266, 16
      %v274 = vrot.slane %v272, 1
      %v275 = vor.u32 %v270, %v274
      %v277 = vshll.u32 %v267, 16
      %v279 = vrot.slane %v277, 1
      %v280 = vsel %vm268, %v275, %v279
      %v298 = vunpack.c.l.b16 %v244
      %v299 = vunpack.c.l.b16 %v245
      %v300 = vunpack.c.l.b16 %v246
      %v301 = vunpack.c.l.b16 %v247
      %v302 = vunpack.c.l.b16 %v248
      %v303 = vunpack.c.l.b16 %v249
      %v304 = vunpack.c.l.b16 %v250
      %v305 = vunpack.c.l.b16 %v251
      %v306 = vunpack.c.l.b16 %v252
      %v307 = vunpack.c.l.b16 %v253
      %v308 = vunpack.c.l.b16 %v254
      %v309 = vunpack.c.l.b16 %v255
      %v310 = vunpack.c.l.b16 %v256
      %v311 = vunpack.c.l.b16 %v257
      %v312 = vunpack.c.l.b16 %v258
      %v313 = vunpack.c.l.b16 %v259
      %v314 = vpack.c.b16 %v299, %v298
      %v315 = vpack.c.b16 %v301, %v300
      %v316 = vpack.c.b16 %v303, %v302
      %v317 = vpack.c.b16 %v305, %v304
      %v318 = vpack.c.b16 %v307, %v306
      %v319 = vpack.c.b16 %v309, %v308
      %v320 = vpack.c.b16 %v311, %v310
      %v321 = vpack.c.b16 %v313, %v312
      %330 = vmatpush.bf16.msra.mxu0 %v321
      %331 = vmatpush.bf16.msra.mxu0 %v320
      %332 = vmatpush.bf16.msra.mxu0 %v319
      %333 = vmatpush.bf16.msra.mxu0 %v318
      %334 = vmatpush.bf16.msra.mxu0 %v317
      %335 = vmatpush.bf16.msra.mxu0 %v316
      %336 = vmatpush.bf16.msra.mxu0 %v315
      %337 = vmatpush.bf16.msra.mxu0 %v314
      %338 = vmatmul.bf16.gmra.mxu0 %v280
      %v339 = vpop.f32.mrf.mxu0
      %v340 = vadd.f32 0.0, %v339
      %v341 = vpop.f32.mrf.mxu0
      %v342 = vadd.f32 0.0, %v341
      %343 = vdwg.mxu0
      %v361 = vunpack.c.l.b16 %v226
      %v362 = vunpack.c.l.b16 %v227
      %v363 = vunpack.c.l.b16 %v228
      %v364 = vunpack.c.l.b16 %v229
      %v365 = vunpack.c.l.b16 %v230
      %v366 = vunpack.c.l.b16 %v231
      %v367 = vunpack.c.l.b16 %v232
      %v368 = vunpack.c.l.b16 %v233
      %v369 = vunpack.c.l.b16 %v234
      %v370 = vunpack.c.l.b16 %v235
      %v371 = vunpack.c.l.b16 %v236
      %v372 = vunpack.c.l.b16 %v237
      %v373 = vunpack.c.l.b16 %v238
      %v374 = vunpack.c.l.b16 %v239
      %v375 = vunpack.c.l.b16 %v240
      %v376 = vunpack.c.l.b16 %v241
      %v377 = vpack.c.b16 %v362, %v361
      %v378 = vpack.c.b16 %v364, %v363
      %v379 = vpack.c.b16 %v366, %v365
      %v380 = vpack.c.b16 %v368, %v367
      %v381 = vpack.c.b16 %v370, %v369
      %v382 = vpack.c.b16 %v372, %v371
      %v383 = vpack.c.b16 %v374, %v373
      %v384 = vpack.c.b16 %v376, %v375
      %393 = vmatpush.bf16.msra.mxu0 %v384
      %394 = vmatpush.bf16.msra.mxu0 %v383
      %395 = vmatpush.bf16.msra.mxu0 %v382
      %396 = vmatpush.bf16.msra.mxu0 %v381
      %397 = vmatpush.bf16.msra.mxu0 %v380
      %398 = vmatpush.bf16.msra.mxu0 %v379
      %399 = vmatpush.bf16.msra.mxu0 %v378
      %400 = vmatpush.bf16.msra.mxu0 %v377
      %401 = vmatmul.bf16.gmra.mxu0 %v266
      %v402 = vpop.f32.mrf.mxu0
      %v403 = vadd.f32 %v340, %v402
      %v404 = vpop.f32.mrf.mxu0
      %v405 = vadd.f32 %v342, %v404
      %406 = vdwg.mxu0
      %v407 = vld [vmem:[%s207] sm:$0xe]
      %s408 = scalar_lea.vmem %s1, 128
      %v409 = vld [vmem:[%s408] sm:$0xf]
      %v410 = vld [vmem:[%s408 + $0x4] sm:$0xf]
      %v411 = vld [vmem:[%s408 + $0x8] sm:$0xf]
      %v412 = vld [vmem:[%s408 + $0xc] sm:$0xf]
      %v413 = vld [vmem:[%s408 + $0x10] sm:$0xf]
      %v414 = vld [vmem:[%s408 + $0x14] sm:$0xf]
      %v415 = vld [vmem:[%s408 + $0x18] sm:$0xf]
      %v416 = vld [vmem:[%s408 + $0x1c] sm:$0xf]
      %v417 = vld [vmem:[%s408 + $0x20] sm:$0xf]
      %v418 = vld [vmem:[%s408 + $0x24] sm:$0xf]
      %v419 = vld [vmem:[%s408 + $0x28] sm:$0xf]
      %v420 = vld [vmem:[%s408 + $0x2c] sm:$0xf]
      %v421 = vld [vmem:[%s408 + $0x30] sm:$0xf]
      %v422 = vld [vmem:[%s408 + $0x34] sm:$0xf]
      %v423 = vld [vmem:[%s408 + $0x38] sm:$0xf]
      %v424 = vld [vmem:[%s408 + $0x3c] sm:$0xf]
      %v426 = vunpack.c.l.b16 %v407
      %v427 = vpack.c.b16 %v264, %v426
      %vm428 = vcmask 1046528
      %v429 = vrot.slane %v427, 1
      %v430 = vrot.slane %v267, 1
      %v431 = vsel %vm428, %v429, %v430
      %v449 = vunpack.c.l.b16 %v409
      %v450 = vunpack.c.l.b16 %v410
      %v451 = vunpack.c.l.b16 %v411
      %v452 = vunpack.c.l.b16 %v412
      %v453 = vunpack.c.l.b16 %v413
      %v454 = vunpack.c.l.b16 %v414
      %v455 = vunpack.c.l.b16 %v415
      %v456 = vunpack.c.l.b16 %v416
      %v457 = vunpack.c.l.b16 %v417
      %v458 = vunpack.c.l.b16 %v418
      %v459 = vunpack.c.l.b16 %v419
      %v460 = vunpack.c.l.b16 %v420
      %v461 = vunpack.c.l.b16 %v421
      %v462 = vunpack.c.l.b16 %v422
      %v463 = vunpack.c.l.b16 %v423
      %v464 = vunpack.c.l.b16 %v424
      %v465 = vpack.c.b16 %v450, %v449
      %v466 = vpack.c.b16 %v452, %v451
      %v467 = vpack.c.b16 %v454, %v453
      %v468 = vpack.c.b16 %v456, %v455
      %v469 = vpack.c.b16 %v458, %v457
      %v470 = vpack.c.b16 %v460, %v459
      %v471 = vpack.c.b16 %v462, %v461
      %v472 = vpack.c.b16 %v464, %v463
      %481 = vmatpush.bf16.msra.mxu0 %v472
      %482 = vmatpush.bf16.msra.mxu0 %v471
      %483 = vmatpush.bf16.msra.mxu0 %v470
      %484 = vmatpush.bf16.msra.mxu0 %v469
      %485 = vmatpush.bf16.msra.mxu0 %v468
      %486 = vmatpush.bf16.msra.mxu0 %v467
      %487 = vmatpush.bf16.msra.mxu0 %v466
      %488 = vmatpush.bf16.msra.mxu0 %v465
      %489 = vmatmul.bf16.gmra.mxu0 %v431
      %v490 = vpop.f32.mrf.mxu0
      %v491 = vadd.f32 0.0, %v490
      %v492 = vpop.f32.mrf.mxu0
      %v493 = vadd.f32 0.0, %v492
      %494 = vdwg.mxu0
      %v495 = vadd.f32 %v403, %v491
      %v496 = vadd.f32 %v405, %v493
      %v497 = vld [vmem:[%s207 + $0x8] sm:$0xf]
      %s498 = scalar_lea.vmem %s1, 192
      %v499 = vld [vmem:[%s498] sm:$0xf]
      %v500 = vld [vmem:[%s498 + $0x4] sm:$0xf]
      %v501 = vld [vmem:[%s498 + $0x8] sm:$0xf]
      %v502 = vld [vmem:[%s498 + $0xc] sm:$0xf]
      %v503 = vld [vmem:[%s498 + $0x10] sm:$0xf]
      %v504 = vld [vmem:[%s498 + $0x14] sm:$0xf]
      %v505 = vld [vmem:[%s498 + $0x18] sm:$0xf]
      %v506 = vld [vmem:[%s498 + $0x1c] sm:$0xf]
      %v507 = vld [vmem:[%s498 + $0x20] sm:$0xf]
      %v508 = vld [vmem:[%s498 + $0x24] sm:$0xf]
      %v509 = vld [vmem:[%s498 + $0x28] sm:$0xf]
      %v510 = vld [vmem:[%s498 + $0x2c] sm:$0xf]
      %v511 = vld [vmem:[%s498 + $0x30] sm:$0xf]
      %v512 = vld [vmem:[%s498 + $0x34] sm:$0xf]
      %v513 = vld [vmem:[%s498 + $0x38] sm:$0xf]
      %v514 = vld [vmem:[%s498 + $0x3c] sm:$0xf]
      %v516 = vunpack.c.l.b16 %v497
      %v517 = vpack.c.b16 %v516, %v264
      %v535 = vunpack.c.l.b16 %v499
      %v536 = vunpack.c.l.b16 %v500
      %v537 = vunpack.c.l.b16 %v501
      %v538 = vunpack.c.l.b16 %v502
      %v539 = vunpack.c.l.b16 %v503
      %v540 = vunpack.c.l.b16 %v504
      %v541 = vunpack.c.l.b16 %v505
      %v542 = vunpack.c.l.b16 %v506
      %v543 = vunpack.c.l.b16 %v507
      %v544 = vunpack.c.l.b16 %v508
      %v545 = vunpack.c.l.b16 %v509
      %v546 = vunpack.c.l.b16 %v510
      %v547 = vunpack.c.l.b16 %v511
      %v548 = vunpack.c.l.b16 %v512
      %v549 = vunpack.c.l.b16 %v513
      %v550 = vunpack.c.l.b16 %v514
      %v551 = vpack.c.b16 %v536, %v535
      %v552 = vpack.c.b16 %v538, %v537
      %v553 = vpack.c.b16 %v540, %v539
      %v554 = vpack.c.b16 %v542, %v541
      %v555 = vpack.c.b16 %v544, %v543
      %v556 = vpack.c.b16 %v546, %v545
      %v557 = vpack.c.b16 %v548, %v547
      %v558 = vpack.c.b16 %v550, %v549
      %567 = vmatpush.bf16.msra.mxu0 %v558
      %568 = vmatpush.bf16.msra.mxu0 %v557
      %569 = vmatpush.bf16.msra.mxu0 %v556
      %570 = vmatpush.bf16.msra.mxu0 %v555
      %571 = vmatpush.bf16.msra.mxu0 %v554
      %572 = vmatpush.bf16.msra.mxu0 %v553
      %573 = vmatpush.bf16.msra.mxu0 %v552
      %574 = vmatpush.bf16.msra.mxu0 %v551
      %575 = vmatmul.bf16.gmra.mxu0 %v517
      %v576 = vpop.f32.mrf.mxu0
      %v577 = vadd.f32 0.0, %v576
      %v578 = vpop.f32.mrf.mxu0
      %v579 = vadd.f32 0.0, %v578
      %580 = vdwg.mxu0
      %v581 = vadd.f32 %v495, %v577
      %v582 = vadd.f32 %v496, %v579
      %v583 = vld [vmem:[%s207 + $0x4] sm:$0xf]
      %v584 = vld [vmem:[%s207 + $0x8] sm:$0xf]
      %v585 = vld [vmem:[%s207 + $0xc] sm:$0x1]
      %s586 = scalar_lea.vmem %s1, 256
      %v587 = vld [vmem:[%s586] sm:$0xf]
      %v588 = vld [vmem:[%s586 + $0x4] sm:$0xf]
      %v589 = vld [vmem:[%s586 + $0x8] sm:$0xf]
      %v590 = vld [vmem:[%s586 + $0xc] sm:$0xf]
      %v591 = vld [vmem:[%s586 + $0x10] sm:$0xf]
      %v592 = vld [vmem:[%s586 + $0x14] sm:$0xf]
      %v593 = vld [vmem:[%s586 + $0x18] sm:$0xf]
      %v594 = vld [vmem:[%s586 + $0x1c] sm:$0xf]
      %v595 = vld [vmem:[%s586 + $0x20] sm:$0xf]
      %v596 = vld [vmem:[%s586 + $0x24] sm:$0xf]
      %v597 = vld [vmem:[%s586 + $0x28] sm:$0xf]
      %v598 = vld [vmem:[%s586 + $0x2c] sm:$0xf]
      %v599 = vld [vmem:[%s586 + $0x30] sm:$0xf]
      %v600 = vld [vmem:[%s586 + $0x34] sm:$0xf]
      %v601 = vld [vmem:[%s586 + $0x38] sm:$0xf]
      %v602 = vld [vmem:[%s586 + $0x3c] sm:$0xf]
      %v606 = vunpack.c.l.b16 %v583
      %v607 = vunpack.c.l.b16 %v584
      %v608 = vunpack.c.l.b16 %v585
      %v609 = vpack.c.b16 %v607, %v606
      %v610 = vpack.c.b16 %v608, %v608
      %v612 = vshrl.u32 %v609, 16
      %v614 = vshll.u32 %v609, 16
      %v616 = vrot.slane %v614, 1
      %v617 = vor.u32 %v612, %v616
      %v619 = vshll.u32 %v610, 16
      %v621 = vrot.slane %v619, 1
      %v622 = vsel %vm268, %v617, %v621
      %v640 = vunpack.c.l.b16 %v587
      %v641 = vunpack.c.l.b16 %v588
      %v642 = vunpack.c.l.b16 %v589
      %v643 = vunpack.c.l.b16 %v590
      %v644 = vunpack.c.l.b16 %v591
      %v645 = vunpack.c.l.b16 %v592
      %v646 = vunpack.c.l.b16 %v593
      %v647 = vunpack.c.l.b16 %v594
      %v648 = vunpack.c.l.b16 %v595
      %v649 = vunpack.c.l.b16 %v596
      %v650 = vunpack.c.l.b16 %v597
      %v651 = vunpack.c.l.b16 %v598
      %v652 = vunpack.c.l.b16 %v599
      %v653 = vunpack.c.l.b16 %v600
      %v654 = vunpack.c.l.b16 %v601
      %v655 = vunpack.c.l.b16 %v602
      %v656 = vpack.c.b16 %v641, %v640
      %v657 = vpack.c.b16 %v643, %v642
      %v658 = vpack.c.b16 %v645, %v644
      %v659 = vpack.c.b16 %v647, %v646
      %v660 = vpack.c.b16 %v649, %v648
      %v661 = vpack.c.b16 %v651, %v650
      %v662 = vpack.c.b16 %v653, %v652
      %v663 = vpack.c.b16 %v655, %v654
      %672 = vmatpush.bf16.msra.mxu0 %v663
      %673 = vmatpush.bf16.msra.mxu0 %v662
      %674 = vmatpush.bf16.msra.mxu0 %v661
      %675 = vmatpush.bf16.msra.mxu0 %v660
      %676 = vmatpush.bf16.msra.mxu0 %v659
      %677 = vmatpush.bf16.msra.mxu0 %v658
      %678 = vmatpush.bf16.msra.mxu0 %v657
      %679 = vmatpush.bf16.msra.mxu0 %v656
      %680 = vmatmul.bf16.gmra.mxu0 %v622
      %v681 = vpop.f32.mrf.mxu0
      %v682 = vadd.f32 0.0, %v681
      %v683 = vpop.f32.mrf.mxu0
      %v684 = vadd.f32 0.0, %v683
      %685 = vdwg.mxu0
      %v686 = vadd.f32 %v581, %v682
      %v687 = vadd.f32 %v582, %v684
      %v688 = vld [vmem:[%s207 + $0x4] sm:$0xe]
      %s689 = scalar_lea.vmem %s1, 320
      %v690 = vld [vmem:[%s689] sm:$0xf]
      %v691 = vld [vmem:[%s689 + $0x4] sm:$0xf]
      %v692 = vld [vmem:[%s689 + $0x8] sm:$0xf]
      %v693 = vld [vmem:[%s689 + $0xc] sm:$0xf]
      %v694 = vld [vmem:[%s689 + $0x10] sm:$0xf]
      %v695 = vld [vmem:[%s689 + $0x14] sm:$0xf]
      %v696 = vld [vmem:[%s689 + $0x18] sm:$0xf]
      %v697 = vld [vmem:[%s689 + $0x1c] sm:$0xf]
      %v698 = vld [vmem:[%s689 + $0x20] sm:$0xf]
      %v699 = vld [vmem:[%s689 + $0x24] sm:$0xf]
      %v700 = vld [vmem:[%s689 + $0x28] sm:$0xf]
      %v701 = vld [vmem:[%s689 + $0x2c] sm:$0xf]
      %v702 = vld [vmem:[%s689 + $0x30] sm:$0xf]
      %v703 = vld [vmem:[%s689 + $0x34] sm:$0xf]
      %v704 = vld [vmem:[%s689 + $0x38] sm:$0xf]
      %v705 = vld [vmem:[%s689 + $0x3c] sm:$0xf]
      %v707 = vunpack.c.l.b16 %v688
      %v708 = vpack.c.b16 %v607, %v707
      %v709 = vrot.slane %v708, 1
      %v710 = vrot.slane %v610, 1
      %v711 = vsel %vm428, %v709, %v710
      %v729 = vunpack.c.l.b16 %v690
      %v730 = vunpack.c.l.b16 %v691
      %v731 = vunpack.c.l.b16 %v692
      %v732 = vunpack.c.l.b16 %v693
      %v733 = vunpack.c.l.b16 %v694
      %v734 = vunpack.c.l.b16 %v695
      %v735 = vunpack.c.l.b16 %v696
      %v736 = vunpack.c.l.b16 %v697
      %v737 = vunpack.c.l.b16 %v698
      %v738 = vunpack.c.l.b16 %v699
      %v739 = vunpack.c.l.b16 %v700
      %v740 = vunpack.c.l.b16 %v701
      %v741 = vunpack.c.l.b16 %v702
      %v742 = vunpack.c.l.b16 %v703
      %v743 = vunpack.c.l.b16 %v704
      %v744 = vunpack.c.l.b16 %v705
      %v745 = vpack.c.b16 %v730, %v729
      %v746 = vpack.c.b16 %v732, %v731
      %v747 = vpack.c.b16 %v734, %v733
      %v748 = vpack.c.b16 %v736, %v735
      %v749 = vpack.c.b16 %v738, %v737
      %v750 = vpack.c.b16 %v740, %v739
      %v751 = vpack.c.b16 %v742, %v741
      %v752 = vpack.c.b16 %v744, %v743
      %761 = vmatpush.bf16.msra.mxu0 %v752
      %762 = vmatpush.bf16.msra.mxu0 %v751
      %763 = vmatpush.bf16.msra.mxu0 %v750
      %764 = vmatpush.bf16.msra.mxu0 %v749
      %765 = vmatpush.bf16.msra.mxu0 %v748
      %766 = vmatpush.bf16.msra.mxu0 %v747
      %767 = vmatpush.bf16.msra.mxu0 %v746
      %768 = vmatpush.bf16.msra.mxu0 %v745
      %769 = vmatmul.bf16.gmra.mxu0 %v711
      %v770 = vpop.f32.mrf.mxu0
      %v771 = vadd.f32 0.0, %v770
      %v772 = vpop.f32.mrf.mxu0
      %v773 = vadd.f32 0.0, %v772
      %774 = vdwg.mxu0
      %v775 = vadd.f32 %v686, %v771
      %v776 = vadd.f32 %v687, %v773
      %v777 = vld [vmem:[%s207 + $0xc] sm:$0xf]
      %s778 = scalar_lea.vmem %s1, 384
      %v779 = vld [vmem:[%s778] sm:$0xf]
      %v780 = vld [vmem:[%s778 + $0x4] sm:$0xf]
      %v781 = vld [vmem:[%s778 + $0x8] sm:$0xf]
      %v782 = vld [vmem:[%s778 + $0xc] sm:$0xf]
      %v783 = vld [vmem:[%s778 + $0x10] sm:$0xf]
      %v784 = vld [vmem:[%s778 + $0x14] sm:$0xf]
      %v785 = vld [vmem:[%s778 + $0x18] sm:$0xf]
      %v786 = vld [vmem:[%s778 + $0x1c] sm:$0xf]
      %v787 = vld [vmem:[%s778 + $0x20] sm:$0xf]
      %v788 = vld [vmem:[%s778 + $0x24] sm:$0xf]
      %v789 = vld [vmem:[%s778 + $0x28] sm:$0xf]
      %v790 = vld [vmem:[%s778 + $0x2c] sm:$0xf]
      %v791 = vld [vmem:[%s778 + $0x30] sm:$0xf]
      %v792 = vld [vmem:[%s778 + $0x34] sm:$0xf]
      %v793 = vld [vmem:[%s778 + $0x38] sm:$0xf]
      %v794 = vld [vmem:[%s778 + $0x3c] sm:$0xf]
      %v796 = vunpack.c.l.b16 %v777
      %v797 = vpack.c.b16 %v796, %v607
      %v815 = vunpack.c.l.b16 %v779
      %v816 = vunpack.c.l.b16 %v780
      %v817 = vunpack.c.l.b16 %v781
      %v818 = vunpack.c.l.b16 %v782
      %v819 = vunpack.c.l.b16 %v783
      %v820 = vunpack.c.l.b16 %v784
      %v821 = vunpack.c.l.b16 %v785
      %v822 = vunpack.c.l.b16 %v786
      %v823 = vunpack.c.l.b16 %v787
      %v824 = vunpack.c.l.b16 %v788
      %v825 = vunpack.c.l.b16 %v789
      %v826 = vunpack.c.l.b16 %v790
      %v827 = vunpack.c.l.b16 %v791
      %v828 = vunpack.c.l.b16 %v792
      %v829 = vunpack.c.l.b16 %v793
      %v830 = vunpack.c.l.b16 %v794
      %v831 = vpack.c.b16 %v816, %v815
      %v832 = vpack.c.b16 %v818, %v817
      %v833 = vpack.c.b16 %v820, %v819
      %v834 = vpack.c.b16 %v822, %v821
      %v835 = vpack.c.b16 %v824, %v823
      %v836 = vpack.c.b16 %v826, %v825
      %v837 = vpack.c.b16 %v828, %v827
      %v838 = vpack.c.b16 %v830, %v829
      %847 = vmatpush.bf16.msra.mxu0 %v838
      %848 = vmatpush.bf16.msra.mxu0 %v837
      %849 = vmatpush.bf16.msra.mxu0 %v836
      %850 = vmatpush.bf16.msra.mxu0 %v835
      %851 = vmatpush.bf16.msra.mxu0 %v834
      %852 = vmatpush.bf16.msra.mxu0 %v833
      %853 = vmatpush.bf16.msra.mxu0 %v832
      %854 = vmatpush.bf16.msra.mxu0 %v831
      %855 = vmatmul.bf16.gmra.mxu0 %v797
      %v856 = vpop.f32.mrf.mxu0
      %v857 = vadd.f32 0.0, %v856
      %v858 = vpop.f32.mrf.mxu0
      %v859 = vadd.f32 0.0, %v858
      %860 = vdwg.mxu0
      %v861 = vadd.f32 %v775, %v857
      %v862 = vadd.f32 %v776, %v859
      %v863 = vld [vmem:[%s207 + $0x8] sm:$0xf]
      %v864 = vld [vmem:[%s207 + $0xc] sm:$0xf]
      %v865 = vld [vmem:[%s207 + $0x10] sm:$0x1]
      %s866 = scalar_lea.vmem %s1, 448
      %v867 = vld [vmem:[%s866] sm:$0xf]
      %v868 = vld [vmem:[%s866 + $0x4] sm:$0xf]
      %v869 = vld [vmem:[%s866 + $0x8] sm:$0xf]
      %v870 = vld [vmem:[%s866 + $0xc] sm:$0xf]
      %v871 = vld [vmem:[%s866 + $0x10] sm:$0xf]
      %v872 = vld [vmem:[%s866 + $0x14] sm:$0xf]
      %v873 = vld [vmem:[%s866 + $0x18] sm:$0xf]
      %v874 = vld [vmem:[%s866 + $0x1c] sm:$0xf]
      %v875 = vld [vmem:[%s866 + $0x20] sm:$0xf]
      %v876 = vld [vmem:[%s866 + $0x24] sm:$0xf]
      %v877 = vld [vmem:[%s866 + $0x28] sm:$0xf]
      %v878 = vld [vmem:[%s866 + $0x2c] sm:$0xf]
      %v879 = vld [vmem:[%s866 + $0x30] sm:$0xf]
      %v880 = vld [vmem:[%s866 + $0x34] sm:$0xf]
      %v881 = vld [vmem:[%s866 + $0x38] sm:$0xf]
      %v882 = vld [vmem:[%s866 + $0x3c] sm:$0xf]
      %v886 = vunpack.c.l.b16 %v863
      %v887 = vunpack.c.l.b16 %v864
      %v888 = vunpack.c.l.b16 %v865
      %v889 = vpack.c.b16 %v887, %v886
      %v890 = vpack.c.b16 %v888, %v888
      %v892 = vshrl.u32 %v889, 16
      %v894 = vshll.u32 %v889, 16
      %v896 = vrot.slane %v894, 1
      %v897 = vor.u32 %v892, %v896
      %v899 = vshll.u32 %v890, 16
      %v901 = vrot.slane %v899, 1
      %v902 = vsel %vm268, %v897, %v901
      %v920 = vunpack.c.l.b16 %v867
      %v921 = vunpack.c.l.b16 %v868
      %v922 = vunpack.c.l.b16 %v869
      %v923 = vunpack.c.l.b16 %v870
      %v924 = vunpack.c.l.b16 %v871
      %v925 = vunpack.c.l.b16 %v872
      %v926 = vunpack.c.l.b16 %v873
      %v927 = vunpack.c.l.b16 %v874
      %v928 = vunpack.c.l.b16 %v875
      %v929 = vunpack.c.l.b16 %v876
      %v930 = vunpack.c.l.b16 %v877
      %v931 = vunpack.c.l.b16 %v878
      %v932 = vunpack.c.l.b16 %v879
      %v933 = vunpack.c.l.b16 %v880
      %v934 = vunpack.c.l.b16 %v881
      %v935 = vunpack.c.l.b16 %v882
      %v936 = vpack.c.b16 %v921, %v920
      %v937 = vpack.c.b16 %v923, %v922
      %v938 = vpack.c.b16 %v925, %v924
      %v939 = vpack.c.b16 %v927, %v926
      %v940 = vpack.c.b16 %v929, %v928
      %v941 = vpack.c.b16 %v931, %v930
      %v942 = vpack.c.b16 %v933, %v932
      %v943 = vpack.c.b16 %v935, %v934
      %952 = vmatpush.bf16.msra.mxu0 %v943
      %953 = vmatpush.bf16.msra.mxu0 %v942
      %954 = vmatpush.bf16.msra.mxu0 %v941
      %955 = vmatpush.bf16.msra.mxu0 %v940
      %956 = vmatpush.bf16.msra.mxu0 %v939
      %957 = vmatpush.bf16.msra.mxu0 %v938
      %958 = vmatpush.bf16.msra.mxu0 %v937
      %959 = vmatpush.bf16.msra.mxu0 %v936
      %960 = vmatmul.bf16.gmra.mxu0 %v902
      %v961 = vpop.f32.mrf.mxu0
      %v962 = vadd.f32 0.0, %v961
      %v963 = vpop.f32.mrf.mxu0
      %v964 = vadd.f32 0.0, %v963
      %965 = vdwg.mxu0
      %v966 = vadd.f32 %v861, %v962
      %v967 = vadd.f32 %v862, %v964
      %v968 = vld [vmem:[%s207 + $0x8] sm:$0xe]
      %s969 = scalar_lea.vmem %s1, 512
      %v970 = vld [vmem:[%s969] sm:$0xf]
      %v971 = vld [vmem:[%s969 + $0x4] sm:$0xf]
      %v972 = vld [vmem:[%s969 + $0x8] sm:$0xf]
      %v973 = vld [vmem:[%s969 + $0xc] sm:$0xf]
      %v974 = vld [vmem:[%s969 + $0x10] sm:$0xf]
      %v975 = vld [vmem:[%s969 + $0x14] sm:$0xf]
      %v976 = vld [vmem:[%s969 + $0x18] sm:$0xf]
      %v977 = vld [vmem:[%s969 + $0x1c] sm:$0xf]
      %v978 = vld [vmem:[%s969 + $0x20] sm:$0xf]
      %v979 = vld [vmem:[%s969 + $0x24] sm:$0xf]
      %v980 = vld [vmem:[%s969 + $0x28] sm:$0xf]
      %v981 = vld [vmem:[%s969 + $0x2c] sm:$0xf]
      %v982 = vld [vmem:[%s969 + $0x30] sm:$0xf]
      %v983 = vld [vmem:[%s969 + $0x34] sm:$0xf]
      %v984 = vld [vmem:[%s969 + $0x38] sm:$0xf]
      %v985 = vld [vmem:[%s969 + $0x3c] sm:$0xf]
      %v987 = vunpack.c.l.b16 %v968
      %v988 = vpack.c.b16 %v887, %v987
      %v989 = vrot.slane %v988, 1
      %v990 = vrot.slane %v890, 1
      %v991 = vsel %vm428, %v989, %v990
      %v1009 = vunpack.c.l.b16 %v970
      %v1010 = vunpack.c.l.b16 %v971
      %v1011 = vunpack.c.l.b16 %v972
      %v1012 = vunpack.c.l.b16 %v973
      %v1013 = vunpack.c.l.b16 %v974
      %v1014 = vunpack.c.l.b16 %v975
      %v1015 = vunpack.c.l.b16 %v976
      %v1016 = vunpack.c.l.b16 %v977
      %v1017 = vunpack.c.l.b16 %v978
      %v1018 = vunpack.c.l.b16 %v979
      %v1019 = vunpack.c.l.b16 %v980
      %v1020 = vunpack.c.l.b16 %v981
      %v1021 = vunpack.c.l.b16 %v982
      %v1022 = vunpack.c.l.b16 %v983
      %v1023 = vunpack.c.l.b16 %v984
      %v1024 = vunpack.c.l.b16 %v985
      %v1025 = vpack.c.b16 %v1010, %v1009
      %v1026 = vpack.c.b16 %v1012, %v1011
      %v1027 = vpack.c.b16 %v1014, %v1013
      %v1028 = vpack.c.b16 %v1016, %v1015
      %v1029 = vpack.c.b16 %v1018, %v1017
      %v1030 = vpack.c.b16 %v1020, %v1019
      %v1031 = vpack.c.b16 %v1022, %v1021
      %v1032 = vpack.c.b16 %v1024, %v1023
      %1041 = vmatpush.bf16.msra.mxu0 %v1032
      %1042 = vmatpush.bf16.msra.mxu0 %v1031
      %1043 = vmatpush.bf16.msra.mxu0 %v1030
      %1044 = vmatpush.bf16.msra.mxu0 %v1029
      %1045 = vmatpush.bf16.msra.mxu0 %v1028
      %1046 = vmatpush.bf16.msra.mxu0 %v1027
      %1047 = vmatpush.bf16.msra.mxu0 %v1026
      %1048 = vmatpush.bf16.msra.mxu0 %v1025
      %1049 = vmatmul.bf16.gmra.mxu0 %v991
      %v1050 = vpop.f32.mrf.mxu0
      %v1051 = vadd.f32 0.0, %v1050
      %v1052 = vpop.f32.mrf.mxu0
      %v1053 = vadd.f32 0.0, %v1052
      %1054 = vdwg.mxu0
      %v1055 = vadd.f32 %v966, %v1051
      %v1056 = vadd.f32 %v967, %v1053
      %v1057 = vpack.c.bf16 %v1055, %v1055
      %v1058 = vpack.c.bf16 %v1056, %v1056
      %1059 = vst [vmem:[%s216] sm:$0xf] %v1057
      %1060 = vst [vmem:[%s216 + $0x4] sm:$0xf] %v1058
      %v1061 = vlaneseq
      %v1062 = vshrl.u32 %v1061, 7
      %v1063 = vadd.s32 %v1062, 8
      %vm1064 = vcmp.lt.s32.totalorder %v1062, 0
      %v1065 = vsub.s32 0, %v1062
      %v1066 = vsel %vm1064, %v1065, %v1062
      %v1067 = vshrl.u32 %v1066, 3
      %v1068 = vand.u32 %v1066, 7
      %v1069 = vsub.s32 0, %v1068
      %v1070 = vsel %vm1064, %v1069, %v1068
      %vm1071 = vcmp.lt.s32.totalorder %v1063, 0
      %v1072 = vsub.s32 0, %v1063
      %v1073 = vsel %vm1071, %v1072, %v1063
      %v1074 = vshrl.u32 %v1073, 3
      %v1075 = vand.u32 %v1073, 7
      %v1076 = vsub.s32 0, %v1075
      %v1077 = vsel %vm1071, %v1076, %v1075
      %vm1078 = vcmp.ne.s32.totalorder %v1070, 0
      %vm1079 = vcmp.ne.s32.totalorder %v1077, 0
      %vm1080 = vcmp.lt.s32.totalorder %v1070, 0
      %vm1081 = vcmp.lt.s32.totalorder %v1077, 0
      %vm1082 = vmand %vm1080, %vm1078
      %vm1083 = vmand %vm1081, %vm1079
      %v1084 = vadd.s32 %v1070, 8
      %v1085 = vadd.s32 %v1077, 8
      %v1086 = vsel %vm1082, %v1084, %v1070
      %v1087 = vsel %vm1083, %v1085, %v1077
      %vm1088 = vcmp.lt.s32.totalorder %v1086, 2
      %vm1089 = vcmp.lt.s32.totalorder %v1087, 2
      %v1090 = vsel %vm1088, 1, 0
      %v1091 = vsel %vm1089, 1, 0
      %v1092 = vcvt.s32.f32 %v1090
      %v1093 = vcvt.s32.f32 %v1091
      %v1094 = vmul.f32 %v1055, %v1092
      %v1095 = vmul.f32 %v1056, %v1093
      %v1096 = vadd.f32 %v1094, %v1095
      %v1097 = vrot.slane %v1096, 4
      %v1098 = vadd.f32 %v1096, %v1097
      %v1099 = vrot.slane %v1098, 2
      %v1100 = vadd.f32 %v1098, %v1099
      %v1101 = vrot.slane %v1100, 1
      %v1102 = vadd.f32 %v1100, %v1101
      %1103 = vst [vmem:[%s222] sm:$0x1] %v1102
      %v1104 = vmul.f32 %v1094, %v1094
      %v1105 = vmul.f32 %v1095, %v1095
      %v1106 = vadd.f32 %v1104, %v1105
      %v1107 = vrot.slane %v1106, 4
      %v1108 = vadd.f32 %v1106, %v1107
      %v1109 = vrot.slane %v1108, 2
      %v1110 = vadd.f32 %v1108, %v1109
      %v1111 = vrot.slane %v1110, 1
      %v1112 = vadd.f32 %v1110, %v1111
      %1113 = vst [vmem:[%s222 + $0x1] sm:$0x1] %v1112
      %s1114 = smul.u32 2, %s20
      %p1115 = scmp.lt.s32.totalorder %s19, 1
      %s1116 = scalar_select %p1115, %s19, 1
      %p1117 = scmp.lt.s32.totalorder %s1114, 1
      %s1118 = scalar_select %p1117, %s1114, 1
      %s1119 = smul.addr %s1116, 2
      %s1120 = sadd.s32 %s1118, %s1119
      %s1121 = smul.addr %s1120, 4
      %s1122 = scalar_lea.vmem %s2, %s1121
      %s1123 = sadd.s32 %s19, %s20
      %p1124 = scmp.lt.s32.totalorder %s1123, 1
      %s1125 = scalar_select %p1124, %s1123, 1
      %s1126 = smul.addr %s1125, 8
      %s1127 = scalar_lea.vmem %s3, %s1126
      // Predicated region
      $region29: #{unet_forward.19} parent=27 // pred_check
        %p1128 = pneg %p96
      $region30: #{unet_forward.19} parent=27 // pred_check_branch
        %1130 = sbr.rel (%p1128) target = $region32
      $region31: #{unet_forward.19} parent=27 // pred_region
        %s1131 = smul.u32 2, %s20
      $region32: #{unet_forward.19} parent=27 // pred_fallthru
        _
      // Predicated region
      $region33: #{unet_forward.19} parent=27 // pred_check
        %p1132 = pneg %p124
      $region34: #{unet_forward.19} parent=27 // pred_check_branch
        %1134 = sbr.rel (%p1132) target = $region36
      $region35: #{unet_forward.19} parent=27 // pred_region
        %s1135 = sadd.s32 %s19, %s20
      $region36: #{unet_forward.19} parent=27 // pred_fallthru
        _
    $region28: #{unet_forward.19} parent=5 // pred_fallthru
      _
    %p1136 = scmp.le.s32.totalorder 2, %s10
    // Predicated region
    $region37: #{unet_forward.19} parent=5 // pred_check
      %p1137 = pneg %p1136
    $region38: #{unet_forward.19} parent=5 // pred_check_branch
      %1139 = sbr.rel (%p1137) target = $region40
    $region39: #{unet_forward.19} parent=5 // pred_region
      %s1140 = ssub.s32 %s10, 2
      // Predicated region
      $region41: #{unet_forward.19} parent=39 // pred_check
        %p1141 = pneg %p102
      $region42: #{unet_forward.19} parent=39 // pred_check_branch
        %1143 = sbr.rel (%p1141) target = $region44
      $region43: #{unet_forward.19} parent=39 // pred_region
        %s1144 = smul.u32 2, %s22
        %p1145 = scmp.lt.s32.totalorder %s21, 1
        %s1146 = scalar_select %p1145, %s21, 1
        %p1147 = scmp.lt.s32.totalorder %s1144, 1
        %s1148 = scalar_select %p1147, %s1144, 1
        %s1149 = smul.addr %s1146, 2
        %s1150 = sadd.s32 %s1148, %s1149
        %s1151 = smul.addr %s1150, 4
        %s1152 = scalar_lea.vmem %s2, %s1151
      $region44: #{unet_forward.19} parent=39 // pred_fallthru
        _
      // Predicated region
      $region45: #{unet_forward.19} parent=39 // pred_check
        %p1153 = pneg %p130
      $region46: #{unet_forward.19} parent=39 // pred_check_branch
        %1155 = sbr.rel (%p1153) target = $region48
      $region47: #{unet_forward.19} parent=39 // pred_region
        %s1156 = sadd.s32 %s21, %s22
        %p1157 = scmp.lt.s32.totalorder %s1156, 1
        %s1158 = scalar_select %p1157, %s1156, 1
        %s1159 = smul.addr %s1158, 8
        %s1160 = scalar_lea.vmem %s3, %s1159
      $region48: #{unet_forward.19} parent=39 // pred_fallthru
        _
    $region40: #{unet_forward.19} parent=5 // pred_fallthru
      _
  $region6: #{unet_forward.19} parent=0 // loop_footer
    %s14 = sadd.s32 1, %s10
  $region7: #{unet_forward.19} parent=0 // loop_footer_branch
    %9 = sbr.rel target = $region3
  $region8: #{unet_forward.19} parent=0 // loop_exit
    _

// kernel: unet_forward.24
$region0: #{unet_forward.24}
  #allocation0 [shape = 'u32[]', space=smem, size = 0x4, offset = 0x4, fixed_abs, tag = 'smem constant byte address 0x4 - core index']
  #allocation1 [shape = 'u32[72,128]{1,0:T(1,128)}', space=vmem, size = 0x9000, scoped, tag = 'internal scratch']
  %s0 = inlined_call_operand.vmem [shape: bf16[32,64], index: 0, kind: input, shape index: {}]
  %s1 = inlined_call_operand.vmem [shape: f32[8,64], index: 1, kind: input, shape index: {}]
  %s2 = inlined_call_operand.vmem [shape: bf16[32,64], index: 2, kind: input, shape index: {}]
  %s3 = inlined_call_operand.vmem [shape: bf16[32,64], index: 3, kind: output, shape index: {}]
  %s4 = sld [smem:[#allocation0]]
  $region22: #{unet_forward.24} parent=0
    _
  %s6 = ssub.s32 1, %s4
  %s7 = scalar_select 0, %s6, %s4
  // Predicated region
  $region2: #{unet_forward.24} parent=0 // pred_check
    _
  $region3: #{unet_forward.24} parent=0 // pred_check_branch
    %9 = sbr.rel (0) target = $region5
  $region4: #{unet_forward.24} parent=0 // pred_region
    _
  $region5: #{unet_forward.24} parent=0 // pred_fallthru
    _
  // Predicated region
  $region6: #{unet_forward.24} parent=0 // pred_check
    _
  $region7: #{unet_forward.24} parent=0 // pred_check_branch
    %11 = sbr.rel (0) target = $region9
  $region8: #{unet_forward.24} parent=0 // pred_region
    _
  $region9: #{unet_forward.24} parent=0 // pred_fallthru
    _
  // Predicated region
  $region10: #{unet_forward.24} parent=0 // pred_check
    _
  $region11: #{unet_forward.24} parent=0 // pred_check_branch
    %13 = sbr.rel (0) target = $region13
  $region12: #{unet_forward.24} parent=0 // pred_region
    _
  $region13: #{unet_forward.24} parent=0 // pred_fallthru
    _
  %v14 = vld [vmem:[%s0] sm:$0xf]
  %v15 = vld [vmem:[%s0 + $0x4] sm:$0xf]
  %v16 = vld [vmem:[%s0 + $0x8] sm:$0xf]
  %v17 = vld [vmem:[%s0 + $0xc] sm:$0xf]
  %v18 = vunpack.c.l.bf16 %v14
  %v19 = vunpack.c.l.bf16 %v15
  %v20 = vunpack.c.l.bf16 %v16
  %v21 = vunpack.c.l.bf16 %v17
  %v22 = vld [vmem:[%s1] sm:$0x1]
  %v23 = vmul.f32 %v22, 0.03125
  %v24 = vld [vmem:[%s1 + $0x1] sm:$0x1]
  %v25 = vmul.f32 %v24, 0.03125
  %v26 = vmul.f32 %v23, %v23
  %v27 = vsub.f32 %v25, %v26
  %v28 = vmax.f32 %v27, 0.0
  %v29 = vperm.slane %v23, 0
  %v30 = vsub.f32 %v18, %v29
  %v31 = vsub.f32 %v19, %v29
  %v32 = vsub.f32 %v20, %v29
  %v33 = vsub.f32 %v21, %v29
  %v34 = vadd.f32 %v28, 1e-05
  %v35 = vrsqrt.pop %v34
  %v36 = vmul.f32 %v35, %v34
  %v37 = vmul.f32 %v36, %v35
  %v38 = vmul.f32 0.5, %v37
  %v39 = vsub.f32 1.5, %v38
  %v40 = vmul.f32 %v35, %v39
  %vm41 = vweird.f32 %v34
  %vm42 = vweird.f32 %v35
  %vm43 = vmor %vm41, %vm42
  %v44 = vsel %vm43, %v35, %v40
  %v45 = vperm.slane %v44, 0
  %v46 = vmul.f32 %v30, %v45
  %v47 = vmul.f32 %v31, %v45
  %v48 = vmul.f32 %v32, %v45
  %v49 = vmul.f32 %v33, %v45
  %v50 = vmax.f32 %v46, 0.0
  %v51 = vmax.f32 %v47, 0.0
  %v52 = vmax.f32 %v48, 0.0
  %v53 = vmax.f32 %v49, 0.0
  %v54 = vld [vmem:[%s2] sm:$0xf]
  %v55 = vld [vmem:[%s2 + $0x4] sm:$0xf]
  %v56 = vld [vmem:[%s2 + $0x8] sm:$0xf]
  %v57 = vld [vmem:[%s2 + $0xc] sm:$0xf]
  %v58 = vunpack.c.l.bf16 %v54
  %v59 = vunpack.c.l.bf16 %v55
  %v60 = vunpack.c.l.bf16 %v56
  %v61 = vunpack.c.l.bf16 %v57
  %v62 = vadd.f32 %v50, %v58
  %v63 = vadd.f32 %v51, %v59
  %v64 = vadd.f32 %v52, %v60
  %v65 = vadd.f32 %v53, %v61
  %v66 = vpack.c.bf16 %v62, %v62
  %v67 = vpack.c.bf16 %v63, %v63
  %v68 = vpack.c.bf16 %v64, %v64
  %v69 = vpack.c.bf16 %v65, %v65
  %vm70 = vcmask 519168
  %71 = vst.msk [vmem:[%s3] sm:$0xf] %vm70, %v66
  %72 = vst.msk [vmem:[%s3 + $0x4] sm:$0xf] %vm70, %v67
  %73 = vst.msk [vmem:[%s3 + $0x8] sm:$0xf] %vm70, %v68
  %74 = vst.msk [vmem:[%s3 + $0xc] sm:$0xf] %vm70, %v69
  // Predicated region
  $region14: #{unet_forward.24} parent=0 // pred_check
    _
  $region15: #{unet_forward.24} parent=0 // pred_check_branch
    %76 = sbr.rel (0) target = $region17
  $region16: #{unet_forward.24} parent=0 // pred_region
    _
  $region17: #{unet_forward.24} parent=0 // pred_fallthru
    _
  // Predicated region
  $region18: #{unet_forward.24} parent=0 // pred_check
    _
  $region19: #{unet_forward.24} parent=0 // pred_check_branch
    %78 = sbr.rel (0) target = $region21
  $region20: #{unet_forward.24} parent=0 // pred_region
    _
  $region21: #{unet_forward.24} parent=0 // pred_fallthru
    _

// kernel: unet_forward.23
$region0: #{unet_forward.23}
  #allocation0 [shape = 'u32[]', space=smem, size = 0x4, offset = 0x4, fixed_abs, tag = 'smem constant byte address 0x4 - core index']
  #allocation1 [shape = 'u32[72,128]{1,0:T(1,128)}', space=vmem, size = 0x9000, scoped, tag = 'internal scratch']
  %s0 = inlined_call_operand.vmem [shape: bf16[2,1,56,128], index: 0, kind: input, shape index: {}]
  %s1 = inlined_call_operand.vmem [shape: bf16[9,128,64], index: 1, kind: input, shape index: {}]
  %s2 = inlined_call_operand.vmem [shape: bf16[2,32,64], index: 2, kind: output, shape index: {0}]
  %s3 = inlined_call_operand.vmem [shape: f32[16,64], index: 3, kind: output, shape index: {1}]
  %4 = xla_tuple %s2, %s3
  %s5 = sld [smem:[#allocation0]]
  $region49: #{unet_forward.23} parent=0
    _
  %s7 = ssub.s32 1, %s5
  %s8 = scalar_select 0, %s7, %s5
  loop: start=0, step=1, limit=4
  $region2: #{unet_forward.23} parent=0 // loop_pre_header
    _
  $region3: #{unet_forward.23} parent=0 // loop_header
    %s10 = sphi 0, %s14
    %p11 = scmp.ge.s32.totalorder %s10, 4
    %s17 = sphi 0, %s29
    %s18 = sphi 0, %s25
    %s19 = sphi 0, %s17
    %s20 = sphi 0, %s18
    %s21 = sphi 0, %s19
    %s22 = sphi 0, %s20
    %s34 = sphi 0, %s36
    %s37 = sphi 0, %s34
    %s38 = sphi 0, %s37
    %s54 = sphi 0, %s38
    %s58 = sphi 0, %s58
    %s60 = sphi 0, %s58
    %s61 = sphi 0, %s60
    %s75 = sphi 0, %s61
    %s83 = sphi 0, %s85
    %s86 = sphi 0, %s83
    %s87 = sphi 0, %s86
    %s103 = sphi 0, %s87
    %s111 = sphi 0, %s113
    %s114 = sphi 0, %s111
    %s115 = sphi 0, %s114
    %s131 = sphi 0, %s115
  $region4: #{unet_forward.23} parent=0 // loop_header_branch
    %13 = sbr.rel (%p11) target = $region8
  $region5: #{unet_forward.23} parent=0 // loop_body
    %s15 = ssub.s32 %s10, 1
    %s16 = ssub.s32 %s10, 2
    %s23 = sadd.s32 1, %s18
    %p24 = scmp.ge.s32.totalorder %s23, 1
    %s25 = scalar_select %p24, 0, %s23
    %s26 = sadd.s32 1, %s17
    %s27 = scalar_select %p24, %s26, %s17
    %p28 = scmp.ge.s32.totalorder %s27, 2
    %s29 = scalar_select %p28, 0, %s27
    %s30 = ssub.s32 %s17, %s29
    %s31 = ssub.s32 %s18, %s25
    %s32 = sor.u32 %s30, %s31
    %p33 = scmp.eq.s32.totalorder %s32, 0
    %s35 = sadd.s32 %s34, 1
    %s36 = scalar_select %p33, %s34, %s35
    %p39 = pneg %p33
    %p40 = scmp.eq.s32.totalorder %s10, 1
    %p41 = por %p39, %p40
    %p42 = scmp.ne.s32.totalorder %s34, %s37
    %p43 = scmp.eq.s32.totalorder %s10, 0
    %p44 = por %p42, %p43
    %p45 = scmp.ne.s32.totalorder %s34, %s37
    %p46 = scmp.eq.s32.totalorder %s15, 1
    %p47 = por %p45, %p46
    %p48 = scmp.ne.s32.totalorder %s37, %s38
    %p49 = scmp.eq.s32.totalorder %s15, 0
    %p50 = por %p48, %p49
    %p51 = scmp.ne.s32.totalorder %s37, %s38
    %p52 = scmp.eq.s32.totalorder %s16, 1
    %p53 = por %p51, %p52
    %p55 = scmp.ne.s32.totalorder %s38, %s54
    %p56 = scmp.eq.s32.totalorder %s16, 0
    %p57 = por %p55, %p56
    %s59 = sadd.s32 %s58, 1
    %p62 = scmp.eq.s32.totalorder %s10, 1
    %p63 = scmp.ne.s32.totalorder %s58, %s60
    %p64 = scmp.eq.s32.totalorder %s10, 0
    %p65 = por %p63, %p64
    %p66 = scmp.ne.s32.totalorder %s58, %s60
    %p67 = scmp.eq.s32.totalorder %s15, 1
    %p68 = por %p66, %p67
    %p69 = scmp.ne.s32.totalorder %s60, %s61
    %p70 = scmp.eq.s32.totalorder %s15, 0
    %p71 = por %p69, %p70
    %p72 = scmp.ne.s32.totalorder %s60, %s61
    %p73 = scmp.eq.s32.totalorder %s16, 1
    %p74 = por %p72, %p73
    %p76 = scmp.ne.s32.totalorder %s61, %s75
    %p77 = scmp.eq.s32.totalorder %s16, 0
    %p78 = por %p76, %p77
    %s79 = ssub.s32 %s17, %s29
    %s80 = ssub.s32 %s18, %s25
    %s81 = sor.u32 %s79, %s80
    %p82 = scmp.eq.s32.totalorder %s81, 0
    %s84 = sadd.s32 %s83, 1
    %s85 = scalar_select %p82, %s83, %s84
    %p88 = pneg %p82
    %p89 = scmp.eq.s32.totalorder %s10, 1
    %p90 = por %p88, %p89
    %p91 = scmp.ne.s32.totalorder %s83, %s86
    %p92 = scmp.eq.s32.totalorder %s10, 0
    %p93 = por %p91, %p92
    %p94 = scmp.ne.s32.totalorder %s83, %s86
    %p95 = scmp.eq.s32.totalorder %s15, 1
    %p96 = por %p94, %p95
    %p97 = scmp.ne.s32.totalorder %s86, %s87
    %p98 = scmp.eq.s32.totalorder %s15, 0
    %p99 = por %p97, %p98
    %p100 = scmp.ne.s32.totalorder %s86, %s87
    %p101 = scmp.eq.s32.totalorder %s16, 1
    %p102 = por %p100, %p101
    %p104 = scmp.ne.s32.totalorder %s87, %s103
    %p105 = scmp.eq.s32.totalorder %s16, 0
    %p106 = por %p104, %p105
    %s107 = sadd.s32 %s17, %s18
    %s108 = sadd.s32 %s29, %s25
    %s109 = ssub.s32 %s107, %s108
    %p110 = scmp.eq.s32.totalorder %s109, 0
    %s112 = sadd.s32 %s111, 1
    %s113 = scalar_select %p110, %s111, %s112
    %p116 = pneg %p110
    %p117 = scmp.eq.s32.totalorder %s10, 1
    %p118 = por %p116, %p117
    %p119 = scmp.ne.s32.totalorder %s111, %s114
    %p120 = scmp.eq.s32.totalorder %s10, 0
    %p121 = por %p119, %p120
    %p122 = scmp.ne.s32.totalorder %s111, %s114
    %p123 = scmp.eq.s32.totalorder %s15, 1
    %p124 = por %p122, %p123
    %p125 = scmp.ne.s32.totalorder %s114, %s115
    %p126 = scmp.eq.s32.totalorder %s15, 0
    %p127 = por %p125, %p126
    %p128 = scmp.ne.s32.totalorder %s114, %s115
    %p129 = scmp.eq.s32.totalorder %s16, 1
    %p130 = por %p128, %p129
    %p132 = scmp.ne.s32.totalorder %s115, %s131
    %p133 = scmp.eq.s32.totalorder %s16, 0
    %p134 = por %p132, %p133
    %p135 = scmp.le.s32.totalorder 1, %s10
    %p136 = scmp.lt.s32.totalorder %s10, 3
    %p137 = pnand %p135, %p136
    %p138 = pneg %p137
    // Predicated region
    $region9: #{unet_forward.23} parent=5 // pred_check
      _
    $region10: #{unet_forward.23} parent=5 // pred_check_branch
      %140 = sbr.rel (%p137) target = $region12
    $region11: #{unet_forward.23} parent=5 // pred_region
      %s141 = ssub.s32 %s10, 1
      // Predicated region
      $region13: #{unet_forward.23} parent=11 // pred_check
        %p142 = pneg %p71
      $region14: #{unet_forward.23} parent=11 // pred_check_branch
        %144 = sbr.rel (%p142) target = $region16
      $region15: #{unet_forward.23} parent=11 // pred_region
        _
      $region16: #{unet_forward.23} parent=11 // pred_fallthru
        _
    $region12: #{unet_forward.23} parent=5 // pred_fallthru
      _
    %p145 = scmp.lt.s32.totalorder %s10, 2
    // Predicated region
    $region17: #{unet_forward.23} parent=5 // pred_check
      %p146 = pneg %p145
    $region18: #{unet_forward.23} parent=5 // pred_check_branch
      %148 = sbr.rel (%p146) target = $region20
    $region19: #{unet_forward.23} parent=5 // pred_region
      // Predicated region
      $region21: #{unet_forward.23} parent=19 // pred_check
        %p149 = pneg %p44
      $region22: #{unet_forward.23} parent=19 // pred_check_branch
        %151 = sbr.rel (%p149) target = $region24
      $region23: #{unet_forward.23} parent=19 // pred_region
        %p152 = scmp.lt.s32.totalorder %s17, 1
        %s153 = scalar_select %p152, %s17, 1
        %p154 = scmp.lt.s32.totalorder %s18, 0
        %s155 = scalar_select %p154, %s18, 0
        %s156 = smul.addr %s155, 7
        %s157 = smul.addr %s153, 7
        %s158 = sadd.s32 %s156, %s157
        %s159 = smul.addr %s158, 4
        %s160 = scalar_lea.vmem %s0, %s159
      $region24: #{unet_forward.23} parent=19 // pred_fallthru
        _
    $region20: #{unet_forward.23} parent=5 // pred_fallthru
      _
    %p161 = scmp.le.s32.totalorder 1, %s10
    %p162 = scmp.lt.s32.totalorder %s10, 3
    %p163 = pnand %p161, %p162
    %p164 = pneg %p163
    // Predicated region
    $region25: #{unet_forward.23} parent=5 // pred_check
      _
    $region26: #{unet_forward.23} parent=5 // pred_check_branch
      %166 = sbr.rel (%p163) target = $region28
    $region27: #{unet_forward.23} parent=5 // pred_region
      %s167 = ssub.s32 %s10, 1
      %p168 = scmp.lt.s32.totalorder %s19, 1
      %s169 = scalar_select %p168, %s19, 1
      %p170 = scmp.lt.s32.totalorder %s20, 0
      %s171 = scalar_select %p170, %s20, 0
      %s172 = smul.addr %s171, 7
      %s173 = smul.addr %s169, 7
      %s174 = sadd.s32 %s172, %s173
      %s175 = smul.addr %s174, 4
      %s176 = scalar_lea.vmem %s0, %s175
      %p177 = pneg %p50
      %p178 = pneg %p47
      %p179 = pneg %p71
      %p180 = pneg %p68
      %p181 = pneg %p99
      %p182 = pneg %p96
      %s183 = smul.u32 4, %s20
      %p184 = scmp.lt.s32.totalorder %s19, 1
      %s185 = scalar_select %p184, %s19, 1
      %p186 = scmp.lt.s32.totalorder %s183, 3
      %s187 = scalar_select %p186, %s183, 3
      %s188 = smul.addr %s185, 4
      %s189 = sadd.s32 %s187, %s188
      %s190 = smul.addr %s189, 4
      %s191 = scalar_lea.vmem %s2, %s190
      %p192 = pneg %p127
      %p193 = pneg %p124
      %s194 = sadd.s32 %s19, %s20
      %p195 = scmp.lt.s32.totalorder %s194, 1
      %s196 = scalar_select %p195, %s194, 1
      %s197 = smul.addr %s196, 8
      %s198 = scalar_lea.vmem %s3, %s197
      %p199 = scmp.lt.s32.totalorder %s19, 1
      %s200 = scalar_select %p199, %s19, 1
      %p201 = scmp.lt.s32.totalorder %s20, 0
      %s202 = scalar_select %p201, %s20, 0
      %s203 = smul.addr %s202, 7
      %s204 = smul.addr %s200, 7
      %s205 = sadd.s32 %s203, %s204
      %s206 = smul.addr %s205, 4
      %s207 = scalar_lea.vmem %s0, %s206
      %s208 = smul.u32 4, %s20
      %p209 = scmp.lt.s32.totalorder %s19, 1
      %s210 = scalar_select %p209, %s19, 1
      %p211 = scmp.lt.s32.totalorder %s208, 3
      %s212 = scalar_select %p211, %s208, 3
      %s213 = smul.addr %s210, 4
      %s214 = sadd.s32 %s212, %s213
      %s215 = smul.addr %s214, 4
      %s216 = scalar_lea.vmem %s2, %s215
      %s217 = smul.u32 4, %s20
      %s218 = sadd.s32 %s19, %s20
      %p219 = scmp.lt.s32.totalorder %s218, 1
      %s220 = scalar_select %p219, %s218, 1
      %s221 = smul.addr %s220, 8
      %s222 = scalar_lea.vmem %s3, %s221
      %s223 = sadd.s32 %s19, %s20
      %v224 = vld [vmem:[%s207] sm:$0xf]
      %v225 = vld [vmem:[%s207 + $0x4] sm:$0xf]
      %v226 = vld [vmem:[%s207 + $0x8] sm:$0xf]
      %v227 = vld [vmem:[%s207 + $0xc] sm:$0xf]
      %v228 = vld [vmem:[%s1] sm:$0xf]
      %v229 = vld [vmem:[%s1 + $0x4] sm:$0xf]
      %v230 = vld [vmem:[%s1 + $0x8] sm:$0xf]
      %v231 = vld [vmem:[%s1 + $0xc] sm:$0xf]
      %v232 = vld [vmem:[%s1 + $0x10] sm:$0xf]
      %v233 = vld [vmem:[%s1 + $0x14] sm:$0xf]
      %v234 = vld [vmem:[%s1 + $0x18] sm:$0xf]
      %v235 = vld [vmem:[%s1 + $0x1c] sm:$0xf]
      %v236 = vld [vmem:[%s1 + $0x20] sm:$0xf]
      %v237 = vld [vmem:[%s1 + $0x24] sm:$0xf]
      %v238 = vld [vmem:[%s1 + $0x28] sm:$0xf]
      %v239 = vld [vmem:[%s1 + $0x2c] sm:$0xf]
      %v240 = vld [vmem:[%s1 + $0x30] sm:$0xf]
      %v241 = vld [vmem:[%s1 + $0x34] sm:$0xf]
      %v242 = vld [vmem:[%s1 + $0x38] sm:$0xf]
      %v243 = vld [vmem:[%s1 + $0x3c] sm:$0xf]
      %v244 = vld [vmem:[%s207 + $0x10] sm:$0x1]
      %s245 = scalar_lea.vmem %s1, 64
      %v246 = vld [vmem:[%s245] sm:$0xf]
      %v247 = vld [vmem:[%s245 + $0x4] sm:$0xf]
      %v248 = vld [vmem:[%s245 + $0x8] sm:$0xf]
      %v249 = vld [vmem:[%s245 + $0xc] sm:$0xf]
      %v250 = vld [vmem:[%s245 + $0x10] sm:$0xf]
      %v251 = vld [vmem:[%s245 + $0x14] sm:$0xf]
      %v252 = vld [vmem:[%s245 + $0x18] sm:$0xf]
      %v253 = vld [vmem:[%s245 + $0x1c] sm:$0xf]
      %v254 = vld [vmem:[%s245 + $0x20] sm:$0xf]
      %v255 = vld [vmem:[%s245 + $0x24] sm:$0xf]
      %v256 = vld [vmem:[%s245 + $0x28] sm:$0xf]
      %v257 = vld [vmem:[%s245 + $0x2c] sm:$0xf]
      %v258 = vld [vmem:[%s245 + $0x30] sm:$0xf]
      %v259 = vld [vmem:[%s245 + $0x34] sm:$0xf]
      %v260 = vld [vmem:[%s245 + $0x38] sm:$0xf]
      %v261 = vld [vmem:[%s245 + $0x3c] sm:$0xf]
      %v267 = vunpack.c.l.b16 %v224
      %v268 = vunpack.c.l.b16 %v225
      %v269 = vunpack.c.l.b16 %v226
      %v270 = vunpack.c.l.b16 %v227
      %v271 = vunpack.c.l.b16 %v244
      %v272 = vpack.c.b16 %v268, %v267
      %v273 = vpack.c.b16 %v270, %v269
      %v274 = vpack.c.b16 %v271, %v271
      %vm275 = vsmask.f32 7424
      %v277 = vshrl.u32 %v272, 16
      %v279 = vshll.u32 %v272, 16
      %v281 = vrot.slane %v279, 1
      %v282 = vor.u32 %v277, %v281
      %v284 = vshll.u32 %v273, 16
      %v286 = vrot.slane %v284, 1
      %v287 = vsel %vm275, %v282, %v286
      %v288 = vshrl.u32 %v273, 16
      %v290 = vor.u32 %v288, %v286
      %v292 = vshll.u32 %v274, 16
      %v294 = vrot.slane %v292, 1
      %v295 = vsel %vm275, %v290, %v294
      %v314 = vunpack.c.l.b16 %v246
      %v315 = vunpack.c.l.b16 %v247
      %v316 = vunpack.c.l.b16 %v248
      %v317 = vunpack.c.l.b16 %v249
      %v318 = vunpack.c.l.b16 %v250
      %v319 = vunpack.c.l.b16 %v251
      %v320 = vunpack.c.l.b16 %v252
      %v321 = vunpack.c.l.b16 %v253
      %v322 = vunpack.c.l.b16 %v254
      %v323 = vunpack.c.l.b16 %v255
      %v324 = vunpack.c.l.b16 %v256
      %v325 = vunpack.c.l.b16 %v257
      %v326 = vunpack.c.l.b16 %v258
      %v327 = vunpack.c.l.b16 %v259
      %v328 = vunpack.c.l.b16 %v260
      %v329 = vunpack.c.l.b16 %v261
      %v330 = vpack.c.b16 %v315, %v314
      %v331 = vpack.c.b16 %v317, %v316
      %v332 = vpack.c.b16 %v319, %v318
      %v333 = vpack.c.b16 %v321, %v320
      %v334 = vpack.c.b16 %v323, %v322
      %v335 = vpack.c.b16 %v325, %v324
      %v336 = vpack.c.b16 %v327, %v326
      %v337 = vpack.c.b16 %v329, %v328
      %346 = vmatpush.bf16.msra.mxu0 %v337
      %347 = vmatpush.bf16.msra.mxu0 %v336
      %348 = vmatpush.bf16.msra.mxu0 %v335
      %349 = vmatpush.bf16.msra.mxu0 %v334
      %350 = vmatpush.bf16.msra.mxu0 %v333
      %351 = vmatpush.bf16.msra.mxu0 %v332
      %352 = vmatpush.bf16.msra.mxu0 %v331
      %353 = vmatpush.bf16.msra.mxu0 %v330
      %354 = vmatmul.bf16.gmra.mxu0 %v287
      %v355 = vpop.f32.mrf.mxu0
      %v356 = vadd.f32 0.0, %v355
      %v357 = vpop.f32.mrf.mxu0
      %v358 = vadd.f32 0.0, %v357
      %359 = vmatmul.bf16.gmra.mxu0 %v295
      %v360 = vpop.f32.mrf.mxu0
      %v361 = vadd.f32 0.0, %v360
      %v362 = vpop.f32.mrf.mxu0
      %v363 = vadd.f32 0.0, %v362
      %364 = vdwg.mxu0
      %v383 = vunpack.c.l.b16 %v228
      %v384 = vunpack.c.l.b16 %v229
      %v385 = vunpack.c.l.b16 %v230
      %v386 = vunpack.c.l.b16 %v231
      %v387 = vunpack.c.l.b16 %v232
      %v388 = vunpack.c.l.b16 %v233
      %v389 = vunpack.c.l.b16 %v234
      %v390 = vunpack.c.l.b16 %v235
      %v391 = vunpack.c.l.b16 %v236
      %v392 = vunpack.c.l.b16 %v237
      %v393 = vunpack.c.l.b16 %v238
      %v394 = vunpack.c.l.b16 %v239
      %v395 = vunpack.c.l.b16 %v240
      %v396 = vunpack.c.l.b16 %v241
      %v397 = vunpack.c.l.b16 %v242
      %v398 = vunpack.c.l.b16 %v243
      %v399 = vpack.c.b16 %v384, %v383
      %v400 = vpack.c.b16 %v386, %v385
      %v401 = vpack.c.b16 %v388, %v387
      %v402 = vpack.c.b16 %v390, %v389
      %v403 = vpack.c.b16 %v392, %v391
      %v404 = vpack.c.b16 %v394, %v393
      %v405 = vpack.c.b16 %v396, %v395
      %v406 = vpack.c.b16 %v398, %v397
      %415 = vmatpush.bf16.msra.mxu0 %v406
      %416 = vmatpush.bf16.msra.mxu0 %v405
      %417 = vmatpush.bf16.msra.mxu0 %v404
      %418 = vmatpush.bf16.msra.mxu0 %v403
      %419 = vmatpush.bf16.msra.mxu0 %v402
      %420 = vmatpush.bf16.msra.mxu0 %v401
      %421 = vmatpush.bf16.msra.mxu0 %v400
      %422 = vmatpush.bf16.msra.mxu0 %v399
      %423 = vmatmul.bf16.gmra.mxu0 %v272
      %v424 = vpop.f32.mrf.mxu0
      %v425 = vadd.f32 %v356, %v424
      %v426 = vpop.f32.mrf.mxu0
      %v427 = vadd.f32 %v358, %v426
      %428 = vmatmul.bf16.gmra.mxu0 %v273
      %v429 = vpop.f32.mrf.mxu0
      %v430 = vadd.f32 %v361, %v429
      %v431 = vpop.f32.mrf.mxu0
      %v432 = vadd.f32 %v363, %v431
      %433 = vdwg.mxu0
      %v434 = vld [vmem:[%s207] sm:$0xe]
      %s435 = scalar_lea.vmem %s1, 128
      %v436 = vld [vmem:[%s435] sm:$0xf]
      %v437 = vld [vmem:[%s435 + $0x4] sm:$0xf]
      %v438 = vld [vmem:[%s435 + $0x8] sm:$0xf]
      %v439 = vld [vmem:[%s435 + $0xc] sm:$0xf]
      %v440 = vld [vmem:[%s435 + $0x10] sm:$0xf]
      %v441 = vld [vmem:[%s435 + $0x14] sm:$0xf]
      %v442 = vld [vmem:[%s435 + $0x18] sm:$0xf]
      %v443 = vld [vmem:[%s435 + $0x1c] sm:$0xf]
      %v444 = vld [vmem:[%s435 + $0x20] sm:$0xf]
      %v445 = vld [vmem:[%s435 + $0x24] sm:$0xf]
      %v446 = vld [vmem:[%s435 + $0x28] sm:$0xf]
      %v447 = vld [vmem:[%s435 + $0x2c] sm:$0xf]
      %v448 = vld [vmem:[%s435 + $0x30] sm:$0xf]
      %v449 = vld [vmem:[%s435 + $0x34] sm:$0xf]
      %v450 = vld [vmem:[%s435 + $0x38] sm:$0xf]
      %v451 = vld [vmem:[%s435 + $0x3c] sm:$0xf]
      %v453 = vunpack.c.l.b16 %v434
      %v454 = vpack.c.b16 %v268, %v453
      %vm455 = vcmask 1046528
      %v456 = vrot.slane %v454, 1
      %v457 = vrot.slane %v273, 1
      %v458 = vsel %vm455, %v456, %v457
      %v459 = vrot.slane %v274, 1
      %v460 = vsel %vm455, %v457, %v459
      %v479 = vunpack.c.l.b16 %v436
      %v480 = vunpack.c.l.b16 %v437
      %v481 = vunpack.c.l.b16 %v438
      %v482 = vunpack.c.l.b16 %v439
      %v483 = vunpack.c.l.b16 %v440
      %v484 = vunpack.c.l.b16 %v441
      %v485 = vunpack.c.l.b16 %v442
      %v486 = vunpack.c.l.b16 %v443
      %v487 = vunpack.c.l.b16 %v444
      %v488 = vunpack.c.l.b16 %v445
      %v489 = vunpack.c.l.b16 %v446
      %v490 = vunpack.c.l.b16 %v447
      %v491 = vunpack.c.l.b16 %v448
      %v492 = vunpack.c.l.b16 %v449
      %v493 = vunpack.c.l.b16 %v450
      %v494 = vunpack.c.l.b16 %v451
      %v495 = vpack.c.b16 %v480, %v479
      %v496 = vpack.c.b16 %v482, %v481
      %v497 = vpack.c.b16 %v484, %v483
      %v498 = vpack.c.b16 %v486, %v485
      %v499 = vpack.c.b16 %v488, %v487
      %v500 = vpack.c.b16 %v490, %v489
      %v501 = vpack.c.b16 %v492, %v491
      %v502 = vpack.c.b16 %v494, %v493
      %511 = vmatpush.bf16.msra.mxu0 %v502
      %512 = vmatpush.bf16.msra.mxu0 %v501
      %513 = vmatpush.bf16.msra.mxu0 %v500
      %514 = vmatpush.bf16.msra.mxu0 %v499
      %515 = vmatpush.bf16.msra.mxu0 %v498
      %516 = vmatpush.bf16.msra.mxu0 %v497
      %517 = vmatpush.bf16.msra.mxu0 %v496
      %518 = vmatpush.bf16.msra.mxu0 %v495
      %519 = vmatmul.bf16.gmra.mxu0 %v458
      %v520 = vpop.f32.mrf.mxu0
      %v521 = vadd.f32 0.0, %v520
      %v522 = vpop.f32.mrf.mxu0
      %v523 = vadd.f32 0.0, %v522
      %524 = vmatmul.bf16.gmra.mxu0 %v460
      %v525 = vpop.f32.mrf.mxu0
      %v526 = vadd.f32 0.0, %v525
      %v527 = vpop.f32.mrf.mxu0
      %v528 = vadd.f32 0.0, %v527
      %529 = vdwg.mxu0
      %v530 = vadd.f32 %v425, %v521
      %v531 = vadd.f32 %v427, %v523
      %v532 = vadd.f32 %v430, %v526
      %v533 = vadd.f32 %v432, %v528
      %v534 = vld [vmem:[%s207 + $0x10] sm:$0xf]
      %s535 = scalar_lea.vmem %s1, 192
      %v536 = vld [vmem:[%s535] sm:$0xf]
      %v537 = vld [vmem:[%s535 + $0x4] sm:$0xf]
      %v538 = vld [vmem:[%s535 + $0x8] sm:$0xf]
      %v539 = vld [vmem:[%s535 + $0xc] sm:$0xf]
      %v540 = vld [vmem:[%s535 + $0x10] sm:$0xf]
      %v541 = vld [vmem:[%s535 + $0x14] sm:$0xf]
      %v542 = vld [vmem:[%s535 + $0x18] sm:$0xf]
      %v543 = vld [vmem:[%s535 + $0x1c] sm:$0xf]
      %v544 = vld [vmem:[%s535 + $0x20] sm:$0xf]
      %v545 = vld [vmem:[%s535 + $0x24] sm:$0xf]
      %v546 = vld [vmem:[%s535 + $0x28] sm:$0xf]
      %v547 = vld [vmem:[%s535 + $0x2c] sm:$0xf]
      %v548 = vld [vmem:[%s535 + $0x30] sm:$0xf]
      %v549 = vld [vmem:[%s535 + $0x34] sm:$0xf]
      %v550 = vld [vmem:[%s535 + $0x38] sm:$0xf]
      %v551 = vld [vmem:[%s535 + $0x3c] sm:$0xf]
      %v553 = vunpack.c.l.b16 %v534
      %v554 = vpack.c.b16 %v269, %v268
      %v555 = vpack.c.b16 %v553, %v270
      %v574 = vunpack.c.l.b16 %v536
      %v575 = vunpack.c.l.b16 %v537
      %v576 = vunpack.c.l.b16 %v538
      %v577 = vunpack.c.l.b16 %v539
      %v578 = vunpack.c.l.b16 %v540
      %v579 = vunpack.c.l.b16 %v541
      %v580 = vunpack.c.l.b16 %v542
      %v581 = vunpack.c.l.b16 %v543
      %v582 = vunpack.c.l.b16 %v544
      %v583 = vunpack.c.l.b16 %v545
      %v584 = vunpack.c.l.b16 %v546
      %v585 = vunpack.c.l.b16 %v547
      %v586 = vunpack.c.l.b16 %v548
      %v587 = vunpack.c.l.b16 %v549
      %v588 = vunpack.c.l.b16 %v550
      %v589 = vunpack.c.l.b16 %v551
      %v590 = vpack.c.b16 %v575, %v574
      %v591 = vpack.c.b16 %v577, %v576
      %v592 = vpack.c.b16 %v579, %v578
      %v593 = vpack.c.b16 %v581, %v580
      %v594 = vpack.c.b16 %v583, %v582
      %v595 = vpack.c.b16 %v585, %v584
      %v596 = vpack.c.b16 %v587, %v586
      %v597 = vpack.c.b16 %v589, %v588
      %606 = vmatpush.bf16.msra.mxu0 %v597
      %607 = vmatpush.bf16.msra.mxu0 %v596
      %608 = vmatpush.bf16.msra.mxu0 %v595
      %609 = vmatpush.bf16.msra.mxu0 %v594
      %610 = vmatpush.bf16.msra.mxu0 %v593
      %611 = vmatpush.bf16.msra.mxu0 %v592
      %612 = vmatpush.bf16.msra.mxu0 %v591
      %613 = vmatpush.bf16.msra.mxu0 %v590
      %614 = vmatmul.bf16.gmra.mxu0 %v554
      %v615 = vpop.f32.mrf.mxu0
      %v616 = vadd.f32 0.0, %v615
      %v617 = vpop.f32.mrf.mxu0
      %v618 = vadd.f32 0.0, %v617
      %619 = vmatmul.bf16.gmra.mxu0 %v555
      %v620 = vpop.f32.mrf.mxu0
      %v621 = vadd.f32 0.0, %v620
      %v622 = vpop.f32.mrf.mxu0
      %v623 = vadd.f32 0.0, %v622
      %624 = vdwg.mxu0
      %v625 = vadd.f32 %v530, %v616
      %v626 = vadd.f32 %v531, %v618
      %v627 = vadd.f32 %v532, %v621
      %v628 = vadd.f32 %v533, %v623
      %v629 = vld [vmem:[%s207 + $0x4] sm:$0xf]
      %v630 = vld [vmem:[%s207 + $0x8] sm:$0xf]
      %v631 = vld [vmem:[%s207 + $0xc] sm:$0xf]
      %v632 = vld [vmem:[%s207 + $0x10] sm:$0xf]
      %v633 = vld [vmem:[%s207 + $0x14] sm:$0x1]
      %s634 = scalar_lea.vmem %s1, 256
      %v635 = vld [vmem:[%s634] sm:$0xf]
      %v636 = vld [vmem:[%s634 + $0x4] sm:$0xf]
      %v637 = vld [vmem:[%s634 + $0x8] sm:$0xf]
      %v638 = vld [vmem:[%s634 + $0xc] sm:$0xf]
      %v639 = vld [vmem:[%s634 + $0x10] sm:$0xf]
      %v640 = vld [vmem:[%s634 + $0x14] sm:$0xf]
      %v641 = vld [vmem:[%s634 + $0x18] sm:$0xf]
      %v642 = vld [vmem:[%s634 + $0x1c] sm:$0xf]
      %v643 = vld [vmem:[%s634 + $0x20] sm:$0xf]
      %v644 = vld [vmem:[%s634 + $0x24] sm:$0xf]
      %v645 = vld [vmem:[%s634 + $0x28] sm:$0xf]
      %v646 = vld [vmem:[%s634 + $0x2c] sm:$0xf]
      %v647 = vld [vmem:[%s634 + $0x30] sm:$0xf]
      %v648 = vld [vmem:[%s634 + $0x34] sm:$0xf]
      %v649 = vld [vmem:[%s634 + $0x38] sm:$0xf]
      %v650 = vld [vmem:[%s634 + $0x3c] sm:$0xf]
      %v656 = vunpack.c.l.b16 %v629
      %v657 = vunpack.c.l.b16 %v630
      %v658 = vunpack.c.l.b16 %v631
      %v659 = vunpack.c.l.b16 %v632
      %v660 = vunpack.c.l.b16 %v633
      %v661 = vpack.c.b16 %v657, %v656
      %v662 = vpack.c.b16 %v659, %v658
      %v663 = vpack.c.b16 %v660, %v660
      %v665 = vshrl.u32 %v661, 16
      %v667 = vshll.u32 %v661, 16
      %v669 = vrot.slane %v667, 1
      %v670 = vor.u32 %v665, %v669
      %v672 = vshll.u32 %v662, 16
      %v674 = vrot.slane %v672, 1
      %v675 = vsel %vm275, %v670, %v674
      %v676 = vshrl.u32 %v662, 16
      %v678 = vor.u32 %v676, %v674
      %v680 = vshll.u32 %v663, 16
      %v682 = vrot.slane %v680, 1
      %v683 = vsel %vm275, %v678, %v682
      %v702 = vunpack.c.l.b16 %v635
      %v703 = vunpack.c.l.b16 %v636
      %v704 = vunpack.c.l.b16 %v637
      %v705 = vunpack.c.l.b16 %v638
      %v706 = vunpack.c.l.b16 %v639
      %v707 = vunpack.c.l.b16 %v640
      %v708 = vunpack.c.l.b16 %v641
      %v709 = vunpack.c.l.b16 %v642
      %v710 = vunpack.c.l.b16 %v643
      %v711 = vunpack.c.l.b16 %v644
      %v712 = vunpack.c.l.b16 %v645
      %v713 = vunpack.c.l.b16 %v646
      %v714 = vunpack.c.l.b16 %v647
      %v715 = vunpack.c.l.b16 %v648
      %v716 = vunpack.c.l.b16 %v649
      %v717 = vunpack.c.l.b16 %v650
      %v718 = vpack.c.b16 %v703, %v702
      %v719 = vpack.c.b16 %v705, %v704
      %v720 = vpack.c.b16 %v707, %v706
      %v721 = vpack.c.b16 %v709, %v708
      %v722 = vpack.c.b16 %v711, %v710
      %v723 = vpack.c.b16 %v713, %v712
      %v724 = vpack.c.b16 %v715, %v714
      %v725 = vpack.c.b16 %v717, %v716
      %734 = vmatpush.bf16.msra.mxu0 %v725
      %735 = vmatpush.bf16.msra.mxu0 %v724
      %736 = vmatpush.bf16.msra.mxu0 %v723
      %737 = vmatpush.bf16.msra.mxu0 %v722
      %738 = vmatpush.bf16.msra.mxu0 %v721
      %739 = vmatpush.bf16.msra.mxu0 %v720
      %740 = vmatpush.bf16.msra.mxu0 %v719
      %741 = vmatpush.bf16.msra.mxu0 %v718
      %742 = vmatmul.bf16.gmra.mxu0 %v675
      %v743 = vpop.f32.mrf.mxu0
      %v744 = vadd.f32 0.0, %v743
      %v745 = vpop.f32.mrf.mxu0
      %v746 = vadd.f32 0.0, %v745
      %747 = vmatmul.bf16.gmra.mxu0 %v683
      %v748 = vpop.f32.mrf.mxu0
      %v749 = vadd.f32 0.0, %v748
      %v750 = vpop.f32.mrf.mxu0
      %v751 = vadd.f32 0.0, %v750
      %752 = vdwg.mxu0
      %v753 = vadd.f32 %v625, %v744
      %v754 = vadd.f32 %v626, %v746
      %v755 = vadd.f32 %v627, %v749
      %v756 = vadd.f32 %v628, %v751
      %v757 = vld [vmem:[%s207 + $0x4] sm:$0xe]
      %s758 = scalar_lea.vmem %s1, 320
      %v759 = vld [vmem:[%s758] sm:$0xf]
      %v760 = vld [vmem:[%s758 + $0x4] sm:$0xf]
      %v761 = vld [vmem:[%s758 + $0x8] sm:$0xf]
      %v762 = vld [vmem:[%s758 + $0xc] sm:$0xf]
      %v763 = vld [vmem:[%s758 + $0x10] sm:$0xf]
      %v764 = vld [vmem:[%s758 + $0x14] sm:$0xf]
      %v765 = vld [vmem:[%s758 + $0x18] sm:$0xf]
      %v766 = vld [vmem:[%s758 + $0x1c] sm:$0xf]
      %v767 = vld [vmem:[%s758 + $0x20] sm:$0xf]
      %v768 = vld [vmem:[%s758 + $0x24] sm:$0xf]
      %v769 = vld [vmem:[%s758 + $0x28] sm:$0xf]
      %v770 = vld [vmem:[%s758 + $0x2c] sm:$0xf]
      %v771 = vld [vmem:[%s758 + $0x30] sm:$0xf]
      %v772 = vld [vmem:[%s758 + $0x34] sm:$0xf]
      %v773 = vld [vmem:[%s758 + $0x38] sm:$0xf]
      %v774 = vld [vmem:[%s758 + $0x3c] sm:$0xf]
      %v776 = vunpack.c.l.b16 %v757
      %v777 = vpack.c.b16 %v657, %v776
      %v778 = vrot.slane %v777, 1
      %v779 = vrot.slane %v662, 1
      %v780 = vsel %vm455, %v778, %v779
      %v781 = vrot.slane %v663, 1
      %v782 = vsel %vm455, %v779, %v781
      %v801 = vunpack.c.l.b16 %v759
      %v802 = vunpack.c.l.b16 %v760
      %v803 = vunpack.c.l.b16 %v761
      %v804 = vunpack.c.l.b16 %v762
      %v805 = vunpack.c.l.b16 %v763
      %v806 = vunpack.c.l.b16 %v764
      %v807 = vunpack.c.l.b16 %v765
      %v808 = vunpack.c.l.b16 %v766
      %v809 = vunpack.c.l.b16 %v767
      %v810 = vunpack.c.l.b16 %v768
      %v811 = vunpack.c.l.b16 %v769
      %v812 = vunpack.c.l.b16 %v770
      %v813 = vunpack.c.l.b16 %v771
      %v814 = vunpack.c.l.b16 %v772
      %v815 = vunpack.c.l.b16 %v773
      %v816 = vunpack.c.l.b16 %v774
      %v817 = vpack.c.b16 %v802, %v801
      %v818 = vpack.c.b16 %v804, %v803
      %v819 = vpack.c.b16 %v806, %v805
      %v820 = vpack.c.b16 %v808, %v807
      %v821 = vpack.c.b16 %v810, %v809
      %v822 = vpack.c.b16 %v812, %v811
      %v823 = vpack.c.b16 %v814, %v813
      %v824 = vpack.c.b16 %v816, %v815
      %833 = vmatpush.bf16.msra.mxu0 %v824
      %834 = vmatpush.bf16.msra.mxu0 %v823
      %835 = vmatpush.bf16.msra.mxu0 %v822
      %836 = vmatpush.bf16.msra.mxu0 %v821
      %837 = vmatpush.bf16.msra.mxu0 %v820
      %838 = vmatpush.bf16.msra.mxu0 %v819
      %839 = vmatpush.bf16.msra.mxu0 %v818
      %840 = vmatpush.bf16.msra.mxu0 %v817
      %841 = vmatmul.bf16.gmra.mxu0 %v780
      %v842 = vpop.f32.mrf.mxu0
      %v843 = vadd.f32 0.0, %v842
      %v844 = vpop.f32.mrf.mxu0
      %v845 = vadd.f32 0.0, %v844
      %846 = vmatmul.bf16.gmra.mxu0 %v782
      %v847 = vpop.f32.mrf.mxu0
      %v848 = vadd.f32 0.0, %v847
      %v849 = vpop.f32.mrf.mxu0
      %v850 = vadd.f32 0.0, %v849
      %851 = vdwg.mxu0
      %v852 = vadd.f32 %v753, %v843
      %v853 = vadd.f32 %v754, %v845
      %v854 = vadd.f32 %v755, %v848
      %v855 = vadd.f32 %v756, %v850
      %v856 = vld [vmem:[%s207 + $0x14] sm:$0xf]
      %s857 = scalar_lea.vmem %s1, 384
      %v858 = vld [vmem:[%s857] sm:$0xf]
      %v859 = vld [vmem:[%s857 + $0x4] sm:$0xf]
      %v860 = vld [vmem:[%s857 + $0x8] sm:$0xf]
      %v861 = vld [vmem:[%s857 + $0xc] sm:$0xf]
      %v862 = vld [vmem:[%s857 + $0x10] sm:$0xf]
      %v863 = vld [vmem:[%s857 + $0x14] sm:$0xf]
      %v864 = vld [vmem:[%s857 + $0x18] sm:$0xf]
      %v865 = vld [vmem:[%s857 + $0x1c] sm:$0xf]
      %v866 = vld [vmem:[%s857 + $0x20] sm:$0xf]
      %v867 = vld [vmem:[%s857 + $0x24] sm:$0xf]
      %v868 = vld [vmem:[%s857 + $0x28] sm:$0xf]
      %v869 = vld [vmem:[%s857 + $0x2c] sm:$0xf]
      %v870 = vld [vmem:[%s857 + $0x30] sm:$0xf]
      %v871 = vld [vmem:[%s857 + $0x34] sm:$0xf]
      %v872 = vld [vmem:[%s857 + $0x38] sm:$0xf]
      %v873 = vld [vmem:[%s857 + $0x3c] sm:$0xf]
      %v875 = vunpack.c.l.b16 %v856
      %v876 = vpack.c.b16 %v658, %v657
      %v877 = vpack.c.b16 %v875, %v659
      %v896 = vunpack.c.l.b16 %v858
      %v897 = vunpack.c.l.b16 %v859
      %v898 = vunpack.c.l.b16 %v860
      %v899 = vunpack.c.l.b16 %v861
      %v900 = vunpack.c.l.b16 %v862
      %v901 = vunpack.c.l.b16 %v863
      %v902 = vunpack.c.l.b16 %v864
      %v903 = vunpack.c.l.b16 %v865
      %v904 = vunpack.c.l.b16 %v866
      %v905 = vunpack.c.l.b16 %v867
      %v906 = vunpack.c.l.b16 %v868
      %v907 = vunpack.c.l.b16 %v869
      %v908 = vunpack.c.l.b16 %v870
      %v909 = vunpack.c.l.b16 %v871
      %v910 = vunpack.c.l.b16 %v872
      %v911 = vunpack.c.l.b16 %v873
      %v912 = vpack.c.b16 %v897, %v896
      %v913 = vpack.c.b16 %v899, %v898
      %v914 = vpack.c.b16 %v901, %v900
      %v915 = vpack.c.b16 %v903, %v902
      %v916 = vpack.c.b16 %v905, %v904
      %v917 = vpack.c.b16 %v907, %v906
      %v918 = vpack.c.b16 %v909, %v908
      %v919 = vpack.c.b16 %v911, %v910
      %928 = vmatpush.bf16.msra.mxu0 %v919
      %929 = vmatpush.bf16.msra.mxu0 %v918
      %930 = vmatpush.bf16.msra.mxu0 %v917
      %931 = vmatpush.bf16.msra.mxu0 %v916
      %932 = vmatpush.bf16.msra.mxu0 %v915
      %933 = vmatpush.bf16.msra.mxu0 %v914
      %934 = vmatpush.bf16.msra.mxu0 %v913
      %935 = vmatpush.bf16.msra.mxu0 %v912
      %936 = vmatmul.bf16.gmra.mxu0 %v876
      %v937 = vpop.f32.mrf.mxu0
      %v938 = vadd.f32 0.0, %v937
      %v939 = vpop.f32.mrf.mxu0
      %v940 = vadd.f32 0.0, %v939
      %941 = vmatmul.bf16.gmra.mxu0 %v877
      %v942 = vpop.f32.mrf.mxu0
      %v943 = vadd.f32 0.0, %v942
      %v944 = vpop.f32.mrf.mxu0
      %v945 = vadd.f32 0.0, %v944
      %946 = vdwg.mxu0
      %v947 = vadd.f32 %v852, %v938
      %v948 = vadd.f32 %v853, %v940
      %v949 = vadd.f32 %v854, %v943
      %v950 = vadd.f32 %v855, %v945
      %v951 = vld [vmem:[%s207 + $0x8] sm:$0xf]
      %v952 = vld [vmem:[%s207 + $0xc] sm:$0xf]
      %v953 = vld [vmem:[%s207 + $0x10] sm:$0xf]
      %v954 = vld [vmem:[%s207 + $0x14] sm:$0xf]
      %v955 = vld [vmem:[%s207 + $0x18] sm:$0x1]
      %s956 = scalar_lea.vmem %s1, 448
      %v957 = vld [vmem:[%s956] sm:$0xf]
      %v958 = vld [vmem:[%s956 + $0x4] sm:$0xf]
      %v959 = vld [vmem:[%s956 + $0x8] sm:$0xf]
      %v960 = vld [vmem:[%s956 + $0xc] sm:$0xf]
      %v961 = vld [vmem:[%s956 + $0x10] sm:$0xf]
      %v962 = vld [vmem:[%s956 + $0x14] sm:$0xf]
      %v963 = vld [vmem:[%s956 + $0x18] sm:$0xf]
      %v964 = vld [vmem:[%s956 + $0x1c] sm:$0xf]
      %v965 = vld [vmem:[%s956 + $0x20] sm:$0xf]
      %v966 = vld [vmem:[%s956 + $0x24] sm:$0xf]
      %v967 = vld [vmem:[%s956 + $0x28] sm:$0xf]
      %v968 = vld [vmem:[%s956 + $0x2c] sm:$0xf]
      %v969 = vld [vmem:[%s956 + $0x30] sm:$0xf]
      %v970 = vld [vmem:[%s956 + $0x34] sm:$0xf]
      %v971 = vld [vmem:[%s956 + $0x38] sm:$0xf]
      %v972 = vld [vmem:[%s956 + $0x3c] sm:$0xf]
      %v978 = vunpack.c.l.b16 %v951
      %v979 = vunpack.c.l.b16 %v952
      %v980 = vunpack.c.l.b16 %v953
      %v981 = vunpack.c.l.b16 %v954
      %v982 = vunpack.c.l.b16 %v955
      %v983 = vpack.c.b16 %v979, %v978
      %v984 = vpack.c.b16 %v981, %v980
      %v985 = vpack.c.b16 %v982, %v982
      %v987 = vshrl.u32 %v983, 16
      %v989 = vshll.u32 %v983, 16
      %v991 = vrot.slane %v989, 1
      %v992 = vor.u32 %v987, %v991
      %v994 = vshll.u32 %v984, 16
      %v996 = vrot.slane %v994, 1
      %v997 = vsel %vm275, %v992, %v996
      %v998 = vshrl.u32 %v984, 16
      %v1000 = vor.u32 %v998, %v996
      %v1002 = vshll.u32 %v985, 16
      %v1004 = vrot.slane %v1002, 1
      %v1005 = vsel %vm275, %v1000, %v1004
      %v1024 = vunpack.c.l.b16 %v957
      %v1025 = vunpack.c.l.b16 %v958
      %v1026 = vunpack.c.l.b16 %v959
      %v1027 = vunpack.c.l.b16 %v960
      %v1028 = vunpack.c.l.b16 %v961
      %v1029 = vunpack.c.l.b16 %v962
      %v1030 = vunpack.c.l.b16 %v963
      %v1031 = vunpack.c.l.b16 %v964
      %v1032 = vunpack.c.l.b16 %v965
      %v1033 = vunpack.c.l.b16 %v966
      %v1034 = vunpack.c.l.b16 %v967
      %v1035 = vunpack.c.l.b16 %v968
      %v1036 = vunpack.c.l.b16 %v969
      %v1037 = vunpack.c.l.b16 %v970
      %v1038 = vunpack.c.l.b16 %v971
      %v1039 = vunpack.c.l.b16 %v972
      %v1040 = vpack.c.b16 %v1025, %v1024
      %v1041 = vpack.c.b16 %v1027, %v1026
      %v1042 = vpack.c.b16 %v1029, %v1028
      %v1043 = vpack.c.b16 %v1031, %v1030
      %v1044 = vpack.c.b16 %v1033, %v1032
      %v1045 = vpack.c.b16 %v1035, %v1034
      %v1046 = vpack.c.b16 %v1037, %v1036
      %v1047 = vpack.c.b16 %v1039, %v1038
      %1056 = vmatpush.bf16.msra.mxu0 %v1047
      %1057 = vmatpush.bf16.msra.mxu0 %v1046
      %1058 = vmatpush.bf16.msra.mxu0 %v1045
      %1059 = vmatpush.bf16.msra.mxu0 %v1044
      %1060 = vmatpush.bf16.msra.mxu0 %v1043
      %1061 = vmatpush.bf16.msra.mxu0 %v1042
      %1062 = vmatpush.bf16.msra.mxu0 %v1041
      %1063 = vmatpush.bf16.msra.mxu0 %v1040
      %1064 = vmatmul.bf16.gmra.mxu0 %v997
      %v1065 = vpop.f32.mrf.mxu0
      %v1066 = vadd.f32 0.0, %v1065
      %v1067 = vpop.f32.mrf.mxu0
      %v1068 = vadd.f32 0.0, %v1067
      %1069 = vmatmul.bf16.gmra.mxu0 %v1005
      %v1070 = vpop.f32.mrf.mxu0
      %v1071 = vadd.f32 0.0, %v1070
      %v1072 = vpop.f32.mrf.mxu0
      %v1073 = vadd.f32 0.0, %v1072
      %1074 = vdwg.mxu0
      %v1075 = vadd.f32 %v947, %v1066
      %v1076 = vadd.f32 %v948, %v1068
      %v1077 = vadd.f32 %v949, %v1071
      %v1078 = vadd.f32 %v950, %v1073
      %v1079 = vld [vmem:[%s207 + $0x8] sm:$0xe]
      %s1080 = scalar_lea.vmem %s1, 512
      %v1081 = vld [vmem:[%s1080] sm:$0xf]
      %v1082 = vld [vmem:[%s1080 + $0x4] sm:$0xf]
      %v1083 = vld [vmem:[%s1080 + $0x8] sm:$0xf]
      %v1084 = vld [vmem:[%s1080 + $0xc] sm:$0xf]
      %v1085 = vld [vmem:[%s1080 + $0x10] sm:$0xf]
      %v1086 = vld [vmem:[%s1080 + $0x14] sm:$0xf]
      %v1087 = vld [vmem:[%s1080 + $0x18] sm:$0xf]
      %v1088 = vld [vmem:[%s1080 + $0x1c] sm:$0xf]
      %v1089 = vld [vmem:[%s1080 + $0x20] sm:$0xf]
      %v1090 = vld [vmem:[%s1080 + $0x24] sm:$0xf]
      %v1091 = vld [vmem:[%s1080 + $0x28] sm:$0xf]
      %v1092 = vld [vmem:[%s1080 + $0x2c] sm:$0xf]
      %v1093 = vld [vmem:[%s1080 + $0x30] sm:$0xf]
      %v1094 = vld [vmem:[%s1080 + $0x34] sm:$0xf]
      %v1095 = vld [vmem:[%s1080 + $0x38] sm:$0xf]
      %v1096 = vld [vmem:[%s1080 + $0x3c] sm:$0xf]
      %v1098 = vunpack.c.l.b16 %v1079
      %v1099 = vpack.c.b16 %v979, %v1098
      %v1100 = vrot.slane %v1099, 1
      %v1101 = vrot.slane %v984, 1
      %v1102 = vsel %vm455, %v1100, %v1101
      %v1103 = vrot.slane %v985, 1
      %v1104 = vsel %vm455, %v1101, %v1103
      %v1123 = vunpack.c.l.b16 %v1081
      %v1124 = vunpack.c.l.b16 %v1082
      %v1125 = vunpack.c.l.b16 %v1083
      %v1126 = vunpack.c.l.b16 %v1084
      %v1127 = vunpack.c.l.b16 %v1085
      %v1128 = vunpack.c.l.b16 %v1086
      %v1129 = vunpack.c.l.b16 %v1087
      %v1130 = vunpack.c.l.b16 %v1088
      %v1131 = vunpack.c.l.b16 %v1089
      %v1132 = vunpack.c.l.b16 %v1090
      %v1133 = vunpack.c.l.b16 %v1091
      %v1134 = vunpack.c.l.b16 %v1092
      %v1135 = vunpack.c.l.b16 %v1093
      %v1136 = vunpack.c.l.b16 %v1094
      %v1137 = vunpack.c.l.b16 %v1095
      %v1138 = vunpack.c.l.b16 %v1096
      %v1139 = vpack.c.b16 %v1124, %v1123
      %v1140 = vpack.c.b16 %v1126, %v1125
      %v1141 = vpack.c.b16 %v1128, %v1127
      %v1142 = vpack.c.b16 %v1130, %v1129
      %v1143 = vpack.c.b16 %v1132, %v1131
      %v1144 = vpack.c.b16 %v1134, %v1133
      %v1145 = vpack.c.b16 %v1136, %v1135
      %v1146 = vpack.c.b16 %v1138, %v1137
      %1155 = vmatpush.bf16.msra.mxu0 %v1146
      %1156 = vmatpush.bf16.msra.mxu0 %v1145
      %1157 = vmatpush.bf16.msra.mxu0 %v1144
      %1158 = vmatpush.bf16.msra.mxu0 %v1143
      %1159 = vmatpush.bf16.msra.mxu0 %v1142
      %1160 = vmatpush.bf16.msra.mxu0 %v1141
      %1161 = vmatpush.bf16.msra.mxu0 %v1140
      %1162 = vmatpush.bf16.msra.mxu0 %v1139
      %1163 = vmatmul.bf16.gmra.mxu0 %v1102
      %v1164 = vpop.f32.mrf.mxu0
      %v1165 = vadd.f32 0.0, %v1164
      %v1166 = vpop.f32.mrf.mxu0
      %v1167 = vadd.f32 0.0, %v1166
      %1168 = vmatmul.bf16.gmra.mxu0 %v1104
      %v1169 = vpop.f32.mrf.mxu0
      %v1170 = vadd.f32 0.0, %v1169
      %v1171 = vpop.f32.mrf.mxu0
      %v1172 = vadd.f32 0.0, %v1171
      %1173 = vdwg.mxu0
      %v1174 = vadd.f32 %v1075, %v1165
      %v1175 = vadd.f32 %v1076, %v1167
      %v1176 = vadd.f32 %v1077, %v1170
      %v1177 = vadd.f32 %v1078, %v1172
      %v1178 = vpack.c.bf16 %v1174, %v1174
      %v1179 = vpack.c.bf16 %v1175, %v1175
      %v1180 = vpack.c.bf16 %v1176, %v1176
      %v1181 = vpack.c.bf16 %v1177, %v1177
      %vm1182 = vcmask 519168
      %1183 = vst.msk [vmem:[%s216] sm:$0xf] %vm1182, %v1178
      %1184 = vst.msk [vmem:[%s216 + $0x4] sm:$0xf] %vm1182, %v1179
      %1185 = vst.msk [vmem:[%s216 + $0x8] sm:$0xf] %vm1182, %v1180
      %1186 = vst.msk [vmem:[%s216 + $0xc] sm:$0xf] %vm1182, %v1181
      %v1187 = vlaneseq
      %v1188 = vshrl.u32 %v1187, 7
      %v1189 = vadd.s32 %v1188, 8
      %v1190 = vadd.s32 %v1188, 16
      %v1191 = vadd.s32 %v1188, 24
      %vm1192 = vcmp.lt.s32.totalorder %v1188, 0
      %v1193 = vsub.s32 0, %v1188
      %v1194 = vsel %vm1192, %v1193, %v1188
      %v1195 = vshrl.u32 %v1194, 3
      %v1196 = vand.u32 %v1194, 7
      %v1197 = vsub.s32 0, %v1196
      %v1198 = vsel %vm1192, %v1197, %v1196
      %vm1199 = vcmp.lt.s32.totalorder %v1189, 0
      %v1200 = vsub.s32 0, %v1189
      %v1201 = vsel %vm1199, %v1200, %v1189
      %v1202 = vshrl.u32 %v1201, 3
      %v1203 = vand.u32 %v1201, 7
      %v1204 = vsub.s32 0, %v1203
      %v1205 = vsel %vm1199, %v1204, %v1203
      %vm1206 = vcmp.lt.s32.totalorder %v1190, 0
      %v1207 = vsub.s32 0, %v1190
      %v1208 = vsel %vm1206, %v1207, %v1190
      %v1209 = vshrl.u32 %v1208, 3
      %v1210 = vand.u32 %v1208, 7
      %v1211 = vsub.s32 0, %v1210
      %v1212 = vsel %vm1206, %v1211, %v1210
      %vm1213 = vcmp.lt.s32.totalorder %v1191, 0
      %v1214 = vsub.s32 0, %v1191
      %v1215 = vsel %vm1213, %v1214, %v1191
      %v1216 = vshrl.u32 %v1215, 3
      %v1217 = vand.u32 %v1215, 7
      %v1218 = vsub.s32 0, %v1217
      %v1219 = vsel %vm1213, %v1218, %v1217
      %vm1220 = vcmp.ne.s32.totalorder %v1198, 0
      %vm1221 = vcmp.ne.s32.totalorder %v1205, 0
      %vm1222 = vcmp.ne.s32.totalorder %v1212, 0
      %vm1223 = vcmp.ne.s32.totalorder %v1219, 0
      %vm1224 = vcmp.lt.s32.totalorder %v1198, 0
      %vm1225 = vcmp.lt.s32.totalorder %v1205, 0
      %vm1226 = vcmp.lt.s32.totalorder %v1212, 0
      %vm1227 = vcmp.lt.s32.totalorder %v1219, 0
      %vm1228 = vmand %vm1224, %vm1220
      %vm1229 = vmand %vm1225, %vm1221
      %vm1230 = vmand %vm1226, %vm1222
      %vm1231 = vmand %vm1227, %vm1223
      %v1232 = vadd.s32 %v1198, 8
      %v1233 = vadd.s32 %v1205, 8
      %v1234 = vadd.s32 %v1212, 8
      %v1235 = vadd.s32 %v1219, 8
      %v1236 = vsel %vm1228, %v1232, %v1198
      %v1237 = vsel %vm1229, %v1233, %v1205
      %v1238 = vsel %vm1230, %v1234, %v1212
      %v1239 = vsel %vm1231, %v1235, %v1219
      %vm1240 = vcmp.lt.s32.totalorder %v1236, 4
      %vm1241 = vcmp.lt.s32.totalorder %v1237, 4
      %vm1242 = vcmp.lt.s32.totalorder %v1238, 4
      %vm1243 = vcmp.lt.s32.totalorder %v1239, 4
      %v1244 = vsel %vm1240, 1, 0
      %v1245 = vsel %vm1241, 1, 0
      %v1246 = vsel %vm1242, 1, 0
      %v1247 = vsel %vm1243, 1, 0
      %v1248 = vcvt.s32.f32 %v1244
      %v1249 = vcvt.s32.f32 %v1245
      %v1250 = vcvt.s32.f32 %v1246
      %v1251 = vcvt.s32.f32 %v1247
      %v1252 = vmul.f32 %v1174, %v1248
      %v1253 = vmul.f32 %v1175, %v1249
      %v1254 = vmul.f32 %v1176, %v1250
      %v1255 = vmul.f32 %v1177, %v1251
      %vm1256 = vcmask 523264
      %v1257 = vsel %vm1256, %v1252, 0.0
      %v1258 = vsel %vm1256, %v1253, 0.0
      %v1259 = vadd.f32 %v1257, %v1258
      %v1260 = vsel %vm1256, %v1254, 0.0
      %v1261 = vadd.f32 %v1259, %v1260
      %v1262 = vsel %vm1256, %v1255, 0.0
      %v1263 = vadd.f32 %v1261, %v1262
      %v1264 = vrot.slane %v1263, 4
      %v1265 = vadd.f32 %v1263, %v1264
      %v1266 = vrot.slane %v1265, 2
      %v1267 = vadd.f32 %v1265, %v1266
      %v1268 = vrot.slane %v1267, 1
      %v1269 = vadd.f32 %v1267, %v1268
      %vm1270 = vcmask 516096
      %1271 = vst.msk [vmem:[%s222] sm:$0x1] %vm1270, %v1269
      %v1272 = vmul.f32 %v1252, %v1252
      %v1273 = vmul.f32 %v1253, %v1253
      %v1274 = vmul.f32 %v1254, %v1254
      %v1275 = vmul.f32 %v1255, %v1255
      %v1276 = vsel %vm1256, %v1272, 0.0
      %v1277 = vsel %vm1256, %v1273, 0.0
      %v1278 = vadd.f32 %v1276, %v1277
      %v1279 = vsel %vm1256, %v1274, 0.0
      %v1280 = vadd.f32 %v1278, %v1279
      %v1281 = vsel %vm1256, %v1275, 0.0
      %v1282 = vadd.f32 %v1280, %v1281
      %v1283 = vrot.slane %v1282, 4
      %v1284 = vadd.f32 %v1282, %v1283
      %v1285 = vrot.slane %v1284, 2
      %v1286 = vadd.f32 %v1284, %v1285
      %v1287 = vrot.slane %v1286, 1
      %v1288 = vadd.f32 %v1286, %v1287
      %1289 = vst.msk [vmem:[%s222 + $0x1] sm:$0x1] %vm1270, %v1288
      %s1290 = smul.u32 4, %s20
      %p1291 = scmp.lt.s32.totalorder %s19, 1
      %s1292 = scalar_select %p1291, %s19, 1
      %p1293 = scmp.lt.s32.totalorder %s1290, 3
      %s1294 = scalar_select %p1293, %s1290, 3
      %s1295 = smul.addr %s1292, 4
      %s1296 = sadd.s32 %s1294, %s1295
      %s1297 = smul.addr %s1296, 4
      %s1298 = scalar_lea.vmem %s2, %s1297
      %s1299 = sadd.s32 %s19, %s20
      %p1300 = scmp.lt.s32.totalorder %s1299, 1
      %s1301 = scalar_select %p1300, %s1299, 1
      %s1302 = smul.addr %s1301, 8
      %s1303 = scalar_lea.vmem %s3, %s1302
      // Predicated region
      $region29: #{unet_forward.23} parent=27 // pred_check
        %p1304 = pneg %p96
      $region30: #{unet_forward.23} parent=27 // pred_check_branch
        %1306 = sbr.rel (%p1304) target = $region32
      $region31: #{unet_forward.23} parent=27 // pred_region
        %s1307 = smul.u32 4, %s20
      $region32: #{unet_forward.23} parent=27 // pred_fallthru
        _
      // Predicated region
      $region33: #{unet_forward.23} parent=27 // pred_check
        %p1308 = pneg %p124
      $region34: #{unet_forward.23} parent=27 // pred_check_branch
        %1310 = sbr.rel (%p1308) target = $region36
      $region35: #{unet_forward.23} parent=27 // pred_region
        %s1311 = sadd.s32 %s19, %s20
      $region36: #{unet_forward.23} parent=27 // pred_fallthru
        _
    $region28: #{unet_forward.23} parent=5 // pred_fallthru
      _
    %p1312 = scmp.le.s32.totalorder 2, %s10
    // Predicated region
    $region37: #{unet_forward.23} parent=5 // pred_check
      %p1313 = pneg %p1312
    $region38: #{unet_forward.23} parent=5 // pred_check_branch
      %1315 = sbr.rel (%p1313) target = $region40
    $region39: #{unet_forward.23} parent=5 // pred_region
      %s1316 = ssub.s32 %s10, 2
      // Predicated region
      $region41: #{unet_forward.23} parent=39 // pred_check
        %p1317 = pneg %p102
      $region42: #{unet_forward.23} parent=39 // pred_check_branch
        %1319 = sbr.rel (%p1317) target = $region44
      $region43: #{unet_forward.23} parent=39 // pred_region
        %s1320 = smul.u32 4, %s22
        %p1321 = scmp.lt.s32.totalorder %s21, 1
        %s1322 = scalar_select %p1321, %s21, 1
        %p1323 = scmp.lt.s32.totalorder %s1320, 3
        %s1324 = scalar_select %p1323, %s1320, 3
        %s1325 = smul.addr %s1322, 4
        %s1326 = sadd.s32 %s1324, %s1325
        %s1327 = smul.addr %s1326, 4
        %s1328 = scalar_lea.vmem %s2, %s1327
      $region44: #{unet_forward.23} parent=39 // pred_fallthru
        _
      // Predicated region
      $region45: #{unet_forward.23} parent=39 // pred_check
        %p1329 = pneg %p130
      $region46: #{unet_forward.23} parent=39 // pred_check_branch
        %1331 = sbr.rel (%p1329) target = $region48
      $region47: #{unet_forward.23} parent=39 // pred_region
        %s1332 = sadd.s32 %s21, %s22
        %p1333 = scmp.lt.s32.totalorder %s1332, 1
        %s1334 = scalar_select %p1333, %s1332, 1
        %s1335 = smul.addr %s1334, 8
        %s1336 = scalar_lea.vmem %s3, %s1335
      $region48: #{unet_forward.23} parent=39 // pred_fallthru
        _
    $region40: #{unet_forward.23} parent=5 // pred_fallthru
      _
  $region6: #{unet_forward.23} parent=0 // loop_footer
    %s14 = sadd.s32 1, %s10
  $region7: #{unet_forward.23} parent=0 // loop_footer_branch
    %9 = sbr.rel target = $region3
  $region8: #{unet_forward.23} parent=0 // loop_exit
    _

// kernel: unet_forward.26
$region0: #{unet_forward.26}
  #allocation0 [shape = 'u32[]', space=smem, size = 0x4, offset = 0x4, fixed_abs, tag = 'smem constant byte address 0x4 - core index']
  #allocation1 [shape = 'u32[72,128]{1,0:T(1,128)}', space=vmem, size = 0x9000, scoped, tag = 'internal scratch']
  %s0 = inlined_call_operand.vmem [shape: bf16[128,32], index: 0, kind: input, shape index: {}]
  %s1 = inlined_call_operand.vmem [shape: f32[8,32], index: 1, kind: input, shape index: {}]
  %s2 = inlined_call_operand.vmem [shape: bf16[128,32], index: 2, kind: input, shape index: {}]
  %s3 = inlined_call_operand.vmem [shape: bf16[128,32], index: 3, kind: output, shape index: {}]
  %s4 = sld [smem:[#allocation0]]
  $region22: #{unet_forward.26} parent=0
    _
  %s6 = ssub.s32 1, %s4
  %s7 = scalar_select 0, %s6, %s4
  // Predicated region
  $region2: #{unet_forward.26} parent=0 // pred_check
    _
  $region3: #{unet_forward.26} parent=0 // pred_check_branch
    %9 = sbr.rel (0) target = $region5
  $region4: #{unet_forward.26} parent=0 // pred_region
    _
  $region5: #{unet_forward.26} parent=0 // pred_fallthru
    _
  // Predicated region
  $region6: #{unet_forward.26} parent=0 // pred_check
    _
  $region7: #{unet_forward.26} parent=0 // pred_check_branch
    %11 = sbr.rel (0) target = $region9
  $region8: #{unet_forward.26} parent=0 // pred_region
    _
  $region9: #{unet_forward.26} parent=0 // pred_fallthru
    _
  // Predicated region
  $region10: #{unet_forward.26} parent=0 // pred_check
    _
  $region11: #{unet_forward.26} parent=0 // pred_check_branch
    %13 = sbr.rel (0) target = $region13
  $region12: #{unet_forward.26} parent=0 // pred_region
    _
  $region13: #{unet_forward.26} parent=0 // pred_fallthru
    _
  %v14 = vld [vmem:[%s0] sm:$0xf]
  %v15 = vld [vmem:[%s0 + $0x4] sm:$0xf]
  %v16 = vld [vmem:[%s0 + $0x8] sm:$0xf]
  %v17 = vld [vmem:[%s0 + $0xc] sm:$0xf]
  %v18 = vld [vmem:[%s0 + $0x10] sm:$0xf]
  %v19 = vld [vmem:[%s0 + $0x14] sm:$0xf]
  %v20 = vld [vmem:[%s0 + $0x18] sm:$0xf]
  %v21 = vld [vmem:[%s0 + $0x1c] sm:$0xf]
  %v22 = vld [vmem:[%s0 + $0x20] sm:$0xf]
  %v23 = vld [vmem:[%s0 + $0x24] sm:$0xf]
  %v24 = vld [vmem:[%s0 + $0x28] sm:$0xf]
  %v25 = vld [vmem:[%s0 + $0x2c] sm:$0xf]
  %v26 = vld [vmem:[%s0 + $0x30] sm:$0xf]
  %v27 = vld [vmem:[%s0 + $0x34] sm:$0xf]
  %v28 = vld [vmem:[%s0 + $0x38] sm:$0xf]
  %v29 = vld [vmem:[%s0 + $0x3c] sm:$0xf]
  %v30 = vunpack.c.l.bf16 %v14
  %v31 = vunpack.c.l.bf16 %v15
  %v32 = vunpack.c.l.bf16 %v16
  %v33 = vunpack.c.l.bf16 %v17
  %v34 = vunpack.c.l.bf16 %v18
  %v35 = vunpack.c.l.bf16 %v19
  %v36 = vunpack.c.l.bf16 %v20
  %v37 = vunpack.c.l.bf16 %v21
  %v38 = vunpack.c.l.bf16 %v22
  %v39 = vunpack.c.l.bf16 %v23
  %v40 = vunpack.c.l.bf16 %v24
  %v41 = vunpack.c.l.bf16 %v25
  %v42 = vunpack.c.l.bf16 %v26
  %v43 = vunpack.c.l.bf16 %v27
  %v44 = vunpack.c.l.bf16 %v28
  %v45 = vunpack.c.l.bf16 %v29
  %v46 = vld [vmem:[%s1] sm:$0x1]
  %v47 = vmul.f32 %v46, 0.0078125
  %v48 = vld [vmem:[%s1 + $0x1] sm:$0x1]
  %v49 = vmul.f32 %v48, 0.0078125
  %v50 = vmul.f32 %v47, %v47
  %v51 = vsub.f32 %v49, %v50
  %v52 = vmax.f32 %v51, 0.0
  %v53 = vperm.slane %v47, 0
  %v54 = vsub.f32 %v30, %v53
  %v55 = vsub.f32 %v31, %v53
  %v56 = vsub.f32 %v32, %v53
  %v57 = vsub.f32 %v33, %v53
  %v58 = vsub.f32 %v34, %v53
  %v59 = vsub.f32 %v35, %v53
  %v60 = vsub.f32 %v36, %v53
  %v61 = vsub.f32 %v37, %v53
  %v62 = vsub.f32 %v38, %v53
  %v63 = vsub.f32 %v39, %v53
  %v64 = vsub.f32 %v40, %v53
  %v65 = vsub.f32 %v41, %v53
  %v66 = vsub.f32 %v42, %v53
  %v67 = vsub.f32 %v43, %v53
  %v68 = vsub.f32 %v44, %v53
  %v69 = vsub.f32 %v45, %v53
  %v70 = vadd.f32 %v52, 1e-05
  %v71 = vrsqrt.pop %v70
  %v72 = vmul.f32 %v71, %v70
  %v73 = vmul.f32 %v72, %v71
  %v74 = vmul.f32 0.5, %v73
  %v75 = vsub.f32 1.5, %v74
  %v76 = vmul.f32 %v71, %v75
  %vm77 = vweird.f32 %v70
  %vm78 = vweird.f32 %v71
  %vm79 = vmor %vm77, %vm78
  %v80 = vsel %vm79, %v71, %v76
  %v81 = vperm.slane %v80, 0
  %v82 = vmul.f32 %v54, %v81
  %v83 = vmul.f32 %v55, %v81
  %v84 = vmul.f32 %v56, %v81
  %v85 = vmul.f32 %v57, %v81
  %v86 = vmul.f32 %v58, %v81
  %v87 = vmul.f32 %v59, %v81
  %v88 = vmul.f32 %v60, %v81
  %v89 = vmul.f32 %v61, %v81
  %v90 = vmul.f32 %v62, %v81
  %v91 = vmul.f32 %v63, %v81
  %v92 = vmul.f32 %v64, %v81
  %v93 = vmul.f32 %v65, %v81
  %v94 = vmul.f32 %v66, %v81
  %v95 = vmul.f32 %v67, %v81
  %v96 = vmul.f32 %v68, %v81
  %v97 = vmul.f32 %v69, %v81
  %v98 = vmax.f32 %v82, 0.0
  %v99 = vmax.f32 %v83, 0.0
  %v100 = vmax.f32 %v84, 0.0
  %v101 = vmax.f32 %v85, 0.0
  %v102 = vmax.f32 %v86, 0.0
  %v103 = vmax.f32 %v87, 0.0
  %v104 = vmax.f32 %v88, 0.0
  %v105 = vmax.f32 %v89, 0.0
  %v106 = vmax.f32 %v90, 0.0
  %v107 = vmax.f32 %v91, 0.0
  %v108 = vmax.f32 %v92, 0.0
  %v109 = vmax.f32 %v93, 0.0
  %v110 = vmax.f32 %v94, 0.0
  %v111 = vmax.f32 %v95, 0.0
  %v112 = vmax.f32 %v96, 0.0
  %v113 = vmax.f32 %v97, 0.0
  %v114 = vld [vmem:[%s2] sm:$0xf]
  %v115 = vld [vmem:[%s2 + $0x4] sm:$0xf]
  %v116 = vld [vmem:[%s2 + $0x8] sm:$0xf]
  %v117 = vld [vmem:[%s2 + $0xc] sm:$0xf]
  %v118 = vld [vmem:[%s2 + $0x10] sm:$0xf]
  %v119 = vld [vmem:[%s2 + $0x14] sm:$0xf]
  %v120 = vld [vmem:[%s2 + $0x18] sm:$0xf]
  %v121 = vld [vmem:[%s2 + $0x1c] sm:$0xf]
  %v122 = vld [vmem:[%s2 + $0x20] sm:$0xf]
  %v123 = vld [vmem:[%s2 + $0x24] sm:$0xf]
  %v124 = vld [vmem:[%s2 + $0x28] sm:$0xf]
  %v125 = vld [vmem:[%s2 + $0x2c] sm:$0xf]
  %v126 = vld [vmem:[%s2 + $0x30] sm:$0xf]
  %v127 = vld [vmem:[%s2 + $0x34] sm:$0xf]
  %v128 = vld [vmem:[%s2 + $0x38] sm:$0xf]
  %v129 = vld [vmem:[%s2 + $0x3c] sm:$0xf]
  %v130 = vunpack.c.l.bf16 %v114
  %v131 = vunpack.c.l.bf16 %v115
  %v132 = vunpack.c.l.bf16 %v116
  %v133 = vunpack.c.l.bf16 %v117
  %v134 = vunpack.c.l.bf16 %v118
  %v135 = vunpack.c.l.bf16 %v119
  %v136 = vunpack.c.l.bf16 %v120
  %v137 = vunpack.c.l.bf16 %v121
  %v138 = vunpack.c.l.bf16 %v122
  %v139 = vunpack.c.l.bf16 %v123
  %v140 = vunpack.c.l.bf16 %v124
  %v141 = vunpack.c.l.bf16 %v125
  %v142 = vunpack.c.l.bf16 %v126
  %v143 = vunpack.c.l.bf16 %v127
  %v144 = vunpack.c.l.bf16 %v128
  %v145 = vunpack.c.l.bf16 %v129
  %v146 = vadd.f32 %v98, %v130
  %v147 = vadd.f32 %v99, %v131
  %v148 = vadd.f32 %v100, %v132
  %v149 = vadd.f32 %v101, %v133
  %v150 = vadd.f32 %v102, %v134
  %v151 = vadd.f32 %v103, %v135
  %v152 = vadd.f32 %v104, %v136
  %v153 = vadd.f32 %v105, %v137
  %v154 = vadd.f32 %v106, %v138
  %v155 = vadd.f32 %v107, %v139
  %v156 = vadd.f32 %v108, %v140
  %v157 = vadd.f32 %v109, %v141
  %v158 = vadd.f32 %v110, %v142
  %v159 = vadd.f32 %v111, %v143
  %v160 = vadd.f32 %v112, %v144
  %v161 = vadd.f32 %v113, %v145
  %v162 = vpack.c.bf16 %v146, %v146
  %v163 = vpack.c.bf16 %v147, %v147
  %v164 = vpack.c.bf16 %v148, %v148
  %v165 = vpack.c.bf16 %v149, %v149
  %v166 = vpack.c.bf16 %v150, %v150
  %v167 = vpack.c.bf16 %v151, %v151
  %v168 = vpack.c.bf16 %v152, %v152
  %v169 = vpack.c.bf16 %v153, %v153
  %v170 = vpack.c.bf16 %v154, %v154
  %v171 = vpack.c.bf16 %v155, %v155
  %v172 = vpack.c.bf16 %v156, %v156
  %v173 = vpack.c.bf16 %v157, %v157
  %v174 = vpack.c.bf16 %v158, %v158
  %v175 = vpack.c.bf16 %v159, %v159
  %v176 = vpack.c.bf16 %v160, %v160
  %v177 = vpack.c.bf16 %v161, %v161
  %vm178 = vcmask 257024
  %179 = vst.msk [vmem:[%s3] sm:$0xf] %vm178, %v162
  %180 = vst.msk [vmem:[%s3 + $0x4] sm:$0xf] %vm178, %v163
  %181 = vst.msk [vmem:[%s3 + $0x8] sm:$0xf] %vm178, %v164
  %182 = vst.msk [vmem:[%s3 + $0xc] sm:$0xf] %vm178, %v165
  %183 = vst.msk [vmem:[%s3 + $0x10] sm:$0xf] %vm178, %v166
  %184 = vst.msk [vmem:[%s3 + $0x14] sm:$0xf] %vm178, %v167
  %185 = vst.msk [vmem:[%s3 + $0x18] sm:$0xf] %vm178, %v168
  %186 = vst.msk [vmem:[%s3 + $0x1c] sm:$0xf] %vm178, %v169
  %187 = vst.msk [vmem:[%s3 + $0x20] sm:$0xf] %vm178, %v170
  %188 = vst.msk [vmem:[%s3 + $0x24] sm:$0xf] %vm178, %v171
  %189 = vst.msk [vmem:[%s3 + $0x28] sm:$0xf] %vm178, %v172
  %190 = vst.msk [vmem:[%s3 + $0x2c] sm:$0xf] %vm178, %v173
  %191 = vst.msk [vmem:[%s3 + $0x30] sm:$0xf] %vm178, %v174
  %192 = vst.msk [vmem:[%s3 + $0x34] sm:$0xf] %vm178, %v175
  %193 = vst.msk [vmem:[%s3 + $0x38] sm:$0xf] %vm178, %v176
  %194 = vst.msk [vmem:[%s3 + $0x3c] sm:$0xf] %vm178, %v177
  // Predicated region
  $region14: #{unet_forward.26} parent=0 // pred_check
    _
  $region15: #{unet_forward.26} parent=0 // pred_check_branch
    %196 = sbr.rel (0) target = $region17
  $region16: #{unet_forward.26} parent=0 // pred_region
    _
  $region17: #{unet_forward.26} parent=0 // pred_fallthru
    _
  // Predicated region
  $region18: #{unet_forward.26} parent=0 // pred_check
    _
  $region19: #{unet_forward.26} parent=0 // pred_check_branch
    %198 = sbr.rel (0) target = $region21
  $region20: #{unet_forward.26} parent=0 // pred_region
    _
  $region21: #{unet_forward.26} parent=0 // pred_fallthru
    _

// kernel: unet_forward.25
$region0: #{unet_forward.25}
  #allocation0 [shape = 'u32[]', space=smem, size = 0x4, offset = 0x4, fixed_abs, tag = 'smem constant byte address 0x4 - core index']
  #allocation1 [shape = 'u32[72,128]{1,0:T(1,128)}', space=vmem, size = 0x9000, scoped, tag = 'internal scratch']
  %s0 = inlined_call_operand.vmem [shape: bf16[2,1,168,64], index: 0, kind: input, shape index: {}]
  %s1 = inlined_call_operand.vmem [shape: bf16[9,64,32], index: 1, kind: input, shape index: {}]
  %s2 = inlined_call_operand.vmem [shape: bf16[2,128,32], index: 2, kind: output, shape index: {0}]
  %s3 = inlined_call_operand.vmem [shape: f32[16,32], index: 3, kind: output, shape index: {1}]
  %4 = xla_tuple %s2, %s3
  %s5 = sld [smem:[#allocation0]]
  $region49: #{unet_forward.25} parent=0
    _
  %s7 = ssub.s32 1, %s5
  %s8 = scalar_select 0, %s7, %s5
  loop: start=0, step=1, limit=4
  $region2: #{unet_forward.25} parent=0 // loop_pre_header
    _
  $region3: #{unet_forward.25} parent=0 // loop_header
    %s10 = sphi 0, %s14
    %p11 = scmp.ge.s32.totalorder %s10, 4
    %s17 = sphi 0, %s29
    %s18 = sphi 0, %s25
    %s19 = sphi 0, %s17
    %s20 = sphi 0, %s18
    %s21 = sphi 0, %s19
    %s22 = sphi 0, %s20
    %s34 = sphi 0, %s36
    %s37 = sphi 0, %s34
    %s38 = sphi 0, %s37
    %s54 = sphi 0, %s38
    %s58 = sphi 0, %s58
    %s60 = sphi 0, %s58
    %s61 = sphi 0, %s60
    %s75 = sphi 0, %s61
    %s83 = sphi 0, %s85
    %s86 = sphi 0, %s83
    %s87 = sphi 0, %s86
    %s103 = sphi 0, %s87
    %s111 = sphi 0, %s113
    %s114 = sphi 0, %s111
    %s115 = sphi 0, %s114
    %s131 = sphi 0, %s115
  $region4: #{unet_forward.25} parent=0 // loop_header_branch
    %13 = sbr.rel (%p11) target = $region8
  $region5: #{unet_forward.25} parent=0 // loop_body
    %s15 = ssub.s32 %s10, 1
    %s16 = ssub.s32 %s10, 2
    %s23 = sadd.s32 1, %s18
    %p24 = scmp.ge.s32.totalorder %s23, 1
    %s25 = scalar_select %p24, 0, %s23
    %s26 = sadd.s32 1, %s17
    %s27 = scalar_select %p24, %s26, %s17
    %p28 = scmp.ge.s32.totalorder %s27, 2
    %s29 = scalar_select %p28, 0, %s27
    %s30 = ssub.s32 %s17, %s29
    %s31 = ssub.s32 %s18, %s25
    %s32 = sor.u32 %s30, %s31
    %p33 = scmp.eq.s32.totalorder %s32, 0
    %s35 = sadd.s32 %s34, 1
    %s36 = scalar_select %p33, %s34, %s35
    %p39 = pneg %p33
    %p40 = scmp.eq.s32.totalorder %s10, 1
    %p41 = por %p39, %p40
    %p42 = scmp.ne.s32.totalorder %s34, %s37
    %p43 = scmp.eq.s32.totalorder %s10, 0
    %p44 = por %p42, %p43
    %p45 = scmp.ne.s32.totalorder %s34, %s37
    %p46 = scmp.eq.s32.totalorder %s15, 1
    %p47 = por %p45, %p46
    %p48 = scmp.ne.s32.totalorder %s37, %s38
    %p49 = scmp.eq.s32.totalorder %s15, 0
    %p50 = por %p48, %p49
    %p51 = scmp.ne.s32.totalorder %s37, %s38
    %p52 = scmp.eq.s32.totalorder %s16, 1
    %p53 = por %p51, %p52
    %p55 = scmp.ne.s32.totalorder %s38, %s54
    %p56 = scmp.eq.s32.totalorder %s16, 0
    %p57 = por %p55, %p56
    %s59 = sadd.s32 %s58, 1
    %p62 = scmp.eq.s32.totalorder %s10, 1
    %p63 = scmp.ne.s32.totalorder %s58, %s60
    %p64 = scmp.eq.s32.totalorder %s10, 0
    %p65 = por %p63, %p64
    %p66 = scmp.ne.s32.totalorder %s58, %s60
    %p67 = scmp.eq.s32.totalorder %s15, 1
    %p68 = por %p66, %p67
    %p69 = scmp.ne.s32.totalorder %s60, %s61
    %p70 = scmp.eq.s32.totalorder %s15, 0
    %p71 = por %p69, %p70
    %p72 = scmp.ne.s32.totalorder %s60, %s61
    %p73 = scmp.eq.s32.totalorder %s16, 1
    %p74 = por %p72, %p73
    %p76 = scmp.ne.s32.totalorder %s61, %s75
    %p77 = scmp.eq.s32.totalorder %s16, 0
    %p78 = por %p76, %p77
    %s79 = ssub.s32 %s17, %s29
    %s80 = ssub.s32 %s18, %s25
    %s81 = sor.u32 %s79, %s80
    %p82 = scmp.eq.s32.totalorder %s81, 0
    %s84 = sadd.s32 %s83, 1
    %s85 = scalar_select %p82, %s83, %s84
    %p88 = pneg %p82
    %p89 = scmp.eq.s32.totalorder %s10, 1
    %p90 = por %p88, %p89
    %p91 = scmp.ne.s32.totalorder %s83, %s86
    %p92 = scmp.eq.s32.totalorder %s10, 0
    %p93 = por %p91, %p92
    %p94 = scmp.ne.s32.totalorder %s83, %s86
    %p95 = scmp.eq.s32.totalorder %s15, 1
    %p96 = por %p94, %p95
    %p97 = scmp.ne.s32.totalorder %s86, %s87
    %p98 = scmp.eq.s32.totalorder %s15, 0
    %p99 = por %p97, %p98
    %p100 = scmp.ne.s32.totalorder %s86, %s87
    %p101 = scmp.eq.s32.totalorder %s16, 1
    %p102 = por %p100, %p101
    %p104 = scmp.ne.s32.totalorder %s87, %s103
    %p105 = scmp.eq.s32.totalorder %s16, 0
    %p106 = por %p104, %p105
    %s107 = sadd.s32 %s17, %s18
    %s108 = sadd.s32 %s29, %s25
    %s109 = ssub.s32 %s107, %s108
    %p110 = scmp.eq.s32.totalorder %s109, 0
    %s112 = sadd.s32 %s111, 1
    %s113 = scalar_select %p110, %s111, %s112
    %p116 = pneg %p110
    %p117 = scmp.eq.s32.totalorder %s10, 1
    %p118 = por %p116, %p117
    %p119 = scmp.ne.s32.totalorder %s111, %s114
    %p120 = scmp.eq.s32.totalorder %s10, 0
    %p121 = por %p119, %p120
    %p122 = scmp.ne.s32.totalorder %s111, %s114
    %p123 = scmp.eq.s32.totalorder %s15, 1
    %p124 = por %p122, %p123
    %p125 = scmp.ne.s32.totalorder %s114, %s115
    %p126 = scmp.eq.s32.totalorder %s15, 0
    %p127 = por %p125, %p126
    %p128 = scmp.ne.s32.totalorder %s114, %s115
    %p129 = scmp.eq.s32.totalorder %s16, 1
    %p130 = por %p128, %p129
    %p132 = scmp.ne.s32.totalorder %s115, %s131
    %p133 = scmp.eq.s32.totalorder %s16, 0
    %p134 = por %p132, %p133
    %p135 = scmp.le.s32.totalorder 1, %s10
    %p136 = scmp.lt.s32.totalorder %s10, 3
    %p137 = pnand %p135, %p136
    %p138 = pneg %p137
    // Predicated region
    $region9: #{unet_forward.25} parent=5 // pred_check
      _
    $region10: #{unet_forward.25} parent=5 // pred_check_branch
      %140 = sbr.rel (%p137) target = $region12
    $region11: #{unet_forward.25} parent=5 // pred_region
      %s141 = ssub.s32 %s10, 1
      // Predicated region
      $region13: #{unet_forward.25} parent=11 // pred_check
        %p142 = pneg %p71
      $region14: #{unet_forward.25} parent=11 // pred_check_branch
        %144 = sbr.rel (%p142) target = $region16
      $region15: #{unet_forward.25} parent=11 // pred_region
        _
      $region16: #{unet_forward.25} parent=11 // pred_fallthru
        _
    $region12: #{unet_forward.25} parent=5 // pred_fallthru
      _
    %p145 = scmp.lt.s32.totalorder %s10, 2
    // Predicated region
    $region17: #{unet_forward.25} parent=5 // pred_check
      %p146 = pneg %p145
    $region18: #{unet_forward.25} parent=5 // pred_check_branch
      %148 = sbr.rel (%p146) target = $region20
    $region19: #{unet_forward.25} parent=5 // pred_region
      // Predicated region
      $region21: #{unet_forward.25} parent=19 // pred_check
        %p149 = pneg %p44
      $region22: #{unet_forward.25} parent=19 // pred_check_branch
        %151 = sbr.rel (%p149) target = $region24
      $region23: #{unet_forward.25} parent=19 // pred_region
        %p152 = scmp.lt.s32.totalorder %s17, 1
        %s153 = scalar_select %p152, %s17, 1
        %p154 = scmp.lt.s32.totalorder %s18, 0
        %s155 = scalar_select %p154, %s18, 0
        %s156 = smul.addr %s155, 21
        %s157 = smul.addr %s153, 21
        %s158 = sadd.s32 %s156, %s157
        %s159 = smul.addr %s158, 4
        %s160 = scalar_lea.vmem %s0, %s159
      $region24: #{unet_forward.25} parent=19 // pred_fallthru
        _
    $region20: #{unet_forward.25} parent=5 // pred_fallthru
      _
    %p161 = scmp.le.s32.totalorder 1, %s10
    %p162 = scmp.lt.s32.totalorder %s10, 3
    %p163 = pnand %p161, %p162
    %p164 = pneg %p163
    // Predicated region
    $region25: #{unet_forward.25} parent=5 // pred_check
      _
    $region26: #{unet_forward.25} parent=5 // pred_check_branch
      %166 = sbr.rel (%p163) target = $region28
    $region27: #{unet_forward.25} parent=5 // pred_region
      %s167 = ssub.s32 %s10, 1
      %p168 = scmp.lt.s32.totalorder %s19, 1
      %s169 = scalar_select %p168, %s19, 1
      %p170 = scmp.lt.s32.totalorder %s20, 0
      %s171 = scalar_select %p170, %s20, 0
      %s172 = smul.addr %s171, 21
      %s173 = smul.addr %s169, 21
      %s174 = sadd.s32 %s172, %s173
      %s175 = smul.addr %s174, 4
      %s176 = scalar_lea.vmem %s0, %s175
      %p177 = pneg %p50
      %p178 = pneg %p47
      %p179 = pneg %p71
      %p180 = pneg %p68
      %p181 = pneg %p99
      %p182 = pneg %p96
      %s183 = smul.u32 16, %s20
      %p184 = scmp.lt.s32.totalorder %s19, 1
      %s185 = scalar_select %p184, %s19, 1
      %p186 = scmp.lt.s32.totalorder %s183, 15
      %s187 = scalar_select %p186, %s183, 15
      %s188 = smul.addr %s185, 16
      %s189 = sadd.s32 %s187, %s188
      %s190 = smul.addr %s189, 4
      %s191 = scalar_lea.vmem %s2, %s190
      %p192 = pneg %p127
      %p193 = pneg %p124
      %s194 = sadd.s32 %s19, %s20
      %p195 = scmp.lt.s32.totalorder %s194, 1
      %s196 = scalar_select %p195, %s194, 1
      %s197 = smul.addr %s196, 8
      %s198 = scalar_lea.vmem %s3, %s197
      %p199 = scmp.lt.s32.totalorder %s19, 1
      %s200 = scalar_select %p199, %s19, 1
      %p201 = scmp.lt.s32.totalorder %s20, 0
      %s202 = scalar_select %p201, %s20, 0
      %s203 = smul.addr %s202, 21
      %s204 = smul.addr %s200, 21
      %s205 = sadd.s32 %s203, %s204
      %s206 = smul.addr %s205, 4
      %s207 = scalar_lea.vmem %s0, %s206
      %s208 = smul.u32 16, %s20
      %p209 = scmp.lt.s32.totalorder %s19, 1
      %s210 = scalar_select %p209, %s19, 1
      %p211 = scmp.lt.s32.totalorder %s208, 15
      %s212 = scalar_select %p211, %s208, 15
      %s213 = smul.addr %s210, 16
      %s214 = sadd.s32 %s212, %s213
      %s215 = smul.addr %s214, 4
      %s216 = scalar_lea.vmem %s2, %s215
      %s217 = smul.u32 16, %s20
      %s218 = sadd.s32 %s19, %s20
      %p219 = scmp.lt.s32.totalorder %s218, 1
      %s220 = scalar_select %p219, %s218, 1
      %s221 = smul.addr %s220, 8
      %s222 = scalar_lea.vmem %s3, %s221
      %s223 = sadd.s32 %s19, %s20
      %v225 = vld [vmem:[%s207] sm:$0xf]
      %v226 = vld [vmem:[%s207 + $0x4] sm:$0xf]
      %v227 = vld [vmem:[%s207 + $0x8] sm:$0xf]
      %v228 = vld [vmem:[%s207 + $0xc] sm:$0xf]
      %v229 = vld [vmem:[%s207 + $0x10] sm:$0xf]
      %v230 = vld [vmem:[%s207 + $0x14] sm:$0xf]
      %v231 = vld [vmem:[%s207 + $0x18] sm:$0xf]
      %v232 = vld [vmem:[%s207 + $0x1c] sm:$0xf]
      %v233 = vld [vmem:[%s207 + $0x20] sm:$0xf]
      %v234 = vld [vmem:[%s207 + $0x24] sm:$0xf]
      %v235 = vld [vmem:[%s207 + $0x28] sm:$0xf]
      %v236 = vld [vmem:[%s207 + $0x2c] sm:$0xf]
      %v237 = vld [vmem:[%s207 + $0x30] sm:$0xf]
      %v238 = vld [vmem:[%s207 + $0x34] sm:$0xf]
      %v239 = vld [vmem:[%s207 + $0x38] sm:$0xf]
      %v240 = vld [vmem:[%s207 + $0x3c] sm:$0xf]
      %v241 = vld [vmem:[%s1] sm:$0xf]
      %v242 = vld [vmem:[%s1 + $0x4] sm:$0xf]
      %v243 = vld [vmem:[%s1 + $0x8] sm:$0xf]
      %v244 = vld [vmem:[%s1 + $0xc] sm:$0xf]
      %v245 = vld [vmem:[%s1 + $0x10] sm:$0xf]
      %v246 = vld [vmem:[%s1 + $0x14] sm:$0xf]
      %v247 = vld [vmem:[%s1 + $0x18] sm:$0xf]
      %v248 = vld [vmem:[%s1 + $0x1c] sm:$0xf]
      %v249 = vld [vmem:[%s207 + $0x40] sm:$0x1]
      %s250 = scalar_lea.vmem %s1, 32
      %v251 = vld [vmem:[%s250] sm:$0xf]
      %v252 = vld [vmem:[%s250 + $0x4] sm:$0xf]
      %v253 = vld [vmem:[%s250 + $0x8] sm:$0xf]
      %v254 = vld [vmem:[%s250 + $0xc] sm:$0xf]
      %v255 = vld [vmem:[%s250 + $0x10] sm:$0xf]
      %v256 = vld [vmem:[%s250 + $0x14] sm:$0xf]
      %v257 = vld [vmem:[%s250 + $0x18] sm:$0xf]
      %v258 = vld [vmem:[%s250 + $0x1c] sm:$0xf]
      %v276 = vunpack.c.l.b16 %v225
      %v277 = vunpack.c.l.b16 %v226
      %v278 = vunpack.c.l.b16 %v227
      %v279 = vunpack.c.l.b16 %v228
      %v280 = vunpack.c.l.b16 %v229
      %v281 = vunpack.c.l.b16 %v230
      %v282 = vunpack.c.l.b16 %v231
      %v283 = vunpack.c.l.b16 %v232
      %v284 = vunpack.c.l.b16 %v233
      %v285 = vunpack.c.l.b16 %v234
      %v286 = vunpack.c.l.b16 %v235
      %v287 = vunpack.c.l.b16 %v236
      %v288 = vunpack.c.l.b16 %v237
      %v289 = vunpack.c.l.b16 %v238
      %v290 = vunpack.c.l.b16 %v239
      %v291 = vunpack.c.l.b16 %v240
      %v292 = vunpack.c.l.b16 %v249
      %v293 = vpack.c.b16 %v277, %v276
      %v294 = vpack.c.b16 %v279, %v278
      %v295 = vpack.c.b16 %v281, %v280
      %v296 = vpack.c.b16 %v283, %v282
      %v297 = vpack.c.b16 %v285, %v284
      %v298 = vpack.c.b16 %v287, %v286
      %v299 = vpack.c.b16 %v289, %v288
      %v300 = vpack.c.b16 %v291, %v290
      %v301 = vpack.c.b16 %v292, %v292
      %vm302 = vsmask.f32 7424
      %v304 = vshrl.u32 %v293, 16
      %v306 = vshll.u32 %v293, 16
      %v308 = vrot.slane %v306, 1
      %v309 = vor.u32 %v304, %v308
      %v311 = vshll.u32 %v294, 16
      %v313 = vrot.slane %v311, 1
      %v314 = vsel %vm302, %v309, %v313
      %v315 = vshrl.u32 %v294, 16
      %v317 = vor.u32 %v315, %v313
      %v319 = vshll.u32 %v295, 16
      %v321 = vrot.slane %v319, 1
      %v322 = vsel %vm302, %v317, %v321
      %v323 = vshrl.u32 %v295, 16
      %v325 = vor.u32 %v323, %v321
      %v327 = vshll.u32 %v296, 16
      %v329 = vrot.slane %v327, 1
      %v330 = vsel %vm302, %v325, %v329
      %v331 = vshrl.u32 %v296, 16
      %v333 = vor.u32 %v331, %v329
      %v335 = vshll.u32 %v297, 16
      %v337 = vrot.slane %v335, 1
      %v338 = vsel %vm302, %v333, %v337
      %v339 = vshrl.u32 %v297, 16
      %v341 = vor.u32 %v339, %v337
      %v343 = vshll.u32 %v298, 16
      %v345 = vrot.slane %v343, 1
      %v346 = vsel %vm302, %v341, %v345
      %v347 = vshrl.u32 %v298, 16
      %v349 = vor.u32 %v347, %v345
      %v351 = vshll.u32 %v299, 16
      %v353 = vrot.slane %v351, 1
      %v354 = vsel %vm302, %v349, %v353
      %v355 = vshrl.u32 %v299, 16
      %v357 = vor.u32 %v355, %v353
      %v359 = vshll.u32 %v300, 16
      %v361 = vrot.slane %v359, 1
      %v362 = vsel %vm302, %v357, %v361
      %v363 = vshrl.u32 %v300, 16
      %v365 = vor.u32 %v363, %v361
      %v367 = vshll.u32 %v301, 16
      %v369 = vrot.slane %v367, 1
      %v370 = vsel %vm302, %v365, %v369
      %v379 = vunpack.c.l.b16 %v251
      %v380 = vunpack.c.l.b16 %v252
      %v381 = vunpack.c.l.b16 %v253
      %v382 = vunpack.c.l.b16 %v254
      %v383 = vunpack.c.l.b16 %v255
      %v384 = vunpack.c.l.b16 %v256
      %v385 = vunpack.c.l.b16 %v257
      %v386 = vunpack.c.l.b16 %v258
      %v387 = vpack.c.b16 %v380, %v379
      %v388 = vpack.c.b16 %v382, %v381
      %v389 = vpack.c.b16 %v384, %v383
      %v390 = vpack.c.b16 %v386, %v385
      %vm395 = vcmask 523264
      %v397 = vsel %vm395, %v314, 0
      %v400 = vsel %vm395, %v322, 0
      %v403 = vsel %vm395, %v330, 0
      %v406 = vsel %vm395, %v338, 0
      %v409 = vsel %vm395, %v346, 0
      %v412 = vsel %vm395, %v354, 0
      %v415 = vsel %vm395, %v362, 0
      %v418 = vsel %vm395, %v370, 0
      %420 = vmatpush.bf16.msra.mxu0 0
      %421 = vmatpush.bf16.msra.mxu0 0
      %422 = vmatpush.bf16.msra.mxu0 0
      %423 = vmatpush.bf16.msra.mxu0 0
      %424 = vmatpush.bf16.msra.mxu0 %v390
      %425 = vmatpush.bf16.msra.mxu0 %v389
      %426 = vmatpush.bf16.msra.mxu0 %v388
      %427 = vmatpush.bf16.msra.mxu0 %v387
      %428 = vmatmul.bf16.gmra.mxu0 %v397
      %v429 = vpop.f32.mrf.mxu0
      %v430 = vadd.f32 0.0, %v429
      %v431 = vpop.f32.mrf.mxu0
      %v432 = vadd.f32 0.0, %v431
      %433 = vmatmul.bf16.gmra.mxu0 %v400
      %v434 = vpop.f32.mrf.mxu0
      %v435 = vadd.f32 0.0, %v434
      %v436 = vpop.f32.mrf.mxu0
      %v437 = vadd.f32 0.0, %v436
      %438 = vmatmul.bf16.gmra.mxu0 %v403
      %v439 = vpop.f32.mrf.mxu0
      %v440 = vadd.f32 0.0, %v439
      %v441 = vpop.f32.mrf.mxu0
      %v442 = vadd.f32 0.0, %v441
      %443 = vmatmul.bf16.gmra.mxu0 %v406
      %v444 = vpop.f32.mrf.mxu0
      %v445 = vadd.f32 0.0, %v444
      %v446 = vpop.f32.mrf.mxu0
      %v447 = vadd.f32 0.0, %v446
      %448 = vmatmul.bf16.gmra.mxu0 %v409
      %v449 = vpop.f32.mrf.mxu0
      %v450 = vadd.f32 0.0, %v449
      %v451 = vpop.f32.mrf.mxu0
      %v452 = vadd.f32 0.0, %v451
      %453 = vmatmul.bf16.gmra.mxu0 %v412
      %v454 = vpop.f32.mrf.mxu0
      %v455 = vadd.f32 0.0, %v454
      %v456 = vpop.f32.mrf.mxu0
      %v457 = vadd.f32 0.0, %v456
      %458 = vmatmul.bf16.gmra.mxu0 %v415
      %v459 = vpop.f32.mrf.mxu0
      %v460 = vadd.f32 0.0, %v459
      %v461 = vpop.f32.mrf.mxu0
      %v462 = vadd.f32 0.0, %v461
      %463 = vmatmul.bf16.gmra.mxu0 %v418
      %v464 = vpop.f32.mrf.mxu0
      %v465 = vadd.f32 0.0, %v464
      %v466 = vpop.f32.mrf.mxu0
      %v467 = vadd.f32 0.0, %v466
      %468 = vdwg.mxu0
      %v477 = vunpack.c.l.b16 %v241
      %v478 = vunpack.c.l.b16 %v242
      %v479 = vunpack.c.l.b16 %v243
      %v480 = vunpack.c.l.b16 %v244
      %v481 = vunpack.c.l.b16 %v245
      %v482 = vunpack.c.l.b16 %v246
      %v483 = vunpack.c.l.b16 %v247
      %v484 = vunpack.c.l.b16 %v248
      %v485 = vpack.c.b16 %v478, %v477
      %v486 = vpack.c.b16 %v480, %v479
      %v487 = vpack.c.b16 %v482, %v481
      %v488 = vpack.c.b16 %v484, %v483
      %v493 = vsel %vm395, %v293, 0
      %v495 = vsel %vm395, %v294, 0
      %v497 = vsel %vm395, %v295, 0
      %v499 = vsel %vm395, %v296, 0
      %v501 = vsel %vm395, %v297, 0
      %v503 = vsel %vm395, %v298, 0
      %v505 = vsel %vm395, %v299, 0
      %v507 = vsel %vm395, %v300, 0
      %509 = vmatpush.bf16.msra.mxu0 0
      %510 = vmatpush.bf16.msra.mxu0 0
      %511 = vmatpush.bf16.msra.mxu0 0
      %512 = vmatpush.bf16.msra.mxu0 0
      %513 = vmatpush.bf16.msra.mxu0 %v488
      %514 = vmatpush.bf16.msra.mxu0 %v487
      %515 = vmatpush.bf16.msra.mxu0 %v486
      %516 = vmatpush.bf16.msra.mxu0 %v485
      %517 = vmatmul.bf16.gmra.mxu0 %v493
      %v518 = vpop.f32.mrf.mxu0
      %v519 = vadd.f32 %v430, %v518
      %v520 = vpop.f32.mrf.mxu0
      %v521 = vadd.f32 %v432, %v520
      %522 = vmatmul.bf16.gmra.mxu0 %v495
      %v523 = vpop.f32.mrf.mxu0
      %v524 = vadd.f32 %v435, %v523
      %v525 = vpop.f32.mrf.mxu0
      %v526 = vadd.f32 %v437, %v525
      %527 = vmatmul.bf16.gmra.mxu0 %v497
      %v528 = vpop.f32.mrf.mxu0
      %v529 = vadd.f32 %v440, %v528
      %v530 = vpop.f32.mrf.mxu0
      %v531 = vadd.f32 %v442, %v530
      %532 = vmatmul.bf16.gmra.mxu0 %v499
      %v533 = vpop.f32.mrf.mxu0
      %v534 = vadd.f32 %v445, %v533
      %v535 = vpop.f32.mrf.mxu0
      %v536 = vadd.f32 %v447, %v535
      %537 = vmatmul.bf16.gmra.mxu0 %v501
      %v538 = vpop.f32.mrf.mxu0
      %v539 = vadd.f32 %v450, %v538
      %v540 = vpop.f32.mrf.mxu0
      %v541 = vadd.f32 %v452, %v540
      %542 = vmatmul.bf16.gmra.mxu0 %v503
      %v543 = vpop.f32.mrf.mxu0
      %v544 = vadd.f32 %v455, %v543
      %v545 = vpop.f32.mrf.mxu0
      %v546 = vadd.f32 %v457, %v545
      %547 = vmatmul.bf16.gmra.mxu0 %v505
      %v548 = vpop.f32.mrf.mxu0
      %v549 = vadd.f32 %v460, %v548
      %v550 = vpop.f32.mrf.mxu0
      %v551 = vadd.f32 %v462, %v550
      %552 = vmatmul.bf16.gmra.mxu0 %v507
      %v553 = vpop.f32.mrf.mxu0
      %v554 = vadd.f32 %v465, %v553
      %v555 = vpop.f32.mrf.mxu0
      %v556 = vadd.f32 %v467, %v555
      %557 = vdwg.mxu0
      %v558 = vld [vmem:[%s207] sm:$0xe]
      %s559 = scalar_lea.vmem %s1, 64
      %v560 = vld [vmem:[%s559] sm:$0xf]
      %v561 = vld [vmem:[%s559 + $0x4] sm:$0xf]
      %v562 = vld [vmem:[%s559 + $0x8] sm:$0xf]
      %v563 = vld [vmem:[%s559 + $0xc] sm:$0xf]
      %v564 = vld [vmem:[%s559 + $0x10] sm:$0xf]
      %v565 = vld [vmem:[%s559 + $0x14] sm:$0xf]
      %v566 = vld [vmem:[%s559 + $0x18] sm:$0xf]
      %v567 = vld [vmem:[%s559 + $0x1c] sm:$0xf]
      %v569 = vunpack.c.l.b16 %v558
      %v570 = vpack.c.b16 %v277, %v569
      %vm571 = vcmask 1046528
      %v572 = vrot.slane %v570, 1
      %v573 = vrot.slane %v294, 1
      %v574 = vsel %vm571, %v572, %v573
      %v575 = vrot.slane %v295, 1
      %v576 = vsel %vm571, %v573, %v575
      %v577 = vrot.slane %v296, 1
      %v578 = vsel %vm571, %v575, %v577
      %v579 = vrot.slane %v297, 1
      %v580 = vsel %vm571, %v577, %v579
      %v581 = vrot.slane %v298, 1
      %v582 = vsel %vm571, %v579, %v581
      %v583 = vrot.slane %v299, 1
      %v584 = vsel %vm571, %v581, %v583
      %v585 = vrot.slane %v300, 1
      %v586 = vsel %vm571, %v583, %v585
      %v587 = vrot.slane %v301, 1
      %v588 = vsel %vm571, %v585, %v587
      %v597 = vunpack.c.l.b16 %v560
      %v598 = vunpack.c.l.b16 %v561
      %v599 = vunpack.c.l.b16 %v562
      %v600 = vunpack.c.l.b16 %v563
      %v601 = vunpack.c.l.b16 %v564
      %v602 = vunpack.c.l.b16 %v565
      %v603 = vunpack.c.l.b16 %v566
      %v604 = vunpack.c.l.b16 %v567
      %v605 = vpack.c.b16 %v598, %v597
      %v606 = vpack.c.b16 %v600, %v599
      %v607 = vpack.c.b16 %v602, %v601
      %v608 = vpack.c.b16 %v604, %v603
      %v614 = vsel %vm395, %v574, 0
      %v617 = vsel %vm395, %v576, 0
      %v620 = vsel %vm395, %v578, 0
      %v623 = vsel %vm395, %v580, 0
      %v626 = vsel %vm395, %v582, 0
      %v629 = vsel %vm395, %v584, 0
      %v632 = vsel %vm395, %v586, 0
      %v635 = vsel %vm395, %v588, 0
      %637 = vmatpush.bf16.msra.mxu0 0
      %638 = vmatpush.bf16.msra.mxu0 0
      %639 = vmatpush.bf16.msra.mxu0 0
      %640 = vmatpush.bf16.msra.mxu0 0
      %641 = vmatpush.bf16.msra.mxu0 %v608
      %642 = vmatpush.bf16.msra.mxu0 %v607
      %643 = vmatpush.bf16.msra.mxu0 %v606
      %644 = vmatpush.bf16.msra.mxu0 %v605
      %645 = vmatmul.bf16.gmra.mxu0 %v614
      %v646 = vpop.f32.mrf.mxu0
      %v647 = vadd.f32 0.0, %v646
      %v648 = vpop.f32.mrf.mxu0
      %v649 = vadd.f32 0.0, %v648
      %650 = vmatmul.bf16.gmra.mxu0 %v617
      %v651 = vpop.f32.mrf.mxu0
      %v652 = vadd.f32 0.0, %v651
      %v653 = vpop.f32.mrf.mxu0
      %v654 = vadd.f32 0.0, %v653
      %655 = vmatmul.bf16.gmra.mxu0 %v620
      %v656 = vpop.f32.mrf.mxu0
      %v657 = vadd.f32 0.0, %v656
      %v658 = vpop.f32.mrf.mxu0
      %v659 = vadd.f32 0.0, %v658
      %660 = vmatmul.bf16.gmra.mxu0 %v623
      %v661 = vpop.f32.mrf.mxu0
      %v662 = vadd.f32 0.0, %v661
      %v663 = vpop.f32.mrf.mxu0
      %v664 = vadd.f32 0.0, %v663
      %665 = vmatmul.bf16.gmra.mxu0 %v626
      %v666 = vpop.f32.mrf.mxu0
      %v667 = vadd.f32 0.0, %v666
      %v668 = vpop.f32.mrf.mxu0
      %v669 = vadd.f32 0.0, %v668
      %670 = vmatmul.bf16.gmra.mxu0 %v629
      %v671 = vpop.f32.mrf.mxu0
      %v672 = vadd.f32 0.0, %v671
      %v673 = vpop.f32.mrf.mxu0
      %v674 = vadd.f32 0.0, %v673
      %675 = vmatmul.bf16.gmra.mxu0 %v632
      %v676 = vpop.f32.mrf.mxu0
      %v677 = vadd.f32 0.0, %v676
      %v678 = vpop.f32.mrf.mxu0
      %v679 = vadd.f32 0.0, %v678
      %680 = vmatmul.bf16.gmra.mxu0 %v635
      %v681 = vpop.f32.mrf.mxu0
      %v682 = vadd.f32 0.0, %v681
      %v683 = vpop.f32.mrf.mxu0
      %v684 = vadd.f32 0.0, %v683
      %685 = vdwg.mxu0
      %v686 = vadd.f32 %v519, %v647
      %v687 = vadd.f32 %v521, %v649
      %v688 = vadd.f32 %v524, %v652
      %v689 = vadd.f32 %v526, %v654
      %v690 = vadd.f32 %v529, %v657
      %v691 = vadd.f32 %v531, %v659
      %v692 = vadd.f32 %v534, %v662
      %v693 = vadd.f32 %v536, %v664
      %v694 = vadd.f32 %v539, %v667
      %v695 = vadd.f32 %v541, %v669
      %v696 = vadd.f32 %v544, %v672
      %v697 = vadd.f32 %v546, %v674
      %v698 = vadd.f32 %v549, %v677
      %v699 = vadd.f32 %v551, %v679
      %v700 = vadd.f32 %v554, %v682
      %v701 = vadd.f32 %v556, %v684
      %v702 = vld [vmem:[%s207 + $0x8] sm:$0xf]
      %v703 = vld [vmem:[%s207 + $0xc] sm:$0xf]
      %v704 = vld [vmem:[%s207 + $0x10] sm:$0xf]
      %v705 = vld [vmem:[%s207 + $0x14] sm:$0xf]
      %v706 = vld [vmem:[%s207 + $0x18] sm:$0xf]
      %v707 = vld [vmem:[%s207 + $0x1c] sm:$0xf]
      %v708 = vld [vmem:[%s207 + $0x20] sm:$0xf]
      %v709 = vld [vmem:[%s207 + $0x24] sm:$0xf]
      %v710 = vld [vmem:[%s207 + $0x28] sm:$0xf]
      %v711 = vld [vmem:[%s207 + $0x2c] sm:$0xf]
      %v712 = vld [vmem:[%s207 + $0x30] sm:$0xf]
      %v713 = vld [vmem:[%s207 + $0x34] sm:$0xf]
      %v714 = vld [vmem:[%s207 + $0x38] sm:$0xf]
      %v715 = vld [vmem:[%s207 + $0x3c] sm:$0xf]
      %v716 = vld [vmem:[%s207 + $0x40] sm:$0xf]
      %v717 = vld [vmem:[%s207 + $0x44] sm:$0xf]
      %s718 = scalar_lea.vmem %s1, 96
      %v719 = vld [vmem:[%s718] sm:$0xf]
      %v720 = vld [vmem:[%s718 + $0x4] sm:$0xf]
      %v721 = vld [vmem:[%s718 + $0x8] sm:$0xf]
      %v722 = vld [vmem:[%s718 + $0xc] sm:$0xf]
      %v723 = vld [vmem:[%s718 + $0x10] sm:$0xf]
      %v724 = vld [vmem:[%s718 + $0x14] sm:$0xf]
      %v725 = vld [vmem:[%s718 + $0x18] sm:$0xf]
      %v726 = vld [vmem:[%s718 + $0x1c] sm:$0xf]
      %v743 = vunpack.c.l.b16 %v702
      %v744 = vunpack.c.l.b16 %v703
      %v745 = vunpack.c.l.b16 %v704
      %v746 = vunpack.c.l.b16 %v705
      %v747 = vunpack.c.l.b16 %v706
      %v748 = vunpack.c.l.b16 %v707
      %v749 = vunpack.c.l.b16 %v708
      %v750 = vunpack.c.l.b16 %v709
      %v751 = vunpack.c.l.b16 %v710
      %v752 = vunpack.c.l.b16 %v711
      %v753 = vunpack.c.l.b16 %v712
      %v754 = vunpack.c.l.b16 %v713
      %v755 = vunpack.c.l.b16 %v714
      %v756 = vunpack.c.l.b16 %v715
      %v757 = vunpack.c.l.b16 %v716
      %v758 = vunpack.c.l.b16 %v717
      %v759 = vpack.c.b16 %v744, %v743
      %v760 = vpack.c.b16 %v746, %v745
      %v761 = vpack.c.b16 %v748, %v747
      %v762 = vpack.c.b16 %v750, %v749
      %v763 = vpack.c.b16 %v752, %v751
      %v764 = vpack.c.b16 %v754, %v753
      %v765 = vpack.c.b16 %v756, %v755
      %v766 = vpack.c.b16 %v758, %v757
      %v775 = vunpack.c.l.b16 %v719
      %v776 = vunpack.c.l.b16 %v720
      %v777 = vunpack.c.l.b16 %v721
      %v778 = vunpack.c.l.b16 %v722
      %v779 = vunpack.c.l.b16 %v723
      %v780 = vunpack.c.l.b16 %v724
      %v781 = vunpack.c.l.b16 %v725
      %v782 = vunpack.c.l.b16 %v726
      %v783 = vpack.c.b16 %v776, %v775
      %v784 = vpack.c.b16 %v778, %v777
      %v785 = vpack.c.b16 %v780, %v779
      %v786 = vpack.c.b16 %v782, %v781
      %v792 = vsel %vm395, %v759, 0
      %v795 = vsel %vm395, %v760, 0
      %v798 = vsel %vm395, %v761, 0
      %v801 = vsel %vm395, %v762, 0
      %v804 = vsel %vm395, %v763, 0
      %v807 = vsel %vm395, %v764, 0
      %v810 = vsel %vm395, %v765, 0
      %v813 = vsel %vm395, %v766, 0
      %815 = vmatpush.bf16.msra.mxu0 0
      %816 = vmatpush.bf16.msra.mxu0 0
      %817 = vmatpush.bf16.msra.mxu0 0
      %818 = vmatpush.bf16.msra.mxu0 0
      %819 = vmatpush.bf16.msra.mxu0 %v786
      %820 = vmatpush.bf16.msra.mxu0 %v785
      %821 = vmatpush.bf16.msra.mxu0 %v784
      %822 = vmatpush.bf16.msra.mxu0 %v783
      %823 = vmatmul.bf16.gmra.mxu0 %v792
      %v824 = vpop.f32.mrf.mxu0
      %v825 = vadd.f32 0.0, %v824
      %v826 = vpop.f32.mrf.mxu0
      %v827 = vadd.f32 0.0, %v826
      %828 = vmatmul.bf16.gmra.mxu0 %v795
      %v829 = vpop.f32.mrf.mxu0
      %v830 = vadd.f32 0.0, %v829
      %v831 = vpop.f32.mrf.mxu0
      %v832 = vadd.f32 0.0, %v831
      %833 = vmatmul.bf16.gmra.mxu0 %v798
      %v834 = vpop.f32.mrf.mxu0
      %v835 = vadd.f32 0.0, %v834
      %v836 = vpop.f32.mrf.mxu0
      %v837 = vadd.f32 0.0, %v836
      %838 = vmatmul.bf16.gmra.mxu0 %v801
      %v839 = vpop.f32.mrf.mxu0
      %v840 = vadd.f32 0.0, %v839
      %v841 = vpop.f32.mrf.mxu0
      %v842 = vadd.f32 0.0, %v841
      %843 = vmatmul.bf16.gmra.mxu0 %v804
      %v844 = vpop.f32.mrf.mxu0
      %v845 = vadd.f32 0.0, %v844
      %v846 = vpop.f32.mrf.mxu0
      %v847 = vadd.f32 0.0, %v846
      %848 = vmatmul.bf16.gmra.mxu0 %v807
      %v849 = vpop.f32.mrf.mxu0
      %v850 = vadd.f32 0.0, %v849
      %v851 = vpop.f32.mrf.mxu0
      %v852 = vadd.f32 0.0, %v851
      %853 = vmatmul.bf16.gmra.mxu0 %v810
      %v854 = vpop.f32.mrf.mxu0
      %v855 = vadd.f32 0.0, %v854
      %v856 = vpop.f32.mrf.mxu0
      %v857 = vadd.f32 0.0, %v856
      %858 = vmatmul.bf16.gmra.mxu0 %v813
      %v859 = vpop.f32.mrf.mxu0
      %v860 = vadd.f32 0.0, %v859
      %v861 = vpop.f32.mrf.mxu0
      %v862 = vadd.f32 0.0, %v861
      %863 = vdwg.mxu0
      %v864 = vadd.f32 %v686, %v825
      %v865 = vadd.f32 %v687, %v827
      %v866 = vadd.f32 %v688, %v830
      %v867 = vadd.f32 %v689, %v832
      %v868 = vadd.f32 %v690, %v835
      %v869 = vadd.f32 %v691, %v837
      %v870 = vadd.f32 %v692, %v840
      %v871 = vadd.f32 %v693, %v842
      %v872 = vadd.f32 %v694, %v845
      %v873 = vadd.f32 %v695, %v847
      %v874 = vadd.f32 %v696, %v850
      %v875 = vadd.f32 %v697, %v852
      %v876 = vadd.f32 %v698, %v855
      %v877 = vadd.f32 %v699, %v857
      %v878 = vadd.f32 %v700, %v860
      %v879 = vadd.f32 %v701, %v862
      %v880 = vld [vmem:[%s207 + $0x8] sm:$0xf]
      %v881 = vld [vmem:[%s207 + $0xc] sm:$0xf]
      %v882 = vld [vmem:[%s207 + $0x10] sm:$0xf]
      %v883 = vld [vmem:[%s207 + $0x14] sm:$0xf]
      %v884 = vld [vmem:[%s207 + $0x18] sm:$0xf]
      %v885 = vld [vmem:[%s207 + $0x1c] sm:$0xf]
      %v886 = vld [vmem:[%s207 + $0x20] sm:$0xf]
      %v887 = vld [vmem:[%s207 + $0x24] sm:$0xf]
      %v888 = vld [vmem:[%s207 + $0x28] sm:$0xf]
      %v889 = vld [vmem:[%s207 + $0x2c] sm:$0xf]
      %v890 = vld [vmem:[%s207 + $0x30] sm:$0xf]
      %v891 = vld [vmem:[%s207 + $0x34] sm:$0xf]
      %v892 = vld [vmem:[%s207 + $0x38] sm:$0xf]
      %v893 = vld [vmem:[%s207 + $0x3c] sm:$0xf]
      %v894 = vld [vmem:[%s207 + $0x40] sm:$0xf]
      %v895 = vld [vmem:[%s207 + $0x44] sm:$0xf]
      %v896 = vld [vmem:[%s207 + $0x48] sm:$0x1]
      %s897 = scalar_lea.vmem %s1, 128
      %v898 = vld [vmem:[%s897] sm:$0xf]
      %v899 = vld [vmem:[%s897 + $0x4] sm:$0xf]
      %v900 = vld [vmem:[%s897 + $0x8] sm:$0xf]
      %v901 = vld [vmem:[%s897 + $0xc] sm:$0xf]
      %v902 = vld [vmem:[%s897 + $0x10] sm:$0xf]
      %v903 = vld [vmem:[%s897 + $0x14] sm:$0xf]
      %v904 = vld [vmem:[%s897 + $0x18] sm:$0xf]
      %v905 = vld [vmem:[%s897 + $0x1c] sm:$0xf]
      %v923 = vunpack.c.l.b16 %v880
      %v924 = vunpack.c.l.b16 %v881
      %v925 = vunpack.c.l.b16 %v882
      %v926 = vunpack.c.l.b16 %v883
      %v927 = vunpack.c.l.b16 %v884
      %v928 = vunpack.c.l.b16 %v885
      %v929 = vunpack.c.l.b16 %v886
      %v930 = vunpack.c.l.b16 %v887
      %v931 = vunpack.c.l.b16 %v888
      %v932 = vunpack.c.l.b16 %v889
      %v933 = vunpack.c.l.b16 %v890
      %v934 = vunpack.c.l.b16 %v891
      %v935 = vunpack.c.l.b16 %v892
      %v936 = vunpack.c.l.b16 %v893
      %v937 = vunpack.c.l.b16 %v894
      %v938 = vunpack.c.l.b16 %v895
      %v939 = vunpack.c.l.b16 %v896
      %v940 = vpack.c.b16 %v924, %v923
      %v941 = vpack.c.b16 %v926, %v925
      %v942 = vpack.c.b16 %v928, %v927
      %v943 = vpack.c.b16 %v930, %v929
      %v944 = vpack.c.b16 %v932, %v931
      %v945 = vpack.c.b16 %v934, %v933
      %v946 = vpack.c.b16 %v936, %v935
      %v947 = vpack.c.b16 %v938, %v937
      %v948 = vpack.c.b16 %v939, %v939
      %v950 = vshrl.u32 %v940, 16
      %v952 = vshll.u32 %v940, 16
      %v954 = vrot.slane %v952, 1
      %v955 = vor.u32 %v950, %v954
      %v957 = vshll.u32 %v941, 16
      %v959 = vrot.slane %v957, 1
      %v960 = vsel %vm302, %v955, %v959
      %v961 = vshrl.u32 %v941, 16
      %v963 = vor.u32 %v961, %v959
      %v965 = vshll.u32 %v942, 16
      %v967 = vrot.slane %v965, 1
      %v968 = vsel %vm302, %v963, %v967
      %v969 = vshrl.u32 %v942, 16
      %v971 = vor.u32 %v969, %v967
      %v973 = vshll.u32 %v943, 16
      %v975 = vrot.slane %v973, 1
      %v976 = vsel %vm302, %v971, %v975
      %v977 = vshrl.u32 %v943, 16
      %v979 = vor.u32 %v977, %v975
      %v981 = vshll.u32 %v944, 16
      %v983 = vrot.slane %v981, 1
      %v984 = vsel %vm302, %v979, %v983
      %v985 = vshrl.u32 %v944, 16
      %v987 = vor.u32 %v985, %v983
      %v989 = vshll.u32 %v945, 16
      %v991 = vrot.slane %v989, 1
      %v992 = vsel %vm302, %v987, %v991
      %v993 = vshrl.u32 %v945, 16
      %v995 = vor.u32 %v993, %v991
      %v997 = vshll.u32 %v946, 16
      %v999 = vrot.slane %v997, 1
      %v1000 = vsel %vm302, %v995, %v999
      %v1001 = vshrl.u32 %v946, 16
      %v1003 = vor.u32 %v1001, %v999
      %v1005 = vshll.u32 %v947, 16
      %v1007 = vrot.slane %v1005, 1
      %v1008 = vsel %vm302, %v1003, %v1007
      %v1009 = vshrl.u32 %v947, 16
      %v1011 = vor.u32 %v1009, %v1007
      %v1013 = vshll.u32 %v948, 16
      %v1015 = vrot.slane %v1013, 1
      %v1016 = vsel %vm302, %v1011, %v1015
      %v1025 = vunpack.c.l.b16 %v898
      %v1026 = vunpack.c.l.b16 %v899
      %v1027 = vunpack.c.l.b16 %v900
      %v1028 = vunpack.c.l.b16 %v901
      %v1029 = vunpack.c.l.b16 %v902
      %v1030 = vunpack.c.l.b16 %v903
      %v1031 = vunpack.c.l.b16 %v904
      %v1032 = vunpack.c.l.b16 %v905
      %v1033 = vpack.c.b16 %v1026, %v1025
      %v1034 = vpack.c.b16 %v1028, %v1027
      %v1035 = vpack.c.b16 %v1030, %v1029
      %v1036 = vpack.c.b16 %v1032, %v1031
      %v1042 = vsel %vm395, %v960, 0
      %v1045 = vsel %vm395, %v968, 0
      %v1048 = vsel %vm395, %v976, 0
      %v1051 = vsel %vm395, %v984, 0
      %v1054 = vsel %vm395, %v992, 0
      %v1057 = vsel %vm395, %v1000, 0
      %v1060 = vsel %vm395, %v1008, 0
      %v1063 = vsel %vm395, %v1016, 0
      %1065 = vmatpush.bf16.msra.mxu0 0
      %1066 = vmatpush.bf16.msra.mxu0 0
      %1067 = vmatpush.bf16.msra.mxu0 0
      %1068 = vmatpush.bf16.msra.mxu0 0
      %1069 = vmatpush.bf16.msra.mxu0 %v1036
      %1070 = vmatpush.bf16.msra.mxu0 %v1035
      %1071 = vmatpush.bf16.msra.mxu0 %v1034
      %1072 = vmatpush.bf16.msra.mxu0 %v1033
      %1073 = vmatmul.bf16.gmra.mxu0 %v1042
      %v1074 = vpop.f32.mrf.mxu0
      %v1075 = vadd.f32 0.0, %v1074
      %v1076 = vpop.f32.mrf.mxu0
      %v1077 = vadd.f32 0.0, %v1076
      %1078 = vmatmul.bf16.gmra.mxu0 %v1045
      %v1079 = vpop.f32.mrf.mxu0
      %v1080 = vadd.f32 0.0, %v1079
      %v1081 = vpop.f32.mrf.mxu0
      %v1082 = vadd.f32 0.0, %v1081
      %1083 = vmatmul.bf16.gmra.mxu0 %v1048
      %v1084 = vpop.f32.mrf.mxu0
      %v1085 = vadd.f32 0.0, %v1084
      %v1086 = vpop.f32.mrf.mxu0
      %v1087 = vadd.f32 0.0, %v1086
      %1088 = vmatmul.bf16.gmra.mxu0 %v1051
      %v1089 = vpop.f32.mrf.mxu0
      %v1090 = vadd.f32 0.0, %v1089
      %v1091 = vpop.f32.mrf.mxu0
      %v1092 = vadd.f32 0.0, %v1091
      %1093 = vmatmul.bf16.gmra.mxu0 %v1054
      %v1094 = vpop.f32.mrf.mxu0
      %v1095 = vadd.f32 0.0, %v1094
      %v1096 = vpop.f32.mrf.mxu0
      %v1097 = vadd.f32 0.0, %v1096
      %1098 = vmatmul.bf16.gmra.mxu0 %v1057
      %v1099 = vpop.f32.mrf.mxu0
      %v1100 = vadd.f32 0.0, %v1099
      %v1101 = vpop.f32.mrf.mxu0
      %v1102 = vadd.f32 0.0, %v1101
      %1103 = vmatmul.bf16.gmra.mxu0 %v1060
      %v1104 = vpop.f32.mrf.mxu0
      %v1105 = vadd.f32 0.0, %v1104
      %v1106 = vpop.f32.mrf.mxu0
      %v1107 = vadd.f32 0.0, %v1106
      %1108 = vmatmul.bf16.gmra.mxu0 %v1063
      %v1109 = vpop.f32.mrf.mxu0
      %v1110 = vadd.f32 0.0, %v1109
      %v1111 = vpop.f32.mrf.mxu0
      %v1112 = vadd.f32 0.0, %v1111
      %1113 = vdwg.mxu0
      %v1114 = vadd.f32 %v864, %v1075
      %v1115 = vadd.f32 %v865, %v1077
      %v1116 = vadd.f32 %v866, %v1080
      %v1117 = vadd.f32 %v867, %v1082
      %v1118 = vadd.f32 %v868, %v1085
      %v1119 = vadd.f32 %v869, %v1087
      %v1120 = vadd.f32 %v870, %v1090
      %v1121 = vadd.f32 %v871, %v1092
      %v1122 = vadd.f32 %v872, %v1095
      %v1123 = vadd.f32 %v873, %v1097
      %v1124 = vadd.f32 %v874, %v1100
      %v1125 = vadd.f32 %v875, %v1102
      %v1126 = vadd.f32 %v876, %v1105
      %v1127 = vadd.f32 %v877, %v1107
      %v1128 = vadd.f32 %v878, %v1110
      %v1129 = vadd.f32 %v879, %v1112
      %v1130 = vld [vmem:[%s207 + $0x8] sm:$0xe]
      %s1131 = scalar_lea.vmem %s1, 160
      %v1132 = vld [vmem:[%s1131] sm:$0xf]
      %v1133 = vld [vmem:[%s1131 + $0x4] sm:$0xf]
      %v1134 = vld [vmem:[%s1131 + $0x8] sm:$0xf]
      %v1135 = vld [vmem:[%s1131 + $0xc] sm:$0xf]
      %v1136 = vld [vmem:[%s1131 + $0x10] sm:$0xf]
      %v1137 = vld [vmem:[%s1131 + $0x14] sm:$0xf]
      %v1138 = vld [vmem:[%s1131 + $0x18] sm:$0xf]
      %v1139 = vld [vmem:[%s1131 + $0x1c] sm:$0xf]
      %v1141 = vunpack.c.l.b16 %v1130
      %v1142 = vpack.c.b16 %v924, %v1141
      %v1143 = vrot.slane %v1142, 1
      %v1144 = vrot.slane %v941, 1
      %v1145 = vsel %vm571, %v1143, %v1144
      %v1146 = vrot.slane %v942, 1
      %v1147 = vsel %vm571, %v1144, %v1146
      %v1148 = vrot.slane %v943, 1
      %v1149 = vsel %vm571, %v1146, %v1148
      %v1150 = vrot.slane %v944, 1
      %v1151 = vsel %vm571, %v1148, %v1150
      %v1152 = vrot.slane %v945, 1
      %v1153 = vsel %vm571, %v1150, %v1152
      %v1154 = vrot.slane %v946, 1
      %v1155 = vsel %vm571, %v1152, %v1154
      %v1156 = vrot.slane %v947, 1
      %v1157 = vsel %vm571, %v1154, %v1156
      %v1158 = vrot.slane %v948, 1
      %v1159 = vsel %vm571, %v1156, %v1158
      %v1168 = vunpack.c.l.b16 %v1132
      %v1169 = vunpack.c.l.b16 %v1133
      %v1170 = vunpack.c.l.b16 %v1134
      %v1171 = vunpack.c.l.b16 %v1135
      %v1172 = vunpack.c.l.b16 %v1136
      %v1173 = vunpack.c.l.b16 %v1137
      %v1174 = vunpack.c.l.b16 %v1138
      %v1175 = vunpack.c.l.b16 %v1139
      %v1176 = vpack.c.b16 %v1169, %v1168
      %v1177 = vpack.c.b16 %v1171, %v1170
      %v1178 = vpack.c.b16 %v1173, %v1172
      %v1179 = vpack.c.b16 %v1175, %v1174
      %v1185 = vsel %vm395, %v1145, 0
      %v1188 = vsel %vm395, %v1147, 0
      %v1191 = vsel %vm395, %v1149, 0
      %v1194 = vsel %vm395, %v1151, 0
      %v1197 = vsel %vm395, %v1153, 0
      %v1200 = vsel %vm395, %v1155, 0
      %v1203 = vsel %vm395, %v1157, 0
      %v1206 = vsel %vm395, %v1159, 0
      %1208 = vmatpush.bf16.msra.mxu0 0
      %1209 = vmatpush.bf16.msra.mxu0 0
      %1210 = vmatpush.bf16.msra.mxu0 0
      %1211 = vmatpush.bf16.msra.mxu0 0
      %1212 = vmatpush.bf16.msra.mxu0 %v1179
      %1213 = vmatpush.bf16.msra.mxu0 %v1178
      %1214 = vmatpush.bf16.msra.mxu0 %v1177
      %1215 = vmatpush.bf16.msra.mxu0 %v1176
      %1216 = vmatmul.bf16.gmra.mxu0 %v1185
      %v1217 = vpop.f32.mrf.mxu0
      %v1218 = vadd.f32 0.0, %v1217
      %v1219 = vpop.f32.mrf.mxu0
      %v1220 = vadd.f32 0.0, %v1219
      %1221 = vmatmul.bf16.gmra.mxu0 %v1188
      %v1222 = vpop.f32.mrf.mxu0
      %v1223 = vadd.f32 0.0, %v1222
      %v1224 = vpop.f32.mrf.mxu0
      %v1225 = vadd.f32 0.0, %v1224
      %1226 = vmatmul.bf16.gmra.mxu0 %v1191
      %v1227 = vpop.f32.mrf.mxu0
      %v1228 = vadd.f32 0.0, %v1227
      %v1229 = vpop.f32.mrf.mxu0
      %v1230 = vadd.f32 0.0, %v1229
      %1231 = vmatmul.bf16.gmra.mxu0 %v1194
      %v1232 = vpop.f32.mrf.mxu0
      %v1233 = vadd.f32 0.0, %v1232
      %v1234 = vpop.f32.mrf.mxu0
      %v1235 = vadd.f32 0.0, %v1234
      %1236 = vmatmul.bf16.gmra.mxu0 %v1197
      %v1237 = vpop.f32.mrf.mxu0
      %v1238 = vadd.f32 0.0, %v1237
      %v1239 = vpop.f32.mrf.mxu0
      %v1240 = vadd.f32 0.0, %v1239
      %1241 = vmatmul.bf16.gmra.mxu0 %v1200
      %v1242 = vpop.f32.mrf.mxu0
      %v1243 = vadd.f32 0.0, %v1242
      %v1244 = vpop.f32.mrf.mxu0
      %v1245 = vadd.f32 0.0, %v1244
      %1246 = vmatmul.bf16.gmra.mxu0 %v1203
      %v1247 = vpop.f32.mrf.mxu0
      %v1248 = vadd.f32 0.0, %v1247
      %v1249 = vpop.f32.mrf.mxu0
      %v1250 = vadd.f32 0.0, %v1249
      %1251 = vmatmul.bf16.gmra.mxu0 %v1206
      %v1252 = vpop.f32.mrf.mxu0
      %v1253 = vadd.f32 0.0, %v1252
      %v1254 = vpop.f32.mrf.mxu0
      %v1255 = vadd.f32 0.0, %v1254
      %1256 = vdwg.mxu0
      %v1257 = vadd.f32 %v1114, %v1218
      %v1258 = vadd.f32 %v1115, %v1220
      %v1259 = vadd.f32 %v1116, %v1223
      %v1260 = vadd.f32 %v1117, %v1225
      %v1261 = vadd.f32 %v1118, %v1228
      %v1262 = vadd.f32 %v1119, %v1230
      %v1263 = vadd.f32 %v1120, %v1233
      %v1264 = vadd.f32 %v1121, %v1235
      %v1265 = vadd.f32 %v1122, %v1238
      %v1266 = vadd.f32 %v1123, %v1240
      %v1267 = vadd.f32 %v1124, %v1243
      %v1268 = vadd.f32 %v1125, %v1245
      %v1269 = vadd.f32 %v1126, %v1248
      %v1270 = vadd.f32 %v1127, %v1250
      %v1271 = vadd.f32 %v1128, %v1253
      %v1272 = vadd.f32 %v1129, %v1255
      %v1273 = vld [vmem:[%s207 + $0x10] sm:$0xf]
      %v1274 = vld [vmem:[%s207 + $0x14] sm:$0xf]
      %v1275 = vld [vmem:[%s207 + $0x18] sm:$0xf]
      %v1276 = vld [vmem:[%s207 + $0x1c] sm:$0xf]
      %v1277 = vld [vmem:[%s207 + $0x20] sm:$0xf]
      %v1278 = vld [vmem:[%s207 + $0x24] sm:$0xf]
      %v1279 = vld [vmem:[%s207 + $0x28] sm:$0xf]
      %v1280 = vld [vmem:[%s207 + $0x2c] sm:$0xf]
      %v1281 = vld [vmem:[%s207 + $0x30] sm:$0xf]
      %v1282 = vld [vmem:[%s207 + $0x34] sm:$0xf]
      %v1283 = vld [vmem:[%s207 + $0x38] sm:$0xf]
      %v1284 = vld [vmem:[%s207 + $0x3c] sm:$0xf]
      %v1285 = vld [vmem:[%s207 + $0x40] sm:$0xf]
      %v1286 = vld [vmem:[%s207 + $0x44] sm:$0xf]
      %v1287 = vld [vmem:[%s207 + $0x48] sm:$0xf]
      %v1288 = vld [vmem:[%s207 + $0x4c] sm:$0xf]
      %s1289 = scalar_lea.vmem %s1, 192
      %v1290 = vld [vmem:[%s1289] sm:$0xf]
      %v1291 = vld [vmem:[%s1289 + $0x4] sm:$0xf]
      %v1292 = vld [vmem:[%s1289 + $0x8] sm:$0xf]
      %v1293 = vld [vmem:[%s1289 + $0xc] sm:$0xf]
      %v1294 = vld [vmem:[%s1289 + $0x10] sm:$0xf]
      %v1295 = vld [vmem:[%s1289 + $0x14] sm:$0xf]
      %v1296 = vld [vmem:[%s1289 + $0x18] sm:$0xf]
      %v1297 = vld [vmem:[%s1289 + $0x1c] sm:$0xf]
      %v1314 = vunpack.c.l.b16 %v1273
      %v1315 = vunpack.c.l.b16 %v1274
      %v1316 = vunpack.c.l.b16 %v1275
      %v1317 = vunpack.c.l.b16 %v1276
      %v1318 = vunpack.c.l.b16 %v1277
      %v1319 = vunpack.c.l.b16 %v1278
      %v1320 = vunpack.c.l.b16 %v1279
      %v1321 = vunpack.c.l.b16 %v1280
      %v1322 = vunpack.c.l.b16 %v1281
      %v1323 = vunpack.c.l.b16 %v1282
      %v1324 = vunpack.c.l.b16 %v1283
      %v1325 = vunpack.c.l.b16 %v1284
      %v1326 = vunpack.c.l.b16 %v1285
      %v1327 = vunpack.c.l.b16 %v1286
      %v1328 = vunpack.c.l.b16 %v1287
      %v1329 = vunpack.c.l.b16 %v1288
      %v1330 = vpack.c.b16 %v1315, %v1314
      %v1331 = vpack.c.b16 %v1317, %v1316
      %v1332 = vpack.c.b16 %v1319, %v1318
      %v1333 = vpack.c.b16 %v1321, %v1320
      %v1334 = vpack.c.b16 %v1323, %v1322
      %v1335 = vpack.c.b16 %v1325, %v1324
      %v1336 = vpack.c.b16 %v1327, %v1326
      %v1337 = vpack.c.b16 %v1329, %v1328
      %v1346 = vunpack.c.l.b16 %v1290
      %v1347 = vunpack.c.l.b16 %v1291
      %v1348 = vunpack.c.l.b16 %v1292
      %v1349 = vunpack.c.l.b16 %v1293
      %v1350 = vunpack.c.l.b16 %v1294
      %v1351 = vunpack.c.l.b16 %v1295
      %v1352 = vunpack.c.l.b16 %v1296
      %v1353 = vunpack.c.l.b16 %v1297
      %v1354 = vpack.c.b16 %v1347, %v1346
      %v1355 = vpack.c.b16 %v1349, %v1348
      %v1356 = vpack.c.b16 %v1351, %v1350
      %v1357 = vpack.c.b16 %v1353, %v1352
      %v1363 = vsel %vm395, %v1330, 0
      %v1366 = vsel %vm395, %v1331, 0
      %v1369 = vsel %vm395, %v1332, 0
      %v1372 = vsel %vm395, %v1333, 0
      %v1375 = vsel %vm395, %v1334, 0
      %v1378 = vsel %vm395, %v1335, 0
      %v1381 = vsel %vm395, %v1336, 0
      %v1384 = vsel %vm395, %v1337, 0
      %1386 = vmatpush.bf16.msra.mxu0 0
      %1387 = vmatpush.bf16.msra.mxu0 0
      %1388 = vmatpush.bf16.msra.mxu0 0
      %1389 = vmatpush.bf16.msra.mxu0 0
      %1390 = vmatpush.bf16.msra.mxu0 %v1357
      %1391 = vmatpush.bf16.msra.mxu0 %v1356
      %1392 = vmatpush.bf16.msra.mxu0 %v1355
      %1393 = vmatpush.bf16.msra.mxu0 %v1354
      %1394 = vmatmul.bf16.gmra.mxu0 %v1363
      %v1395 = vpop.f32.mrf.mxu0
      %v1396 = vadd.f32 0.0, %v1395
      %v1397 = vpop.f32.mrf.mxu0
      %v1398 = vadd.f32 0.0, %v1397
      %1399 = vmatmul.bf16.gmra.mxu0 %v1366
      %v1400 = vpop.f32.mrf.mxu0
      %v1401 = vadd.f32 0.0, %v1400
      %v1402 = vpop.f32.mrf.mxu0
      %v1403 = vadd.f32 0.0, %v1402
      %1404 = vmatmul.bf16.gmra.mxu0 %v1369
      %v1405 = vpop.f32.mrf.mxu0
      %v1406 = vadd.f32 0.0, %v1405
      %v1407 = vpop.f32.mrf.mxu0
      %v1408 = vadd.f32 0.0, %v1407
      %1409 = vmatmul.bf16.gmra.mxu0 %v1372
      %v1410 = vpop.f32.mrf.mxu0
      %v1411 = vadd.f32 0.0, %v1410
      %v1412 = vpop.f32.mrf.mxu0
      %v1413 = vadd.f32 0.0, %v1412
      %1414 = vmatmul.bf16.gmra.mxu0 %v1375
      %v1415 = vpop.f32.mrf.mxu0
      %v1416 = vadd.f32 0.0, %v1415
      %v1417 = vpop.f32.mrf.mxu0
      %v1418 = vadd.f32 0.0, %v1417
      %1419 = vmatmul.bf16.gmra.mxu0 %v1378
      %v1420 = vpop.f32.mrf.mxu0
      %v1421 = vadd.f32 0.0, %v1420
      %v1422 = vpop.f32.mrf.mxu0
      %v1423 = vadd.f32 0.0, %v1422
      %1424 = vmatmul.bf16.gmra.mxu0 %v1381
      %v1425 = vpop.f32.mrf.mxu0
      %v1426 = vadd.f32 0.0, %v1425
      %v1427 = vpop.f32.mrf.mxu0
      %v1428 = vadd.f32 0.0, %v1427
      %1429 = vmatmul.bf16.gmra.mxu0 %v1384
      %v1430 = vpop.f32.mrf.mxu0
      %v1431 = vadd.f32 0.0, %v1430
      %v1432 = vpop.f32.mrf.mxu0
      %v1433 = vadd.f32 0.0, %v1432
      %1434 = vdwg.mxu0
      %v1435 = vadd.f32 %v1257, %v1396
      %v1436 = vadd.f32 %v1258, %v1398
      %v1437 = vadd.f32 %v1259, %v1401
      %v1438 = vadd.f32 %v1260, %v1403
      %v1439 = vadd.f32 %v1261, %v1406
      %v1440 = vadd.f32 %v1262, %v1408
      %v1441 = vadd.f32 %v1263, %v1411
      %v1442 = vadd.f32 %v1264, %v1413
      %v1443 = vadd.f32 %v1265, %v1416
      %v1444 = vadd.f32 %v1266, %v1418
      %v1445 = vadd.f32 %v1267, %v1421
      %v1446 = vadd.f32 %v1268, %v1423
      %v1447 = vadd.f32 %v1269, %v1426
      %v1448 = vadd.f32 %v1270, %v1428
      %v1449 = vadd.f32 %v1271, %v1431
      %v1450 = vadd.f32 %v1272, %v1433
      %v1451 = vld [vmem:[%s207 + $0x10] sm:$0xf]
      %v1452 = vld [vmem:[%s207 + $0x14] sm:$0xf]
      %v1453 = vld [vmem:[%s207 + $0x18] sm:$0xf]
      %v1454 = vld [vmem:[%s207 + $0x1c] sm:$0xf]
      %v1455 = vld [vmem:[%s207 + $0x20] sm:$0xf]
      %v1456 = vld [vmem:[%s207 + $0x24] sm:$0xf]
      %v1457 = vld [vmem:[%s207 + $0x28] sm:$0xf]
      %v1458 = vld [vmem:[%s207 + $0x2c] sm:$0xf]
      %v1459 = vld [vmem:[%s207 + $0x30] sm:$0xf]
      %v1460 = vld [vmem:[%s207 + $0x34] sm:$0xf]
      %v1461 = vld [vmem:[%s207 + $0x38] sm:$0xf]
      %v1462 = vld [vmem:[%s207 + $0x3c] sm:$0xf]
      %v1463 = vld [vmem:[%s207 + $0x40] sm:$0xf]
      %v1464 = vld [vmem:[%s207 + $0x44] sm:$0xf]
      %v1465 = vld [vmem:[%s207 + $0x48] sm:$0xf]
      %v1466 = vld [vmem:[%s207 + $0x4c] sm:$0xf]
      %v1467 = vld [vmem:[%s207 + $0x50] sm:$0x1]
      %s1468 = scalar_lea.vmem %s1, 224
      %v1469 = vld [vmem:[%s1468] sm:$0xf]
      %v1470 = vld [vmem:[%s1468 + $0x4] sm:$0xf]
      %v1471 = vld [vmem:[%s1468 + $0x8] sm:$0xf]
      %v1472 = vld [vmem:[%s1468 + $0xc] sm:$0xf]
      %v1473 = vld [vmem:[%s1468 + $0x10] sm:$0xf]
      %v1474 = vld [vmem:[%s1468 + $0x14] sm:$0xf]
      %v1475 = vld [vmem:[%s1468 + $0x18] sm:$0xf]
      %v1476 = vld [vmem:[%s1468 + $0x1c] sm:$0xf]
      %v1494 = vunpack.c.l.b16 %v1451
      %v1495 = vunpack.c.l.b16 %v1452
      %v1496 = vunpack.c.l.b16 %v1453
      %v1497 = vunpack.c.l.b16 %v1454
      %v1498 = vunpack.c.l.b16 %v1455
      %v1499 = vunpack.c.l.b16 %v1456
      %v1500 = vunpack.c.l.b16 %v1457
      %v1501 = vunpack.c.l.b16 %v1458
      %v1502 = vunpack.c.l.b16 %v1459
      %v1503 = vunpack.c.l.b16 %v1460
      %v1504 = vunpack.c.l.b16 %v1461
      %v1505 = vunpack.c.l.b16 %v1462
      %v1506 = vunpack.c.l.b16 %v1463
      %v1507 = vunpack.c.l.b16 %v1464
      %v1508 = vunpack.c.l.b16 %v1465
      %v1509 = vunpack.c.l.b16 %v1466
      %v1510 = vunpack.c.l.b16 %v1467
      %v1511 = vpack.c.b16 %v1495, %v1494
      %v1512 = vpack.c.b16 %v1497, %v1496
      %v1513 = vpack.c.b16 %v1499, %v1498
      %v1514 = vpack.c.b16 %v1501, %v1500
      %v1515 = vpack.c.b16 %v1503, %v1502
      %v1516 = vpack.c.b16 %v1505, %v1504
      %v1517 = vpack.c.b16 %v1507, %v1506
      %v1518 = vpack.c.b16 %v1509, %v1508
      %v1519 = vpack.c.b16 %v1510, %v1510
      %v1521 = vshrl.u32 %v1511, 16
      %v1523 = vshll.u32 %v1511, 16
      %v1525 = vrot.slane %v1523, 1
      %v1526 = vor.u32 %v1521, %v1525
      %v1528 = vshll.u32 %v1512, 16
      %v1530 = vrot.slane %v1528, 1
      %v1531 = vsel %vm302, %v1526, %v1530
      %v1532 = vshrl.u32 %v1512, 16
      %v1534 = vor.u32 %v1532, %v1530
      %v1536 = vshll.u32 %v1513, 16
      %v1538 = vrot.slane %v1536, 1
      %v1539 = vsel %vm302, %v1534, %v1538
      %v1540 = vshrl.u32 %v1513, 16
      %v1542 = vor.u32 %v1540, %v1538
      %v1544 = vshll.u32 %v1514, 16
      %v1546 = vrot.slane %v1544, 1
      %v1547 = vsel %vm302, %v1542, %v1546
      %v1548 = vshrl.u32 %v1514, 16
      %v1550 = vor.u32 %v1548, %v1546
      %v1552 = vshll.u32 %v1515, 16
      %v1554 = vrot.slane %v1552, 1
      %v1555 = vsel %vm302, %v1550, %v1554
      %v1556 = vshrl.u32 %v1515, 16
      %v1558 = vor.u32 %v1556, %v1554
      %v1560 = vshll.u32 %v1516, 16
      %v1562 = vrot.slane %v1560, 1
      %v1563 = vsel %vm302, %v1558, %v1562
      %v1564 = vshrl.u32 %v1516, 16
      %v1566 = vor.u32 %v1564, %v1562
      %v1568 = vshll.u32 %v1517, 16
      %v1570 = vrot.slane %v1568, 1
      %v1571 = vsel %vm302, %v1566, %v1570
      %v1572 = vshrl.u32 %v1517, 16
      %v1574 = vor.u32 %v1572, %v1570
      %v1576 = vshll.u32 %v1518, 16
      %v1578 = vrot.slane %v1576, 1
      %v1579 = vsel %vm302, %v1574, %v1578
      %v1580 = vshrl.u32 %v1518, 16
      %v1582 = vor.u32 %v1580, %v1578
      %v1584 = vshll.u32 %v1519, 16
      %v1586 = vrot.slane %v1584, 1
      %v1587 = vsel %vm302, %v1582, %v1586
      %v1596 = vunpack.c.l.b16 %v1469
      %v1597 = vunpack.c.l.b16 %v1470
      %v1598 = vunpack.c.l.b16 %v1471
      %v1599 = vunpack.c.l.b16 %v1472
      %v1600 = vunpack.c.l.b16 %v1473
      %v1601 = vunpack.c.l.b16 %v1474
      %v1602 = vunpack.c.l.b16 %v1475
      %v1603 = vunpack.c.l.b16 %v1476
      %v1604 = vpack.c.b16 %v1597, %v1596
      %v1605 = vpack.c.b16 %v1599, %v1598
      %v1606 = vpack.c.b16 %v1601, %v1600
      %v1607 = vpack.c.b16 %v1603, %v1602
      %v1613 = vsel %vm395, %v1531, 0
      %v1616 = vsel %vm395, %v1539, 0
      %v1619 = vsel %vm395, %v1547, 0
      %v1622 = vsel %vm395, %v1555, 0
      %v1625 = vsel %vm395, %v1563, 0
      %v1628 = vsel %vm395, %v1571, 0
      %v1631 = vsel %vm395, %v1579, 0
      %v1634 = vsel %vm395, %v1587, 0
      %1636 = vmatpush.bf16.msra.mxu0 0
      %1637 = vmatpush.bf16.msra.mxu0 0
      %1638 = vmatpush.bf16.msra.mxu0 0
      %1639 = vmatpush.bf16.msra.mxu0 0
      %1640 = vmatpush.bf16.msra.mxu0 %v1607
      %1641 = vmatpush.bf16.msra.mxu0 %v1606
      %1642 = vmatpush.bf16.msra.mxu0 %v1605
      %1643 = vmatpush.bf16.msra.mxu0 %v1604
      %1644 = vmatmul.bf16.gmra.mxu0 %v1613
      %v1645 = vpop.f32.mrf.mxu0
      %v1646 = vadd.f32 0.0, %v1645
      %v1647 = vpop.f32.mrf.mxu0
      %v1648 = vadd.f32 0.0, %v1647
      %1649 = vmatmul.bf16.gmra.mxu0 %v1616
      %v1650 = vpop.f32.mrf.mxu0
      %v1651 = vadd.f32 0.0, %v1650
      %v1652 = vpop.f32.mrf.mxu0
      %v1653 = vadd.f32 0.0, %v1652
      %1654 = vmatmul.bf16.gmra.mxu0 %v1619
      %v1655 = vpop.f32.mrf.mxu0
      %v1656 = vadd.f32 0.0, %v1655
      %v1657 = vpop.f32.mrf.mxu0
      %v1658 = vadd.f32 0.0, %v1657
      %1659 = vmatmul.bf16.gmra.mxu0 %v1622
      %v1660 = vpop.f32.mrf.mxu0
      %v1661 = vadd.f32 0.0, %v1660
      %v1662 = vpop.f32.mrf.mxu0
      %v1663 = vadd.f32 0.0, %v1662
      %1664 = vmatmul.bf16.gmra.mxu0 %v1625
      %v1665 = vpop.f32.mrf.mxu0
      %v1666 = vadd.f32 0.0, %v1665
      %v1667 = vpop.f32.mrf.mxu0
      %v1668 = vadd.f32 0.0, %v1667
      %1669 = vmatmul.bf16.gmra.mxu0 %v1628
      %v1670 = vpop.f32.mrf.mxu0
      %v1671 = vadd.f32 0.0, %v1670
      %v1672 = vpop.f32.mrf.mxu0
      %v1673 = vadd.f32 0.0, %v1672
      %1674 = vmatmul.bf16.gmra.mxu0 %v1631
      %v1675 = vpop.f32.mrf.mxu0
      %v1676 = vadd.f32 0.0, %v1675
      %v1677 = vpop.f32.mrf.mxu0
      %v1678 = vadd.f32 0.0, %v1677
      %1679 = vmatmul.bf16.gmra.mxu0 %v1634
      %v1680 = vpop.f32.mrf.mxu0
      %v1681 = vadd.f32 0.0, %v1680
      %v1682 = vpop.f32.mrf.mxu0
      %v1683 = vadd.f32 0.0, %v1682
      %1684 = vdwg.mxu0
      %v1685 = vadd.f32 %v1435, %v1646
      %v1686 = vadd.f32 %v1436, %v1648
      %v1687 = vadd.f32 %v1437, %v1651
      %v1688 = vadd.f32 %v1438, %v1653
      %v1689 = vadd.f32 %v1439, %v1656
      %v1690 = vadd.f32 %v1440, %v1658
      %v1691 = vadd.f32 %v1441, %v1661
      %v1692 = vadd.f32 %v1442, %v1663
      %v1693 = vadd.f32 %v1443, %v1666
      %v1694 = vadd.f32 %v1444, %v1668
      %v1695 = vadd.f32 %v1445, %v1671
      %v1696 = vadd.f32 %v1446, %v1673
      %v1697 = vadd.f32 %v1447, %v1676
      %v1698 = vadd.f32 %v1448, %v1678
      %v1699 = vadd.f32 %v1449, %v1681
      %v1700 = vadd.f32 %v1450, %v1683
      %v1701 = vld [vmem:[%s207 + $0x10] sm:$0xe]
      %s1702 = scalar_lea.vmem %s1, 256
      %v1703 = vld [vmem:[%s1702] sm:$0xf]
      %v1704 = vld [vmem:[%s1702 + $0x4] sm:$0xf]
      %v1705 = vld [vmem:[%s1702 + $0x8] sm:$0xf]
      %v1706 = vld [vmem:[%s1702 + $0xc] sm:$0xf]
      %v1707 = vld [vmem:[%s1702 + $0x10] sm:$0xf]
      %v1708 = vld [vmem:[%s1702 + $0x14] sm:$0xf]
      %v1709 = vld [vmem:[%s1702 + $0x18] sm:$0xf]
      %v1710 = vld [vmem:[%s1702 + $0x1c] sm:$0xf]
      %v1712 = vunpack.c.l.b16 %v1701
      %v1713 = vpack.c.b16 %v1495, %v1712
      %v1714 = vrot.slane %v1713, 1
      %v1715 = vrot.slane %v1512, 1
      %v1716 = vsel %vm571, %v1714, %v1715
      %v1717 = vrot.slane %v1513, 1
      %v1718 = vsel %vm571, %v1715, %v1717
      %v1719 = vrot.slane %v1514, 1
      %v1720 = vsel %vm571, %v1717, %v1719
      %v1721 = vrot.slane %v1515, 1
      %v1722 = vsel %vm571, %v1719, %v1721
      %v1723 = vrot.slane %v1516, 1
      %v1724 = vsel %vm571, %v1721, %v1723
      %v1725 = vrot.slane %v1517, 1
      %v1726 = vsel %vm571, %v1723, %v1725
      %v1727 = vrot.slane %v1518, 1
      %v1728 = vsel %vm571, %v1725, %v1727
      %v1729 = vrot.slane %v1519, 1
      %v1730 = vsel %vm571, %v1727, %v1729
      %v1739 = vunpack.c.l.b16 %v1703
      %v1740 = vunpack.c.l.b16 %v1704
      %v1741 = vunpack.c.l.b16 %v1705
      %v1742 = vunpack.c.l.b16 %v1706
      %v1743 = vunpack.c.l.b16 %v1707
      %v1744 = vunpack.c.l.b16 %v1708
      %v1745 = vunpack.c.l.b16 %v1709
      %v1746 = vunpack.c.l.b16 %v1710
      %v1747 = vpack.c.b16 %v1740, %v1739
      %v1748 = vpack.c.b16 %v1742, %v1741
      %v1749 = vpack.c.b16 %v1744, %v1743
      %v1750 = vpack.c.b16 %v1746, %v1745
      %v1756 = vsel %vm395, %v1716, 0
      %v1759 = vsel %vm395, %v1718, 0
      %v1762 = vsel %vm395, %v1720, 0
      %v1765 = vsel %vm395, %v1722, 0
      %v1768 = vsel %vm395, %v1724, 0
      %v1771 = vsel %vm395, %v1726, 0
      %v1774 = vsel %vm395, %v1728, 0
      %v1777 = vsel %vm395, %v1730, 0
      %1779 = vmatpush.bf16.msra.mxu0 0
      %1780 = vmatpush.bf16.msra.mxu0 0
      %1781 = vmatpush.bf16.msra.mxu0 0
      %1782 = vmatpush.bf16.msra.mxu0 0
      %1783 = vmatpush.bf16.msra.mxu0 %v1750
      %1784 = vmatpush.bf16.msra.mxu0 %v1749
      %1785 = vmatpush.bf16.msra.mxu0 %v1748
      %1786 = vmatpush.bf16.msra.mxu0 %v1747
      %1787 = vmatmul.bf16.gmra.mxu0 %v1756
      %v1788 = vpop.f32.mrf.mxu0
      %v1789 = vadd.f32 0.0, %v1788
      %v1790 = vpop.f32.mrf.mxu0
      %v1791 = vadd.f32 0.0, %v1790
      %1792 = vmatmul.bf16.gmra.mxu0 %v1759
      %v1793 = vpop.f32.mrf.mxu0
      %v1794 = vadd.f32 0.0, %v1793
      %v1795 = vpop.f32.mrf.mxu0
      %v1796 = vadd.f32 0.0, %v1795
      %1797 = vmatmul.bf16.gmra.mxu0 %v1762
      %v1798 = vpop.f32.mrf.mxu0
      %v1799 = vadd.f32 0.0, %v1798
      %v1800 = vpop.f32.mrf.mxu0
      %v1801 = vadd.f32 0.0, %v1800
      %1802 = vmatmul.bf16.gmra.mxu0 %v1765
      %v1803 = vpop.f32.mrf.mxu0
      %v1804 = vadd.f32 0.0, %v1803
      %v1805 = vpop.f32.mrf.mxu0
      %v1806 = vadd.f32 0.0, %v1805
      %1807 = vmatmul.bf16.gmra.mxu0 %v1768
      %v1808 = vpop.f32.mrf.mxu0
      %v1809 = vadd.f32 0.0, %v1808
      %v1810 = vpop.f32.mrf.mxu0
      %v1811 = vadd.f32 0.0, %v1810
      %1812 = vmatmul.bf16.gmra.mxu0 %v1771
      %v1813 = vpop.f32.mrf.mxu0
      %v1814 = vadd.f32 0.0, %v1813
      %v1815 = vpop.f32.mrf.mxu0
      %v1816 = vadd.f32 0.0, %v1815
      %1817 = vmatmul.bf16.gmra.mxu0 %v1774
      %v1818 = vpop.f32.mrf.mxu0
      %v1819 = vadd.f32 0.0, %v1818
      %v1820 = vpop.f32.mrf.mxu0
      %v1821 = vadd.f32 0.0, %v1820
      %1822 = vmatmul.bf16.gmra.mxu0 %v1777
      %v1823 = vpop.f32.mrf.mxu0
      %v1824 = vadd.f32 0.0, %v1823
      %v1825 = vpop.f32.mrf.mxu0
      %v1826 = vadd.f32 0.0, %v1825
      %1827 = vdwg.mxu0
      %v1828 = vadd.f32 %v1685, %v1789
      %v1829 = vadd.f32 %v1686, %v1791
      %v1830 = vadd.f32 %v1687, %v1794
      %v1831 = vadd.f32 %v1688, %v1796
      %v1832 = vadd.f32 %v1689, %v1799
      %v1833 = vadd.f32 %v1690, %v1801
      %v1834 = vadd.f32 %v1691, %v1804
      %v1835 = vadd.f32 %v1692, %v1806
      %v1836 = vadd.f32 %v1693, %v1809
      %v1837 = vadd.f32 %v1694, %v1811
      %v1838 = vadd.f32 %v1695, %v1814
      %v1839 = vadd.f32 %v1696, %v1816
      %v1840 = vadd.f32 %v1697, %v1819
      %v1841 = vadd.f32 %v1698, %v1821
      %v1842 = vadd.f32 %v1699, %v1824
      %v1843 = vadd.f32 %v1700, %v1826
      %v1844 = vpack.c.bf16 %v1828, %v1828
      %v1845 = vpack.c.bf16 %v1829, %v1829
      %v1846 = vpack.c.bf16 %v1830, %v1830
      %v1847 = vpack.c.bf16 %v1831, %v1831
      %v1848 = vpack.c.bf16 %v1832, %v1832
      %v1849 = vpack.c.bf16 %v1833, %v1833
      %v1850 = vpack.c.bf16 %v1834, %v1834
      %v1851 = vpack.c.bf16 %v1835, %v1835
      %v1852 = vpack.c.bf16 %v1836, %v1836
      %v1853 = vpack.c.bf16 %v1837, %v1837
      %v1854 = vpack.c.bf16 %v1838, %v1838
      %v1855 = vpack.c.bf16 %v1839, %v1839
      %v1856 = vpack.c.bf16 %v1840, %v1840
      %v1857 = vpack.c.bf16 %v1841, %v1841
      %v1858 = vpack.c.bf16 %v1842, %v1842
      %v1859 = vpack.c.bf16 %v1843, %v1843
      %vm1860 = vcmask 257024
      %1861 = vst.msk [vmem:[%s216] sm:$0xf] %vm1860, %v1844
      %1862 = vst.msk [vmem:[%s216 + $0x4] sm:$0xf] %vm1860, %v1845
      %1863 = vst.msk [vmem:[%s216 + $0x8] sm:$0xf] %vm1860, %v1846
      %1864 = vst.msk [vmem:[%s216 + $0xc] sm:$0xf] %vm1860, %v1847
      %1865 = vst.msk [vmem:[%s216 + $0x10] sm:$0xf] %vm1860, %v1848
      %1866 = vst.msk [vmem:[%s216 + $0x14] sm:$0xf] %vm1860, %v1849
      %1867 = vst.msk [vmem:[%s216 + $0x18] sm:$0xf] %vm1860, %v1850
      %1868 = vst.msk [vmem:[%s216 + $0x1c] sm:$0xf] %vm1860, %v1851
      %1869 = vst.msk [vmem:[%s216 + $0x20] sm:$0xf] %vm1860, %v1852
      %1870 = vst.msk [vmem:[%s216 + $0x24] sm:$0xf] %vm1860, %v1853
      %1871 = vst.msk [vmem:[%s216 + $0x28] sm:$0xf] %vm1860, %v1854
      %1872 = vst.msk [vmem:[%s216 + $0x2c] sm:$0xf] %vm1860, %v1855
      %1873 = vst.msk [vmem:[%s216 + $0x30] sm:$0xf] %vm1860, %v1856
      %1874 = vst.msk [vmem:[%s216 + $0x34] sm:$0xf] %vm1860, %v1857
      %1875 = vst.msk [vmem:[%s216 + $0x38] sm:$0xf] %vm1860, %v1858
      %1876 = vst.msk [vmem:[%s216 + $0x3c] sm:$0xf] %vm1860, %v1859
      %v1877 = vlaneseq
      %v1878 = vshrl.u32 %v1877, 7
      %v1879 = vadd.s32 %v1878, 8
      %v1880 = vadd.s32 %v1878, 16
      %v1881 = vadd.s32 %v1878, 24
      %v1882 = vadd.s32 %v1878, 32
      %v1883 = vadd.s32 %v1878, 40
      %v1884 = vadd.s32 %v1878, 48
      %v1885 = vadd.s32 %v1878, 56
      %v1886 = vadd.s32 %v1878, 64
      %v1887 = vadd.s32 %v1878, 72
      %v1888 = vadd.s32 %v1878, 80
      %v1889 = vadd.s32 %v1878, 88
      %v1890 = vadd.s32 %v1878, 96
      %v1891 = vadd.s32 %v1878, 104
      %v1892 = vadd.s32 %v1878, 112
      %v1893 = vadd.s32 %v1878, 120
      %vm1894 = vcmp.lt.s32.totalorder %v1878, 0
      %v1895 = vsub.s32 0, %v1878
      %v1896 = vsel %vm1894, %v1895, %v1878
      %v1897 = vshrl.u32 %v1896, 4
      %v1898 = vand.u32 %v1896, 15
      %v1899 = vsub.s32 0, %v1898
      %v1900 = vsel %vm1894, %v1899, %v1898
      %vm1901 = vcmp.lt.s32.totalorder %v1879, 0
      %v1902 = vsub.s32 0, %v1879
      %v1903 = vsel %vm1901, %v1902, %v1879
      %v1904 = vshrl.u32 %v1903, 4
      %v1905 = vand.u32 %v1903, 15
      %v1906 = vsub.s32 0, %v1905
      %v1907 = vsel %vm1901, %v1906, %v1905
      %vm1908 = vcmp.lt.s32.totalorder %v1880, 0
      %v1909 = vsub.s32 0, %v1880
      %v1910 = vsel %vm1908, %v1909, %v1880
      %v1911 = vshrl.u32 %v1910, 4
      %v1912 = vand.u32 %v1910, 15
      %v1913 = vsub.s32 0, %v1912
      %v1914 = vsel %vm1908, %v1913, %v1912
      %vm1915 = vcmp.lt.s32.totalorder %v1881, 0
      %v1916 = vsub.s32 0, %v1881
      %v1917 = vsel %vm1915, %v1916, %v1881
      %v1918 = vshrl.u32 %v1917, 4
      %v1919 = vand.u32 %v1917, 15
      %v1920 = vsub.s32 0, %v1919
      %v1921 = vsel %vm1915, %v1920, %v1919
      %vm1922 = vcmp.lt.s32.totalorder %v1882, 0
      %v1923 = vsub.s32 0, %v1882
      %v1924 = vsel %vm1922, %v1923, %v1882
      %v1925 = vshrl.u32 %v1924, 4
      %v1926 = vand.u32 %v1924, 15
      %v1927 = vsub.s32 0, %v1926
      %v1928 = vsel %vm1922, %v1927, %v1926
      %vm1929 = vcmp.lt.s32.totalorder %v1883, 0
      %v1930 = vsub.s32 0, %v1883
      %v1931 = vsel %vm1929, %v1930, %v1883
      %v1932 = vshrl.u32 %v1931, 4
      %v1933 = vand.u32 %v1931, 15
      %v1934 = vsub.s32 0, %v1933
      %v1935 = vsel %vm1929, %v1934, %v1933
      %vm1936 = vcmp.lt.s32.totalorder %v1884, 0
      %v1937 = vsub.s32 0, %v1884
      %v1938 = vsel %vm1936, %v1937, %v1884
      %v1939 = vshrl.u32 %v1938, 4
      %v1940 = vand.u32 %v1938, 15
      %v1941 = vsub.s32 0, %v1940
      %v1942 = vsel %vm1936, %v1941, %v1940
      %vm1943 = vcmp.lt.s32.totalorder %v1885, 0
      %v1944 = vsub.s32 0, %v1885
      %v1945 = vsel %vm1943, %v1944, %v1885
      %v1946 = vshrl.u32 %v1945, 4
      %v1947 = vand.u32 %v1945, 15
      %v1948 = vsub.s32 0, %v1947
      %v1949 = vsel %vm1943, %v1948, %v1947
      %vm1950 = vcmp.lt.s32.totalorder %v1886, 0
      %v1951 = vsub.s32 0, %v1886
      %v1952 = vsel %vm1950, %v1951, %v1886
      %v1953 = vshrl.u32 %v1952, 4
      %v1954 = vand.u32 %v1952, 15
      %v1955 = vsub.s32 0, %v1954
      %v1956 = vsel %vm1950, %v1955, %v1954
      %vm1957 = vcmp.lt.s32.totalorder %v1887, 0
      %v1958 = vsub.s32 0, %v1887
      %v1959 = vsel %vm1957, %v1958, %v1887
      %v1960 = vshrl.u32 %v1959, 4
      %v1961 = vand.u32 %v1959, 15
      %v1962 = vsub.s32 0, %v1961
      %v1963 = vsel %vm1957, %v1962, %v1961
      %vm1964 = vcmp.lt.s32.totalorder %v1888, 0
      %v1965 = vsub.s32 0, %v1888
      %v1966 = vsel %vm1964, %v1965, %v1888
      %v1967 = vshrl.u32 %v1966, 4
      %v1968 = vand.u32 %v1966, 15
      %v1969 = vsub.s32 0, %v1968
      %v1970 = vsel %vm1964, %v1969, %v1968
      %vm1971 = vcmp.lt.s32.totalorder %v1889, 0
      %v1972 = vsub.s32 0, %v1889
      %v1973 = vsel %vm1971, %v1972, %v1889
      %v1974 = vshrl.u32 %v1973, 4
      %v1975 = vand.u32 %v1973, 15
      %v1976 = vsub.s32 0, %v1975
      %v1977 = vsel %vm1971, %v1976, %v1975
      %vm1978 = vcmp.lt.s32.totalorder %v1890, 0
      %v1979 = vsub.s32 0, %v1890
      %v1980 = vsel %vm1978, %v1979, %v1890
      %v1981 = vshrl.u32 %v1980, 4
      %v1982 = vand.u32 %v1980, 15
      %v1983 = vsub.s32 0, %v1982
      %v1984 = vsel %vm1978, %v1983, %v1982
      %vm1985 = vcmp.lt.s32.totalorder %v1891, 0
      %v1986 = vsub.s32 0, %v1891
      %v1987 = vsel %vm1985, %v1986, %v1891
      %v1988 = vshrl.u32 %v1987, 4
      %v1989 = vand.u32 %v1987, 15
      %v1990 = vsub.s32 0, %v1989
      %v1991 = vsel %vm1985, %v1990, %v1989
      %vm1992 = vcmp.lt.s32.totalorder %v1892, 0
      %v1993 = vsub.s32 0, %v1892
      %v1994 = vsel %vm1992, %v1993, %v1892
      %v1995 = vshrl.u32 %v1994, 4
      %v1996 = vand.u32 %v1994, 15
      %v1997 = vsub.s32 0, %v1996
      %v1998 = vsel %vm1992, %v1997, %v1996
      %vm1999 = vcmp.lt.s32.totalorder %v1893, 0
      %v2000 = vsub.s32 0, %v1893
      %v2001 = vsel %vm1999, %v2000, %v1893
      %v2002 = vshrl.u32 %v2001, 4
      %v2003 = vand.u32 %v2001, 15
      %v2004 = vsub.s32 0, %v2003
      %v2005 = vsel %vm1999, %v2004, %v2003
      %vm2006 = vcmp.ne.s32.totalorder %v1900, 0
      %vm2007 = vcmp.ne.s32.totalorder %v1907, 0
      %vm2008 = vcmp.ne.s32.totalorder %v1914, 0
      %vm2009 = vcmp.ne.s32.totalorder %v1921, 0
      %vm2010 = vcmp.ne.s32.totalorder %v1928, 0
      %vm2011 = vcmp.ne.s32.totalorder %v1935, 0
      %vm2012 = vcmp.ne.s32.totalorder %v1942, 0
      %vm2013 = vcmp.ne.s32.totalorder %v1949, 0
      %vm2014 = vcmp.ne.s32.totalorder %v1956, 0
      %vm2015 = vcmp.ne.s32.totalorder %v1963, 0
      %vm2016 = vcmp.ne.s32.totalorder %v1970, 0
      %vm2017 = vcmp.ne.s32.totalorder %v1977, 0
      %vm2018 = vcmp.ne.s32.totalorder %v1984, 0
      %vm2019 = vcmp.ne.s32.totalorder %v1991, 0
      %vm2020 = vcmp.ne.s32.totalorder %v1998, 0
      %vm2021 = vcmp.ne.s32.totalorder %v2005, 0
      %vm2022 = vcmp.lt.s32.totalorder %v1900, 0
      %vm2023 = vcmp.lt.s32.totalorder %v1907, 0
      %vm2024 = vcmp.lt.s32.totalorder %v1914, 0
      %vm2025 = vcmp.lt.s32.totalorder %v1921, 0
      %vm2026 = vcmp.lt.s32.totalorder %v1928, 0
      %vm2027 = vcmp.lt.s32.totalorder %v1935, 0
      %vm2028 = vcmp.lt.s32.totalorder %v1942, 0
      %vm2029 = vcmp.lt.s32.totalorder %v1949, 0
      %vm2030 = vcmp.lt.s32.totalorder %v1956, 0
      %vm2031 = vcmp.lt.s32.totalorder %v1963, 0
      %vm2032 = vcmp.lt.s32.totalorder %v1970, 0
      %vm2033 = vcmp.lt.s32.totalorder %v1977, 0
      %vm2034 = vcmp.lt.s32.totalorder %v1984, 0
      %vm2035 = vcmp.lt.s32.totalorder %v1991, 0
      %vm2036 = vcmp.lt.s32.totalorder %v1998, 0
      %vm2037 = vcmp.lt.s32.totalorder %v2005, 0
      %vm2038 = vmand %vm2022, %vm2006
      %vm2039 = vmand %vm2023, %vm2007
      %vm2040 = vmand %vm2024, %vm2008
      %vm2041 = vmand %vm2025, %vm2009
      %vm2042 = vmand %vm2026, %vm2010
      %vm2043 = vmand %vm2027, %vm2011
      %vm2044 = vmand %vm2028, %vm2012
      %vm2045 = vmand %vm2029, %vm2013
      %vm2046 = vmand %vm2030, %vm2014
      %vm2047 = vmand %vm2031, %vm2015
      %vm2048 = vmand %vm2032, %vm2016
      %vm2049 = vmand %vm2033, %vm2017
      %vm2050 = vmand %vm2034, %vm2018
      %vm2051 = vmand %vm2035, %vm2019
      %vm2052 = vmand %vm2036, %vm2020
      %vm2053 = vmand %vm2037, %vm2021
      %v2054 = vadd.s32 %v1900, 16
      %v2055 = vadd.s32 %v1907, 16
      %v2056 = vadd.s32 %v1914, 16
      %v2057 = vadd.s32 %v1921, 16
      %v2058 = vadd.s32 %v1928, 16
      %v2059 = vadd.s32 %v1935, 16
      %v2060 = vadd.s32 %v1942, 16
      %v2061 = vadd.s32 %v1949, 16
      %v2062 = vadd.s32 %v1956, 16
      %v2063 = vadd.s32 %v1963, 16
      %v2064 = vadd.s32 %v1970, 16
      %v2065 = vadd.s32 %v1977, 16
      %v2066 = vadd.s32 %v1984, 16
      %v2067 = vadd.s32 %v1991, 16
      %v2068 = vadd.s32 %v1998, 16
      %v2069 = vadd.s32 %v2005, 16
      %v2070 = vsel %vm2038, %v2054, %v1900
      %v2071 = vsel %vm2039, %v2055, %v1907
      %v2072 = vsel %vm2040, %v2056, %v1914
      %v2073 = vsel %vm2041, %v2057, %v1921
      %v2074 = vsel %vm2042, %v2058, %v1928
      %v2075 = vsel %vm2043, %v2059, %v1935
      %v2076 = vsel %vm2044, %v2060, %v1942
      %v2077 = vsel %vm2045, %v2061, %v1949
      %v2078 = vsel %vm2046, %v2062, %v1956
      %v2079 = vsel %vm2047, %v2063, %v1963
      %v2080 = vsel %vm2048, %v2064, %v1970
      %v2081 = vsel %vm2049, %v2065, %v1977
      %v2082 = vsel %vm2050, %v2066, %v1984
      %v2083 = vsel %vm2051, %v2067, %v1991
      %v2084 = vsel %vm2052, %v2068, %v1998
      %v2085 = vsel %vm2053, %v2069, %v2005
      %vm2086 = vcmp.lt.s32.totalorder %v2070, 8
      %vm2087 = vcmp.lt.s32.totalorder %v2071, 8
      %vm2088 = vcmp.lt.s32.totalorder %v2072, 8
      %vm2089 = vcmp.lt.s32.totalorder %v2073, 8
      %vm2090 = vcmp.lt.s32.totalorder %v2074, 8
      %vm2091 = vcmp.lt.s32.totalorder %v2075, 8
      %vm2092 = vcmp.lt.s32.totalorder %v2076, 8
      %vm2093 = vcmp.lt.s32.totalorder %v2077, 8
      %vm2094 = vcmp.lt.s32.totalorder %v2078, 8
      %vm2095 = vcmp.lt.s32.totalorder %v2079, 8
      %vm2096 = vcmp.lt.s32.totalorder %v2080, 8
      %vm2097 = vcmp.lt.s32.totalorder %v2081, 8
      %vm2098 = vcmp.lt.s32.totalorder %v2082, 8
      %vm2099 = vcmp.lt.s32.totalorder %v2083, 8
      %vm2100 = vcmp.lt.s32.totalorder %v2084, 8
      %vm2101 = vcmp.lt.s32.totalorder %v2085, 8
      %v2102 = vsel %vm2086, 1, 0
      %v2103 = vsel %vm2087, 1, 0
      %v2104 = vsel %vm2088, 1, 0
      %v2105 = vsel %vm2089, 1, 0
      %v2106 = vsel %vm2090, 1, 0
      %v2107 = vsel %vm2091, 1, 0
      %v2108 = vsel %vm2092, 1, 0
      %v2109 = vsel %vm2093, 1, 0
      %v2110 = vsel %vm2094, 1, 0
      %v2111 = vsel %vm2095, 1, 0
      %v2112 = vsel %vm2096, 1, 0
      %v2113 = vsel %vm2097, 1, 0
      %v2114 = vsel %vm2098, 1, 0
      %v2115 = vsel %vm2099, 1, 0
      %v2116 = vsel %vm2100, 1, 0
      %v2117 = vsel %vm2101, 1, 0
      %v2118 = vcvt.s32.f32 %v2102
      %v2119 = vcvt.s32.f32 %v2103
      %v2120 = vcvt.s32.f32 %v2104
      %v2121 = vcvt.s32.f32 %v2105
      %v2122 = vcvt.s32.f32 %v2106
      %v2123 = vcvt.s32.f32 %v2107
      %v2124 = vcvt.s32.f32 %v2108
      %v2125 = vcvt.s32.f32 %v2109
      %v2126 = vcvt.s32.f32 %v2110
      %v2127 = vcvt.s32.f32 %v2111
      %v2128 = vcvt.s32.f32 %v2112
      %v2129 = vcvt.s32.f32 %v2113
      %v2130 = vcvt.s32.f32 %v2114
      %v2131 = vcvt.s32.f32 %v2115
      %v2132 = vcvt.s32.f32 %v2116
      %v2133 = vcvt.s32.f32 %v2117
      %v2134 = vmul.f32 %v1828, %v2118
      %v2135 = vmul.f32 %v1829, %v2119
      %v2136 = vmul.f32 %v1830, %v2120
      %v2137 = vmul.f32 %v1831, %v2121
      %v2138 = vmul.f32 %v1832, %v2122
      %v2139 = vmul.f32 %v1833, %v2123
      %v2140 = vmul.f32 %v1834, %v2124
      %v2141 = vmul.f32 %v1835, %v2125
      %v2142 = vmul.f32 %v1836, %v2126
      %v2143 = vmul.f32 %v1837, %v2127
      %v2144 = vmul.f32 %v1838, %v2128
      %v2145 = vmul.f32 %v1839, %v2129
      %v2146 = vmul.f32 %v1840, %v2130
      %v2147 = vmul.f32 %v1841, %v2131
      %v2148 = vmul.f32 %v1842, %v2132
      %v2149 = vmul.f32 %v1843, %v2133
      %vm2150 = vcmask 261120
      %v2151 = vsel %vm2150, %v2134, 0.0
      %v2152 = vsel %vm2150, %v2135, 0.0
      %v2153 = vadd.f32 %v2151, %v2152
      %v2154 = vsel %vm2150, %v2136, 0.0
      %v2155 = vadd.f32 %v2153, %v2154
      %v2156 = vsel %vm2150, %v2137, 0.0
      %v2157 = vadd.f32 %v2155, %v2156
      %v2158 = vsel %vm2150, %v2138, 0.0
      %v2159 = vadd.f32 %v2157, %v2158
      %v2160 = vsel %vm2150, %v2139, 0.0
      %v2161 = vadd.f32 %v2159, %v2160
      %v2162 = vsel %vm2150, %v2140, 0.0
      %v2163 = vadd.f32 %v2161, %v2162
      %v2164 = vsel %vm2150, %v2141, 0.0
      %v2165 = vadd.f32 %v2163, %v2164
      %v2166 = vsel %vm2150, %v2142, 0.0
      %v2167 = vadd.f32 %v2165, %v2166
      %v2168 = vsel %vm2150, %v2143, 0.0
      %v2169 = vadd.f32 %v2167, %v2168
      %v2170 = vsel %vm2150, %v2144, 0.0
      %v2171 = vadd.f32 %v2169, %v2170
      %v2172 = vsel %vm2150, %v2145, 0.0
      %v2173 = vadd.f32 %v2171, %v2172
      %v2174 = vsel %vm2150, %v2146, 0.0
      %v2175 = vadd.f32 %v2173, %v2174
      %v2176 = vsel %vm2150, %v2147, 0.0
      %v2177 = vadd.f32 %v2175, %v2176
      %v2178 = vsel %vm2150, %v2148, 0.0
      %v2179 = vadd.f32 %v2177, %v2178
      %v2180 = vsel %vm2150, %v2149, 0.0
      %v2181 = vadd.f32 %v2179, %v2180
      %v2182 = vrot.slane %v2181, 4
      %v2183 = vadd.f32 %v2181, %v2182
      %v2184 = vrot.slane %v2183, 2
      %v2185 = vadd.f32 %v2183, %v2184
      %v2186 = vrot.slane %v2185, 1
      %v2187 = vadd.f32 %v2185, %v2186
      %vm2188 = vcmask 253952
      %2189 = vst.msk [vmem:[%s222] sm:$0x1] %vm2188, %v2187
      %v2190 = vmul.f32 %v2134, %v2134
      %v2191 = vmul.f32 %v2135, %v2135
      %v2192 = vmul.f32 %v2136, %v2136
      %v2193 = vmul.f32 %v2137, %v2137
      %v2194 = vmul.f32 %v2138, %v2138
      %v2195 = vmul.f32 %v2139, %v2139
      %v2196 = vmul.f32 %v2140, %v2140
      %v2197 = vmul.f32 %v2141, %v2141
      %v2198 = vmul.f32 %v2142, %v2142
      %v2199 = vmul.f32 %v2143, %v2143
      %v2200 = vmul.f32 %v2144, %v2144
      %v2201 = vmul.f32 %v2145, %v2145
      %v2202 = vmul.f32 %v2146, %v2146
      %v2203 = vmul.f32 %v2147, %v2147
      %v2204 = vmul.f32 %v2148, %v2148
      %v2205 = vmul.f32 %v2149, %v2149
      %v2206 = vsel %vm2150, %v2190, 0.0
      %v2207 = vsel %vm2150, %v2191, 0.0
      %v2208 = vadd.f32 %v2206, %v2207
      %v2209 = vsel %vm2150, %v2192, 0.0
      %v2210 = vadd.f32 %v2208, %v2209
      %v2211 = vsel %vm2150, %v2193, 0.0
      %v2212 = vadd.f32 %v2210, %v2211
      %v2213 = vsel %vm2150, %v2194, 0.0
      %v2214 = vadd.f32 %v2212, %v2213
      %v2215 = vsel %vm2150, %v2195, 0.0
      %v2216 = vadd.f32 %v2214, %v2215
      %v2217 = vsel %vm2150, %v2196, 0.0
      %v2218 = vadd.f32 %v2216, %v2217
      %v2219 = vsel %vm2150, %v2197, 0.0
      %v2220 = vadd.f32 %v2218, %v2219
      %v2221 = vsel %vm2150, %v2198, 0.0
      %v2222 = vadd.f32 %v2220, %v2221
      %v2223 = vsel %vm2150, %v2199, 0.0
      %v2224 = vadd.f32 %v2222, %v2223
      %v2225 = vsel %vm2150, %v2200, 0.0
      %v2226 = vadd.f32 %v2224, %v2225
      %v2227 = vsel %vm2150, %v2201, 0.0
      %v2228 = vadd.f32 %v2226, %v2227
      %v2229 = vsel %vm2150, %v2202, 0.0
      %v2230 = vadd.f32 %v2228, %v2229
      %v2231 = vsel %vm2150, %v2203, 0.0
      %v2232 = vadd.f32 %v2230, %v2231
      %v2233 = vsel %vm2150, %v2204, 0.0
      %v2234 = vadd.f32 %v2232, %v2233
      %v2235 = vsel %vm2150, %v2205, 0.0
      %v2236 = vadd.f32 %v2234, %v2235
      %v2237 = vrot.slane %v2236, 4
      %v2238 = vadd.f32 %v2236, %v2237
      %v2239 = vrot.slane %v2238, 2
      %v2240 = vadd.f32 %v2238, %v2239
      %v2241 = vrot.slane %v2240, 1
      %v2242 = vadd.f32 %v2240, %v2241
      %2243 = vst.msk [vmem:[%s222 + $0x1] sm:$0x1] %vm2188, %v2242
      %s2244 = smul.u32 16, %s20
      %p2245 = scmp.lt.s32.totalorder %s19, 1
      %s2246 = scalar_select %p2245, %s19, 1
      %p2247 = scmp.lt.s32.totalorder %s2244, 15
      %s2248 = scalar_select %p2247, %s2244, 15
      %s2249 = smul.addr %s2246, 16
      %s2250 = sadd.s32 %s2248, %s2249
      %s2251 = smul.addr %s2250, 4
      %s2252 = scalar_lea.vmem %s2, %s2251
      %s2253 = sadd.s32 %s19, %s20
      %p2254 = scmp.lt.s32.totalorder %s2253, 1
      %s2255 = scalar_select %p2254, %s2253, 1
      %s2256 = smul.addr %s2255, 8
      %s2257 = scalar_lea.vmem %s3, %s2256
      // Predicated region
      $region29: #{unet_forward.25} parent=27 // pred_check
        %p2258 = pneg %p96
      $region30: #{unet_forward.25} parent=27 // pred_check_branch
        %2260 = sbr.rel (%p2258) target = $region32
      $region31: #{unet_forward.25} parent=27 // pred_region
        %s2261 = smul.u32 16, %s20
      $region32: #{unet_forward.25} parent=27 // pred_fallthru
        _
      // Predicated region
      $region33: #{unet_forward.25} parent=27 // pred_check
        %p2262 = pneg %p124
      $region34: #{unet_forward.25} parent=27 // pred_check_branch
        %2264 = sbr.rel (%p2262) target = $region36
      $region35: #{unet_forward.25} parent=27 // pred_region
        %s2265 = sadd.s32 %s19, %s20
      $region36: #{unet_forward.25} parent=27 // pred_fallthru
        _
    $region28: #{unet_forward.25} parent=5 // pred_fallthru
      _
    %p2266 = scmp.le.s32.totalorder 2, %s10
    // Predicated region
    $region37: #{unet_forward.25} parent=5 // pred_check
      %p2267 = pneg %p2266
    $region38: #{unet_forward.25} parent=5 // pred_check_branch
      %2269 = sbr.rel (%p2267) target = $region40
    $region39: #{unet_forward.25} parent=5 // pred_region
      %s2270 = ssub.s32 %s10, 2
      // Predicated region
      $region41: #{unet_forward.25} parent=39 // pred_check
        %p2271 = pneg %p102
      $region42: #{unet_forward.25} parent=39 // pred_check_branch
        %2273 = sbr.rel (%p2271) target = $region44
      $region43: #{unet_forward.25} parent=39 // pred_region
        %s2274 = smul.u32 16, %s22
        %p2275 = scmp.lt.s32.totalorder %s21, 1
        %s2276 = scalar_select %p2275, %s21, 1
        %p2277 = scmp.lt.s32.totalorder %s2274, 15
        %s2278 = scalar_select %p2277, %s2274, 15
        %s2279 = smul.addr %s2276, 16
        %s2280 = sadd.s32 %s2278, %s2279
        %s2281 = smul.addr %s2280, 4
        %s2282 = scalar_lea.vmem %s2, %s2281
      $region44: #{unet_forward.25} parent=39 // pred_fallthru
        _
      // Predicated region
      $region45: #{unet_forward.25} parent=39 // pred_check
        %p2283 = pneg %p130
      $region46: #{unet_forward.25} parent=39 // pred_check_branch
        %2285 = sbr.rel (%p2283) target = $region48
      $region47: #{unet_forward.25} parent=39 // pred_region
        %s2286 = sadd.s32 %s21, %s22
        %p2287 = scmp.lt.s32.totalorder %s2286, 1
        %s2288 = scalar_select %p2287, %s2286, 1
        %s2289 = smul.addr %s2288, 8
        %s2290 = scalar_lea.vmem %s3, %s2289
      $region48: #{unet_forward.25} parent=39 // pred_fallthru
        _
    $region40: #{unet_forward.25} parent=5 // pred_fallthru
      _
  $region6: #{unet_forward.25} parent=0 // loop_footer
    %s14 = sadd.s32 1, %s10
  $region7: #{unet_forward.25} parent=0 // loop_footer_branch
    %9 = sbr.rel target = $region3
  $region8: #{unet_forward.25} parent=0 // loop_exit
    _

// kernel: unet_forward.27
$region0: #{unet_forward.27}
  #allocation0 [shape = 'u32[]', space=smem, size = 0x4, offset = 0x4, fixed_abs, tag = 'smem constant byte address 0x4 - core index']
  #allocation1 [shape = 'u32[72,128]{1,0:T(1,128)}', space=vmem, size = 0x9000, scoped, tag = 'internal scratch']
  %s0 = inlined_call_operand.vmem [shape: bf16[2,1,440,32], index: 0, kind: input, shape index: {}]
  %s1 = inlined_call_operand.vmem [shape: bf16[9,32,128], index: 1, kind: input, shape index: {}]
  %s2 = inlined_call_operand.vmem [shape: f32[1,128], index: 2, kind: input, shape index: {}]
  %s3 = inlined_call_operand.vmem [shape: f32[2,384,128], index: 3, kind: output, shape index: {}]
  %s4 = sld [smem:[#allocation0]]
  $region45: #{unet_forward.27} parent=0
    _
  %s6 = ssub.s32 1, %s4
  %s7 = scalar_select 0, %s6, %s4
  loop: start=0, step=1, limit=4
  $region2: #{unet_forward.27} parent=0 // loop_pre_header
    _
  $region3: #{unet_forward.27} parent=0 // loop_header
    %s9 = sphi 0, %s13
    %p10 = scmp.ge.s32.totalorder %s9, 4
    %s16 = sphi 0, %s28
    %s17 = sphi 0, %s24
    %s18 = sphi 0, %s16
    %s19 = sphi 0, %s17
    %s20 = sphi 0, %s18
    %s21 = sphi 0, %s19
    %s33 = sphi 0, %s35
    %s36 = sphi 0, %s33
    %s37 = sphi 0, %s36
    %s53 = sphi 0, %s37
    %s57 = sphi 0, %s57
    %s59 = sphi 0, %s57
    %s60 = sphi 0, %s59
    %s74 = sphi 0, %s60
    %s78 = sphi 0, %s78
    %s80 = sphi 0, %s78
    %s81 = sphi 0, %s80
    %s95 = sphi 0, %s81
    %s103 = sphi 0, %s105
    %s106 = sphi 0, %s103
    %s107 = sphi 0, %s106
    %s123 = sphi 0, %s107
  $region4: #{unet_forward.27} parent=0 // loop_header_branch
    %12 = sbr.rel (%p10) target = $region8
  $region5: #{unet_forward.27} parent=0 // loop_body
    %s14 = ssub.s32 %s9, 1
    %s15 = ssub.s32 %s9, 2
    %s22 = sadd.s32 1, %s17
    %p23 = scmp.ge.s32.totalorder %s22, 1
    %s24 = scalar_select %p23, 0, %s22
    %s25 = sadd.s32 1, %s16
    %s26 = scalar_select %p23, %s25, %s16
    %p27 = scmp.ge.s32.totalorder %s26, 2
    %s28 = scalar_select %p27, 0, %s26
    %s29 = ssub.s32 %s16, %s28
    %s30 = ssub.s32 %s17, %s24
    %s31 = sor.u32 %s29, %s30
    %p32 = scmp.eq.s32.totalorder %s31, 0
    %s34 = sadd.s32 %s33, 1
    %s35 = scalar_select %p32, %s33, %s34
    %p38 = pneg %p32
    %p39 = scmp.eq.s32.totalorder %s9, 1
    %p40 = por %p38, %p39
    %p41 = scmp.ne.s32.totalorder %s33, %s36
    %p42 = scmp.eq.s32.totalorder %s9, 0
    %p43 = por %p41, %p42
    %p44 = scmp.ne.s32.totalorder %s33, %s36
    %p45 = scmp.eq.s32.totalorder %s14, 1
    %p46 = por %p44, %p45
    %p47 = scmp.ne.s32.totalorder %s36, %s37
    %p48 = scmp.eq.s32.totalorder %s14, 0
    %p49 = por %p47, %p48
    %p50 = scmp.ne.s32.totalorder %s36, %s37
    %p51 = scmp.eq.s32.totalorder %s15, 1
    %p52 = por %p50, %p51
    %p54 = scmp.ne.s32.totalorder %s37, %s53
    %p55 = scmp.eq.s32.totalorder %s15, 0
    %p56 = por %p54, %p55
    %s58 = sadd.s32 %s57, 1
    %p61 = scmp.eq.s32.totalorder %s9, 1
    %p62 = scmp.ne.s32.totalorder %s57, %s59
    %p63 = scmp.eq.s32.totalorder %s9, 0
    %p64 = por %p62, %p63
    %p65 = scmp.ne.s32.totalorder %s57, %s59
    %p66 = scmp.eq.s32.totalorder %s14, 1
    %p67 = por %p65, %p66
    %p68 = scmp.ne.s32.totalorder %s59, %s60
    %p69 = scmp.eq.s32.totalorder %s14, 0
    %p70 = por %p68, %p69
    %p71 = scmp.ne.s32.totalorder %s59, %s60
    %p72 = scmp.eq.s32.totalorder %s15, 1
    %p73 = por %p71, %p72
    %p75 = scmp.ne.s32.totalorder %s60, %s74
    %p76 = scmp.eq.s32.totalorder %s15, 0
    %p77 = por %p75, %p76
    %s79 = sadd.s32 %s78, 1
    %p82 = scmp.eq.s32.totalorder %s9, 1
    %p83 = scmp.ne.s32.totalorder %s78, %s80
    %p84 = scmp.eq.s32.totalorder %s9, 0
    %p85 = por %p83, %p84
    %p86 = scmp.ne.s32.totalorder %s78, %s80
    %p87 = scmp.eq.s32.totalorder %s14, 1
    %p88 = por %p86, %p87
    %p89 = scmp.ne.s32.totalorder %s80, %s81
    %p90 = scmp.eq.s32.totalorder %s14, 0
    %p91 = por %p89, %p90
    %p92 = scmp.ne.s32.totalorder %s80, %s81
    %p93 = scmp.eq.s32.totalorder %s15, 1
    %p94 = por %p92, %p93
    %p96 = scmp.ne.s32.totalorder %s81, %s95
    %p97 = scmp.eq.s32.totalorder %s15, 0
    %p98 = por %p96, %p97
    %s99 = ssub.s32 %s16, %s28
    %s100 = ssub.s32 %s17, %s24
    %s101 = sor.u32 %s99, %s100
    %p102 = scmp.eq.s32.totalorder %s101, 0
    %s104 = sadd.s32 %s103, 1
    %s105 = scalar_select %p102, %s103, %s104
    %p108 = pneg %p102
    %p109 = scmp.eq.s32.totalorder %s9, 1
    %p110 = por %p108, %p109
    %p111 = scmp.ne.s32.totalorder %s103, %s106
    %p112 = scmp.eq.s32.totalorder %s9, 0
    %p113 = por %p111, %p112
    %p114 = scmp.ne.s32.totalorder %s103, %s106
    %p115 = scmp.eq.s32.totalorder %s14, 1
    %p116 = por %p114, %p115
    %p117 = scmp.ne.s32.totalorder %s106, %s107
    %p118 = scmp.eq.s32.totalorder %s14, 0
    %p119 = por %p117, %p118
    %p120 = scmp.ne.s32.totalorder %s106, %s107
    %p121 = scmp.eq.s32.totalorder %s15, 1
    %p122 = por %p120, %p121
    %p124 = scmp.ne.s32.totalorder %s107, %s123
    %p125 = scmp.eq.s32.totalorder %s15, 0
    %p126 = por %p124, %p125
    %p127 = scmp.le.s32.totalorder 1, %s9
    %p128 = scmp.lt.s32.totalorder %s9, 3
    %p129 = pnand %p127, %p128
    %p130 = pneg %p129
    // Predicated region
    $region9: #{unet_forward.27} parent=5 // pred_check
      _
    $region10: #{unet_forward.27} parent=5 // pred_check_branch
      %132 = sbr.rel (%p129) target = $region12
    $region11: #{unet_forward.27} parent=5 // pred_region
      %s133 = ssub.s32 %s9, 1
      // Predicated region
      $region13: #{unet_forward.27} parent=11 // pred_check
        %p134 = pneg %p70
      $region14: #{unet_forward.27} parent=11 // pred_check_branch
        %136 = sbr.rel (%p134) target = $region16
      $region15: #{unet_forward.27} parent=11 // pred_region
        _
      $region16: #{unet_forward.27} parent=11 // pred_fallthru
        _
      // Predicated region
      $region17: #{unet_forward.27} parent=11 // pred_check
        %p137 = pneg %p91
      $region18: #{unet_forward.27} parent=11 // pred_check_branch
        %139 = sbr.rel (%p137) target = $region20
      $region19: #{unet_forward.27} parent=11 // pred_region
        _
      $region20: #{unet_forward.27} parent=11 // pred_fallthru
        _
    $region12: #{unet_forward.27} parent=5 // pred_fallthru
      _
    %p140 = scmp.lt.s32.totalorder %s9, 2
    // Predicated region
    $region21: #{unet_forward.27} parent=5 // pred_check
      %p141 = pneg %p140
    $region22: #{unet_forward.27} parent=5 // pred_check_branch
      %143 = sbr.rel (%p141) target = $region24
    $region23: #{unet_forward.27} parent=5 // pred_region
      // Predicated region
      $region25: #{unet_forward.27} parent=23 // pred_check
        %p144 = pneg %p43
      $region26: #{unet_forward.27} parent=23 // pred_check_branch
        %146 = sbr.rel (%p144) target = $region28
      $region27: #{unet_forward.27} parent=23 // pred_region
        %p147 = scmp.lt.s32.totalorder %s16, 1
        %s148 = scalar_select %p147, %s16, 1
        %p149 = scmp.lt.s32.totalorder %s17, 0
        %s150 = scalar_select %p149, %s17, 0
        %s151 = smul.addr %s150, 55
        %s152 = smul.addr %s148, 55
        %s153 = sadd.s32 %s151, %s152
        %s154 = smul.addr %s153, 4
        %s155 = scalar_lea.vmem %s0, %s154
      $region28: #{unet_forward.27} parent=23 // pred_fallthru
        _
    $region24: #{unet_forward.27} parent=5 // pred_fallthru
      _
    %p156 = scmp.le.s32.totalorder 1, %s9
    %p157 = scmp.lt.s32.totalorder %s9, 3
    %p158 = pnand %p156, %p157
    %p159 = pneg %p158
    // Predicated region
    $region29: #{unet_forward.27} parent=5 // pred_check
      _
    $region30: #{unet_forward.27} parent=5 // pred_check_branch
      %161 = sbr.rel (%p158) target = $region32
    $region31: #{unet_forward.27} parent=5 // pred_region
      %s162 = ssub.s32 %s9, 1
      %p163 = scmp.lt.s32.totalorder %s18, 1
      %s164 = scalar_select %p163, %s18, 1
      %p165 = scmp.lt.s32.totalorder %s19, 0
      %s166 = scalar_select %p165, %s19, 0
      %s167 = smul.addr %s166, 55
      %s168 = smul.addr %s164, 55
      %s169 = sadd.s32 %s167, %s168
      %s170 = smul.addr %s169, 4
      %s171 = scalar_lea.vmem %s0, %s170
      %p172 = pneg %p49
      %p173 = pneg %p46
      %p174 = pneg %p70
      %p175 = pneg %p67
      %p176 = pneg %p91
      %p177 = pneg %p88
      %p178 = pneg %p119
      %p179 = pneg %p116
      %s180 = smul.u32 48, %s19
      %p181 = scmp.lt.s32.totalorder %s18, 1
      %s182 = scalar_select %p181, %s18, 1
      %p183 = scmp.lt.s32.totalorder %s180, 47
      %s184 = scalar_select %p183, %s180, 47
      %s185 = smul.addr %s182, 48
      %s186 = sadd.s32 %s184, %s185
      %s187 = smul.addr %s186, 8
      %s188 = scalar_lea.vmem %s3, %s187
      %p189 = scmp.lt.s32.totalorder %s18, 1
      %s190 = scalar_select %p189, %s18, 1
      %p191 = scmp.lt.s32.totalorder %s19, 0
      %s192 = scalar_select %p191, %s19, 0
      %s193 = smul.addr %s192, 55
      %s194 = smul.addr %s190, 55
      %s195 = sadd.s32 %s193, %s194
      %s196 = smul.addr %s195, 4
      %s197 = scalar_lea.vmem %s0, %s196
      %s198 = smul.u32 48, %s19
      %p199 = scmp.lt.s32.totalorder %s18, 1
      %s200 = scalar_select %p199, %s18, 1
      %p201 = scmp.lt.s32.totalorder %s198, 47
      %s202 = scalar_select %p201, %s198, 47
      %s203 = smul.addr %s200, 48
      %s204 = sadd.s32 %s202, %s203
      %s205 = smul.addr %s204, 8
      %s206 = scalar_lea.vmem %s3, %s205
      %s207 = smul.u32 48, %s19
      %v209 = vld [vmem:[%s197] sm:$0xf]
      %v210 = vld [vmem:[%s197 + $0x4] sm:$0xf]
      %v211 = vld [vmem:[%s197 + $0x8] sm:$0xf]
      %v212 = vld [vmem:[%s197 + $0xc] sm:$0xf]
      %v213 = vld [vmem:[%s197 + $0x10] sm:$0xf]
      %v214 = vld [vmem:[%s197 + $0x14] sm:$0xf]
      %v215 = vld [vmem:[%s197 + $0x18] sm:$0xf]
      %v216 = vld [vmem:[%s197 + $0x1c] sm:$0xf]
      %v217 = vld [vmem:[%s197 + $0x20] sm:$0xf]
      %v218 = vld [vmem:[%s197 + $0x24] sm:$0xf]
      %v219 = vld [vmem:[%s197 + $0x28] sm:$0xf]
      %v220 = vld [vmem:[%s197 + $0x2c] sm:$0xf]
      %v221 = vld [vmem:[%s197 + $0x30] sm:$0xf]
      %v222 = vld [vmem:[%s197 + $0x34] sm:$0xf]
      %v223 = vld [vmem:[%s197 + $0x38] sm:$0xf]
      %v224 = vld [vmem:[%s197 + $0x3c] sm:$0xf]
      %v225 = vld [vmem:[%s197 + $0x40] sm:$0xf]
      %v226 = vld [vmem:[%s197 + $0x44] sm:$0xf]
      %v227 = vld [vmem:[%s197 + $0x48] sm:$0xf]
      %v228 = vld [vmem:[%s197 + $0x4c] sm:$0xf]
      %v229 = vld [vmem:[%s197 + $0x50] sm:$0xf]
      %v230 = vld [vmem:[%s197 + $0x54] sm:$0xf]
      %v231 = vld [vmem:[%s197 + $0x58] sm:$0xf]
      %v232 = vld [vmem:[%s197 + $0x5c] sm:$0xf]
      %v233 = vld [vmem:[%s197 + $0x60] sm:$0xf]
      %v234 = vld [vmem:[%s197 + $0x64] sm:$0xf]
      %v235 = vld [vmem:[%s197 + $0x68] sm:$0xf]
      %v236 = vld [vmem:[%s197 + $0x6c] sm:$0xf]
      %v237 = vld [vmem:[%s197 + $0x70] sm:$0xf]
      %v238 = vld [vmem:[%s197 + $0x74] sm:$0xf]
      %v239 = vld [vmem:[%s197 + $0x78] sm:$0xf]
      %v240 = vld [vmem:[%s197 + $0x7c] sm:$0xf]
      %v241 = vld [vmem:[%s197 + $0x80] sm:$0xf]
      %v242 = vld [vmem:[%s197 + $0x84] sm:$0xf]
      %v243 = vld [vmem:[%s197 + $0x88] sm:$0xf]
      %v244 = vld [vmem:[%s197 + $0x8c] sm:$0xf]
      %v245 = vld [vmem:[%s197 + $0x90] sm:$0xf]
      %v246 = vld [vmem:[%s197 + $0x94] sm:$0xf]
      %v247 = vld [vmem:[%s197 + $0x98] sm:$0xf]
      %v248 = vld [vmem:[%s197 + $0x9c] sm:$0xf]
      %v249 = vld [vmem:[%s197 + $0xa0] sm:$0xf]
      %v250 = vld [vmem:[%s197 + $0xa4] sm:$0xf]
      %v251 = vld [vmem:[%s197 + $0xa8] sm:$0xf]
      %v252 = vld [vmem:[%s197 + $0xac] sm:$0xf]
      %v253 = vld [vmem:[%s197 + $0xb0] sm:$0xf]
      %v254 = vld [vmem:[%s197 + $0xb4] sm:$0xf]
      %v255 = vld [vmem:[%s197 + $0xb8] sm:$0xf]
      %v256 = vld [vmem:[%s197 + $0xbc] sm:$0xf]
      %v257 = vld [vmem:[%s1] sm:$0xf]
      %v258 = vld [vmem:[%s1 + $0x4] sm:$0xf]
      %v259 = vld [vmem:[%s1 + $0x8] sm:$0xf]
      %v260 = vld [vmem:[%s1 + $0xc] sm:$0xf]
      %v261 = vld [vmem:[%s197 + $0xc0] sm:$0x1]
      %s262 = scalar_lea.vmem %s1, 16
      %v263 = vld [vmem:[%s262] sm:$0xf]
      %v264 = vld [vmem:[%s262 + $0x4] sm:$0xf]
      %v265 = vld [vmem:[%s262 + $0x8] sm:$0xf]
      %v266 = vld [vmem:[%s262 + $0xc] sm:$0xf]
      %v316 = vunpack.c.l.b16 %v209
      %v317 = vunpack.c.l.b16 %v210
      %v318 = vunpack.c.l.b16 %v211
      %v319 = vunpack.c.l.b16 %v212
      %v320 = vunpack.c.l.b16 %v213
      %v321 = vunpack.c.l.b16 %v214
      %v322 = vunpack.c.l.b16 %v215
      %v323 = vunpack.c.l.b16 %v216
      %v324 = vunpack.c.l.b16 %v217
      %v325 = vunpack.c.l.b16 %v218
      %v326 = vunpack.c.l.b16 %v219
      %v327 = vunpack.c.l.b16 %v220
      %v328 = vunpack.c.l.b16 %v221
      %v329 = vunpack.c.l.b16 %v222
      %v330 = vunpack.c.l.b16 %v223
      %v331 = vunpack.c.l.b16 %v224
      %v332 = vunpack.c.l.b16 %v225
      %v333 = vunpack.c.l.b16 %v226
      %v334 = vunpack.c.l.b16 %v227
      %v335 = vunpack.c.l.b16 %v228
      %v336 = vunpack.c.l.b16 %v229
      %v337 = vunpack.c.l.b16 %v230
      %v338 = vunpack.c.l.b16 %v231
      %v339 = vunpack.c.l.b16 %v232
      %v340 = vunpack.c.l.b16 %v233
      %v341 = vunpack.c.l.b16 %v234
      %v342 = vunpack.c.l.b16 %v235
      %v343 = vunpack.c.l.b16 %v236
      %v344 = vunpack.c.l.b16 %v237
      %v345 = vunpack.c.l.b16 %v238
      %v346 = vunpack.c.l.b16 %v239
      %v347 = vunpack.c.l.b16 %v240
      %v348 = vunpack.c.l.b16 %v241
      %v349 = vunpack.c.l.b16 %v242
      %v350 = vunpack.c.l.b16 %v243
      %v351 = vunpack.c.l.b16 %v244
      %v352 = vunpack.c.l.b16 %v245
      %v353 = vunpack.c.l.b16 %v246
      %v354 = vunpack.c.l.b16 %v247
      %v355 = vunpack.c.l.b16 %v248
      %v356 = vunpack.c.l.b16 %v249
      %v357 = vunpack.c.l.b16 %v250
      %v358 = vunpack.c.l.b16 %v251
      %v359 = vunpack.c.l.b16 %v252
      %v360 = vunpack.c.l.b16 %v253
      %v361 = vunpack.c.l.b16 %v254
      %v362 = vunpack.c.l.b16 %v255
      %v363 = vunpack.c.l.b16 %v256
      %v364 = vunpack.c.l.b16 %v261
      %v365 = vpack.c.b16 %v317, %v316
      %v366 = vpack.c.b16 %v319, %v318
      %v367 = vpack.c.b16 %v321, %v320
      %v368 = vpack.c.b16 %v323, %v322
      %v369 = vpack.c.b16 %v325, %v324
      %v370 = vpack.c.b16 %v327, %v326
      %v371 = vpack.c.b16 %v329, %v328
      %v372 = vpack.c.b16 %v331, %v330
      %v373 = vpack.c.b16 %v333, %v332
      %v374 = vpack.c.b16 %v335, %v334
      %v375 = vpack.c.b16 %v337, %v336
      %v376 = vpack.c.b16 %v339, %v338
      %v377 = vpack.c.b16 %v341, %v340
      %v378 = vpack.c.b16 %v343, %v342
      %v379 = vpack.c.b16 %v345, %v344
      %v380 = vpack.c.b16 %v347, %v346
      %v381 = vpack.c.b16 %v349, %v348
      %v382 = vpack.c.b16 %v351, %v350
      %v383 = vpack.c.b16 %v353, %v352
      %v384 = vpack.c.b16 %v355, %v354
      %v385 = vpack.c.b16 %v357, %v356
      %v386 = vpack.c.b16 %v359, %v358
      %v387 = vpack.c.b16 %v361, %v360
      %v388 = vpack.c.b16 %v363, %v362
      %v389 = vpack.c.b16 %v364, %v364
      %vm390 = vsmask.f32 7424
      %v392 = vshrl.u32 %v365, 16
      %v394 = vshll.u32 %v365, 16
      %v396 = vrot.slane %v394, 1
      %v397 = vor.u32 %v392, %v396
      %v399 = vshll.u32 %v366, 16
      %v401 = vrot.slane %v399, 1
      %v402 = vsel %vm390, %v397, %v401
      %v403 = vshrl.u32 %v366, 16
      %v405 = vor.u32 %v403, %v401
      %v407 = vshll.u32 %v367, 16
      %v409 = vrot.slane %v407, 1
      %v410 = vsel %vm390, %v405, %v409
      %v411 = vshrl.u32 %v367, 16
      %v413 = vor.u32 %v411, %v409
      %v415 = vshll.u32 %v368, 16
      %v417 = vrot.slane %v415, 1
      %v418 = vsel %vm390, %v413, %v417
      %v419 = vshrl.u32 %v368, 16
      %v421 = vor.u32 %v419, %v417
      %v423 = vshll.u32 %v369, 16
      %v425 = vrot.slane %v423, 1
      %v426 = vsel %vm390, %v421, %v425
      %v427 = vshrl.u32 %v369, 16
      %v429 = vor.u32 %v427, %v425
      %v431 = vshll.u32 %v370, 16
      %v433 = vrot.slane %v431, 1
      %v434 = vsel %vm390, %v429, %v433
      %v435 = vshrl.u32 %v370, 16
      %v437 = vor.u32 %v435, %v433
      %v439 = vshll.u32 %v371, 16
      %v441 = vrot.slane %v439, 1
      %v442 = vsel %vm390, %v437, %v441
      %v443 = vshrl.u32 %v371, 16
      %v445 = vor.u32 %v443, %v441
      %v447 = vshll.u32 %v372, 16
      %v449 = vrot.slane %v447, 1
      %v450 = vsel %vm390, %v445, %v449
      %v451 = vshrl.u32 %v372, 16
      %v453 = vor.u32 %v451, %v449
      %v455 = vshll.u32 %v373, 16
      %v457 = vrot.slane %v455, 1
      %v458 = vsel %vm390, %v453, %v457
      %v459 = vshrl.u32 %v373, 16
      %v461 = vor.u32 %v459, %v457
      %v463 = vshll.u32 %v374, 16
      %v465 = vrot.slane %v463, 1
      %v466 = vsel %vm390, %v461, %v465
      %v467 = vshrl.u32 %v374, 16
      %v469 = vor.u32 %v467, %v465
      %v471 = vshll.u32 %v375, 16
      %v473 = vrot.slane %v471, 1
      %v474 = vsel %vm390, %v469, %v473
      %v475 = vshrl.u32 %v375, 16
      %v477 = vor.u32 %v475, %v473
      %v479 = vshll.u32 %v376, 16
      %v481 = vrot.slane %v479, 1
      %v482 = vsel %vm390, %v477, %v481
      %v483 = vshrl.u32 %v376, 16
      %v485 = vor.u32 %v483, %v481
      %v487 = vshll.u32 %v377, 16
      %v489 = vrot.slane %v487, 1
      %v490 = vsel %vm390, %v485, %v489
      %v491 = vshrl.u32 %v377, 16
      %v493 = vor.u32 %v491, %v489
      %v495 = vshll.u32 %v378, 16
      %v497 = vrot.slane %v495, 1
      %v498 = vsel %vm390, %v493, %v497
      %v499 = vshrl.u32 %v378, 16
      %v501 = vor.u32 %v499, %v497
      %v503 = vshll.u32 %v379, 16
      %v505 = vrot.slane %v503, 1
      %v506 = vsel %vm390, %v501, %v505
      %v507 = vshrl.u32 %v379, 16
      %v509 = vor.u32 %v507, %v505
      %v511 = vshll.u32 %v380, 16
      %v513 = vrot.slane %v511, 1
      %v514 = vsel %vm390, %v509, %v513
      %v515 = vshrl.u32 %v380, 16
      %v517 = vor.u32 %v515, %v513
      %v519 = vshll.u32 %v381, 16
      %v521 = vrot.slane %v519, 1
      %v522 = vsel %vm390, %v517, %v521
      %v523 = vshrl.u32 %v381, 16
      %v525 = vor.u32 %v523, %v521
      %v527 = vshll.u32 %v382, 16
      %v529 = vrot.slane %v527, 1
      %v530 = vsel %vm390, %v525, %v529
      %v531 = vshrl.u32 %v382, 16
      %v533 = vor.u32 %v531, %v529
      %v535 = vshll.u32 %v383, 16
      %v537 = vrot.slane %v535, 1
      %v538 = vsel %vm390, %v533, %v537
      %v539 = vshrl.u32 %v383, 16
      %v541 = vor.u32 %v539, %v537
      %v543 = vshll.u32 %v384, 16
      %v545 = vrot.slane %v543, 1
      %v546 = vsel %vm390, %v541, %v545
      %v547 = vshrl.u32 %v384, 16
      %v549 = vor.u32 %v547, %v545
      %v551 = vshll.u32 %v385, 16
      %v553 = vrot.slane %v551, 1
      %v554 = vsel %vm390, %v549, %v553
      %v555 = vshrl.u32 %v385, 16
      %v557 = vor.u32 %v555, %v553
      %v559 = vshll.u32 %v386, 16
      %v561 = vrot.slane %v559, 1
      %v562 = vsel %vm390, %v557, %v561
      %v563 = vshrl.u32 %v386, 16
      %v565 = vor.u32 %v563, %v561
      %v567 = vshll.u32 %v387, 16
      %v569 = vrot.slane %v567, 1
      %v570 = vsel %vm390, %v565, %v569
      %v571 = vshrl.u32 %v387, 16
      %v573 = vor.u32 %v571, %v569
      %v575 = vshll.u32 %v388, 16
      %v577 = vrot.slane %v575, 1
      %v578 = vsel %vm390, %v573, %v577
      %v579 = vshrl.u32 %v388, 16
      %v581 = vor.u32 %v579, %v577
      %v583 = vshll.u32 %v389, 16
      %v585 = vrot.slane %v583, 1
      %v586 = vsel %vm390, %v581, %v585
      %v591 = vunpack.c.l.b16 %v263
      %v592 = vunpack.c.l.b16 %v264
      %v593 = vunpack.c.l.b16 %v265
      %v594 = vunpack.c.l.b16 %v266
      %v595 = vpack.c.b16 %v592, %v591
      %v596 = vpack.c.b16 %v594, %v593
      %vm599 = vcmask 261120
      %v601 = vsel %vm599, %v402, 0
      %v604 = vsel %vm599, %v410, 0
      %v607 = vsel %vm599, %v418, 0
      %v610 = vsel %vm599, %v426, 0
      %v613 = vsel %vm599, %v434, 0
      %v616 = vsel %vm599, %v442, 0
      %v619 = vsel %vm599, %v450, 0
      %v622 = vsel %vm599, %v458, 0
      %v625 = vsel %vm599, %v466, 0
      %v628 = vsel %vm599, %v474, 0
      %v631 = vsel %vm599, %v482, 0
      %v634 = vsel %vm599, %v490, 0
      %v637 = vsel %vm599, %v498, 0
      %v640 = vsel %vm599, %v506, 0
      %v643 = vsel %vm599, %v514, 0
      %v646 = vsel %vm599, %v522, 0
      %v649 = vsel %vm599, %v530, 0
      %v652 = vsel %vm599, %v538, 0
      %v655 = vsel %vm599, %v546, 0
      %v658 = vsel %vm599, %v554, 0
      %v661 = vsel %vm599, %v562, 0
      %v664 = vsel %vm599, %v570, 0
      %v667 = vsel %vm599, %v578, 0
      %v670 = vsel %vm599, %v586, 0
      %672 = vmatpush.bf16.msra.mxu0 0
      %673 = vmatpush.bf16.msra.mxu0 0
      %674 = vmatpush.bf16.msra.mxu0 0
      %675 = vmatpush.bf16.msra.mxu0 0
      %676 = vmatpush.bf16.msra.mxu0 0
      %677 = vmatpush.bf16.msra.mxu0 0
      %678 = vmatpush.bf16.msra.mxu0 %v596
      %679 = vmatpush.bf16.msra.mxu0 %v595
      %680 = vmatmul.bf16.gmra.mxu0 %v601
      %v681 = vpop.f32.mrf.mxu0
      %v682 = vadd.f32 0.0, %v681
      %v683 = vpop.f32.mrf.mxu0
      %v684 = vadd.f32 0.0, %v683
      %685 = vmatmul.bf16.gmra.mxu0 %v604
      %v686 = vpop.f32.mrf.mxu0
      %v687 = vadd.f32 0.0, %v686
      %v688 = vpop.f32.mrf.mxu0
      %v689 = vadd.f32 0.0, %v688
      %690 = vmatmul.bf16.gmra.mxu0 %v607
      %v691 = vpop.f32.mrf.mxu0
      %v692 = vadd.f32 0.0, %v691
      %v693 = vpop.f32.mrf.mxu0
      %v694 = vadd.f32 0.0, %v693
      %695 = vmatmul.bf16.gmra.mxu0 %v610
      %v696 = vpop.f32.mrf.mxu0
      %v697 = vadd.f32 0.0, %v696
      %v698 = vpop.f32.mrf.mxu0
      %v699 = vadd.f32 0.0, %v698
      %700 = vmatmul.bf16.gmra.mxu0 %v613
      %v701 = vpop.f32.mrf.mxu0
      %v702 = vadd.f32 0.0, %v701
      %v703 = vpop.f32.mrf.mxu0
      %v704 = vadd.f32 0.0, %v703
      %705 = vmatmul.bf16.gmra.mxu0 %v616
      %v706 = vpop.f32.mrf.mxu0
      %v707 = vadd.f32 0.0, %v706
      %v708 = vpop.f32.mrf.mxu0
      %v709 = vadd.f32 0.0, %v708
      %710 = vmatmul.bf16.gmra.mxu0 %v619
      %v711 = vpop.f32.mrf.mxu0
      %v712 = vadd.f32 0.0, %v711
      %v713 = vpop.f32.mrf.mxu0
      %v714 = vadd.f32 0.0, %v713
      %715 = vmatmul.bf16.gmra.mxu0 %v622
      %v716 = vpop.f32.mrf.mxu0
      %v717 = vadd.f32 0.0, %v716
      %v718 = vpop.f32.mrf.mxu0
      %v719 = vadd.f32 0.0, %v718
      %720 = vmatmul.bf16.gmra.mxu0 %v625
      %v721 = vpop.f32.mrf.mxu0
      %v722 = vadd.f32 0.0, %v721
      %v723 = vpop.f32.mrf.mxu0
      %v724 = vadd.f32 0.0, %v723
      %725 = vmatmul.bf16.gmra.mxu0 %v628
      %v726 = vpop.f32.mrf.mxu0
      %v727 = vadd.f32 0.0, %v726
      %v728 = vpop.f32.mrf.mxu0
      %v729 = vadd.f32 0.0, %v728
      %730 = vmatmul.bf16.gmra.mxu0 %v631
      %v731 = vpop.f32.mrf.mxu0
      %v732 = vadd.f32 0.0, %v731
      %v733 = vpop.f32.mrf.mxu0
      %v734 = vadd.f32 0.0, %v733
      %735 = vmatmul.bf16.gmra.mxu0 %v634
      %v736 = vpop.f32.mrf.mxu0
      %v737 = vadd.f32 0.0, %v736
      %v738 = vpop.f32.mrf.mxu0
      %v739 = vadd.f32 0.0, %v738
      %740 = vmatmul.bf16.gmra.mxu0 %v637
      %v741 = vpop.f32.mrf.mxu0
      %v742 = vadd.f32 0.0, %v741
      %v743 = vpop.f32.mrf.mxu0
      %v744 = vadd.f32 0.0, %v743
      %745 = vmatmul.bf16.gmra.mxu0 %v640
      %v746 = vpop.f32.mrf.mxu0
      %v747 = vadd.f32 0.0, %v746
      %v748 = vpop.f32.mrf.mxu0
      %v749 = vadd.f32 0.0, %v748
      %750 = vmatmul.bf16.gmra.mxu0 %v643
      %v751 = vpop.f32.mrf.mxu0
      %v752 = vadd.f32 0.0, %v751
      %v753 = vpop.f32.mrf.mxu0
      %v754 = vadd.f32 0.0, %v753
      %755 = vmatmul.bf16.gmra.mxu0 %v646
      %v756 = vpop.f32.mrf.mxu0
      %v757 = vadd.f32 0.0, %v756
      %v758 = vpop.f32.mrf.mxu0
      %v759 = vadd.f32 0.0, %v758
      %760 = vmatmul.bf16.gmra.mxu0 %v649
      %v761 = vpop.f32.mrf.mxu0
      %v762 = vadd.f32 0.0, %v761
      %v763 = vpop.f32.mrf.mxu0
      %v764 = vadd.f32 0.0, %v763
      %765 = vmatmul.bf16.gmra.mxu0 %v652
      %v766 = vpop.f32.mrf.mxu0
      %v767 = vadd.f32 0.0, %v766
      %v768 = vpop.f32.mrf.mxu0
      %v769 = vadd.f32 0.0, %v768
      %770 = vmatmul.bf16.gmra.mxu0 %v655
      %v771 = vpop.f32.mrf.mxu0
      %v772 = vadd.f32 0.0, %v771
      %v773 = vpop.f32.mrf.mxu0
      %v774 = vadd.f32 0.0, %v773
      %775 = vmatmul.bf16.gmra.mxu0 %v658
      %v776 = vpop.f32.mrf.mxu0
      %v777 = vadd.f32 0.0, %v776
      %v778 = vpop.f32.mrf.mxu0
      %v779 = vadd.f32 0.0, %v778
      %780 = vmatmul.bf16.gmra.mxu0 %v661
      %v781 = vpop.f32.mrf.mxu0
      %v782 = vadd.f32 0.0, %v781
      %v783 = vpop.f32.mrf.mxu0
      %v784 = vadd.f32 0.0, %v783
      %785 = vmatmul.bf16.gmra.mxu0 %v664
      %v786 = vpop.f32.mrf.mxu0
      %v787 = vadd.f32 0.0, %v786
      %v788 = vpop.f32.mrf.mxu0
      %v789 = vadd.f32 0.0, %v788
      %790 = vmatmul.bf16.gmra.mxu0 %v667
      %v791 = vpop.f32.mrf.mxu0
      %v792 = vadd.f32 0.0, %v791
      %v793 = vpop.f32.mrf.mxu0
      %v794 = vadd.f32 0.0, %v793
      %795 = vmatmul.bf16.gmra.mxu0 %v670
      %v796 = vpop.f32.mrf.mxu0
      %v797 = vadd.f32 0.0, %v796
      %v798 = vpop.f32.mrf.mxu0
      %v799 = vadd.f32 0.0, %v798
      %800 = vdwg.mxu0
      %v805 = vunpack.c.l.b16 %v257
      %v806 = vunpack.c.l.b16 %v258
      %v807 = vunpack.c.l.b16 %v259
      %v808 = vunpack.c.l.b16 %v260
      %v809 = vpack.c.b16 %v806, %v805
      %v810 = vpack.c.b16 %v808, %v807
      %v813 = vsel %vm599, %v365, 0
      %v815 = vsel %vm599, %v366, 0
      %v817 = vsel %vm599, %v367, 0
      %v819 = vsel %vm599, %v368, 0
      %v821 = vsel %vm599, %v369, 0
      %v823 = vsel %vm599, %v370, 0
      %v825 = vsel %vm599, %v371, 0
      %v827 = vsel %vm599, %v372, 0
      %v829 = vsel %vm599, %v373, 0
      %v831 = vsel %vm599, %v374, 0
      %v833 = vsel %vm599, %v375, 0
      %v835 = vsel %vm599, %v376, 0
      %v837 = vsel %vm599, %v377, 0
      %v839 = vsel %vm599, %v378, 0
      %v841 = vsel %vm599, %v379, 0
      %v843 = vsel %vm599, %v380, 0
      %v845 = vsel %vm599, %v381, 0
      %v847 = vsel %vm599, %v382, 0
      %v849 = vsel %vm599, %v383, 0
      %v851 = vsel %vm599, %v384, 0
      %v853 = vsel %vm599, %v385, 0
      %v855 = vsel %vm599, %v386, 0
      %v857 = vsel %vm599, %v387, 0
      %v859 = vsel %vm599, %v388, 0
      %861 = vmatpush.bf16.msra.mxu0 0
      %862 = vmatpush.bf16.msra.mxu0 0
      %863 = vmatpush.bf16.msra.mxu0 0
      %864 = vmatpush.bf16.msra.mxu0 0
      %865 = vmatpush.bf16.msra.mxu0 0
      %866 = vmatpush.bf16.msra.mxu0 0
      %867 = vmatpush.bf16.msra.mxu0 %v810
      %868 = vmatpush.bf16.msra.mxu0 %v809
      %869 = vmatmul.bf16.gmra.mxu0 %v813
      %v870 = vpop.f32.mrf.mxu0
      %v871 = vadd.f32 %v682, %v870
      %v872 = vpop.f32.mrf.mxu0
      %v873 = vadd.f32 %v684, %v872
      %874 = vmatmul.bf16.gmra.mxu0 %v815
      %v875 = vpop.f32.mrf.mxu0
      %v876 = vadd.f32 %v687, %v875
      %v877 = vpop.f32.mrf.mxu0
      %v878 = vadd.f32 %v689, %v877
      %879 = vmatmul.bf16.gmra.mxu0 %v817
      %v880 = vpop.f32.mrf.mxu0
      %v881 = vadd.f32 %v692, %v880
      %v882 = vpop.f32.mrf.mxu0
      %v883 = vadd.f32 %v694, %v882
      %884 = vmatmul.bf16.gmra.mxu0 %v819
      %v885 = vpop.f32.mrf.mxu0
      %v886 = vadd.f32 %v697, %v885
      %v887 = vpop.f32.mrf.mxu0
      %v888 = vadd.f32 %v699, %v887
      %889 = vmatmul.bf16.gmra.mxu0 %v821
      %v890 = vpop.f32.mrf.mxu0
      %v891 = vadd.f32 %v702, %v890
      %v892 = vpop.f32.mrf.mxu0
      %v893 = vadd.f32 %v704, %v892
      %894 = vmatmul.bf16.gmra.mxu0 %v823
      %v895 = vpop.f32.mrf.mxu0
      %v896 = vadd.f32 %v707, %v895
      %v897 = vpop.f32.mrf.mxu0
      %v898 = vadd.f32 %v709, %v897
      %899 = vmatmul.bf16.gmra.mxu0 %v825
      %v900 = vpop.f32.mrf.mxu0
      %v901 = vadd.f32 %v712, %v900
      %v902 = vpop.f32.mrf.mxu0
      %v903 = vadd.f32 %v714, %v902
      %904 = vmatmul.bf16.gmra.mxu0 %v827
      %v905 = vpop.f32.mrf.mxu0
      %v906 = vadd.f32 %v717, %v905
      %v907 = vpop.f32.mrf.mxu0
      %v908 = vadd.f32 %v719, %v907
      %909 = vmatmul.bf16.gmra.mxu0 %v829
      %v910 = vpop.f32.mrf.mxu0
      %v911 = vadd.f32 %v722, %v910
      %v912 = vpop.f32.mrf.mxu0
      %v913 = vadd.f32 %v724, %v912
      %914 = vmatmul.bf16.gmra.mxu0 %v831
      %v915 = vpop.f32.mrf.mxu0
      %v916 = vadd.f32 %v727, %v915
      %v917 = vpop.f32.mrf.mxu0
      %v918 = vadd.f32 %v729, %v917
      %919 = vmatmul.bf16.gmra.mxu0 %v833
      %v920 = vpop.f32.mrf.mxu0
      %v921 = vadd.f32 %v732, %v920
      %v922 = vpop.f32.mrf.mxu0
      %v923 = vadd.f32 %v734, %v922
      %924 = vmatmul.bf16.gmra.mxu0 %v835
      %v925 = vpop.f32.mrf.mxu0
      %v926 = vadd.f32 %v737, %v925
      %v927 = vpop.f32.mrf.mxu0
      %v928 = vadd.f32 %v739, %v927
      %929 = vmatmul.bf16.gmra.mxu0 %v837
      %v930 = vpop.f32.mrf.mxu0
      %v931 = vadd.f32 %v742, %v930
      %v932 = vpop.f32.mrf.mxu0
      %v933 = vadd.f32 %v744, %v932
      %934 = vmatmul.bf16.gmra.mxu0 %v839
      %v935 = vpop.f32.mrf.mxu0
      %v936 = vadd.f32 %v747, %v935
      %v937 = vpop.f32.mrf.mxu0
      %v938 = vadd.f32 %v749, %v937
      %939 = vmatmul.bf16.gmra.mxu0 %v841
      %v940 = vpop.f32.mrf.mxu0
      %v941 = vadd.f32 %v752, %v940
      %v942 = vpop.f32.mrf.mxu0
      %v943 = vadd.f32 %v754, %v942
      %944 = vmatmul.bf16.gmra.mxu0 %v843
      %v945 = vpop.f32.mrf.mxu0
      %v946 = vadd.f32 %v757, %v945
      %v947 = vpop.f32.mrf.mxu0
      %v948 = vadd.f32 %v759, %v947
      %949 = vmatmul.bf16.gmra.mxu0 %v845
      %v950 = vpop.f32.mrf.mxu0
      %v951 = vadd.f32 %v762, %v950
      %v952 = vpop.f32.mrf.mxu0
      %v953 = vadd.f32 %v764, %v952
      %954 = vmatmul.bf16.gmra.mxu0 %v847
      %v955 = vpop.f32.mrf.mxu0
      %v956 = vadd.f32 %v767, %v955
      %v957 = vpop.f32.mrf.mxu0
      %v958 = vadd.f32 %v769, %v957
      %959 = vmatmul.bf16.gmra.mxu0 %v849
      %v960 = vpop.f32.mrf.mxu0
      %v961 = vadd.f32 %v772, %v960
      %v962 = vpop.f32.mrf.mxu0
      %v963 = vadd.f32 %v774, %v962
      %964 = vmatmul.bf16.gmra.mxu0 %v851
      %v965 = vpop.f32.mrf.mxu0
      %v966 = vadd.f32 %v777, %v965
      %v967 = vpop.f32.mrf.mxu0
      %v968 = vadd.f32 %v779, %v967
      %969 = vmatmul.bf16.gmra.mxu0 %v853
      %v970 = vpop.f32.mrf.mxu0
      %v971 = vadd.f32 %v782, %v970
      %v972 = vpop.f32.mrf.mxu0
      %v973 = vadd.f32 %v784, %v972
      %974 = vmatmul.bf16.gmra.mxu0 %v855
      %v975 = vpop.f32.mrf.mxu0
      %v976 = vadd.f32 %v787, %v975
      %v977 = vpop.f32.mrf.mxu0
      %v978 = vadd.f32 %v789, %v977
      %979 = vmatmul.bf16.gmra.mxu0 %v857
      %v980 = vpop.f32.mrf.mxu0
      %v981 = vadd.f32 %v792, %v980
      %v982 = vpop.f32.mrf.mxu0
      %v983 = vadd.f32 %v794, %v982
      %984 = vmatmul.bf16.gmra.mxu0 %v859
      %v985 = vpop.f32.mrf.mxu0
      %v986 = vadd.f32 %v797, %v985
      %v987 = vpop.f32.mrf.mxu0
      %v988 = vadd.f32 %v799, %v987
      %989 = vdwg.mxu0
      %v990 = vld [vmem:[%s197] sm:$0xe]
      %s991 = scalar_lea.vmem %s1, 32
      %v992 = vld [vmem:[%s991] sm:$0xf]
      %v993 = vld [vmem:[%s991 + $0x4] sm:$0xf]
      %v994 = vld [vmem:[%s991 + $0x8] sm:$0xf]
      %v995 = vld [vmem:[%s991 + $0xc] sm:$0xf]
      %v997 = vunpack.c.l.b16 %v990
      %v998 = vpack.c.b16 %v317, %v997
      %vm999 = vcmask 1046528
      %v1000 = vrot.slane %v998, 1
      %v1001 = vrot.slane %v366, 1
      %v1002 = vsel %vm999, %v1000, %v1001
      %v1003 = vrot.slane %v367, 1
      %v1004 = vsel %vm999, %v1001, %v1003
      %v1005 = vrot.slane %v368, 1
      %v1006 = vsel %vm999, %v1003, %v1005
      %v1007 = vrot.slane %v369, 1
      %v1008 = vsel %vm999, %v1005, %v1007
      %v1009 = vrot.slane %v370, 1
      %v1010 = vsel %vm999, %v1007, %v1009
      %v1011 = vrot.slane %v371, 1
      %v1012 = vsel %vm999, %v1009, %v1011
      %v1013 = vrot.slane %v372, 1
      %v1014 = vsel %vm999, %v1011, %v1013
      %v1015 = vrot.slane %v373, 1
      %v1016 = vsel %vm999, %v1013, %v1015
      %v1017 = vrot.slane %v374, 1
      %v1018 = vsel %vm999, %v1015, %v1017
      %v1019 = vrot.slane %v375, 1
      %v1020 = vsel %vm999, %v1017, %v1019
      %v1021 = vrot.slane %v376, 1
      %v1022 = vsel %vm999, %v1019, %v1021
      %v1023 = vrot.slane %v377, 1
      %v1024 = vsel %vm999, %v1021, %v1023
      %v1025 = vrot.slane %v378, 1
      %v1026 = vsel %vm999, %v1023, %v1025
      %v1027 = vrot.slane %v379, 1
      %v1028 = vsel %vm999, %v1025, %v1027
      %v1029 = vrot.slane %v380, 1
      %v1030 = vsel %vm999, %v1027, %v1029
      %v1031 = vrot.slane %v381, 1
      %v1032 = vsel %vm999, %v1029, %v1031
      %v1033 = vrot.slane %v382, 1
      %v1034 = vsel %vm999, %v1031, %v1033
      %v1035 = vrot.slane %v383, 1
      %v1036 = vsel %vm999, %v1033, %v1035
      %v1037 = vrot.slane %v384, 1
      %v1038 = vsel %vm999, %v1035, %v1037
      %v1039 = vrot.slane %v385, 1
      %v1040 = vsel %vm999, %v1037, %v1039
      %v1041 = vrot.slane %v386, 1
      %v1042 = vsel %vm999, %v1039, %v1041
      %v1043 = vrot.slane %v387, 1
      %v1044 = vsel %vm999, %v1041, %v1043
      %v1045 = vrot.slane %v388, 1
      %v1046 = vsel %vm999, %v1043, %v1045
      %v1047 = vrot.slane %v389, 1
      %v1048 = vsel %vm999, %v1045, %v1047
      %v1053 = vunpack.c.l.b16 %v992
      %v1054 = vunpack.c.l.b16 %v993
      %v1055 = vunpack.c.l.b16 %v994
      %v1056 = vunpack.c.l.b16 %v995
      %v1057 = vpack.c.b16 %v1054, %v1053
      %v1058 = vpack.c.b16 %v1056, %v1055
      %v1062 = vsel %vm599, %v1002, 0
      %v1065 = vsel %vm599, %v1004, 0
      %v1068 = vsel %vm599, %v1006, 0
      %v1071 = vsel %vm599, %v1008, 0
      %v1074 = vsel %vm599, %v1010, 0
      %v1077 = vsel %vm599, %v1012, 0
      %v1080 = vsel %vm599, %v1014, 0
      %v1083 = vsel %vm599, %v1016, 0
      %v1086 = vsel %vm599, %v1018, 0
      %v1089 = vsel %vm599, %v1020, 0
      %v1092 = vsel %vm599, %v1022, 0
      %v1095 = vsel %vm599, %v1024, 0
      %v1098 = vsel %vm599, %v1026, 0
      %v1101 = vsel %vm599, %v1028, 0
      %v1104 = vsel %vm599, %v1030, 0
      %v1107 = vsel %vm599, %v1032, 0
      %v1110 = vsel %vm599, %v1034, 0
      %v1113 = vsel %vm599, %v1036, 0
      %v1116 = vsel %vm599, %v1038, 0
      %v1119 = vsel %vm599, %v1040, 0
      %v1122 = vsel %vm599, %v1042, 0
      %v1125 = vsel %vm599, %v1044, 0
      %v1128 = vsel %vm599, %v1046, 0
      %v1131 = vsel %vm599, %v1048, 0
      %1133 = vmatpush.bf16.msra.mxu0 0
      %1134 = vmatpush.bf16.msra.mxu0 0
      %1135 = vmatpush.bf16.msra.mxu0 0
      %1136 = vmatpush.bf16.msra.mxu0 0
      %1137 = vmatpush.bf16.msra.mxu0 0
      %1138 = vmatpush.bf16.msra.mxu0 0
      %1139 = vmatpush.bf16.msra.mxu0 %v1058
      %1140 = vmatpush.bf16.msra.mxu0 %v1057
      %1141 = vmatmul.bf16.gmra.mxu0 %v1062
      %v1142 = vpop.f32.mrf.mxu0
      %v1143 = vadd.f32 0.0, %v1142
      %v1144 = vpop.f32.mrf.mxu0
      %v1145 = vadd.f32 0.0, %v1144
      %1146 = vmatmul.bf16.gmra.mxu0 %v1065
      %v1147 = vpop.f32.mrf.mxu0
      %v1148 = vadd.f32 0.0, %v1147
      %v1149 = vpop.f32.mrf.mxu0
      %v1150 = vadd.f32 0.0, %v1149
      %1151 = vmatmul.bf16.gmra.mxu0 %v1068
      %v1152 = vpop.f32.mrf.mxu0
      %v1153 = vadd.f32 0.0, %v1152
      %v1154 = vpop.f32.mrf.mxu0
      %v1155 = vadd.f32 0.0, %v1154
      %1156 = vmatmul.bf16.gmra.mxu0 %v1071
      %v1157 = vpop.f32.mrf.mxu0
      %v1158 = vadd.f32 0.0, %v1157
      %v1159 = vpop.f32.mrf.mxu0
      %v1160 = vadd.f32 0.0, %v1159
      %1161 = vmatmul.bf16.gmra.mxu0 %v1074
      %v1162 = vpop.f32.mrf.mxu0
      %v1163 = vadd.f32 0.0, %v1162
      %v1164 = vpop.f32.mrf.mxu0
      %v1165 = vadd.f32 0.0, %v1164
      %1166 = vmatmul.bf16.gmra.mxu0 %v1077
      %v1167 = vpop.f32.mrf.mxu0
      %v1168 = vadd.f32 0.0, %v1167
      %v1169 = vpop.f32.mrf.mxu0
      %v1170 = vadd.f32 0.0, %v1169
      %1171 = vmatmul.bf16.gmra.mxu0 %v1080
      %v1172 = vpop.f32.mrf.mxu0
      %v1173 = vadd.f32 0.0, %v1172
      %v1174 = vpop.f32.mrf.mxu0
      %v1175 = vadd.f32 0.0, %v1174
      %1176 = vmatmul.bf16.gmra.mxu0 %v1083
      %v1177 = vpop.f32.mrf.mxu0
      %v1178 = vadd.f32 0.0, %v1177
      %v1179 = vpop.f32.mrf.mxu0
      %v1180 = vadd.f32 0.0, %v1179
      %1181 = vmatmul.bf16.gmra.mxu0 %v1086
      %v1182 = vpop.f32.mrf.mxu0
      %v1183 = vadd.f32 0.0, %v1182
      %v1184 = vpop.f32.mrf.mxu0
      %v1185 = vadd.f32 0.0, %v1184
      %1186 = vmatmul.bf16.gmra.mxu0 %v1089
      %v1187 = vpop.f32.mrf.mxu0
      %v1188 = vadd.f32 0.0, %v1187
      %v1189 = vpop.f32.mrf.mxu0
      %v1190 = vadd.f32 0.0, %v1189
      %1191 = vmatmul.bf16.gmra.mxu0 %v1092
      %v1192 = vpop.f32.mrf.mxu0
      %v1193 = vadd.f32 0.0, %v1192
      %v1194 = vpop.f32.mrf.mxu0
      %v1195 = vadd.f32 0.0, %v1194
      %1196 = vmatmul.bf16.gmra.mxu0 %v1095
      %v1197 = vpop.f32.mrf.mxu0
      %v1198 = vadd.f32 0.0, %v1197
      %v1199 = vpop.f32.mrf.mxu0
      %v1200 = vadd.f32 0.0, %v1199
      %1201 = vmatmul.bf16.gmra.mxu0 %v1098
      %v1202 = vpop.f32.mrf.mxu0
      %v1203 = vadd.f32 0.0, %v1202
      %v1204 = vpop.f32.mrf.mxu0
      %v1205 = vadd.f32 0.0, %v1204
      %1206 = vmatmul.bf16.gmra.mxu0 %v1101
      %v1207 = vpop.f32.mrf.mxu0
      %v1208 = vadd.f32 0.0, %v1207
      %v1209 = vpop.f32.mrf.mxu0
      %v1210 = vadd.f32 0.0, %v1209
      %1211 = vmatmul.bf16.gmra.mxu0 %v1104
      %v1212 = vpop.f32.mrf.mxu0
      %v1213 = vadd.f32 0.0, %v1212
      %v1214 = vpop.f32.mrf.mxu0
      %v1215 = vadd.f32 0.0, %v1214
      %1216 = vmatmul.bf16.gmra.mxu0 %v1107
      %v1217 = vpop.f32.mrf.mxu0
      %v1218 = vadd.f32 0.0, %v1217
      %v1219 = vpop.f32.mrf.mxu0
      %v1220 = vadd.f32 0.0, %v1219
      %1221 = vmatmul.bf16.gmra.mxu0 %v1110
      %v1222 = vpop.f32.mrf.mxu0
      %v1223 = vadd.f32 0.0, %v1222
      %v1224 = vpop.f32.mrf.mxu0
      %v1225 = vadd.f32 0.0, %v1224
      %1226 = vmatmul.bf16.gmra.mxu0 %v1113
      %v1227 = vpop.f32.mrf.mxu0
      %v1228 = vadd.f32 0.0, %v1227
      %v1229 = vpop.f32.mrf.mxu0
      %v1230 = vadd.f32 0.0, %v1229
      %1231 = vmatmul.bf16.gmra.mxu0 %v1116
      %v1232 = vpop.f32.mrf.mxu0
      %v1233 = vadd.f32 0.0, %v1232
      %v1234 = vpop.f32.mrf.mxu0
      %v1235 = vadd.f32 0.0, %v1234
      %1236 = vmatmul.bf16.gmra.mxu0 %v1119
      %v1237 = vpop.f32.mrf.mxu0
      %v1238 = vadd.f32 0.0, %v1237
      %v1239 = vpop.f32.mrf.mxu0
      %v1240 = vadd.f32 0.0, %v1239
      %1241 = vmatmul.bf16.gmra.mxu0 %v1122
      %v1242 = vpop.f32.mrf.mxu0
      %v1243 = vadd.f32 0.0, %v1242
      %v1244 = vpop.f32.mrf.mxu0
      %v1245 = vadd.f32 0.0, %v1244
      %1246 = vmatmul.bf16.gmra.mxu0 %v1125
      %v1247 = vpop.f32.mrf.mxu0
      %v1248 = vadd.f32 0.0, %v1247
      %v1249 = vpop.f32.mrf.mxu0
      %v1250 = vadd.f32 0.0, %v1249
      %1251 = vmatmul.bf16.gmra.mxu0 %v1128
      %v1252 = vpop.f32.mrf.mxu0
      %v1253 = vadd.f32 0.0, %v1252
      %v1254 = vpop.f32.mrf.mxu0
      %v1255 = vadd.f32 0.0, %v1254
      %1256 = vmatmul.bf16.gmra.mxu0 %v1131
      %v1257 = vpop.f32.mrf.mxu0
      %v1258 = vadd.f32 0.0, %v1257
      %v1259 = vpop.f32.mrf.mxu0
      %v1260 = vadd.f32 0.0, %v1259
      %1261 = vdwg.mxu0
      %v1262 = vadd.f32 %v871, %v1143
      %v1263 = vadd.f32 %v873, %v1145
      %v1264 = vadd.f32 %v876, %v1148
      %v1265 = vadd.f32 %v878, %v1150
      %v1266 = vadd.f32 %v881, %v1153
      %v1267 = vadd.f32 %v883, %v1155
      %v1268 = vadd.f32 %v886, %v1158
      %v1269 = vadd.f32 %v888, %v1160
      %v1270 = vadd.f32 %v891, %v1163
      %v1271 = vadd.f32 %v893, %v1165
      %v1272 = vadd.f32 %v896, %v1168
      %v1273 = vadd.f32 %v898, %v1170
      %v1274 = vadd.f32 %v901, %v1173
      %v1275 = vadd.f32 %v903, %v1175
      %v1276 = vadd.f32 %v906, %v1178
      %v1277 = vadd.f32 %v908, %v1180
      %v1278 = vadd.f32 %v911, %v1183
      %v1279 = vadd.f32 %v913, %v1185
      %v1280 = vadd.f32 %v916, %v1188
      %v1281 = vadd.f32 %v918, %v1190
      %v1282 = vadd.f32 %v921, %v1193
      %v1283 = vadd.f32 %v923, %v1195
      %v1284 = vadd.f32 %v926, %v1198
      %v1285 = vadd.f32 %v928, %v1200
      %v1286 = vadd.f32 %v931, %v1203
      %v1287 = vadd.f32 %v933, %v1205
      %v1288 = vadd.f32 %v936, %v1208
      %v1289 = vadd.f32 %v938, %v1210
      %v1290 = vadd.f32 %v941, %v1213
      %v1291 = vadd.f32 %v943, %v1215
      %v1292 = vadd.f32 %v946, %v1218
      %v1293 = vadd.f32 %v948, %v1220
      %v1294 = vadd.f32 %v951, %v1223
      %v1295 = vadd.f32 %v953, %v1225
      %v1296 = vadd.f32 %v956, %v1228
      %v1297 = vadd.f32 %v958, %v1230
      %v1298 = vadd.f32 %v961, %v1233
      %v1299 = vadd.f32 %v963, %v1235
      %v1300 = vadd.f32 %v966, %v1238
      %v1301 = vadd.f32 %v968, %v1240
      %v1302 = vadd.f32 %v971, %v1243
      %v1303 = vadd.f32 %v973, %v1245
      %v1304 = vadd.f32 %v976, %v1248
      %v1305 = vadd.f32 %v978, %v1250
      %v1306 = vadd.f32 %v981, %v1253
      %v1307 = vadd.f32 %v983, %v1255
      %v1308 = vadd.f32 %v986, %v1258
      %v1309 = vadd.f32 %v988, %v1260
      %v1310 = vld [vmem:[%s197 + $0xc] sm:$0xf]
      %v1311 = vld [vmem:[%s197 + $0x10] sm:$0xf]
      %v1312 = vld [vmem:[%s197 + $0x14] sm:$0xf]
      %v1313 = vld [vmem:[%s197 + $0x18] sm:$0xf]
      %v1314 = vld [vmem:[%s197 + $0x1c] sm:$0xf]
      %v1315 = vld [vmem:[%s197 + $0x20] sm:$0xf]
      %v1316 = vld [vmem:[%s197 + $0x24] sm:$0xf]
      %v1317 = vld [vmem:[%s197 + $0x28] sm:$0xf]
      %v1318 = vld [vmem:[%s197 + $0x2c] sm:$0xf]
      %v1319 = vld [vmem:[%s197 + $0x30] sm:$0xf]
      %v1320 = vld [vmem:[%s197 + $0x34] sm:$0xf]
      %v1321 = vld [vmem:[%s197 + $0x38] sm:$0xf]
      %v1322 = vld [vmem:[%s197 + $0x3c] sm:$0xf]
      %v1323 = vld [vmem:[%s197 + $0x40] sm:$0xf]
      %v1324 = vld [vmem:[%s197 + $0x44] sm:$0xf]
      %v1325 = vld [vmem:[%s197 + $0x48] sm:$0xf]
      %v1326 = vld [vmem:[%s197 + $0x4c] sm:$0xf]
      %v1327 = vld [vmem:[%s197 + $0x50] sm:$0xf]
      %v1328 = vld [vmem:[%s197 + $0x54] sm:$0xf]
      %v1329 = vld [vmem:[%s197 + $0x58] sm:$0xf]
      %v1330 = vld [vmem:[%s197 + $0x5c] sm:$0xf]
      %v1331 = vld [vmem:[%s197 + $0x60] sm:$0xf]
      %v1332 = vld [vmem:[%s197 + $0x64] sm:$0xf]
      %v1333 = vld [vmem:[%s197 + $0x68] sm:$0xf]
      %v1334 = vld [vmem:[%s197 + $0x6c] sm:$0xf]
      %v1335 = vld [vmem:[%s197 + $0x70] sm:$0xf]
      %v1336 = vld [vmem:[%s197 + $0x74] sm:$0xf]
      %v1337 = vld [vmem:[%s197 + $0x78] sm:$0xf]
      %v1338 = vld [vmem:[%s197 + $0x7c] sm:$0xf]
      %v1339 = vld [vmem:[%s197 + $0x80] sm:$0xf]
      %v1340 = vld [vmem:[%s197 + $0x84] sm:$0xf]
      %v1341 = vld [vmem:[%s197 + $0x88] sm:$0xf]
      %v1342 = vld [vmem:[%s197 + $0x8c] sm:$0xf]
      %v1343 = vld [vmem:[%s197 + $0x90] sm:$0xf]
      %v1344 = vld [vmem:[%s197 + $0x94] sm:$0xf]
      %v1345 = vld [vmem:[%s197 + $0x98] sm:$0xf]
      %v1346 = vld [vmem:[%s197 + $0x9c] sm:$0xf]
      %v1347 = vld [vmem:[%s197 + $0xa0] sm:$0xf]
      %v1348 = vld [vmem:[%s197 + $0xa4] sm:$0xf]
      %v1349 = vld [vmem:[%s197 + $0xa8] sm:$0xf]
      %v1350 = vld [vmem:[%s197 + $0xac] sm:$0xf]
      %v1351 = vld [vmem:[%s197 + $0xb0] sm:$0xf]
      %v1352 = vld [vmem:[%s197 + $0xb4] sm:$0xf]
      %v1353 = vld [vmem:[%s197 + $0xb8] sm:$0xf]
      %v1354 = vld [vmem:[%s197 + $0xbc] sm:$0xf]
      %v1355 = vld [vmem:[%s197 + $0xc0] sm:$0xf]
      %v1356 = vld [vmem:[%s197 + $0xc4] sm:$0xf]
      %v1357 = vld [vmem:[%s197 + $0xc8] sm:$0xf]
      %s1358 = scalar_lea.vmem %s1, 48
      %v1359 = vld [vmem:[%s1358] sm:$0xf]
      %v1360 = vld [vmem:[%s1358 + $0x4] sm:$0xf]
      %v1361 = vld [vmem:[%s1358 + $0x8] sm:$0xf]
      %v1362 = vld [vmem:[%s1358 + $0xc] sm:$0xf]
      %v1411 = vunpack.c.l.b16 %v1310
      %v1412 = vunpack.c.l.b16 %v1311
      %v1413 = vunpack.c.l.b16 %v1312
      %v1414 = vunpack.c.l.b16 %v1313
      %v1415 = vunpack.c.l.b16 %v1314
      %v1416 = vunpack.c.l.b16 %v1315
      %v1417 = vunpack.c.l.b16 %v1316
      %v1418 = vunpack.c.l.b16 %v1317
      %v1419 = vunpack.c.l.b16 %v1318
      %v1420 = vunpack.c.l.b16 %v1319
      %v1421 = vunpack.c.l.b16 %v1320
      %v1422 = vunpack.c.l.b16 %v1321
      %v1423 = vunpack.c.l.b16 %v1322
      %v1424 = vunpack.c.l.b16 %v1323
      %v1425 = vunpack.c.l.b16 %v1324
      %v1426 = vunpack.c.l.b16 %v1325
      %v1427 = vunpack.c.l.b16 %v1326
      %v1428 = vunpack.c.l.b16 %v1327
      %v1429 = vunpack.c.l.b16 %v1328
      %v1430 = vunpack.c.l.b16 %v1329
      %v1431 = vunpack.c.l.b16 %v1330
      %v1432 = vunpack.c.l.b16 %v1331
      %v1433 = vunpack.c.l.b16 %v1332
      %v1434 = vunpack.c.l.b16 %v1333
      %v1435 = vunpack.c.l.b16 %v1334
      %v1436 = vunpack.c.l.b16 %v1335
      %v1437 = vunpack.c.l.b16 %v1336
      %v1438 = vunpack.c.l.b16 %v1337
      %v1439 = vunpack.c.l.b16 %v1338
      %v1440 = vunpack.c.l.b16 %v1339
      %v1441 = vunpack.c.l.b16 %v1340
      %v1442 = vunpack.c.l.b16 %v1341
      %v1443 = vunpack.c.l.b16 %v1342
      %v1444 = vunpack.c.l.b16 %v1343
      %v1445 = vunpack.c.l.b16 %v1344
      %v1446 = vunpack.c.l.b16 %v1345
      %v1447 = vunpack.c.l.b16 %v1346
      %v1448 = vunpack.c.l.b16 %v1347
      %v1449 = vunpack.c.l.b16 %v1348
      %v1450 = vunpack.c.l.b16 %v1349
      %v1451 = vunpack.c.l.b16 %v1350
      %v1452 = vunpack.c.l.b16 %v1351
      %v1453 = vunpack.c.l.b16 %v1352
      %v1454 = vunpack.c.l.b16 %v1353
      %v1455 = vunpack.c.l.b16 %v1354
      %v1456 = vunpack.c.l.b16 %v1355
      %v1457 = vunpack.c.l.b16 %v1356
      %v1458 = vunpack.c.l.b16 %v1357
      %v1459 = vpack.c.b16 %v1412, %v1411
      %v1460 = vpack.c.b16 %v1414, %v1413
      %v1461 = vpack.c.b16 %v1416, %v1415
      %v1462 = vpack.c.b16 %v1418, %v1417
      %v1463 = vpack.c.b16 %v1420, %v1419
      %v1464 = vpack.c.b16 %v1422, %v1421
      %v1465 = vpack.c.b16 %v1424, %v1423
      %v1466 = vpack.c.b16 %v1426, %v1425
      %v1467 = vpack.c.b16 %v1428, %v1427
      %v1468 = vpack.c.b16 %v1430, %v1429
      %v1469 = vpack.c.b16 %v1432, %v1431
      %v1470 = vpack.c.b16 %v1434, %v1433
      %v1471 = vpack.c.b16 %v1436, %v1435
      %v1472 = vpack.c.b16 %v1438, %v1437
      %v1473 = vpack.c.b16 %v1440, %v1439
      %v1474 = vpack.c.b16 %v1442, %v1441
      %v1475 = vpack.c.b16 %v1444, %v1443
      %v1476 = vpack.c.b16 %v1446, %v1445
      %v1477 = vpack.c.b16 %v1448, %v1447
      %v1478 = vpack.c.b16 %v1450, %v1449
      %v1479 = vpack.c.b16 %v1452, %v1451
      %v1480 = vpack.c.b16 %v1454, %v1453
      %v1481 = vpack.c.b16 %v1456, %v1455
      %v1482 = vpack.c.b16 %v1458, %v1457
      %v1487 = vunpack.c.l.b16 %v1359
      %v1488 = vunpack.c.l.b16 %v1360
      %v1489 = vunpack.c.l.b16 %v1361
      %v1490 = vunpack.c.l.b16 %v1362
      %v1491 = vpack.c.b16 %v1488, %v1487
      %v1492 = vpack.c.b16 %v1490, %v1489
      %v1496 = vsel %vm599, %v1459, 0
      %v1499 = vsel %vm599, %v1460, 0
      %v1502 = vsel %vm599, %v1461, 0
      %v1505 = vsel %vm599, %v1462, 0
      %v1508 = vsel %vm599, %v1463, 0
      %v1511 = vsel %vm599, %v1464, 0
      %v1514 = vsel %vm599, %v1465, 0
      %v1517 = vsel %vm599, %v1466, 0
      %v1520 = vsel %vm599, %v1467, 0
      %v1523 = vsel %vm599, %v1468, 0
      %v1526 = vsel %vm599, %v1469, 0
      %v1529 = vsel %vm599, %v1470, 0
      %v1532 = vsel %vm599, %v1471, 0
      %v1535 = vsel %vm599, %v1472, 0
      %v1538 = vsel %vm599, %v1473, 0
      %v1541 = vsel %vm599, %v1474, 0
      %v1544 = vsel %vm599, %v1475, 0
      %v1547 = vsel %vm599, %v1476, 0
      %v1550 = vsel %vm599, %v1477, 0
      %v1553 = vsel %vm599, %v1478, 0
      %v1556 = vsel %vm599, %v1479, 0
      %v1559 = vsel %vm599, %v1480, 0
      %v1562 = vsel %vm599, %v1481, 0
      %v1565 = vsel %vm599, %v1482, 0
      %1567 = vmatpush.bf16.msra.mxu0 0
      %1568 = vmatpush.bf16.msra.mxu0 0
      %1569 = vmatpush.bf16.msra.mxu0 0
      %1570 = vmatpush.bf16.msra.mxu0 0
      %1571 = vmatpush.bf16.msra.mxu0 0
      %1572 = vmatpush.bf16.msra.mxu0 0
      %1573 = vmatpush.bf16.msra.mxu0 %v1492
      %1574 = vmatpush.bf16.msra.mxu0 %v1491
      %1575 = vmatmul.bf16.gmra.mxu0 %v1496
      %v1576 = vpop.f32.mrf.mxu0
      %v1577 = vadd.f32 0.0, %v1576
      %v1578 = vpop.f32.mrf.mxu0
      %v1579 = vadd.f32 0.0, %v1578
      %1580 = vmatmul.bf16.gmra.mxu0 %v1499
      %v1581 = vpop.f32.mrf.mxu0
      %v1582 = vadd.f32 0.0, %v1581
      %v1583 = vpop.f32.mrf.mxu0
      %v1584 = vadd.f32 0.0, %v1583
      %1585 = vmatmul.bf16.gmra.mxu0 %v1502
      %v1586 = vpop.f32.mrf.mxu0
      %v1587 = vadd.f32 0.0, %v1586
      %v1588 = vpop.f32.mrf.mxu0
      %v1589 = vadd.f32 0.0, %v1588
      %1590 = vmatmul.bf16.gmra.mxu0 %v1505
      %v1591 = vpop.f32.mrf.mxu0
      %v1592 = vadd.f32 0.0, %v1591
      %v1593 = vpop.f32.mrf.mxu0
      %v1594 = vadd.f32 0.0, %v1593
      %1595 = vmatmul.bf16.gmra.mxu0 %v1508
      %v1596 = vpop.f32.mrf.mxu0
      %v1597 = vadd.f32 0.0, %v1596
      %v1598 = vpop.f32.mrf.mxu0
      %v1599 = vadd.f32 0.0, %v1598
      %1600 = vmatmul.bf16.gmra.mxu0 %v1511
      %v1601 = vpop.f32.mrf.mxu0
      %v1602 = vadd.f32 0.0, %v1601
      %v1603 = vpop.f32.mrf.mxu0
      %v1604 = vadd.f32 0.0, %v1603
      %1605 = vmatmul.bf16.gmra.mxu0 %v1514
      %v1606 = vpop.f32.mrf.mxu0
      %v1607 = vadd.f32 0.0, %v1606
      %v1608 = vpop.f32.mrf.mxu0
      %v1609 = vadd.f32 0.0, %v1608
      %1610 = vmatmul.bf16.gmra.mxu0 %v1517
      %v1611 = vpop.f32.mrf.mxu0
      %v1612 = vadd.f32 0.0, %v1611
      %v1613 = vpop.f32.mrf.mxu0
      %v1614 = vadd.f32 0.0, %v1613
      %1615 = vmatmul.bf16.gmra.mxu0 %v1520
      %v1616 = vpop.f32.mrf.mxu0
      %v1617 = vadd.f32 0.0, %v1616
      %v1618 = vpop.f32.mrf.mxu0
      %v1619 = vadd.f32 0.0, %v1618
      %1620 = vmatmul.bf16.gmra.mxu0 %v1523
      %v1621 = vpop.f32.mrf.mxu0
      %v1622 = vadd.f32 0.0, %v1621
      %v1623 = vpop.f32.mrf.mxu0
      %v1624 = vadd.f32 0.0, %v1623
      %1625 = vmatmul.bf16.gmra.mxu0 %v1526
      %v1626 = vpop.f32.mrf.mxu0
      %v1627 = vadd.f32 0.0, %v1626
      %v1628 = vpop.f32.mrf.mxu0
      %v1629 = vadd.f32 0.0, %v1628
      %1630 = vmatmul.bf16.gmra.mxu0 %v1529
      %v1631 = vpop.f32.mrf.mxu0
      %v1632 = vadd.f32 0.0, %v1631
      %v1633 = vpop.f32.mrf.mxu0
      %v1634 = vadd.f32 0.0, %v1633
      %1635 = vmatmul.bf16.gmra.mxu0 %v1532
      %v1636 = vpop.f32.mrf.mxu0
      %v1637 = vadd.f32 0.0, %v1636
      %v1638 = vpop.f32.mrf.mxu0
      %v1639 = vadd.f32 0.0, %v1638
      %1640 = vmatmul.bf16.gmra.mxu0 %v1535
      %v1641 = vpop.f32.mrf.mxu0
      %v1642 = vadd.f32 0.0, %v1641
      %v1643 = vpop.f32.mrf.mxu0
      %v1644 = vadd.f32 0.0, %v1643
      %1645 = vmatmul.bf16.gmra.mxu0 %v1538
      %v1646 = vpop.f32.mrf.mxu0
      %v1647 = vadd.f32 0.0, %v1646
      %v1648 = vpop.f32.mrf.mxu0
      %v1649 = vadd.f32 0.0, %v1648
      %1650 = vmatmul.bf16.gmra.mxu0 %v1541
      %v1651 = vpop.f32.mrf.mxu0
      %v1652 = vadd.f32 0.0, %v1651
      %v1653 = vpop.f32.mrf.mxu0
      %v1654 = vadd.f32 0.0, %v1653
      %1655 = vmatmul.bf16.gmra.mxu0 %v1544
      %v1656 = vpop.f32.mrf.mxu0
      %v1657 = vadd.f32 0.0, %v1656
      %v1658 = vpop.f32.mrf.mxu0
      %v1659 = vadd.f32 0.0, %v1658
      %1660 = vmatmul.bf16.gmra.mxu0 %v1547
      %v1661 = vpop.f32.mrf.mxu0
      %v1662 = vadd.f32 0.0, %v1661
      %v1663 = vpop.f32.mrf.mxu0
      %v1664 = vadd.f32 0.0, %v1663
      %1665 = vmatmul.bf16.gmra.mxu0 %v1550
      %v1666 = vpop.f32.mrf.mxu0
      %v1667 = vadd.f32 0.0, %v1666
      %v1668 = vpop.f32.mrf.mxu0
      %v1669 = vadd.f32 0.0, %v1668
      %1670 = vmatmul.bf16.gmra.mxu0 %v1553
      %v1671 = vpop.f32.mrf.mxu0
      %v1672 = vadd.f32 0.0, %v1671
      %v1673 = vpop.f32.mrf.mxu0
      %v1674 = vadd.f32 0.0, %v1673
      %1675 = vmatmul.bf16.gmra.mxu0 %v1556
      %v1676 = vpop.f32.mrf.mxu0
      %v1677 = vadd.f32 0.0, %v1676
      %v1678 = vpop.f32.mrf.mxu0
      %v1679 = vadd.f32 0.0, %v1678
      %1680 = vmatmul.bf16.gmra.mxu0 %v1559
      %v1681 = vpop.f32.mrf.mxu0
      %v1682 = vadd.f32 0.0, %v1681
      %v1683 = vpop.f32.mrf.mxu0
      %v1684 = vadd.f32 0.0, %v1683
      %1685 = vmatmul.bf16.gmra.mxu0 %v1562
      %v1686 = vpop.f32.mrf.mxu0
      %v1687 = vadd.f32 0.0, %v1686
      %v1688 = vpop.f32.mrf.mxu0
      %v1689 = vadd.f32 0.0, %v1688
      %1690 = vmatmul.bf16.gmra.mxu0 %v1565
      %v1691 = vpop.f32.mrf.mxu0
      %v1692 = vadd.f32 0.0, %v1691
      %v1693 = vpop.f32.mrf.mxu0
      %v1694 = vadd.f32 0.0, %v1693
      %1695 = vdwg.mxu0
      %v1696 = vadd.f32 %v1262, %v1577
      %v1697 = vadd.f32 %v1263, %v1579
      %v1698 = vadd.f32 %v1264, %v1582
      %v1699 = vadd.f32 %v1265, %v1584
      %v1700 = vadd.f32 %v1266, %v1587
      %v1701 = vadd.f32 %v1267, %v1589
      %v1702 = vadd.f32 %v1268, %v1592
      %v1703 = vadd.f32 %v1269, %v1594
      %v1704 = vadd.f32 %v1270, %v1597
      %v1705 = vadd.f32 %v1271, %v1599
      %v1706 = vadd.f32 %v1272, %v1602
      %v1707 = vadd.f32 %v1273, %v1604
      %v1708 = vadd.f32 %v1274, %v1607
      %v1709 = vadd.f32 %v1275, %v1609
      %v1710 = vadd.f32 %v1276, %v1612
      %v1711 = vadd.f32 %v1277, %v1614
      %v1712 = vadd.f32 %v1278, %v1617
      %v1713 = vadd.f32 %v1279, %v1619
      %v1714 = vadd.f32 %v1280, %v1622
      %v1715 = vadd.f32 %v1281, %v1624
      %v1716 = vadd.f32 %v1282, %v1627
      %v1717 = vadd.f32 %v1283, %v1629
      %v1718 = vadd.f32 %v1284, %v1632
      %v1719 = vadd.f32 %v1285, %v1634
      %v1720 = vadd.f32 %v1286, %v1637
      %v1721 = vadd.f32 %v1287, %v1639
      %v1722 = vadd.f32 %v1288, %v1642
      %v1723 = vadd.f32 %v1289, %v1644
      %v1724 = vadd.f32 %v1290, %v1647
      %v1725 = vadd.f32 %v1291, %v1649
      %v1726 = vadd.f32 %v1292, %v1652
      %v1727 = vadd.f32 %v1293, %v1654
      %v1728 = vadd.f32 %v1294, %v1657
      %v1729 = vadd.f32 %v1295, %v1659
      %v1730 = vadd.f32 %v1296, %v1662
      %v1731 = vadd.f32 %v1297, %v1664
      %v1732 = vadd.f32 %v1298, %v1667
      %v1733 = vadd.f32 %v1299, %v1669
      %v1734 = vadd.f32 %v1300, %v1672
      %v1735 = vadd.f32 %v1301, %v1674
      %v1736 = vadd.f32 %v1302, %v1677
      %v1737 = vadd.f32 %v1303, %v1679
      %v1738 = vadd.f32 %v1304, %v1682
      %v1739 = vadd.f32 %v1305, %v1684
      %v1740 = vadd.f32 %v1306, %v1687
      %v1741 = vadd.f32 %v1307, %v1689
      %v1742 = vadd.f32 %v1308, %v1692
      %v1743 = vadd.f32 %v1309, %v1694
      %v1744 = vld [vmem:[%s197 + $0xc] sm:$0xf]
      %v1745 = vld [vmem:[%s197 + $0x10] sm:$0xf]
      %v1746 = vld [vmem:[%s197 + $0x14] sm:$0xf]
      %v1747 = vld [vmem:[%s197 + $0x18] sm:$0xf]
      %v1748 = vld [vmem:[%s197 + $0x1c] sm:$0xf]
      %v1749 = vld [vmem:[%s197 + $0x20] sm:$0xf]
      %v1750 = vld [vmem:[%s197 + $0x24] sm:$0xf]
      %v1751 = vld [vmem:[%s197 + $0x28] sm:$0xf]
      %v1752 = vld [vmem:[%s197 + $0x2c] sm:$0xf]
      %v1753 = vld [vmem:[%s197 + $0x30] sm:$0xf]
      %v1754 = vld [vmem:[%s197 + $0x34] sm:$0xf]
      %v1755 = vld [vmem:[%s197 + $0x38] sm:$0xf]
      %v1756 = vld [vmem:[%s197 + $0x3c] sm:$0xf]
      %v1757 = vld [vmem:[%s197 + $0x40] sm:$0xf]
      %v1758 = vld [vmem:[%s197 + $0x44] sm:$0xf]
      %v1759 = vld [vmem:[%s197 + $0x48] sm:$0xf]
      %v1760 = vld [vmem:[%s197 + $0x4c] sm:$0xf]
      %v1761 = vld [vmem:[%s197 + $0x50] sm:$0xf]
      %v1762 = vld [vmem:[%s197 + $0x54] sm:$0xf]
      %v1763 = vld [vmem:[%s197 + $0x58] sm:$0xf]
      %v1764 = vld [vmem:[%s197 + $0x5c] sm:$0xf]
      %v1765 = vld [vmem:[%s197 + $0x60] sm:$0xf]
      %v1766 = vld [vmem:[%s197 + $0x64] sm:$0xf]
      %v1767 = vld [vmem:[%s197 + $0x68] sm:$0xf]
      %v1768 = vld [vmem:[%s197 + $0x6c] sm:$0xf]
      %v1769 = vld [vmem:[%s197 + $0x70] sm:$0xf]
      %v1770 = vld [vmem:[%s197 + $0x74] sm:$0xf]
      %v1771 = vld [vmem:[%s197 + $0x78] sm:$0xf]
      %v1772 = vld [vmem:[%s197 + $0x7c] sm:$0xf]
      %v1773 = vld [vmem:[%s197 + $0x80] sm:$0xf]
      %v1774 = vld [vmem:[%s197 + $0x84] sm:$0xf]
      %v1775 = vld [vmem:[%s197 + $0x88] sm:$0xf]
      %v1776 = vld [vmem:[%s197 + $0x8c] sm:$0xf]
      %v1777 = vld [vmem:[%s197 + $0x90] sm:$0xf]
      %v1778 = vld [vmem:[%s197 + $0x94] sm:$0xf]
      %v1779 = vld [vmem:[%s197 + $0x98] sm:$0xf]
      %v1780 = vld [vmem:[%s197 + $0x9c] sm:$0xf]
      %v1781 = vld [vmem:[%s197 + $0xa0] sm:$0xf]
      %v1782 = vld [vmem:[%s197 + $0xa4] sm:$0xf]
      %v1783 = vld [vmem:[%s197 + $0xa8] sm:$0xf]
      %v1784 = vld [vmem:[%s197 + $0xac] sm:$0xf]
      %v1785 = vld [vmem:[%s197 + $0xb0] sm:$0xf]
      %v1786 = vld [vmem:[%s197 + $0xb4] sm:$0xf]
      %v1787 = vld [vmem:[%s197 + $0xb8] sm:$0xf]
      %v1788 = vld [vmem:[%s197 + $0xbc] sm:$0xf]
      %v1789 = vld [vmem:[%s197 + $0xc0] sm:$0xf]
      %v1790 = vld [vmem:[%s197 + $0xc4] sm:$0xf]
      %v1791 = vld [vmem:[%s197 + $0xc8] sm:$0xf]
      %v1792 = vld [vmem:[%s197 + $0xcc] sm:$0x1]
      %s1793 = scalar_lea.vmem %s1, 64
      %v1794 = vld [vmem:[%s1793] sm:$0xf]
      %v1795 = vld [vmem:[%s1793 + $0x4] sm:$0xf]
      %v1796 = vld [vmem:[%s1793 + $0x8] sm:$0xf]
      %v1797 = vld [vmem:[%s1793 + $0xc] sm:$0xf]
      %v1847 = vunpack.c.l.b16 %v1744
      %v1848 = vunpack.c.l.b16 %v1745
      %v1849 = vunpack.c.l.b16 %v1746
      %v1850 = vunpack.c.l.b16 %v1747
      %v1851 = vunpack.c.l.b16 %v1748
      %v1852 = vunpack.c.l.b16 %v1749
      %v1853 = vunpack.c.l.b16 %v1750
      %v1854 = vunpack.c.l.b16 %v1751
      %v1855 = vunpack.c.l.b16 %v1752
      %v1856 = vunpack.c.l.b16 %v1753
      %v1857 = vunpack.c.l.b16 %v1754
      %v1858 = vunpack.c.l.b16 %v1755
      %v1859 = vunpack.c.l.b16 %v1756
      %v1860 = vunpack.c.l.b16 %v1757
      %v1861 = vunpack.c.l.b16 %v1758
      %v1862 = vunpack.c.l.b16 %v1759
      %v1863 = vunpack.c.l.b16 %v1760
      %v1864 = vunpack.c.l.b16 %v1761
      %v1865 = vunpack.c.l.b16 %v1762
      %v1866 = vunpack.c.l.b16 %v1763
      %v1867 = vunpack.c.l.b16 %v1764
      %v1868 = vunpack.c.l.b16 %v1765
      %v1869 = vunpack.c.l.b16 %v1766
      %v1870 = vunpack.c.l.b16 %v1767
      %v1871 = vunpack.c.l.b16 %v1768
      %v1872 = vunpack.c.l.b16 %v1769
      %v1873 = vunpack.c.l.b16 %v1770
      %v1874 = vunpack.c.l.b16 %v1771
      %v1875 = vunpack.c.l.b16 %v1772
      %v1876 = vunpack.c.l.b16 %v1773
      %v1877 = vunpack.c.l.b16 %v1774
      %v1878 = vunpack.c.l.b16 %v1775
      %v1879 = vunpack.c.l.b16 %v1776
      %v1880 = vunpack.c.l.b16 %v1777
      %v1881 = vunpack.c.l.b16 %v1778
      %v1882 = vunpack.c.l.b16 %v1779
      %v1883 = vunpack.c.l.b16 %v1780
      %v1884 = vunpack.c.l.b16 %v1781
      %v1885 = vunpack.c.l.b16 %v1782
      %v1886 = vunpack.c.l.b16 %v1783
      %v1887 = vunpack.c.l.b16 %v1784
      %v1888 = vunpack.c.l.b16 %v1785
      %v1889 = vunpack.c.l.b16 %v1786
      %v1890 = vunpack.c.l.b16 %v1787
      %v1891 = vunpack.c.l.b16 %v1788
      %v1892 = vunpack.c.l.b16 %v1789
      %v1893 = vunpack.c.l.b16 %v1790
      %v1894 = vunpack.c.l.b16 %v1791
      %v1895 = vunpack.c.l.b16 %v1792
      %v1896 = vpack.c.b16 %v1848, %v1847
      %v1897 = vpack.c.b16 %v1850, %v1849
      %v1898 = vpack.c.b16 %v1852, %v1851
      %v1899 = vpack.c.b16 %v1854, %v1853
      %v1900 = vpack.c.b16 %v1856, %v1855
      %v1901 = vpack.c.b16 %v1858, %v1857
      %v1902 = vpack.c.b16 %v1860, %v1859
      %v1903 = vpack.c.b16 %v1862, %v1861
      %v1904 = vpack.c.b16 %v1864, %v1863
      %v1905 = vpack.c.b16 %v1866, %v1865
      %v1906 = vpack.c.b16 %v1868, %v1867
      %v1907 = vpack.c.b16 %v1870, %v1869
      %v1908 = vpack.c.b16 %v1872, %v1871
      %v1909 = vpack.c.b16 %v1874, %v1873
      %v1910 = vpack.c.b16 %v1876, %v1875
      %v1911 = vpack.c.b16 %v1878, %v1877
      %v1912 = vpack.c.b16 %v1880, %v1879
      %v1913 = vpack.c.b16 %v1882, %v1881
      %v1914 = vpack.c.b16 %v1884, %v1883
      %v1915 = vpack.c.b16 %v1886, %v1885
      %v1916 = vpack.c.b16 %v1888, %v1887
      %v1917 = vpack.c.b16 %v1890, %v1889
      %v1918 = vpack.c.b16 %v1892, %v1891
      %v1919 = vpack.c.b16 %v1894, %v1893
      %v1920 = vpack.c.b16 %v1895, %v1895
      %v1922 = vshrl.u32 %v1896, 16
      %v1924 = vshll.u32 %v1896, 16
      %v1926 = vrot.slane %v1924, 1
      %v1927 = vor.u32 %v1922, %v1926
      %v1929 = vshll.u32 %v1897, 16
      %v1931 = vrot.slane %v1929, 1
      %v1932 = vsel %vm390, %v1927, %v1931
      %v1933 = vshrl.u32 %v1897, 16
      %v1935 = vor.u32 %v1933, %v1931
      %v1937 = vshll.u32 %v1898, 16
      %v1939 = vrot.slane %v1937, 1
      %v1940 = vsel %vm390, %v1935, %v1939
      %v1941 = vshrl.u32 %v1898, 16
      %v1943 = vor.u32 %v1941, %v1939
      %v1945 = vshll.u32 %v1899, 16
      %v1947 = vrot.slane %v1945, 1
      %v1948 = vsel %vm390, %v1943, %v1947
      %v1949 = vshrl.u32 %v1899, 16
      %v1951 = vor.u32 %v1949, %v1947
      %v1953 = vshll.u32 %v1900, 16
      %v1955 = vrot.slane %v1953, 1
      %v1956 = vsel %vm390, %v1951, %v1955
      %v1957 = vshrl.u32 %v1900, 16
      %v1959 = vor.u32 %v1957, %v1955
      %v1961 = vshll.u32 %v1901, 16
      %v1963 = vrot.slane %v1961, 1
      %v1964 = vsel %vm390, %v1959, %v1963
      %v1965 = vshrl.u32 %v1901, 16
      %v1967 = vor.u32 %v1965, %v1963
      %v1969 = vshll.u32 %v1902, 16
      %v1971 = vrot.slane %v1969, 1
      %v1972 = vsel %vm390, %v1967, %v1971
      %v1973 = vshrl.u32 %v1902, 16
      %v1975 = vor.u32 %v1973, %v1971
      %v1977 = vshll.u32 %v1903, 16
      %v1979 = vrot.slane %v1977, 1
      %v1980 = vsel %vm390, %v1975, %v1979
      %v1981 = vshrl.u32 %v1903, 16
      %v1983 = vor.u32 %v1981, %v1979
      %v1985 = vshll.u32 %v1904, 16
      %v1987 = vrot.slane %v1985, 1
      %v1988 = vsel %vm390, %v1983, %v1987
      %v1989 = vshrl.u32 %v1904, 16
      %v1991 = vor.u32 %v1989, %v1987
      %v1993 = vshll.u32 %v1905, 16
      %v1995 = vrot.slane %v1993, 1
      %v1996 = vsel %vm390, %v1991, %v1995
      %v1997 = vshrl.u32 %v1905, 16
      %v1999 = vor.u32 %v1997, %v1995
      %v2001 = vshll.u32 %v1906, 16
      %v2003 = vrot.slane %v2001, 1
      %v2004 = vsel %vm390, %v1999, %v2003
      %v2005 = vshrl.u32 %v1906, 16
      %v2007 = vor.u32 %v2005, %v2003
      %v2009 = vshll.u32 %v1907, 16
      %v2011 = vrot.slane %v2009, 1
      %v2012 = vsel %vm390, %v2007, %v2011
      %v2013 = vshrl.u32 %v1907, 16
      %v2015 = vor.u32 %v2013, %v2011
      %v2017 = vshll.u32 %v1908, 16
      %v2019 = vrot.slane %v2017, 1
      %v2020 = vsel %vm390, %v2015, %v2019
      %v2021 = vshrl.u32 %v1908, 16
      %v2023 = vor.u32 %v2021, %v2019
      %v2025 = vshll.u32 %v1909, 16
      %v2027 = vrot.slane %v2025, 1
      %v2028 = vsel %vm390, %v2023, %v2027
      %v2029 = vshrl.u32 %v1909, 16
      %v2031 = vor.u32 %v2029, %v2027
      %v2033 = vshll.u32 %v1910, 16
      %v2035 = vrot.slane %v2033, 1
      %v2036 = vsel %vm390, %v2031, %v2035
      %v2037 = vshrl.u32 %v1910, 16
      %v2039 = vor.u32 %v2037, %v2035
      %v2041 = vshll.u32 %v1911, 16
      %v2043 = vrot.slane %v2041, 1
      %v2044 = vsel %vm390, %v2039, %v2043
      %v2045 = vshrl.u32 %v1911, 16
      %v2047 = vor.u32 %v2045, %v2043
      %v2049 = vshll.u32 %v1912, 16
      %v2051 = vrot.slane %v2049, 1
      %v2052 = vsel %vm390, %v2047, %v2051
      %v2053 = vshrl.u32 %v1912, 16
      %v2055 = vor.u32 %v2053, %v2051
      %v2057 = vshll.u32 %v1913, 16
      %v2059 = vrot.slane %v2057, 1
      %v2060 = vsel %vm390, %v2055, %v2059
      %v2061 = vshrl.u32 %v1913, 16
      %v2063 = vor.u32 %v2061, %v2059
      %v2065 = vshll.u32 %v1914, 16
      %v2067 = vrot.slane %v2065, 1
      %v2068 = vsel %vm390, %v2063, %v2067
      %v2069 = vshrl.u32 %v1914, 16
      %v2071 = vor.u32 %v2069, %v2067
      %v2073 = vshll.u32 %v1915, 16
      %v2075 = vrot.slane %v2073, 1
      %v2076 = vsel %vm390, %v2071, %v2075
      %v2077 = vshrl.u32 %v1915, 16
      %v2079 = vor.u32 %v2077, %v2075
      %v2081 = vshll.u32 %v1916, 16
      %v2083 = vrot.slane %v2081, 1
      %v2084 = vsel %vm390, %v2079, %v2083
      %v2085 = vshrl.u32 %v1916, 16
      %v2087 = vor.u32 %v2085, %v2083
      %v2089 = vshll.u32 %v1917, 16
      %v2091 = vrot.slane %v2089, 1
      %v2092 = vsel %vm390, %v2087, %v2091
      %v2093 = vshrl.u32 %v1917, 16
      %v2095 = vor.u32 %v2093, %v2091
      %v2097 = vshll.u32 %v1918, 16
      %v2099 = vrot.slane %v2097, 1
      %v2100 = vsel %vm390, %v2095, %v2099
      %v2101 = vshrl.u32 %v1918, 16
      %v2103 = vor.u32 %v2101, %v2099
      %v2105 = vshll.u32 %v1919, 16
      %v2107 = vrot.slane %v2105, 1
      %v2108 = vsel %vm390, %v2103, %v2107
      %v2109 = vshrl.u32 %v1919, 16
      %v2111 = vor.u32 %v2109, %v2107
      %v2113 = vshll.u32 %v1920, 16
      %v2115 = vrot.slane %v2113, 1
      %v2116 = vsel %vm390, %v2111, %v2115
      %v2121 = vunpack.c.l.b16 %v1794
      %v2122 = vunpack.c.l.b16 %v1795
      %v2123 = vunpack.c.l.b16 %v1796
      %v2124 = vunpack.c.l.b16 %v1797
      %v2125 = vpack.c.b16 %v2122, %v2121
      %v2126 = vpack.c.b16 %v2124, %v2123
      %v2130 = vsel %vm599, %v1932, 0
      %v2133 = vsel %vm599, %v1940, 0
      %v2136 = vsel %vm599, %v1948, 0
      %v2139 = vsel %vm599, %v1956, 0
      %v2142 = vsel %vm599, %v1964, 0
      %v2145 = vsel %vm599, %v1972, 0
      %v2148 = vsel %vm599, %v1980, 0
      %v2151 = vsel %vm599, %v1988, 0
      %v2154 = vsel %vm599, %v1996, 0
      %v2157 = vsel %vm599, %v2004, 0
      %v2160 = vsel %vm599, %v2012, 0
      %v2163 = vsel %vm599, %v2020, 0
      %v2166 = vsel %vm599, %v2028, 0
      %v2169 = vsel %vm599, %v2036, 0
      %v2172 = vsel %vm599, %v2044, 0
      %v2175 = vsel %vm599, %v2052, 0
      %v2178 = vsel %vm599, %v2060, 0
      %v2181 = vsel %vm599, %v2068, 0
      %v2184 = vsel %vm599, %v2076, 0
      %v2187 = vsel %vm599, %v2084, 0
      %v2190 = vsel %vm599, %v2092, 0
      %v2193 = vsel %vm599, %v2100, 0
      %v2196 = vsel %vm599, %v2108, 0
      %v2199 = vsel %vm599, %v2116, 0
      %2201 = vmatpush.bf16.msra.mxu0 0
      %2202 = vmatpush.bf16.msra.mxu0 0
      %2203 = vmatpush.bf16.msra.mxu0 0
      %2204 = vmatpush.bf16.msra.mxu0 0
      %2205 = vmatpush.bf16.msra.mxu0 0
      %2206 = vmatpush.bf16.msra.mxu0 0
      %2207 = vmatpush.bf16.msra.mxu0 %v2126
      %2208 = vmatpush.bf16.msra.mxu0 %v2125
      %2209 = vmatmul.bf16.gmra.mxu0 %v2130
      %v2210 = vpop.f32.mrf.mxu0
      %v2211 = vadd.f32 0.0, %v2210
      %v2212 = vpop.f32.mrf.mxu0
      %v2213 = vadd.f32 0.0, %v2212
      %2214 = vmatmul.bf16.gmra.mxu0 %v2133
      %v2215 = vpop.f32.mrf.mxu0
      %v2216 = vadd.f32 0.0, %v2215
      %v2217 = vpop.f32.mrf.mxu0
      %v2218 = vadd.f32 0.0, %v2217
      %2219 = vmatmul.bf16.gmra.mxu0 %v2136
      %v2220 = vpop.f32.mrf.mxu0
      %v2221 = vadd.f32 0.0, %v2220
      %v2222 = vpop.f32.mrf.mxu0
      %v2223 = vadd.f32 0.0, %v2222
      %2224 = vmatmul.bf16.gmra.mxu0 %v2139
      %v2225 = vpop.f32.mrf.mxu0
      %v2226 = vadd.f32 0.0, %v2225
      %v2227 = vpop.f32.mrf.mxu0
      %v2228 = vadd.f32 0.0, %v2227
      %2229 = vmatmul.bf16.gmra.mxu0 %v2142
      %v2230 = vpop.f32.mrf.mxu0
      %v2231 = vadd.f32 0.0, %v2230
      %v2232 = vpop.f32.mrf.mxu0
      %v2233 = vadd.f32 0.0, %v2232
      %2234 = vmatmul.bf16.gmra.mxu0 %v2145
      %v2235 = vpop.f32.mrf.mxu0
      %v2236 = vadd.f32 0.0, %v2235
      %v2237 = vpop.f32.mrf.mxu0
      %v2238 = vadd.f32 0.0, %v2237
      %2239 = vmatmul.bf16.gmra.mxu0 %v2148
      %v2240 = vpop.f32.mrf.mxu0
      %v2241 = vadd.f32 0.0, %v2240
      %v2242 = vpop.f32.mrf.mxu0
      %v2243 = vadd.f32 0.0, %v2242
      %2244 = vmatmul.bf16.gmra.mxu0 %v2151
      %v2245 = vpop.f32.mrf.mxu0
      %v2246 = vadd.f32 0.0, %v2245
      %v2247 = vpop.f32.mrf.mxu0
      %v2248 = vadd.f32 0.0, %v2247
      %2249 = vmatmul.bf16.gmra.mxu0 %v2154
      %v2250 = vpop.f32.mrf.mxu0
      %v2251 = vadd.f32 0.0, %v2250
      %v2252 = vpop.f32.mrf.mxu0
      %v2253 = vadd.f32 0.0, %v2252
      %2254 = vmatmul.bf16.gmra.mxu0 %v2157
      %v2255 = vpop.f32.mrf.mxu0
      %v2256 = vadd.f32 0.0, %v2255
      %v2257 = vpop.f32.mrf.mxu0
      %v2258 = vadd.f32 0.0, %v2257
      %2259 = vmatmul.bf16.gmra.mxu0 %v2160
      %v2260 = vpop.f32.mrf.mxu0
      %v2261 = vadd.f32 0.0, %v2260
      %v2262 = vpop.f32.mrf.mxu0
      %v2263 = vadd.f32 0.0, %v2262
      %2264 = vmatmul.bf16.gmra.mxu0 %v2163
      %v2265 = vpop.f32.mrf.mxu0
      %v2266 = vadd.f32 0.0, %v2265
      %v2267 = vpop.f32.mrf.mxu0
      %v2268 = vadd.f32 0.0, %v2267
      %2269 = vmatmul.bf16.gmra.mxu0 %v2166
      %v2270 = vpop.f32.mrf.mxu0
      %v2271 = vadd.f32 0.0, %v2270
      %v2272 = vpop.f32.mrf.mxu0
      %v2273 = vadd.f32 0.0, %v2272
      %2274 = vmatmul.bf16.gmra.mxu0 %v2169
      %v2275 = vpop.f32.mrf.mxu0
      %v2276 = vadd.f32 0.0, %v2275
      %v2277 = vpop.f32.mrf.mxu0
      %v2278 = vadd.f32 0.0, %v2277
      %2279 = vmatmul.bf16.gmra.mxu0 %v2172
      %v2280 = vpop.f32.mrf.mxu0
      %v2281 = vadd.f32 0.0, %v2280
      %v2282 = vpop.f32.mrf.mxu0
      %v2283 = vadd.f32 0.0, %v2282
      %2284 = vmatmul.bf16.gmra.mxu0 %v2175
      %v2285 = vpop.f32.mrf.mxu0
      %v2286 = vadd.f32 0.0, %v2285
      %v2287 = vpop.f32.mrf.mxu0
      %v2288 = vadd.f32 0.0, %v2287
      %2289 = vmatmul.bf16.gmra.mxu0 %v2178
      %v2290 = vpop.f32.mrf.mxu0
      %v2291 = vadd.f32 0.0, %v2290
      %v2292 = vpop.f32.mrf.mxu0
      %v2293 = vadd.f32 0.0, %v2292
      %2294 = vmatmul.bf16.gmra.mxu0 %v2181
      %v2295 = vpop.f32.mrf.mxu0
      %v2296 = vadd.f32 0.0, %v2295
      %v2297 = vpop.f32.mrf.mxu0
      %v2298 = vadd.f32 0.0, %v2297
      %2299 = vmatmul.bf16.gmra.mxu0 %v2184
      %v2300 = vpop.f32.mrf.mxu0
      %v2301 = vadd.f32 0.0, %v2300
      %v2302 = vpop.f32.mrf.mxu0
      %v2303 = vadd.f32 0.0, %v2302
      %2304 = vmatmul.bf16.gmra.mxu0 %v2187
      %v2305 = vpop.f32.mrf.mxu0
      %v2306 = vadd.f32 0.0, %v2305
      %v2307 = vpop.f32.mrf.mxu0
      %v2308 = vadd.f32 0.0, %v2307
      %2309 = vmatmul.bf16.gmra.mxu0 %v2190
      %v2310 = vpop.f32.mrf.mxu0
      %v2311 = vadd.f32 0.0, %v2310
      %v2312 = vpop.f32.mrf.mxu0
      %v2313 = vadd.f32 0.0, %v2312
      %2314 = vmatmul.bf16.gmra.mxu0 %v2193
      %v2315 = vpop.f32.mrf.mxu0
      %v2316 = vadd.f32 0.0, %v2315
      %v2317 = vpop.f32.mrf.mxu0
      %v2318 = vadd.f32 0.0, %v2317
      %2319 = vmatmul.bf16.gmra.mxu0 %v2196
      %v2320 = vpop.f32.mrf.mxu0
      %v2321 = vadd.f32 0.0, %v2320
      %v2322 = vpop.f32.mrf.mxu0
      %v2323 = vadd.f32 0.0, %v2322
      %2324 = vmatmul.bf16.gmra.mxu0 %v2199
      %v2325 = vpop.f32.mrf.mxu0
      %v2326 = vadd.f32 0.0, %v2325
      %v2327 = vpop.f32.mrf.mxu0
      %v2328 = vadd.f32 0.0, %v2327
      %2329 = vdwg.mxu0
      %v2330 = vadd.f32 %v1696, %v2211
      %v2331 = vadd.f32 %v1697, %v2213
      %v2332 = vadd.f32 %v1698, %v2216
      %v2333 = vadd.f32 %v1699, %v2218
      %v2334 = vadd.f32 %v1700, %v2221
      %v2335 = vadd.f32 %v1701, %v2223
      %v2336 = vadd.f32 %v1702, %v2226
      %v2337 = vadd.f32 %v1703, %v2228
      %v2338 = vadd.f32 %v1704, %v2231
      %v2339 = vadd.f32 %v1705, %v2233
      %v2340 = vadd.f32 %v1706, %v2236
      %v2341 = vadd.f32 %v1707, %v2238
      %v2342 = vadd.f32 %v1708, %v2241
      %v2343 = vadd.f32 %v1709, %v2243
      %v2344 = vadd.f32 %v1710, %v2246
      %v2345 = vadd.f32 %v1711, %v2248
      %v2346 = vadd.f32 %v1712, %v2251
      %v2347 = vadd.f32 %v1713, %v2253
      %v2348 = vadd.f32 %v1714, %v2256
      %v2349 = vadd.f32 %v1715, %v2258
      %v2350 = vadd.f32 %v1716, %v2261
      %v2351 = vadd.f32 %v1717, %v2263
      %v2352 = vadd.f32 %v1718, %v2266
      %v2353 = vadd.f32 %v1719, %v2268
      %v2354 = vadd.f32 %v1720, %v2271
      %v2355 = vadd.f32 %v1721, %v2273
      %v2356 = vadd.f32 %v1722, %v2276
      %v2357 = vadd.f32 %v1723, %v2278
      %v2358 = vadd.f32 %v1724, %v2281
      %v2359 = vadd.f32 %v1725, %v2283
      %v2360 = vadd.f32 %v1726, %v2286
      %v2361 = vadd.f32 %v1727, %v2288
      %v2362 = vadd.f32 %v1728, %v2291
      %v2363 = vadd.f32 %v1729, %v2293
      %v2364 = vadd.f32 %v1730, %v2296
      %v2365 = vadd.f32 %v1731, %v2298
      %v2366 = vadd.f32 %v1732, %v2301
      %v2367 = vadd.f32 %v1733, %v2303
      %v2368 = vadd.f32 %v1734, %v2306
      %v2369 = vadd.f32 %v1735, %v2308
      %v2370 = vadd.f32 %v1736, %v2311
      %v2371 = vadd.f32 %v1737, %v2313
      %v2372 = vadd.f32 %v1738, %v2316
      %v2373 = vadd.f32 %v1739, %v2318
      %v2374 = vadd.f32 %v1740, %v2321
      %v2375 = vadd.f32 %v1741, %v2323
      %v2376 = vadd.f32 %v1742, %v2326
      %v2377 = vadd.f32 %v1743, %v2328
      %v2378 = vld [vmem:[%s197 + $0xc] sm:$0xe]
      %s2379 = scalar_lea.vmem %s1, 80
      %v2380 = vld [vmem:[%s2379] sm:$0xf]
      %v2381 = vld [vmem:[%s2379 + $0x4] sm:$0xf]
      %v2382 = vld [vmem:[%s2379 + $0x8] sm:$0xf]
      %v2383 = vld [vmem:[%s2379 + $0xc] sm:$0xf]
      %v2385 = vunpack.c.l.b16 %v2378
      %v2386 = vpack.c.b16 %v1848, %v2385
      %v2387 = vrot.slane %v2386, 1
      %v2388 = vrot.slane %v1897, 1
      %v2389 = vsel %vm999, %v2387, %v2388
      %v2390 = vrot.slane %v1898, 1
      %v2391 = vsel %vm999, %v2388, %v2390
      %v2392 = vrot.slane %v1899, 1
      %v2393 = vsel %vm999, %v2390, %v2392
      %v2394 = vrot.slane %v1900, 1
      %v2395 = vsel %vm999, %v2392, %v2394
      %v2396 = vrot.slane %v1901, 1
      %v2397 = vsel %vm999, %v2394, %v2396
      %v2398 = vrot.slane %v1902, 1
      %v2399 = vsel %vm999, %v2396, %v2398
      %v2400 = vrot.slane %v1903, 1
      %v2401 = vsel %vm999, %v2398, %v2400
      %v2402 = vrot.slane %v1904, 1
      %v2403 = vsel %vm999, %v2400, %v2402
      %v2404 = vrot.slane %v1905, 1
      %v2405 = vsel %vm999, %v2402, %v2404
      %v2406 = vrot.slane %v1906, 1
      %v2407 = vsel %vm999, %v2404, %v2406
      %v2408 = vrot.slane %v1907, 1
      %v2409 = vsel %vm999, %v2406, %v2408
      %v2410 = vrot.slane %v1908, 1
      %v2411 = vsel %vm999, %v2408, %v2410
      %v2412 = vrot.slane %v1909, 1
      %v2413 = vsel %vm999, %v2410, %v2412
      %v2414 = vrot.slane %v1910, 1
      %v2415 = vsel %vm999, %v2412, %v2414
      %v2416 = vrot.slane %v1911, 1
      %v2417 = vsel %vm999, %v2414, %v2416
      %v2418 = vrot.slane %v1912, 1
      %v2419 = vsel %vm999, %v2416, %v2418
      %v2420 = vrot.slane %v1913, 1
      %v2421 = vsel %vm999, %v2418, %v2420
      %v2422 = vrot.slane %v1914, 1
      %v2423 = vsel %vm999, %v2420, %v2422
      %v2424 = vrot.slane %v1915, 1
      %v2425 = vsel %vm999, %v2422, %v2424
      %v2426 = vrot.slane %v1916, 1
      %v2427 = vsel %vm999, %v2424, %v2426
      %v2428 = vrot.slane %v1917, 1
      %v2429 = vsel %vm999, %v2426, %v2428
      %v2430 = vrot.slane %v1918, 1
      %v2431 = vsel %vm999, %v2428, %v2430
      %v2432 = vrot.slane %v1919, 1
      %v2433 = vsel %vm999, %v2430, %v2432
      %v2434 = vrot.slane %v1920, 1
      %v2435 = vsel %vm999, %v2432, %v2434
      %v2440 = vunpack.c.l.b16 %v2380
      %v2441 = vunpack.c.l.b16 %v2381
      %v2442 = vunpack.c.l.b16 %v2382
      %v2443 = vunpack.c.l.b16 %v2383
      %v2444 = vpack.c.b16 %v2441, %v2440
      %v2445 = vpack.c.b16 %v2443, %v2442
      %v2449 = vsel %vm599, %v2389, 0
      %v2452 = vsel %vm599, %v2391, 0
      %v2455 = vsel %vm599, %v2393, 0
      %v2458 = vsel %vm599, %v2395, 0
      %v2461 = vsel %vm599, %v2397, 0
      %v2464 = vsel %vm599, %v2399, 0
      %v2467 = vsel %vm599, %v2401, 0
      %v2470 = vsel %vm599, %v2403, 0
      %v2473 = vsel %vm599, %v2405, 0
      %v2476 = vsel %vm599, %v2407, 0
      %v2479 = vsel %vm599, %v2409, 0
      %v2482 = vsel %vm599, %v2411, 0
      %v2485 = vsel %vm599, %v2413, 0
      %v2488 = vsel %vm599, %v2415, 0
      %v2491 = vsel %vm599, %v2417, 0
      %v2494 = vsel %vm599, %v2419, 0
      %v2497 = vsel %vm599, %v2421, 0
      %v2500 = vsel %vm599, %v2423, 0
      %v2503 = vsel %vm599, %v2425, 0
      %v2506 = vsel %vm599, %v2427, 0
      %v2509 = vsel %vm599, %v2429, 0
      %v2512 = vsel %vm599, %v2431, 0
      %v2515 = vsel %vm599, %v2433, 0
      %v2518 = vsel %vm599, %v2435, 0
      %2520 = vmatpush.bf16.msra.mxu0 0
      %2521 = vmatpush.bf16.msra.mxu0 0
      %2522 = vmatpush.bf16.msra.mxu0 0
      %2523 = vmatpush.bf16.msra.mxu0 0
      %2524 = vmatpush.bf16.msra.mxu0 0
      %2525 = vmatpush.bf16.msra.mxu0 0
      %2526 = vmatpush.bf16.msra.mxu0 %v2445
      %2527 = vmatpush.bf16.msra.mxu0 %v2444
      %2528 = vmatmul.bf16.gmra.mxu0 %v2449
      %v2529 = vpop.f32.mrf.mxu0
      %v2530 = vadd.f32 0.0, %v2529
      %v2531 = vpop.f32.mrf.mxu0
      %v2532 = vadd.f32 0.0, %v2531
      %2533 = vmatmul.bf16.gmra.mxu0 %v2452
      %v2534 = vpop.f32.mrf.mxu0
      %v2535 = vadd.f32 0.0, %v2534
      %v2536 = vpop.f32.mrf.mxu0
      %v2537 = vadd.f32 0.0, %v2536
      %2538 = vmatmul.bf16.gmra.mxu0 %v2455
      %v2539 = vpop.f32.mrf.mxu0
      %v2540 = vadd.f32 0.0, %v2539
      %v2541 = vpop.f32.mrf.mxu0
      %v2542 = vadd.f32 0.0, %v2541
      %2543 = vmatmul.bf16.gmra.mxu0 %v2458
      %v2544 = vpop.f32.mrf.mxu0
      %v2545 = vadd.f32 0.0, %v2544
      %v2546 = vpop.f32.mrf.mxu0
      %v2547 = vadd.f32 0.0, %v2546
      %2548 = vmatmul.bf16.gmra.mxu0 %v2461
      %v2549 = vpop.f32.mrf.mxu0
      %v2550 = vadd.f32 0.0, %v2549
      %v2551 = vpop.f32.mrf.mxu0
      %v2552 = vadd.f32 0.0, %v2551
      %2553 = vmatmul.bf16.gmra.mxu0 %v2464
      %v2554 = vpop.f32.mrf.mxu0
      %v2555 = vadd.f32 0.0, %v2554
      %v2556 = vpop.f32.mrf.mxu0
      %v2557 = vadd.f32 0.0, %v2556
      %2558 = vmatmul.bf16.gmra.mxu0 %v2467
      %v2559 = vpop.f32.mrf.mxu0
      %v2560 = vadd.f32 0.0, %v2559
      %v2561 = vpop.f32.mrf.mxu0
      %v2562 = vadd.f32 0.0, %v2561
      %2563 = vmatmul.bf16.gmra.mxu0 %v2470
      %v2564 = vpop.f32.mrf.mxu0
      %v2565 = vadd.f32 0.0, %v2564
      %v2566 = vpop.f32.mrf.mxu0
      %v2567 = vadd.f32 0.0, %v2566
      %2568 = vmatmul.bf16.gmra.mxu0 %v2473
      %v2569 = vpop.f32.mrf.mxu0
      %v2570 = vadd.f32 0.0, %v2569
      %v2571 = vpop.f32.mrf.mxu0
      %v2572 = vadd.f32 0.0, %v2571
      %2573 = vmatmul.bf16.gmra.mxu0 %v2476
      %v2574 = vpop.f32.mrf.mxu0
      %v2575 = vadd.f32 0.0, %v2574
      %v2576 = vpop.f32.mrf.mxu0
      %v2577 = vadd.f32 0.0, %v2576
      %2578 = vmatmul.bf16.gmra.mxu0 %v2479
      %v2579 = vpop.f32.mrf.mxu0
      %v2580 = vadd.f32 0.0, %v2579
      %v2581 = vpop.f32.mrf.mxu0
      %v2582 = vadd.f32 0.0, %v2581
      %2583 = vmatmul.bf16.gmra.mxu0 %v2482
      %v2584 = vpop.f32.mrf.mxu0
      %v2585 = vadd.f32 0.0, %v2584
      %v2586 = vpop.f32.mrf.mxu0
      %v2587 = vadd.f32 0.0, %v2586
      %2588 = vmatmul.bf16.gmra.mxu0 %v2485
      %v2589 = vpop.f32.mrf.mxu0
      %v2590 = vadd.f32 0.0, %v2589
      %v2591 = vpop.f32.mrf.mxu0
      %v2592 = vadd.f32 0.0, %v2591
      %2593 = vmatmul.bf16.gmra.mxu0 %v2488
      %v2594 = vpop.f32.mrf.mxu0
      %v2595 = vadd.f32 0.0, %v2594
      %v2596 = vpop.f32.mrf.mxu0
      %v2597 = vadd.f32 0.0, %v2596
      %2598 = vmatmul.bf16.gmra.mxu0 %v2491
      %v2599 = vpop.f32.mrf.mxu0
      %v2600 = vadd.f32 0.0, %v2599
      %v2601 = vpop.f32.mrf.mxu0
      %v2602 = vadd.f32 0.0, %v2601
      %2603 = vmatmul.bf16.gmra.mxu0 %v2494
      %v2604 = vpop.f32.mrf.mxu0
      %v2605 = vadd.f32 0.0, %v2604
      %v2606 = vpop.f32.mrf.mxu0
      %v2607 = vadd.f32 0.0, %v2606
      %2608 = vmatmul.bf16.gmra.mxu0 %v2497
      %v2609 = vpop.f32.mrf.mxu0
      %v2610 = vadd.f32 0.0, %v2609
      %v2611 = vpop.f32.mrf.mxu0
      %v2612 = vadd.f32 0.0, %v2611
      %2613 = vmatmul.bf16.gmra.mxu0 %v2500
      %v2614 = vpop.f32.mrf.mxu0
      %v2615 = vadd.f32 0.0, %v2614
      %v2616 = vpop.f32.mrf.mxu0
      %v2617 = vadd.f32 0.0, %v2616
      %2618 = vmatmul.bf16.gmra.mxu0 %v2503
      %v2619 = vpop.f32.mrf.mxu0
      %v2620 = vadd.f32 0.0, %v2619
      %v2621 = vpop.f32.mrf.mxu0
      %v2622 = vadd.f32 0.0, %v2621
      %2623 = vmatmul.bf16.gmra.mxu0 %v2506
      %v2624 = vpop.f32.mrf.mxu0
      %v2625 = vadd.f32 0.0, %v2624
      %v2626 = vpop.f32.mrf.mxu0
      %v2627 = vadd.f32 0.0, %v2626
      %2628 = vmatmul.bf16.gmra.mxu0 %v2509
      %v2629 = vpop.f32.mrf.mxu0
      %v2630 = vadd.f32 0.0, %v2629
      %v2631 = vpop.f32.mrf.mxu0
      %v2632 = vadd.f32 0.0, %v2631
      %2633 = vmatmul.bf16.gmra.mxu0 %v2512
      %v2634 = vpop.f32.mrf.mxu0
      %v2635 = vadd.f32 0.0, %v2634
      %v2636 = vpop.f32.mrf.mxu0
      %v2637 = vadd.f32 0.0, %v2636
      %2638 = vmatmul.bf16.gmra.mxu0 %v2515
      %v2639 = vpop.f32.mrf.mxu0
      %v2640 = vadd.f32 0.0, %v2639
      %v2641 = vpop.f32.mrf.mxu0
      %v2642 = vadd.f32 0.0, %v2641
      %2643 = vmatmul.bf16.gmra.mxu0 %v2518
      %v2644 = vpop.f32.mrf.mxu0
      %v2645 = vadd.f32 0.0, %v2644
      %v2646 = vpop.f32.mrf.mxu0
      %v2647 = vadd.f32 0.0, %v2646
      %2648 = vdwg.mxu0
      %v2649 = vadd.f32 %v2330, %v2530
      %v2650 = vadd.f32 %v2331, %v2532
      %v2651 = vadd.f32 %v2332, %v2535
      %v2652 = vadd.f32 %v2333, %v2537
      %v2653 = vadd.f32 %v2334, %v2540
      %v2654 = vadd.f32 %v2335, %v2542
      %v2655 = vadd.f32 %v2336, %v2545
      %v2656 = vadd.f32 %v2337, %v2547
      %v2657 = vadd.f32 %v2338, %v2550
      %v2658 = vadd.f32 %v2339, %v2552
      %v2659 = vadd.f32 %v2340, %v2555
      %v2660 = vadd.f32 %v2341, %v2557
      %v2661 = vadd.f32 %v2342, %v2560
      %v2662 = vadd.f32 %v2343, %v2562
      %v2663 = vadd.f32 %v2344, %v2565
      %v2664 = vadd.f32 %v2345, %v2567
      %v2665 = vadd.f32 %v2346, %v2570
      %v2666 = vadd.f32 %v2347, %v2572
      %v2667 = vadd.f32 %v2348, %v2575
      %v2668 = vadd.f32 %v2349, %v2577
      %v2669 = vadd.f32 %v2350, %v2580
      %v2670 = vadd.f32 %v2351, %v2582
      %v2671 = vadd.f32 %v2352, %v2585
      %v2672 = vadd.f32 %v2353, %v2587
      %v2673 = vadd.f32 %v2354, %v2590
      %v2674 = vadd.f32 %v2355, %v2592
      %v2675 = vadd.f32 %v2356, %v2595
      %v2676 = vadd.f32 %v2357, %v2597
      %v2677 = vadd.f32 %v2358, %v2600
      %v2678 = vadd.f32 %v2359, %v2602
      %v2679 = vadd.f32 %v2360, %v2605
      %v2680 = vadd.f32 %v2361, %v2607
      %v2681 = vadd.f32 %v2362, %v2610
      %v2682 = vadd.f32 %v2363, %v2612
      %v2683 = vadd.f32 %v2364, %v2615
      %v2684 = vadd.f32 %v2365, %v2617
      %v2685 = vadd.f32 %v2366, %v2620
      %v2686 = vadd.f32 %v2367, %v2622
      %v2687 = vadd.f32 %v2368, %v2625
      %v2688 = vadd.f32 %v2369, %v2627
      %v2689 = vadd.f32 %v2370, %v2630
      %v2690 = vadd.f32 %v2371, %v2632
      %v2691 = vadd.f32 %v2372, %v2635
      %v2692 = vadd.f32 %v2373, %v2637
      %v2693 = vadd.f32 %v2374, %v2640
      %v2694 = vadd.f32 %v2375, %v2642
      %v2695 = vadd.f32 %v2376, %v2645
      %v2696 = vadd.f32 %v2377, %v2647
      %v2697 = vld [vmem:[%s197 + $0x18] sm:$0xf]
      %v2698 = vld [vmem:[%s197 + $0x1c] sm:$0xf]
      %v2699 = vld [vmem:[%s197 + $0x20] sm:$0xf]
      %v2700 = vld [vmem:[%s197 + $0x24] sm:$0xf]
      %v2701 = vld [vmem:[%s197 + $0x28] sm:$0xf]
      %v2702 = vld [vmem:[%s197 + $0x2c] sm:$0xf]
      %v2703 = vld [vmem:[%s197 + $0x30] sm:$0xf]
      %v2704 = vld [vmem:[%s197 + $0x34] sm:$0xf]
      %v2705 = vld [vmem:[%s197 + $0x38] sm:$0xf]
      %v2706 = vld [vmem:[%s197 + $0x3c] sm:$0xf]
      %v2707 = vld [vmem:[%s197 + $0x40] sm:$0xf]
      %v2708 = vld [vmem:[%s197 + $0x44] sm:$0xf]
      %v2709 = vld [vmem:[%s197 + $0x48] sm:$0xf]
      %v2710 = vld [vmem:[%s197 + $0x4c] sm:$0xf]
      %v2711 = vld [vmem:[%s197 + $0x50] sm:$0xf]
      %v2712 = vld [vmem:[%s197 + $0x54] sm:$0xf]
      %v2713 = vld [vmem:[%s197 + $0x58] sm:$0xf]
      %v2714 = vld [vmem:[%s197 + $0x5c] sm:$0xf]
      %v2715 = vld [vmem:[%s197 + $0x60] sm:$0xf]
      %v2716 = vld [vmem:[%s197 + $0x64] sm:$0xf]
      %v2717 = vld [vmem:[%s197 + $0x68] sm:$0xf]
      %v2718 = vld [vmem:[%s197 + $0x6c] sm:$0xf]
      %v2719 = vld [vmem:[%s197 + $0x70] sm:$0xf]
      %v2720 = vld [vmem:[%s197 + $0x74] sm:$0xf]
      %v2721 = vld [vmem:[%s197 + $0x78] sm:$0xf]
      %v2722 = vld [vmem:[%s197 + $0x7c] sm:$0xf]
      %v2723 = vld [vmem:[%s197 + $0x80] sm:$0xf]
      %v2724 = vld [vmem:[%s197 + $0x84] sm:$0xf]
      %v2725 = vld [vmem:[%s197 + $0x88] sm:$0xf]
      %v2726 = vld [vmem:[%s197 + $0x8c] sm:$0xf]
      %v2727 = vld [vmem:[%s197 + $0x90] sm:$0xf]
      %v2728 = vld [vmem:[%s197 + $0x94] sm:$0xf]
      %v2729 = vld [vmem:[%s197 + $0x98] sm:$0xf]
      %v2730 = vld [vmem:[%s197 + $0x9c] sm:$0xf]
      %v2731 = vld [vmem:[%s197 + $0xa0] sm:$0xf]
      %v2732 = vld [vmem:[%s197 + $0xa4] sm:$0xf]
      %v2733 = vld [vmem:[%s197 + $0xa8] sm:$0xf]
      %v2734 = vld [vmem:[%s197 + $0xac] sm:$0xf]
      %v2735 = vld [vmem:[%s197 + $0xb0] sm:$0xf]
      %v2736 = vld [vmem:[%s197 + $0xb4] sm:$0xf]
      %v2737 = vld [vmem:[%s197 + $0xb8] sm:$0xf]
      %v2738 = vld [vmem:[%s197 + $0xbc] sm:$0xf]
      %v2739 = vld [vmem:[%s197 + $0xc0] sm:$0xf]
      %v2740 = vld [vmem:[%s197 + $0xc4] sm:$0xf]
      %v2741 = vld [vmem:[%s197 + $0xc8] sm:$0xf]
      %v2742 = vld [vmem:[%s197 + $0xcc] sm:$0xf]
      %v2743 = vld [vmem:[%s197 + $0xd0] sm:$0xf]
      %v2744 = vld [vmem:[%s197 + $0xd4] sm:$0xf]
      %s2745 = scalar_lea.vmem %s1, 96
      %v2746 = vld [vmem:[%s2745] sm:$0xf]
      %v2747 = vld [vmem:[%s2745 + $0x4] sm:$0xf]
      %v2748 = vld [vmem:[%s2745 + $0x8] sm:$0xf]
      %v2749 = vld [vmem:[%s2745 + $0xc] sm:$0xf]
      %v2798 = vunpack.c.l.b16 %v2697
      %v2799 = vunpack.c.l.b16 %v2698
      %v2800 = vunpack.c.l.b16 %v2699
      %v2801 = vunpack.c.l.b16 %v2700
      %v2802 = vunpack.c.l.b16 %v2701
      %v2803 = vunpack.c.l.b16 %v2702
      %v2804 = vunpack.c.l.b16 %v2703
      %v2805 = vunpack.c.l.b16 %v2704
      %v2806 = vunpack.c.l.b16 %v2705
      %v2807 = vunpack.c.l.b16 %v2706
      %v2808 = vunpack.c.l.b16 %v2707
      %v2809 = vunpack.c.l.b16 %v2708
      %v2810 = vunpack.c.l.b16 %v2709
      %v2811 = vunpack.c.l.b16 %v2710
      %v2812 = vunpack.c.l.b16 %v2711
      %v2813 = vunpack.c.l.b16 %v2712
      %v2814 = vunpack.c.l.b16 %v2713
      %v2815 = vunpack.c.l.b16 %v2714
      %v2816 = vunpack.c.l.b16 %v2715
      %v2817 = vunpack.c.l.b16 %v2716
      %v2818 = vunpack.c.l.b16 %v2717
      %v2819 = vunpack.c.l.b16 %v2718
      %v2820 = vunpack.c.l.b16 %v2719
      %v2821 = vunpack.c.l.b16 %v2720
      %v2822 = vunpack.c.l.b16 %v2721
      %v2823 = vunpack.c.l.b16 %v2722
      %v2824 = vunpack.c.l.b16 %v2723
      %v2825 = vunpack.c.l.b16 %v2724
      %v2826 = vunpack.c.l.b16 %v2725
      %v2827 = vunpack.c.l.b16 %v2726
      %v2828 = vunpack.c.l.b16 %v2727
      %v2829 = vunpack.c.l.b16 %v2728
      %v2830 = vunpack.c.l.b16 %v2729
      %v2831 = vunpack.c.l.b16 %v2730
      %v2832 = vunpack.c.l.b16 %v2731
      %v2833 = vunpack.c.l.b16 %v2732
      %v2834 = vunpack.c.l.b16 %v2733
      %v2835 = vunpack.c.l.b16 %v2734
      %v2836 = vunpack.c.l.b16 %v2735
      %v2837 = vunpack.c.l.b16 %v2736
      %v2838 = vunpack.c.l.b16 %v2737
      %v2839 = vunpack.c.l.b16 %v2738
      %v2840 = vunpack.c.l.b16 %v2739
      %v2841 = vunpack.c.l.b16 %v2740
      %v2842 = vunpack.c.l.b16 %v2741
      %v2843 = vunpack.c.l.b16 %v2742
      %v2844 = vunpack.c.l.b16 %v2743
      %v2845 = vunpack.c.l.b16 %v2744
      %v2846 = vpack.c.b16 %v2799, %v2798
      %v2847 = vpack.c.b16 %v2801, %v2800
      %v2848 = vpack.c.b16 %v2803, %v2802
      %v2849 = vpack.c.b16 %v2805, %v2804
      %v2850 = vpack.c.b16 %v2807, %v2806
      %v2851 = vpack.c.b16 %v2809, %v2808
      %v2852 = vpack.c.b16 %v2811, %v2810
      %v2853 = vpack.c.b16 %v2813, %v2812
      %v2854 = vpack.c.b16 %v2815, %v2814
      %v2855 = vpack.c.b16 %v2817, %v2816
      %v2856 = vpack.c.b16 %v2819, %v2818
      %v2857 = vpack.c.b16 %v2821, %v2820
      %v2858 = vpack.c.b16 %v2823, %v2822
      %v2859 = vpack.c.b16 %v2825, %v2824
      %v2860 = vpack.c.b16 %v2827, %v2826
      %v2861 = vpack.c.b16 %v2829, %v2828
      %v2862 = vpack.c.b16 %v2831, %v2830
      %v2863 = vpack.c.b16 %v2833, %v2832
      %v2864 = vpack.c.b16 %v2835, %v2834
      %v2865 = vpack.c.b16 %v2837, %v2836
      %v2866 = vpack.c.b16 %v2839, %v2838
      %v2867 = vpack.c.b16 %v2841, %v2840
      %v2868 = vpack.c.b16 %v2843, %v2842
      %v2869 = vpack.c.b16 %v2845, %v2844
      %v2874 = vunpack.c.l.b16 %v2746
      %v2875 = vunpack.c.l.b16 %v2747
      %v2876 = vunpack.c.l.b16 %v2748
      %v2877 = vunpack.c.l.b16 %v2749
      %v2878 = vpack.c.b16 %v2875, %v2874
      %v2879 = vpack.c.b16 %v2877, %v2876
      %v2883 = vsel %vm599, %v2846, 0
      %v2886 = vsel %vm599, %v2847, 0
      %v2889 = vsel %vm599, %v2848, 0
      %v2892 = vsel %vm599, %v2849, 0
      %v2895 = vsel %vm599, %v2850, 0
      %v2898 = vsel %vm599, %v2851, 0
      %v2901 = vsel %vm599, %v2852, 0
      %v2904 = vsel %vm599, %v2853, 0
      %v2907 = vsel %vm599, %v2854, 0
      %v2910 = vsel %vm599, %v2855, 0
      %v2913 = vsel %vm599, %v2856, 0
      %v2916 = vsel %vm599, %v2857, 0
      %v2919 = vsel %vm599, %v2858, 0
      %v2922 = vsel %vm599, %v2859, 0
      %v2925 = vsel %vm599, %v2860, 0
      %v2928 = vsel %vm599, %v2861, 0
      %v2931 = vsel %vm599, %v2862, 0
      %v2934 = vsel %vm599, %v2863, 0
      %v2937 = vsel %vm599, %v2864, 0
      %v2940 = vsel %vm599, %v2865, 0
      %v2943 = vsel %vm599, %v2866, 0
      %v2946 = vsel %vm599, %v2867, 0
      %v2949 = vsel %vm599, %v2868, 0
      %v2952 = vsel %vm599, %v2869, 0
      %2954 = vmatpush.bf16.msra.mxu0 0
      %2955 = vmatpush.bf16.msra.mxu0 0
      %2956 = vmatpush.bf16.msra.mxu0 0
      %2957 = vmatpush.bf16.msra.mxu0 0
      %2958 = vmatpush.bf16.msra.mxu0 0
      %2959 = vmatpush.bf16.msra.mxu0 0
      %2960 = vmatpush.bf16.msra.mxu0 %v2879
      %2961 = vmatpush.bf16.msra.mxu0 %v2878
      %2962 = vmatmul.bf16.gmra.mxu0 %v2883
      %v2963 = vpop.f32.mrf.mxu0
      %v2964 = vadd.f32 0.0, %v2963
      %v2965 = vpop.f32.mrf.mxu0
      %v2966 = vadd.f32 0.0, %v2965
      %2967 = vmatmul.bf16.gmra.mxu0 %v2886
      %v2968 = vpop.f32.mrf.mxu0
      %v2969 = vadd.f32 0.0, %v2968
      %v2970 = vpop.f32.mrf.mxu0
      %v2971 = vadd.f32 0.0, %v2970
      %2972 = vmatmul.bf16.gmra.mxu0 %v2889
      %v2973 = vpop.f32.mrf.mxu0
      %v2974 = vadd.f32 0.0, %v2973
      %v2975 = vpop.f32.mrf.mxu0
      %v2976 = vadd.f32 0.0, %v2975
      %2977 = vmatmul.bf16.gmra.mxu0 %v2892
      %v2978 = vpop.f32.mrf.mxu0
      %v2979 = vadd.f32 0.0, %v2978
      %v2980 = vpop.f32.mrf.mxu0
      %v2981 = vadd.f32 0.0, %v2980
      %2982 = vmatmul.bf16.gmra.mxu0 %v2895
      %v2983 = vpop.f32.mrf.mxu0
      %v2984 = vadd.f32 0.0, %v2983
      %v2985 = vpop.f32.mrf.mxu0
      %v2986 = vadd.f32 0.0, %v2985
      %2987 = vmatmul.bf16.gmra.mxu0 %v2898
      %v2988 = vpop.f32.mrf.mxu0
      %v2989 = vadd.f32 0.0, %v2988
      %v2990 = vpop.f32.mrf.mxu0
      %v2991 = vadd.f32 0.0, %v2990
      %2992 = vmatmul.bf16.gmra.mxu0 %v2901
      %v2993 = vpop.f32.mrf.mxu0
      %v2994 = vadd.f32 0.0, %v2993
      %v2995 = vpop.f32.mrf.mxu0
      %v2996 = vadd.f32 0.0, %v2995
      %2997 = vmatmul.bf16.gmra.mxu0 %v2904
      %v2998 = vpop.f32.mrf.mxu0
      %v2999 = vadd.f32 0.0, %v2998
      %v3000 = vpop.f32.mrf.mxu0
      %v3001 = vadd.f32 0.0, %v3000
      %3002 = vmatmul.bf16.gmra.mxu0 %v2907
      %v3003 = vpop.f32.mrf.mxu0
      %v3004 = vadd.f32 0.0, %v3003
      %v3005 = vpop.f32.mrf.mxu0
      %v3006 = vadd.f32 0.0, %v3005
      %3007 = vmatmul.bf16.gmra.mxu0 %v2910
      %v3008 = vpop.f32.mrf.mxu0
      %v3009 = vadd.f32 0.0, %v3008
      %v3010 = vpop.f32.mrf.mxu0
      %v3011 = vadd.f32 0.0, %v3010
      %3012 = vmatmul.bf16.gmra.mxu0 %v2913
      %v3013 = vpop.f32.mrf.mxu0
      %v3014 = vadd.f32 0.0, %v3013
      %v3015 = vpop.f32.mrf.mxu0
      %v3016 = vadd.f32 0.0, %v3015
      %3017 = vmatmul.bf16.gmra.mxu0 %v2916
      %v3018 = vpop.f32.mrf.mxu0
      %v3019 = vadd.f32 0.0, %v3018
      %v3020 = vpop.f32.mrf.mxu0
      %v3021 = vadd.f32 0.0, %v3020
      %3022 = vmatmul.bf16.gmra.mxu0 %v2919
      %v3023 = vpop.f32.mrf.mxu0
      %v3024 = vadd.f32 0.0, %v3023
      %v3025 = vpop.f32.mrf.mxu0
      %v3026 = vadd.f32 0.0, %v3025
      %3027 = vmatmul.bf16.gmra.mxu0 %v2922
      %v3028 = vpop.f32.mrf.mxu0
      %v3029 = vadd.f32 0.0, %v3028
      %v3030 = vpop.f32.mrf.mxu0
      %v3031 = vadd.f32 0.0, %v3030
      %3032 = vmatmul.bf16.gmra.mxu0 %v2925
      %v3033 = vpop.f32.mrf.mxu0
      %v3034 = vadd.f32 0.0, %v3033
      %v3035 = vpop.f32.mrf.mxu0
      %v3036 = vadd.f32 0.0, %v3035
      %3037 = vmatmul.bf16.gmra.mxu0 %v2928
      %v3038 = vpop.f32.mrf.mxu0
      %v3039 = vadd.f32 0.0, %v3038
      %v3040 = vpop.f32.mrf.mxu0
      %v3041 = vadd.f32 0.0, %v3040
      %3042 = vmatmul.bf16.gmra.mxu0 %v2931
      %v3043 = vpop.f32.mrf.mxu0
      %v3044 = vadd.f32 0.0, %v3043
      %v3045 = vpop.f32.mrf.mxu0
      %v3046 = vadd.f32 0.0, %v3045
      %3047 = vmatmul.bf16.gmra.mxu0 %v2934
      %v3048 = vpop.f32.mrf.mxu0
      %v3049 = vadd.f32 0.0, %v3048
      %v3050 = vpop.f32.mrf.mxu0
      %v3051 = vadd.f32 0.0, %v3050
      %3052 = vmatmul.bf16.gmra.mxu0 %v2937
      %v3053 = vpop.f32.mrf.mxu0
      %v3054 = vadd.f32 0.0, %v3053
      %v3055 = vpop.f32.mrf.mxu0
      %v3056 = vadd.f32 0.0, %v3055
      %3057 = vmatmul.bf16.gmra.mxu0 %v2940
      %v3058 = vpop.f32.mrf.mxu0
      %v3059 = vadd.f32 0.0, %v3058
      %v3060 = vpop.f32.mrf.mxu0
      %v3061 = vadd.f32 0.0, %v3060
      %3062 = vmatmul.bf16.gmra.mxu0 %v2943
      %v3063 = vpop.f32.mrf.mxu0
      %v3064 = vadd.f32 0.0, %v3063
      %v3065 = vpop.f32.mrf.mxu0
      %v3066 = vadd.f32 0.0, %v3065
      %3067 = vmatmul.bf16.gmra.mxu0 %v2946
      %v3068 = vpop.f32.mrf.mxu0
      %v3069 = vadd.f32 0.0, %v3068
      %v3070 = vpop.f32.mrf.mxu0
      %v3071 = vadd.f32 0.0, %v3070
      %3072 = vmatmul.bf16.gmra.mxu0 %v2949
      %v3073 = vpop.f32.mrf.mxu0
      %v3074 = vadd.f32 0.0, %v3073
      %v3075 = vpop.f32.mrf.mxu0
      %v3076 = vadd.f32 0.0, %v3075
      %3077 = vmatmul.bf16.gmra.mxu0 %v2952
      %v3078 = vpop.f32.mrf.mxu0
      %v3079 = vadd.f32 0.0, %v3078
      %v3080 = vpop.f32.mrf.mxu0
      %v3081 = vadd.f32 0.0, %v3080
      %3082 = vdwg.mxu0
      %v3083 = vadd.f32 %v2649, %v2964
      %v3084 = vadd.f32 %v2650, %v2966
      %v3085 = vadd.f32 %v2651, %v2969
      %v3086 = vadd.f32 %v2652, %v2971
      %v3087 = vadd.f32 %v2653, %v2974
      %v3088 = vadd.f32 %v2654, %v2976
      %v3089 = vadd.f32 %v2655, %v2979
      %v3090 = vadd.f32 %v2656, %v2981
      %v3091 = vadd.f32 %v2657, %v2984
      %v3092 = vadd.f32 %v2658, %v2986
      %v3093 = vadd.f32 %v2659, %v2989
      %v3094 = vadd.f32 %v2660, %v2991
      %v3095 = vadd.f32 %v2661, %v2994
      %v3096 = vadd.f32 %v2662, %v2996
      %v3097 = vadd.f32 %v2663, %v2999
      %v3098 = vadd.f32 %v2664, %v3001
      %v3099 = vadd.f32 %v2665, %v3004
      %v3100 = vadd.f32 %v2666, %v3006
      %v3101 = vadd.f32 %v2667, %v3009
      %v3102 = vadd.f32 %v2668, %v3011
      %v3103 = vadd.f32 %v2669, %v3014
      %v3104 = vadd.f32 %v2670, %v3016
      %v3105 = vadd.f32 %v2671, %v3019
      %v3106 = vadd.f32 %v2672, %v3021
      %v3107 = vadd.f32 %v2673, %v3024
      %v3108 = vadd.f32 %v2674, %v3026
      %v3109 = vadd.f32 %v2675, %v3029
      %v3110 = vadd.f32 %v2676, %v3031
      %v3111 = vadd.f32 %v2677, %v3034
      %v3112 = vadd.f32 %v2678, %v3036
      %v3113 = vadd.f32 %v2679, %v3039
      %v3114 = vadd.f32 %v2680, %v3041
      %v3115 = vadd.f32 %v2681, %v3044
      %v3116 = vadd.f32 %v2682, %v3046
      %v3117 = vadd.f32 %v2683, %v3049
      %v3118 = vadd.f32 %v2684, %v3051
      %v3119 = vadd.f32 %v2685, %v3054
      %v3120 = vadd.f32 %v2686, %v3056
      %v3121 = vadd.f32 %v2687, %v3059
      %v3122 = vadd.f32 %v2688, %v3061
      %v3123 = vadd.f32 %v2689, %v3064
      %v3124 = vadd.f32 %v2690, %v3066
      %v3125 = vadd.f32 %v2691, %v3069
      %v3126 = vadd.f32 %v2692, %v3071
      %v3127 = vadd.f32 %v2693, %v3074
      %v3128 = vadd.f32 %v2694, %v3076
      %v3129 = vadd.f32 %v2695, %v3079
      %v3130 = vadd.f32 %v2696, %v3081
      %v3131 = vld [vmem:[%s197 + $0x18] sm:$0xf]
      %v3132 = vld [vmem:[%s197 + $0x1c] sm:$0xf]
      %v3133 = vld [vmem:[%s197 + $0x20] sm:$0xf]
      %v3134 = vld [vmem:[%s197 + $0x24] sm:$0xf]
      %v3135 = vld [vmem:[%s197 + $0x28] sm:$0xf]
      %v3136 = vld [vmem:[%s197 + $0x2c] sm:$0xf]
      %v3137 = vld [vmem:[%s197 + $0x30] sm:$0xf]
      %v3138 = vld [vmem:[%s197 + $0x34] sm:$0xf]
      %v3139 = vld [vmem:[%s197 + $0x38] sm:$0xf]
      %v3140 = vld [vmem:[%s197 + $0x3c] sm:$0xf]
      %v3141 = vld [vmem:[%s197 + $0x40] sm:$0xf]
      %v3142 = vld [vmem:[%s197 + $0x44] sm:$0xf]
      %v3143 = vld [vmem:[%s197 + $0x48] sm:$0xf]
      %v3144 = vld [vmem:[%s197 + $0x4c] sm:$0xf]
      %v3145 = vld [vmem:[%s197 + $0x50] sm:$0xf]
      %v3146 = vld [vmem:[%s197 + $0x54] sm:$0xf]
      %v3147 = vld [vmem:[%s197 + $0x58] sm:$0xf]
      %v3148 = vld [vmem:[%s197 + $0x5c] sm:$0xf]
      %v3149 = vld [vmem:[%s197 + $0x60] sm:$0xf]
      %v3150 = vld [vmem:[%s197 + $0x64] sm:$0xf]
      %v3151 = vld [vmem:[%s197 + $0x68] sm:$0xf]
      %v3152 = vld [vmem:[%s197 + $0x6c] sm:$0xf]
      %v3153 = vld [vmem:[%s197 + $0x70] sm:$0xf]
      %v3154 = vld [vmem:[%s197 + $0x74] sm:$0xf]
      %v3155 = vld [vmem:[%s197 + $0x78] sm:$0xf]
      %v3156 = vld [vmem:[%s197 + $0x7c] sm:$0xf]
      %v3157 = vld [vmem:[%s197 + $0x80] sm:$0xf]
      %v3158 = vld [vmem:[%s197 + $0x84] sm:$0xf]
      %v3159 = vld [vmem:[%s197 + $0x88] sm:$0xf]
      %v3160 = vld [vmem:[%s197 + $0x8c] sm:$0xf]
      %v3161 = vld [vmem:[%s197 + $0x90] sm:$0xf]
      %v3162 = vld [vmem:[%s197 + $0x94] sm:$0xf]
      %v3163 = vld [vmem:[%s197 + $0x98] sm:$0xf]
      %v3164 = vld [vmem:[%s197 + $0x9c] sm:$0xf]
      %v3165 = vld [vmem:[%s197 + $0xa0] sm:$0xf]
      %v3166 = vld [vmem:[%s197 + $0xa4] sm:$0xf]
      %v3167 = vld [vmem:[%s197 + $0xa8] sm:$0xf]
      %v3168 = vld [vmem:[%s197 + $0xac] sm:$0xf]
      %v3169 = vld [vmem:[%s197 + $0xb0] sm:$0xf]
      %v3170 = vld [vmem:[%s197 + $0xb4] sm:$0xf]
      %v3171 = vld [vmem:[%s197 + $0xb8] sm:$0xf]
      %v3172 = vld [vmem:[%s197 + $0xbc] sm:$0xf]
      %v3173 = vld [vmem:[%s197 + $0xc0] sm:$0xf]
      %v3174 = vld [vmem:[%s197 + $0xc4] sm:$0xf]
      %v3175 = vld [vmem:[%s197 + $0xc8] sm:$0xf]
      %v3176 = vld [vmem:[%s197 + $0xcc] sm:$0xf]
      %v3177 = vld [vmem:[%s197 + $0xd0] sm:$0xf]
      %v3178 = vld [vmem:[%s197 + $0xd4] sm:$0xf]
      %v3179 = vld [vmem:[%s197 + $0xd8] sm:$0x1]
      %s3180 = scalar_lea.vmem %s1, 112
      %v3181 = vld [vmem:[%s3180] sm:$0xf]
      %v3182 = vld [vmem:[%s3180 + $0x4] sm:$0xf]
      %v3183 = vld [vmem:[%s3180 + $0x8] sm:$0xf]
      %v3184 = vld [vmem:[%s3180 + $0xc] sm:$0xf]
      %v3234 = vunpack.c.l.b16 %v3131
      %v3235 = vunpack.c.l.b16 %v3132
      %v3236 = vunpack.c.l.b16 %v3133
      %v3237 = vunpack.c.l.b16 %v3134
      %v3238 = vunpack.c.l.b16 %v3135
      %v3239 = vunpack.c.l.b16 %v3136
      %v3240 = vunpack.c.l.b16 %v3137
      %v3241 = vunpack.c.l.b16 %v3138
      %v3242 = vunpack.c.l.b16 %v3139
      %v3243 = vunpack.c.l.b16 %v3140
      %v3244 = vunpack.c.l.b16 %v3141
      %v3245 = vunpack.c.l.b16 %v3142
      %v3246 = vunpack.c.l.b16 %v3143
      %v3247 = vunpack.c.l.b16 %v3144
      %v3248 = vunpack.c.l.b16 %v3145
      %v3249 = vunpack.c.l.b16 %v3146
      %v3250 = vunpack.c.l.b16 %v3147
      %v3251 = vunpack.c.l.b16 %v3148
      %v3252 = vunpack.c.l.b16 %v3149
      %v3253 = vunpack.c.l.b16 %v3150
      %v3254 = vunpack.c.l.b16 %v3151
      %v3255 = vunpack.c.l.b16 %v3152
      %v3256 = vunpack.c.l.b16 %v3153
      %v3257 = vunpack.c.l.b16 %v3154
      %v3258 = vunpack.c.l.b16 %v3155
      %v3259 = vunpack.c.l.b16 %v3156
      %v3260 = vunpack.c.l.b16 %v3157
      %v3261 = vunpack.c.l.b16 %v3158
      %v3262 = vunpack.c.l.b16 %v3159
      %v3263 = vunpack.c.l.b16 %v3160
      %v3264 = vunpack.c.l.b16 %v3161
      %v3265 = vunpack.c.l.b16 %v3162
      %v3266 = vunpack.c.l.b16 %v3163
      %v3267 = vunpack.c.l.b16 %v3164
      %v3268 = vunpack.c.l.b16 %v3165
      %v3269 = vunpack.c.l.b16 %v3166
      %v3270 = vunpack.c.l.b16 %v3167
      %v3271 = vunpack.c.l.b16 %v3168
      %v3272 = vunpack.c.l.b16 %v3169
      %v3273 = vunpack.c.l.b16 %v3170
      %v3274 = vunpack.c.l.b16 %v3171
      %v3275 = vunpack.c.l.b16 %v3172
      %v3276 = vunpack.c.l.b16 %v3173
      %v3277 = vunpack.c.l.b16 %v3174
      %v3278 = vunpack.c.l.b16 %v3175
      %v3279 = vunpack.c.l.b16 %v3176
      %v3280 = vunpack.c.l.b16 %v3177
      %v3281 = vunpack.c.l.b16 %v3178
      %v3282 = vunpack.c.l.b16 %v3179
      %v3283 = vpack.c.b16 %v3235, %v3234
      %v3284 = vpack.c.b16 %v3237, %v3236
      %v3285 = vpack.c.b16 %v3239, %v3238
      %v3286 = vpack.c.b16 %v3241, %v3240
      %v3287 = vpack.c.b16 %v3243, %v3242
      %v3288 = vpack.c.b16 %v3245, %v3244
      %v3289 = vpack.c.b16 %v3247, %v3246
      %v3290 = vpack.c.b16 %v3249, %v3248
      %v3291 = vpack.c.b16 %v3251, %v3250
      %v3292 = vpack.c.b16 %v3253, %v3252
      %v3293 = vpack.c.b16 %v3255, %v3254
      %v3294 = vpack.c.b16 %v3257, %v3256
      %v3295 = vpack.c.b16 %v3259, %v3258
      %v3296 = vpack.c.b16 %v3261, %v3260
      %v3297 = vpack.c.b16 %v3263, %v3262
      %v3298 = vpack.c.b16 %v3265, %v3264
      %v3299 = vpack.c.b16 %v3267, %v3266
      %v3300 = vpack.c.b16 %v3269, %v3268
      %v3301 = vpack.c.b16 %v3271, %v3270
      %v3302 = vpack.c.b16 %v3273, %v3272
      %v3303 = vpack.c.b16 %v3275, %v3274
      %v3304 = vpack.c.b16 %v3277, %v3276
      %v3305 = vpack.c.b16 %v3279, %v3278
      %v3306 = vpack.c.b16 %v3281, %v3280
      %v3307 = vpack.c.b16 %v3282, %v3282
      %v3309 = vshrl.u32 %v3283, 16
      %v3311 = vshll.u32 %v3283, 16
      %v3313 = vrot.slane %v3311, 1
      %v3314 = vor.u32 %v3309, %v3313
      %v3316 = vshll.u32 %v3284, 16
      %v3318 = vrot.slane %v3316, 1
      %v3319 = vsel %vm390, %v3314, %v3318
      %v3320 = vshrl.u32 %v3284, 16
      %v3322 = vor.u32 %v3320, %v3318
      %v3324 = vshll.u32 %v3285, 16
      %v3326 = vrot.slane %v3324, 1
      %v3327 = vsel %vm390, %v3322, %v3326
      %v3328 = vshrl.u32 %v3285, 16
      %v3330 = vor.u32 %v3328, %v3326
      %v3332 = vshll.u32 %v3286, 16
      %v3334 = vrot.slane %v3332, 1
      %v3335 = vsel %vm390, %v3330, %v3334
      %v3336 = vshrl.u32 %v3286, 16
      %v3338 = vor.u32 %v3336, %v3334
      %v3340 = vshll.u32 %v3287, 16
      %v3342 = vrot.slane %v3340, 1
      %v3343 = vsel %vm390, %v3338, %v3342
      %v3344 = vshrl.u32 %v3287, 16
      %v3346 = vor.u32 %v3344, %v3342
      %v3348 = vshll.u32 %v3288, 16
      %v3350 = vrot.slane %v3348, 1
      %v3351 = vsel %vm390, %v3346, %v3350
      %v3352 = vshrl.u32 %v3288, 16
      %v3354 = vor.u32 %v3352, %v3350
      %v3356 = vshll.u32 %v3289, 16
      %v3358 = vrot.slane %v3356, 1
      %v3359 = vsel %vm390, %v3354, %v3358
      %v3360 = vshrl.u32 %v3289, 16
      %v3362 = vor.u32 %v3360, %v3358
      %v3364 = vshll.u32 %v3290, 16
      %v3366 = vrot.slane %v3364, 1
      %v3367 = vsel %vm390, %v3362, %v3366
      %v3368 = vshrl.u32 %v3290, 16
      %v3370 = vor.u32 %v3368, %v3366
      %v3372 = vshll.u32 %v3291, 16
      %v3374 = vrot.slane %v3372, 1
      %v3375 = vsel %vm390, %v3370, %v3374
      %v3376 = vshrl.u32 %v3291, 16
      %v3378 = vor.u32 %v3376, %v3374
      %v3380 = vshll.u32 %v3292, 16
      %v3382 = vrot.slane %v3380, 1
      %v3383 = vsel %vm390, %v3378, %v3382
      %v3384 = vshrl.u32 %v3292, 16
      %v3386 = vor.u32 %v3384, %v3382
      %v3388 = vshll.u32 %v3293, 16
      %v3390 = vrot.slane %v3388, 1
      %v3391 = vsel %vm390, %v3386, %v3390
      %v3392 = vshrl.u32 %v3293, 16
      %v3394 = vor.u32 %v3392, %v3390
      %v3396 = vshll.u32 %v3294, 16
      %v3398 = vrot.slane %v3396, 1
      %v3399 = vsel %vm390, %v3394, %v3398
      %v3400 = vshrl.u32 %v3294, 16
      %v3402 = vor.u32 %v3400, %v3398
      %v3404 = vshll.u32 %v3295, 16
      %v3406 = vrot.slane %v3404, 1
      %v3407 = vsel %vm390, %v3402, %v3406
      %v3408 = vshrl.u32 %v3295, 16
      %v3410 = vor.u32 %v3408, %v3406
      %v3412 = vshll.u32 %v3296, 16
      %v3414 = vrot.slane %v3412, 1
      %v3415 = vsel %vm390, %v3410, %v3414
      %v3416 = vshrl.u32 %v3296, 16
      %v3418 = vor.u32 %v3416, %v3414
      %v3420 = vshll.u32 %v3297, 16
      %v3422 = vrot.slane %v3420, 1
      %v3423 = vsel %vm390, %v3418, %v3422
      %v3424 = vshrl.u32 %v3297, 16
      %v3426 = vor.u32 %v3424, %v3422
      %v3428 = vshll.u32 %v3298, 16
      %v3430 = vrot.slane %v3428, 1
      %v3431 = vsel %vm390, %v3426, %v3430
      %v3432 = vshrl.u32 %v3298, 16
      %v3434 = vor.u32 %v3432, %v3430
      %v3436 = vshll.u32 %v3299, 16
      %v3438 = vrot.slane %v3436, 1
      %v3439 = vsel %vm390, %v3434, %v3438
      %v3440 = vshrl.u32 %v3299, 16
      %v3442 = vor.u32 %v3440, %v3438
      %v3444 = vshll.u32 %v3300, 16
      %v3446 = vrot.slane %v3444, 1
      %v3447 = vsel %vm390, %v3442, %v3446
      %v3448 = vshrl.u32 %v3300, 16
      %v3450 = vor.u32 %v3448, %v3446
      %v3452 = vshll.u32 %v3301, 16
      %v3454 = vrot.slane %v3452, 1
      %v3455 = vsel %vm390, %v3450, %v3454
      %v3456 = vshrl.u32 %v3301, 16
      %v3458 = vor.u32 %v3456, %v3454
      %v3460 = vshll.u32 %v3302, 16
      %v3462 = vrot.slane %v3460, 1
      %v3463 = vsel %vm390, %v3458, %v3462
      %v3464 = vshrl.u32 %v3302, 16
      %v3466 = vor.u32 %v3464, %v3462
      %v3468 = vshll.u32 %v3303, 16
      %v3470 = vrot.slane %v3468, 1
      %v3471 = vsel %vm390, %v3466, %v3470
      %v3472 = vshrl.u32 %v3303, 16
      %v3474 = vor.u32 %v3472, %v3470
      %v3476 = vshll.u32 %v3304, 16
      %v3478 = vrot.slane %v3476, 1
      %v3479 = vsel %vm390, %v3474, %v3478
      %v3480 = vshrl.u32 %v3304, 16
      %v3482 = vor.u32 %v3480, %v3478
      %v3484 = vshll.u32 %v3305, 16
      %v3486 = vrot.slane %v3484, 1
      %v3487 = vsel %vm390, %v3482, %v3486
      %v3488 = vshrl.u32 %v3305, 16
      %v3490 = vor.u32 %v3488, %v3486
      %v3492 = vshll.u32 %v3306, 16
      %v3494 = vrot.slane %v3492, 1
      %v3495 = vsel %vm390, %v3490, %v3494
      %v3496 = vshrl.u32 %v3306, 16
      %v3498 = vor.u32 %v3496, %v3494
      %v3500 = vshll.u32 %v3307, 16
      %v3502 = vrot.slane %v3500, 1
      %v3503 = vsel %vm390, %v3498, %v3502
      %v3508 = vunpack.c.l.b16 %v3181
      %v3509 = vunpack.c.l.b16 %v3182
      %v3510 = vunpack.c.l.b16 %v3183
      %v3511 = vunpack.c.l.b16 %v3184
      %v3512 = vpack.c.b16 %v3509, %v3508
      %v3513 = vpack.c.b16 %v3511, %v3510
      %v3517 = vsel %vm599, %v3319, 0
      %v3520 = vsel %vm599, %v3327, 0
      %v3523 = vsel %vm599, %v3335, 0
      %v3526 = vsel %vm599, %v3343, 0
      %v3529 = vsel %vm599, %v3351, 0
      %v3532 = vsel %vm599, %v3359, 0
      %v3535 = vsel %vm599, %v3367, 0
      %v3538 = vsel %vm599, %v3375, 0
      %v3541 = vsel %vm599, %v3383, 0
      %v3544 = vsel %vm599, %v3391, 0
      %v3547 = vsel %vm599, %v3399, 0
      %v3550 = vsel %vm599, %v3407, 0
      %v3553 = vsel %vm599, %v3415, 0
      %v3556 = vsel %vm599, %v3423, 0
      %v3559 = vsel %vm599, %v3431, 0
      %v3562 = vsel %vm599, %v3439, 0
      %v3565 = vsel %vm599, %v3447, 0
      %v3568 = vsel %vm599, %v3455, 0
      %v3571 = vsel %vm599, %v3463, 0
      %v3574 = vsel %vm599, %v3471, 0
      %v3577 = vsel %vm599, %v3479, 0
      %v3580 = vsel %vm599, %v3487, 0
      %v3583 = vsel %vm599, %v3495, 0
      %v3586 = vsel %vm599, %v3503, 0
      %3588 = vmatpush.bf16.msra.mxu0 0
      %3589 = vmatpush.bf16.msra.mxu0 0
      %3590 = vmatpush.bf16.msra.mxu0 0
      %3591 = vmatpush.bf16.msra.mxu0 0
      %3592 = vmatpush.bf16.msra.mxu0 0
      %3593 = vmatpush.bf16.msra.mxu0 0
      %3594 = vmatpush.bf16.msra.mxu0 %v3513
      %3595 = vmatpush.bf16.msra.mxu0 %v3512
      %3596 = vmatmul.bf16.gmra.mxu0 %v3517
      %v3597 = vpop.f32.mrf.mxu0
      %v3598 = vadd.f32 0.0, %v3597
      %v3599 = vpop.f32.mrf.mxu0
      %v3600 = vadd.f32 0.0, %v3599
      %3601 = vmatmul.bf16.gmra.mxu0 %v3520
      %v3602 = vpop.f32.mrf.mxu0
      %v3603 = vadd.f32 0.0, %v3602
      %v3604 = vpop.f32.mrf.mxu0
      %v3605 = vadd.f32 0.0, %v3604
      %3606 = vmatmul.bf16.gmra.mxu0 %v3523
      %v3607 = vpop.f32.mrf.mxu0
      %v3608 = vadd.f32 0.0, %v3607
      %v3609 = vpop.f32.mrf.mxu0
      %v3610 = vadd.f32 0.0, %v3609
      %3611 = vmatmul.bf16.gmra.mxu0 %v3526
      %v3612 = vpop.f32.mrf.mxu0
      %v3613 = vadd.f32 0.0, %v3612
      %v3614 = vpop.f32.mrf.mxu0
      %v3615 = vadd.f32 0.0, %v3614
      %3616 = vmatmul.bf16.gmra.mxu0 %v3529
      %v3617 = vpop.f32.mrf.mxu0
      %v3618 = vadd.f32 0.0, %v3617
      %v3619 = vpop.f32.mrf.mxu0
      %v3620 = vadd.f32 0.0, %v3619
      %3621 = vmatmul.bf16.gmra.mxu0 %v3532
      %v3622 = vpop.f32.mrf.mxu0
      %v3623 = vadd.f32 0.0, %v3622
      %v3624 = vpop.f32.mrf.mxu0
      %v3625 = vadd.f32 0.0, %v3624
      %3626 = vmatmul.bf16.gmra.mxu0 %v3535
      %v3627 = vpop.f32.mrf.mxu0
      %v3628 = vadd.f32 0.0, %v3627
      %v3629 = vpop.f32.mrf.mxu0
      %v3630 = vadd.f32 0.0, %v3629
      %3631 = vmatmul.bf16.gmra.mxu0 %v3538
      %v3632 = vpop.f32.mrf.mxu0
      %v3633 = vadd.f32 0.0, %v3632
      %v3634 = vpop.f32.mrf.mxu0
      %v3635 = vadd.f32 0.0, %v3634
      %3636 = vmatmul.bf16.gmra.mxu0 %v3541
      %v3637 = vpop.f32.mrf.mxu0
      %v3638 = vadd.f32 0.0, %v3637
      %v3639 = vpop.f32.mrf.mxu0
      %v3640 = vadd.f32 0.0, %v3639
      %3641 = vmatmul.bf16.gmra.mxu0 %v3544
      %v3642 = vpop.f32.mrf.mxu0
      %v3643 = vadd.f32 0.0, %v3642
      %v3644 = vpop.f32.mrf.mxu0
      %v3645 = vadd.f32 0.0, %v3644
      %3646 = vmatmul.bf16.gmra.mxu0 %v3547
      %v3647 = vpop.f32.mrf.mxu0
      %v3648 = vadd.f32 0.0, %v3647
      %v3649 = vpop.f32.mrf.mxu0
      %v3650 = vadd.f32 0.0, %v3649
      %3651 = vmatmul.bf16.gmra.mxu0 %v3550
      %v3652 = vpop.f32.mrf.mxu0
      %v3653 = vadd.f32 0.0, %v3652
      %v3654 = vpop.f32.mrf.mxu0
      %v3655 = vadd.f32 0.0, %v3654
      %3656 = vmatmul.bf16.gmra.mxu0 %v3553
      %v3657 = vpop.f32.mrf.mxu0
      %v3658 = vadd.f32 0.0, %v3657
      %v3659 = vpop.f32.mrf.mxu0
      %v3660 = vadd.f32 0.0, %v3659
      %3661 = vmatmul.bf16.gmra.mxu0 %v3556
      %v3662 = vpop.f32.mrf.mxu0
      %v3663 = vadd.f32 0.0, %v3662
      %v3664 = vpop.f32.mrf.mxu0
      %v3665 = vadd.f32 0.0, %v3664
      %3666 = vmatmul.bf16.gmra.mxu0 %v3559
      %v3667 = vpop.f32.mrf.mxu0
      %v3668 = vadd.f32 0.0, %v3667
      %v3669 = vpop.f32.mrf.mxu0
      %v3670 = vadd.f32 0.0, %v3669
      %3671 = vmatmul.bf16.gmra.mxu0 %v3562
      %v3672 = vpop.f32.mrf.mxu0
      %v3673 = vadd.f32 0.0, %v3672
      %v3674 = vpop.f32.mrf.mxu0
      %v3675 = vadd.f32 0.0, %v3674
      %3676 = vmatmul.bf16.gmra.mxu0 %v3565
      %v3677 = vpop.f32.mrf.mxu0
      %v3678 = vadd.f32 0.0, %v3677
      %v3679 = vpop.f32.mrf.mxu0
      %v3680 = vadd.f32 0.0, %v3679
      %3681 = vmatmul.bf16.gmra.mxu0 %v3568
      %v3682 = vpop.f32.mrf.mxu0
      %v3683 = vadd.f32 0.0, %v3682
      %v3684 = vpop.f32.mrf.mxu0
      %v3685 = vadd.f32 0.0, %v3684
      %3686 = vmatmul.bf16.gmra.mxu0 %v3571
      %v3687 = vpop.f32.mrf.mxu0
      %v3688 = vadd.f32 0.0, %v3687
      %v3689 = vpop.f32.mrf.mxu0
      %v3690 = vadd.f32 0.0, %v3689
      %3691 = vmatmul.bf16.gmra.mxu0 %v3574
      %v3692 = vpop.f32.mrf.mxu0
      %v3693 = vadd.f32 0.0, %v3692
      %v3694 = vpop.f32.mrf.mxu0
      %v3695 = vadd.f32 0.0, %v3694
      %3696 = vmatmul.bf16.gmra.mxu0 %v3577
      %v3697 = vpop.f32.mrf.mxu0
      %v3698 = vadd.f32 0.0, %v3697
      %v3699 = vpop.f32.mrf.mxu0
      %v3700 = vadd.f32 0.0, %v3699
      %3701 = vmatmul.bf16.gmra.mxu0 %v3580
      %v3702 = vpop.f32.mrf.mxu0
      %v3703 = vadd.f32 0.0, %v3702
      %v3704 = vpop.f32.mrf.mxu0
      %v3705 = vadd.f32 0.0, %v3704
      %3706 = vmatmul.bf16.gmra.mxu0 %v3583
      %v3707 = vpop.f32.mrf.mxu0
      %v3708 = vadd.f32 0.0, %v3707
      %v3709 = vpop.f32.mrf.mxu0
      %v3710 = vadd.f32 0.0, %v3709
      %3711 = vmatmul.bf16.gmra.mxu0 %v3586
      %v3712 = vpop.f32.mrf.mxu0
      %v3713 = vadd.f32 0.0, %v3712
      %v3714 = vpop.f32.mrf.mxu0
      %v3715 = vadd.f32 0.0, %v3714
      %3716 = vdwg.mxu0
      %v3717 = vadd.f32 %v3083, %v3598
      %v3718 = vadd.f32 %v3084, %v3600
      %v3719 = vadd.f32 %v3085, %v3603
      %v3720 = vadd.f32 %v3086, %v3605
      %v3721 = vadd.f32 %v3087, %v3608
      %v3722 = vadd.f32 %v3088, %v3610
      %v3723 = vadd.f32 %v3089, %v3613
      %v3724 = vadd.f32 %v3090, %v3615
      %v3725 = vadd.f32 %v3091, %v3618
      %v3726 = vadd.f32 %v3092, %v3620
      %v3727 = vadd.f32 %v3093, %v3623
      %v3728 = vadd.f32 %v3094, %v3625
      %v3729 = vadd.f32 %v3095, %v3628
      %v3730 = vadd.f32 %v3096, %v3630
      %v3731 = vadd.f32 %v3097, %v3633
      %v3732 = vadd.f32 %v3098, %v3635
      %v3733 = vadd.f32 %v3099, %v3638
      %v3734 = vadd.f32 %v3100, %v3640
      %v3735 = vadd.f32 %v3101, %v3643
      %v3736 = vadd.f32 %v3102, %v3645
      %v3737 = vadd.f32 %v3103, %v3648
      %v3738 = vadd.f32 %v3104, %v3650
      %v3739 = vadd.f32 %v3105, %v3653
      %v3740 = vadd.f32 %v3106, %v3655
      %v3741 = vadd.f32 %v3107, %v3658
      %v3742 = vadd.f32 %v3108, %v3660
      %v3743 = vadd.f32 %v3109, %v3663
      %v3744 = vadd.f32 %v3110, %v3665
      %v3745 = vadd.f32 %v3111, %v3668
      %v3746 = vadd.f32 %v3112, %v3670
      %v3747 = vadd.f32 %v3113, %v3673
      %v3748 = vadd.f32 %v3114, %v3675
      %v3749 = vadd.f32 %v3115, %v3678
      %v3750 = vadd.f32 %v3116, %v3680
      %v3751 = vadd.f32 %v3117, %v3683
      %v3752 = vadd.f32 %v3118, %v3685
      %v3753 = vadd.f32 %v3119, %v3688
      %v3754 = vadd.f32 %v3120, %v3690
      %v3755 = vadd.f32 %v3121, %v3693
      %v3756 = vadd.f32 %v3122, %v3695
      %v3757 = vadd.f32 %v3123, %v3698
      %v3758 = vadd.f32 %v3124, %v3700
      %v3759 = vadd.f32 %v3125, %v3703
      %v3760 = vadd.f32 %v3126, %v3705
      %v3761 = vadd.f32 %v3127, %v3708
      %v3762 = vadd.f32 %v3128, %v3710
      %v3763 = vadd.f32 %v3129, %v3713
      %v3764 = vadd.f32 %v3130, %v3715
      %v3765 = vld [vmem:[%s197 + $0x18] sm:$0xe]
      %s3766 = scalar_lea.vmem %s1, 128
      %v3767 = vld [vmem:[%s3766] sm:$0xf]
      %v3768 = vld [vmem:[%s3766 + $0x4] sm:$0xf]
      %v3769 = vld [vmem:[%s3766 + $0x8] sm:$0xf]
      %v3770 = vld [vmem:[%s3766 + $0xc] sm:$0xf]
      %v3772 = vunpack.c.l.b16 %v3765
      %v3773 = vpack.c.b16 %v3235, %v3772
      %v3774 = vrot.slane %v3773, 1
      %v3775 = vrot.slane %v3284, 1
      %v3776 = vsel %vm999, %v3774, %v3775
      %v3777 = vrot.slane %v3285, 1
      %v3778 = vsel %vm999, %v3775, %v3777
      %v3779 = vrot.slane %v3286, 1
      %v3780 = vsel %vm999, %v3777, %v3779
      %v3781 = vrot.slane %v3287, 1
      %v3782 = vsel %vm999, %v3779, %v3781
      %v3783 = vrot.slane %v3288, 1
      %v3784 = vsel %vm999, %v3781, %v3783
      %v3785 = vrot.slane %v3289, 1
      %v3786 = vsel %vm999, %v3783, %v3785
      %v3787 = vrot.slane %v3290, 1
      %v3788 = vsel %vm999, %v3785, %v3787
      %v3789 = vrot.slane %v3291, 1
      %v3790 = vsel %vm999, %v3787, %v3789
      %v3791 = vrot.slane %v3292, 1
      %v3792 = vsel %vm999, %v3789, %v3791
      %v3793 = vrot.slane %v3293, 1
      %v3794 = vsel %vm999, %v3791, %v3793
      %v3795 = vrot.slane %v3294, 1
      %v3796 = vsel %vm999, %v3793, %v3795
      %v3797 = vrot.slane %v3295, 1
      %v3798 = vsel %vm999, %v3795, %v3797
      %v3799 = vrot.slane %v3296, 1
      %v3800 = vsel %vm999, %v3797, %v3799
      %v3801 = vrot.slane %v3297, 1
      %v3802 = vsel %vm999, %v3799, %v3801
      %v3803 = vrot.slane %v3298, 1
      %v3804 = vsel %vm999, %v3801, %v3803
      %v3805 = vrot.slane %v3299, 1
      %v3806 = vsel %vm999, %v3803, %v3805
      %v3807 = vrot.slane %v3300, 1
      %v3808 = vsel %vm999, %v3805, %v3807
      %v3809 = vrot.slane %v3301, 1
      %v3810 = vsel %vm999, %v3807, %v3809
      %v3811 = vrot.slane %v3302, 1
      %v3812 = vsel %vm999, %v3809, %v3811
      %v3813 = vrot.slane %v3303, 1
      %v3814 = vsel %vm999, %v3811, %v3813
      %v3815 = vrot.slane %v3304, 1
      %v3816 = vsel %vm999, %v3813, %v3815
      %v3817 = vrot.slane %v3305, 1
      %v3818 = vsel %vm999, %v3815, %v3817
      %v3819 = vrot.slane %v3306, 1
      %v3820 = vsel %vm999, %v3817, %v3819
      %v3821 = vrot.slane %v3307, 1
      %v3822 = vsel %vm999, %v3819, %v3821
      %v3827 = vunpack.c.l.b16 %v3767
      %v3828 = vunpack.c.l.b16 %v3768
      %v3829 = vunpack.c.l.b16 %v3769
      %v3830 = vunpack.c.l.b16 %v3770
      %v3831 = vpack.c.b16 %v3828, %v3827
      %v3832 = vpack.c.b16 %v3830, %v3829
      %v3836 = vsel %vm599, %v3776, 0
      %v3839 = vsel %vm599, %v3778, 0
      %v3842 = vsel %vm599, %v3780, 0
      %v3845 = vsel %vm599, %v3782, 0
      %v3848 = vsel %vm599, %v3784, 0
      %v3851 = vsel %vm599, %v3786, 0
      %v3854 = vsel %vm599, %v3788, 0
      %v3857 = vsel %vm599, %v3790, 0
      %v3860 = vsel %vm599, %v3792, 0
      %v3863 = vsel %vm599, %v3794, 0
      %v3866 = vsel %vm599, %v3796, 0
      %v3869 = vsel %vm599, %v3798, 0
      %v3872 = vsel %vm599, %v3800, 0
      %v3875 = vsel %vm599, %v3802, 0
      %v3878 = vsel %vm599, %v3804, 0
      %v3881 = vsel %vm599, %v3806, 0
      %v3884 = vsel %vm599, %v3808, 0
      %v3887 = vsel %vm599, %v3810, 0
      %v3890 = vsel %vm599, %v3812, 0
      %v3893 = vsel %vm599, %v3814, 0
      %v3896 = vsel %vm599, %v3816, 0
      %v3899 = vsel %vm599, %v3818, 0
      %v3902 = vsel %vm599, %v3820, 0
      %v3905 = vsel %vm599, %v3822, 0
      %3907 = vmatpush.bf16.msra.mxu0 0
      %3908 = vmatpush.bf16.msra.mxu0 0
      %3909 = vmatpush.bf16.msra.mxu0 0
      %3910 = vmatpush.bf16.msra.mxu0 0
      %3911 = vmatpush.bf16.msra.mxu0 0
      %3912 = vmatpush.bf16.msra.mxu0 0
      %3913 = vmatpush.bf16.msra.mxu0 %v3832
      %3914 = vmatpush.bf16.msra.mxu0 %v3831
      %3915 = vmatmul.bf16.gmra.mxu0 %v3836
      %v3916 = vpop.f32.mrf.mxu0
      %v3917 = vadd.f32 0.0, %v3916
      %v3918 = vpop.f32.mrf.mxu0
      %v3919 = vadd.f32 0.0, %v3918
      %3920 = vmatmul.bf16.gmra.mxu0 %v3839
      %v3921 = vpop.f32.mrf.mxu0
      %v3922 = vadd.f32 0.0, %v3921
      %v3923 = vpop.f32.mrf.mxu0
      %v3924 = vadd.f32 0.0, %v3923
      %3925 = vmatmul.bf16.gmra.mxu0 %v3842
      %v3926 = vpop.f32.mrf.mxu0
      %v3927 = vadd.f32 0.0, %v3926
      %v3928 = vpop.f32.mrf.mxu0
      %v3929 = vadd.f32 0.0, %v3928
      %3930 = vmatmul.bf16.gmra.mxu0 %v3845
      %v3931 = vpop.f32.mrf.mxu0
      %v3932 = vadd.f32 0.0, %v3931
      %v3933 = vpop.f32.mrf.mxu0
      %v3934 = vadd.f32 0.0, %v3933
      %3935 = vmatmul.bf16.gmra.mxu0 %v3848
      %v3936 = vpop.f32.mrf.mxu0
      %v3937 = vadd.f32 0.0, %v3936
      %v3938 = vpop.f32.mrf.mxu0
      %v3939 = vadd.f32 0.0, %v3938
      %3940 = vmatmul.bf16.gmra.mxu0 %v3851
      %v3941 = vpop.f32.mrf.mxu0
      %v3942 = vadd.f32 0.0, %v3941
      %v3943 = vpop.f32.mrf.mxu0
      %v3944 = vadd.f32 0.0, %v3943
      %3945 = vmatmul.bf16.gmra.mxu0 %v3854
      %v3946 = vpop.f32.mrf.mxu0
      %v3947 = vadd.f32 0.0, %v3946
      %v3948 = vpop.f32.mrf.mxu0
      %v3949 = vadd.f32 0.0, %v3948
      %3950 = vmatmul.bf16.gmra.mxu0 %v3857
      %v3951 = vpop.f32.mrf.mxu0
      %v3952 = vadd.f32 0.0, %v3951
      %v3953 = vpop.f32.mrf.mxu0
      %v3954 = vadd.f32 0.0, %v3953
      %3955 = vmatmul.bf16.gmra.mxu0 %v3860
      %v3956 = vpop.f32.mrf.mxu0
      %v3957 = vadd.f32 0.0, %v3956
      %v3958 = vpop.f32.mrf.mxu0
      %v3959 = vadd.f32 0.0, %v3958
      %3960 = vmatmul.bf16.gmra.mxu0 %v3863
      %v3961 = vpop.f32.mrf.mxu0
      %v3962 = vadd.f32 0.0, %v3961
      %v3963 = vpop.f32.mrf.mxu0
      %v3964 = vadd.f32 0.0, %v3963
      %3965 = vmatmul.bf16.gmra.mxu0 %v3866
      %v3966 = vpop.f32.mrf.mxu0
      %v3967 = vadd.f32 0.0, %v3966
      %v3968 = vpop.f32.mrf.mxu0
      %v3969 = vadd.f32 0.0, %v3968
      %3970 = vmatmul.bf16.gmra.mxu0 %v3869
      %v3971 = vpop.f32.mrf.mxu0
      %v3972 = vadd.f32 0.0, %v3971
      %v3973 = vpop.f32.mrf.mxu0
      %v3974 = vadd.f32 0.0, %v3973
      %3975 = vmatmul.bf16.gmra.mxu0 %v3872
      %v3976 = vpop.f32.mrf.mxu0
      %v3977 = vadd.f32 0.0, %v3976
      %v3978 = vpop.f32.mrf.mxu0
      %v3979 = vadd.f32 0.0, %v3978
      %3980 = vmatmul.bf16.gmra.mxu0 %v3875
      %v3981 = vpop.f32.mrf.mxu0
      %v3982 = vadd.f32 0.0, %v3981
      %v3983 = vpop.f32.mrf.mxu0
      %v3984 = vadd.f32 0.0, %v3983
      %3985 = vmatmul.bf16.gmra.mxu0 %v3878
      %v3986 = vpop.f32.mrf.mxu0
      %v3987 = vadd.f32 0.0, %v3986
      %v3988 = vpop.f32.mrf.mxu0
      %v3989 = vadd.f32 0.0, %v3988
      %3990 = vmatmul.bf16.gmra.mxu0 %v3881
      %v3991 = vpop.f32.mrf.mxu0
      %v3992 = vadd.f32 0.0, %v3991
      %v3993 = vpop.f32.mrf.mxu0
      %v3994 = vadd.f32 0.0, %v3993
      %3995 = vmatmul.bf16.gmra.mxu0 %v3884
      %v3996 = vpop.f32.mrf.mxu0
      %v3997 = vadd.f32 0.0, %v3996
      %v3998 = vpop.f32.mrf.mxu0
      %v3999 = vadd.f32 0.0, %v3998
      %4000 = vmatmul.bf16.gmra.mxu0 %v3887
      %v4001 = vpop.f32.mrf.mxu0
      %v4002 = vadd.f32 0.0, %v4001
      %v4003 = vpop.f32.mrf.mxu0
      %v4004 = vadd.f32 0.0, %v4003
      %4005 = vmatmul.bf16.gmra.mxu0 %v3890
      %v4006 = vpop.f32.mrf.mxu0
      %v4007 = vadd.f32 0.0, %v4006
      %v4008 = vpop.f32.mrf.mxu0
      %v4009 = vadd.f32 0.0, %v4008
      %4010 = vmatmul.bf16.gmra.mxu0 %v3893
      %v4011 = vpop.f32.mrf.mxu0
      %v4012 = vadd.f32 0.0, %v4011
      %v4013 = vpop.f32.mrf.mxu0
      %v4014 = vadd.f32 0.0, %v4013
      %4015 = vmatmul.bf16.gmra.mxu0 %v3896
      %v4016 = vpop.f32.mrf.mxu0
      %v4017 = vadd.f32 0.0, %v4016
      %v4018 = vpop.f32.mrf.mxu0
      %v4019 = vadd.f32 0.0, %v4018
      %4020 = vmatmul.bf16.gmra.mxu0 %v3899
      %v4021 = vpop.f32.mrf.mxu0
      %v4022 = vadd.f32 0.0, %v4021
      %v4023 = vpop.f32.mrf.mxu0
      %v4024 = vadd.f32 0.0, %v4023
      %4025 = vmatmul.bf16.gmra.mxu0 %v3902
      %v4026 = vpop.f32.mrf.mxu0
      %v4027 = vadd.f32 0.0, %v4026
      %v4028 = vpop.f32.mrf.mxu0
      %v4029 = vadd.f32 0.0, %v4028
      %4030 = vmatmul.bf16.gmra.mxu0 %v3905
      %v4031 = vpop.f32.mrf.mxu0
      %v4032 = vadd.f32 0.0, %v4031
      %v4033 = vpop.f32.mrf.mxu0
      %v4034 = vadd.f32 0.0, %v4033
      %4035 = vdwg.mxu0
      %v4036 = vadd.f32 %v3717, %v3917
      %v4037 = vadd.f32 %v3718, %v3919
      %v4038 = vadd.f32 %v3719, %v3922
      %v4039 = vadd.f32 %v3720, %v3924
      %v4040 = vadd.f32 %v3721, %v3927
      %v4041 = vadd.f32 %v3722, %v3929
      %v4042 = vadd.f32 %v3723, %v3932
      %v4043 = vadd.f32 %v3724, %v3934
      %v4044 = vadd.f32 %v3725, %v3937
      %v4045 = vadd.f32 %v3726, %v3939
      %v4046 = vadd.f32 %v3727, %v3942
      %v4047 = vadd.f32 %v3728, %v3944
      %v4048 = vadd.f32 %v3729, %v3947
      %v4049 = vadd.f32 %v3730, %v3949
      %v4050 = vadd.f32 %v3731, %v3952
      %v4051 = vadd.f32 %v3732, %v3954
      %v4052 = vadd.f32 %v3733, %v3957
      %v4053 = vadd.f32 %v3734, %v3959
      %v4054 = vadd.f32 %v3735, %v3962
      %v4055 = vadd.f32 %v3736, %v3964
      %v4056 = vadd.f32 %v3737, %v3967
      %v4057 = vadd.f32 %v3738, %v3969
      %v4058 = vadd.f32 %v3739, %v3972
      %v4059 = vadd.f32 %v3740, %v3974
      %v4060 = vadd.f32 %v3741, %v3977
      %v4061 = vadd.f32 %v3742, %v3979
      %v4062 = vadd.f32 %v3743, %v3982
      %v4063 = vadd.f32 %v3744, %v3984
      %v4064 = vadd.f32 %v3745, %v3987
      %v4065 = vadd.f32 %v3746, %v3989
      %v4066 = vadd.f32 %v3747, %v3992
      %v4067 = vadd.f32 %v3748, %v3994
      %v4068 = vadd.f32 %v3749, %v3997
      %v4069 = vadd.f32 %v3750, %v3999
      %v4070 = vadd.f32 %v3751, %v4002
      %v4071 = vadd.f32 %v3752, %v4004
      %v4072 = vadd.f32 %v3753, %v4007
      %v4073 = vadd.f32 %v3754, %v4009
      %v4074 = vadd.f32 %v3755, %v4012
      %v4075 = vadd.f32 %v3756, %v4014
      %v4076 = vadd.f32 %v3757, %v4017
      %v4077 = vadd.f32 %v3758, %v4019
      %v4078 = vadd.f32 %v3759, %v4022
      %v4079 = vadd.f32 %v3760, %v4024
      %v4080 = vadd.f32 %v3761, %v4027
      %v4081 = vadd.f32 %v3762, %v4029
      %v4082 = vadd.f32 %v3763, %v4032
      %v4083 = vadd.f32 %v3764, %v4034
      %v4084 = vld [vmem:[%s2] sm:$0x1]
      %v4086 = vperm.slane %v4084, 0
      %v4088 = vadd.f32 %v4036, %v4086
      %v4089 = vadd.f32 %v4037, %v4086
      %v4090 = vadd.f32 %v4038, %v4086
      %v4091 = vadd.f32 %v4039, %v4086
      %v4092 = vadd.f32 %v4040, %v4086
      %v4093 = vadd.f32 %v4041, %v4086
      %v4094 = vadd.f32 %v4042, %v4086
      %v4095 = vadd.f32 %v4043, %v4086
      %v4096 = vadd.f32 %v4044, %v4086
      %v4097 = vadd.f32 %v4045, %v4086
      %v4098 = vadd.f32 %v4046, %v4086
      %v4099 = vadd.f32 %v4047, %v4086
      %v4100 = vadd.f32 %v4048, %v4086
      %v4101 = vadd.f32 %v4049, %v4086
      %v4102 = vadd.f32 %v4050, %v4086
      %v4103 = vadd.f32 %v4051, %v4086
      %v4104 = vadd.f32 %v4052, %v4086
      %v4105 = vadd.f32 %v4053, %v4086
      %v4106 = vadd.f32 %v4054, %v4086
      %v4107 = vadd.f32 %v4055, %v4086
      %v4108 = vadd.f32 %v4056, %v4086
      %v4109 = vadd.f32 %v4057, %v4086
      %v4110 = vadd.f32 %v4058, %v4086
      %v4111 = vadd.f32 %v4059, %v4086
      %v4112 = vadd.f32 %v4060, %v4086
      %v4113 = vadd.f32 %v4061, %v4086
      %v4114 = vadd.f32 %v4062, %v4086
      %v4115 = vadd.f32 %v4063, %v4086
      %v4116 = vadd.f32 %v4064, %v4086
      %v4117 = vadd.f32 %v4065, %v4086
      %v4118 = vadd.f32 %v4066, %v4086
      %v4119 = vadd.f32 %v4067, %v4086
      %v4120 = vadd.f32 %v4068, %v4086
      %v4121 = vadd.f32 %v4069, %v4086
      %v4122 = vadd.f32 %v4070, %v4086
      %v4123 = vadd.f32 %v4071, %v4086
      %v4124 = vadd.f32 %v4072, %v4086
      %v4125 = vadd.f32 %v4073, %v4086
      %v4126 = vadd.f32 %v4074, %v4086
      %v4127 = vadd.f32 %v4075, %v4086
      %v4128 = vadd.f32 %v4076, %v4086
      %v4129 = vadd.f32 %v4077, %v4086
      %v4130 = vadd.f32 %v4078, %v4086
      %v4131 = vadd.f32 %v4079, %v4086
      %v4132 = vadd.f32 %v4080, %v4086
      %v4133 = vadd.f32 %v4081, %v4086
      %v4134 = vadd.f32 %v4082, %v4086
      %v4135 = vadd.f32 %v4083, %v4086
      %v4136 = vtanh.pop %v4088
      %v4137 = vtanh.pop %v4089
      %v4138 = vtanh.pop %v4090
      %v4139 = vtanh.pop %v4091
      %v4140 = vtanh.pop %v4092
      %v4141 = vtanh.pop %v4093
      %v4142 = vtanh.pop %v4094
      %v4143 = vtanh.pop %v4095
      %v4144 = vtanh.pop %v4096
      %v4145 = vtanh.pop %v4097
      %v4146 = vtanh.pop %v4098
      %v4147 = vtanh.pop %v4099
      %v4148 = vtanh.pop %v4100
      %v4149 = vtanh.pop %v4101
      %v4150 = vtanh.pop %v4102
      %v4151 = vtanh.pop %v4103
      %v4152 = vtanh.pop %v4104
      %v4153 = vtanh.pop %v4105
      %v4154 = vtanh.pop %v4106
      %v4155 = vtanh.pop %v4107
      %v4156 = vtanh.pop %v4108
      %v4157 = vtanh.pop %v4109
      %v4158 = vtanh.pop %v4110
      %v4159 = vtanh.pop %v4111
      %v4160 = vtanh.pop %v4112
      %v4161 = vtanh.pop %v4113
      %v4162 = vtanh.pop %v4114
      %v4163 = vtanh.pop %v4115
      %v4164 = vtanh.pop %v4116
      %v4165 = vtanh.pop %v4117
      %v4166 = vtanh.pop %v4118
      %v4167 = vtanh.pop %v4119
      %v4168 = vtanh.pop %v4120
      %v4169 = vtanh.pop %v4121
      %v4170 = vtanh.pop %v4122
      %v4171 = vtanh.pop %v4123
      %v4172 = vtanh.pop %v4124
      %v4173 = vtanh.pop %v4125
      %v4174 = vtanh.pop %v4126
      %v4175 = vtanh.pop %v4127
      %v4176 = vtanh.pop %v4128
      %v4177 = vtanh.pop %v4129
      %v4178 = vtanh.pop %v4130
      %v4179 = vtanh.pop %v4131
      %v4180 = vtanh.pop %v4132
      %v4181 = vtanh.pop %v4133
      %v4182 = vtanh.pop %v4134
      %v4183 = vtanh.pop %v4135
      %4184 = vst [vmem:[%s206] sm:$0xff] %v4136
      %4185 = vst [vmem:[%s206 + $0x8] sm:$0xff] %v4137
      %4186 = vst [vmem:[%s206 + $0x10] sm:$0xff] %v4138
      %4187 = vst [vmem:[%s206 + $0x18] sm:$0xff] %v4139
      %4188 = vst [vmem:[%s206 + $0x20] sm:$0xff] %v4140
      %4189 = vst [vmem:[%s206 + $0x28] sm:$0xff] %v4141
      %4190 = vst [vmem:[%s206 + $0x30] sm:$0xff] %v4142
      %4191 = vst [vmem:[%s206 + $0x38] sm:$0xff] %v4143
      %4192 = vst [vmem:[%s206 + $0x40] sm:$0xff] %v4144
      %4193 = vst [vmem:[%s206 + $0x48] sm:$0xff] %v4145
      %4194 = vst [vmem:[%s206 + $0x50] sm:$0xff] %v4146
      %4195 = vst [vmem:[%s206 + $0x58] sm:$0xff] %v4147
      %4196 = vst [vmem:[%s206 + $0x60] sm:$0xff] %v4148
      %4197 = vst [vmem:[%s206 + $0x68] sm:$0xff] %v4149
      %4198 = vst [vmem:[%s206 + $0x70] sm:$0xff] %v4150
      %4199 = vst [vmem:[%s206 + $0x78] sm:$0xff] %v4151
      %4200 = vst [vmem:[%s206 + $0x80] sm:$0xff] %v4152
      %4201 = vst [vmem:[%s206 + $0x88] sm:$0xff] %v4153
      %4202 = vst [vmem:[%s206 + $0x90] sm:$0xff] %v4154
      %4203 = vst [vmem:[%s206 + $0x98] sm:$0xff] %v4155
      %4204 = vst [vmem:[%s206 + $0xa0] sm:$0xff] %v4156
      %4205 = vst [vmem:[%s206 + $0xa8] sm:$0xff] %v4157
      %4206 = vst [vmem:[%s206 + $0xb0] sm:$0xff] %v4158
      %4207 = vst [vmem:[%s206 + $0xb8] sm:$0xff] %v4159
      %4208 = vst [vmem:[%s206 + $0xc0] sm:$0xff] %v4160
      %4209 = vst [vmem:[%s206 + $0xc8] sm:$0xff] %v4161
      %4210 = vst [vmem:[%s206 + $0xd0] sm:$0xff] %v4162
      %4211 = vst [vmem:[%s206 + $0xd8] sm:$0xff] %v4163
      %4212 = vst [vmem:[%s206 + $0xe0] sm:$0xff] %v4164
      %4213 = vst [vmem:[%s206 + $0xe8] sm:$0xff] %v4165
      %4214 = vst [vmem:[%s206 + $0xf0] sm:$0xff] %v4166
      %4215 = vst [vmem:[%s206 + $0xf8] sm:$0xff] %v4167
      %4216 = vst [vmem:[%s206 + $0x100] sm:$0xff] %v4168
      %4217 = vst [vmem:[%s206 + $0x108] sm:$0xff] %v4169
      %4218 = vst [vmem:[%s206 + $0x110] sm:$0xff] %v4170
      %4219 = vst [vmem:[%s206 + $0x118] sm:$0xff] %v4171
      %4220 = vst [vmem:[%s206 + $0x120] sm:$0xff] %v4172
      %4221 = vst [vmem:[%s206 + $0x128] sm:$0xff] %v4173
      %4222 = vst [vmem:[%s206 + $0x130] sm:$0xff] %v4174
      %4223 = vst [vmem:[%s206 + $0x138] sm:$0xff] %v4175
      %4224 = vst [vmem:[%s206 + $0x140] sm:$0xff] %v4176
      %4225 = vst [vmem:[%s206 + $0x148] sm:$0xff] %v4177
      %4226 = vst [vmem:[%s206 + $0x150] sm:$0xff] %v4178
      %4227 = vst [vmem:[%s206 + $0x158] sm:$0xff] %v4179
      %4228 = vst [vmem:[%s206 + $0x160] sm:$0xff] %v4180
      %4229 = vst [vmem:[%s206 + $0x168] sm:$0xff] %v4181
      %4230 = vst [vmem:[%s206 + $0x170] sm:$0xff] %v4182
      %4231 = vst [vmem:[%s206 + $0x178] sm:$0xff] %v4183
      %s4232 = smul.u32 48, %s19
      %p4233 = scmp.lt.s32.totalorder %s18, 1
      %s4234 = scalar_select %p4233, %s18, 1
      %p4235 = scmp.lt.s32.totalorder %s4232, 47
      %s4236 = scalar_select %p4235, %s4232, 47
      %s4237 = smul.addr %s4234, 48
      %s4238 = sadd.s32 %s4236, %s4237
      %s4239 = smul.addr %s4238, 8
      %s4240 = scalar_lea.vmem %s3, %s4239
      // Predicated region
      $region33: #{unet_forward.27} parent=31 // pred_check
        %p4241 = pneg %p116
      $region34: #{unet_forward.27} parent=31 // pred_check_branch
        %4243 = sbr.rel (%p4241) target = $region36
      $region35: #{unet_forward.27} parent=31 // pred_region
        %s4244 = smul.u32 48, %s19
      $region36: #{unet_forward.27} parent=31 // pred_fallthru
        _
    $region32: #{unet_forward.27} parent=5 // pred_fallthru
      _
    %p4245 = scmp.le.s32.totalorder 2, %s9
    // Predicated region
    $region37: #{unet_forward.27} parent=5 // pred_check
      %p4246 = pneg %p4245
    $region38: #{unet_forward.27} parent=5 // pred_check_branch
      %4248 = sbr.rel (%p4246) target = $region40
    $region39: #{unet_forward.27} parent=5 // pred_region
      %s4249 = ssub.s32 %s9, 2
      // Predicated region
      $region41: #{unet_forward.27} parent=39 // pred_check
        %p4250 = pneg %p122
      $region42: #{unet_forward.27} parent=39 // pred_check_branch
        %4252 = sbr.rel (%p4250) target = $region44
      $region43: #{unet_forward.27} parent=39 // pred_region
        %s4253 = smul.u32 48, %s21
        %p4254 = scmp.lt.s32.totalorder %s20, 1
        %s4255 = scalar_select %p4254, %s20, 1
        %p4256 = scmp.lt.s32.totalorder %s4253, 47
        %s4257 = scalar_select %p4256, %s4253, 47
        %s4258 = smul.addr %s4255, 48
        %s4259 = sadd.s32 %s4257, %s4258
        %s4260 = smul.addr %s4259, 8
        %s4261 = scalar_lea.vmem %s3, %s4260
      $region44: #{unet_forward.27} parent=39 // pred_fallthru
        _
    $region40: #{unet_forward.27} parent=5 // pred_fallthru
      _
  $region6: #{unet_forward.27} parent=0 // loop_footer
    %s13 = sadd.s32 1, %s9
  $region7: #{unet_forward.27} parent=0 // loop_footer_branch
    %8 = sbr.rel target = $region3
  $region8: #{unet_forward.27} parent=0 // loop_exit
    _

</llo_original>
